<compile_context>
chip_gen: v7x
topology: tpu7x:2x2x1
jax: 0.10.0
libtpu: 0.0.40
codegen_flags: <defaults>
</compile_context>

<pallas_src>
import functools

import jax
import jax.numpy as jnp
from jax import lax
from jax.experimental import pallas as pl
from jax.experimental.pallas import tpu as pltpu

VMEM_LIMIT = 40 * 1024 * 1024


# ---------------------------------------------------------------------------
# Pallas kernels
# ---------------------------------------------------------------------------
def _mm_bias_relu_kernel(x_ref, w_ref, b_ref, o_ref):
    """o = relu(x @ w + b); x:(tm,K) w:(K,N) b:(1,N) o:(tm,N)."""
    acc = jnp.dot(x_ref[...], w_ref[...], preferred_element_type=jnp.float32)
    o_ref[...] = jnp.maximum(acc + b_ref[...], 0.0)


def conv_mm_relu(x_cols, w_mat, b_row, *, grid_m=2):
    """Fused (M,K)x(K,N)+bias+relu for the conv stages (im2col form).
    2-way parallel grid over M: shards across both v7x TensorCores, costs one
    extra (cheap) step on single-TC v5e/v6e."""
    M, K = x_cols.shape
    _, N = w_mat.shape
    if M % grid_m != 0 or (M // grid_m) % 8 != 0:
        grid_m = 1
    tm = M // grid_m
    return pl.pallas_call(
        _mm_bias_relu_kernel,
        out_shape=jax.ShapeDtypeStruct((M, N), jnp.float32),
        grid_spec=pltpu.PrefetchScalarGridSpec(
            num_scalar_prefetch=0,
            grid=(grid_m,),
            in_specs=[
                pl.BlockSpec((tm, K), lambda i: (i, 0)),
                pl.BlockSpec((K, N), lambda i: (0, 0)),
                pl.BlockSpec((1, N), lambda i: (0, 0)),
            ],
            out_specs=pl.BlockSpec((tm, N), lambda i: (i, 0)),
        ),
        compiler_params=pltpu.CompilerParams(
            dimension_semantics=("parallel",),
            vmem_limit_bytes=VMEM_LIMIT,
        ),
    )(x_cols, w_mat, b_row)


def _pool_kernel(x_ref, o_ref, *, c):
    """x:(ta, 2, b, 2*c) = conv+relu rows regrouped as
    (row-pair, h-bit, pooled-width, [w-bit, channel]); o:(ta, b, c) = 2x2 max."""
    hm = jnp.maximum(x_ref[:, 0, :, :], x_ref[:, 1, :, :])   # height pool
    o_ref[...] = jnp.maximum(hm[:, :, :c], hm[:, :, c:])     # width pool


def maxpool2x2_fused(y_flat, n, ho, wo, c, *, grid_a=2):
    """2x2 / stride-2 max pool reading the conv matmul output directly.
    y_flat: (n*ho*wo, c), rows in (n, h, w) order.  Returns NHWC
    (n, ho//2, wo//2, c).  The reshape below is contiguous (free)."""
    a = n * ho // 2
    b = wo // 2
    x = y_flat.reshape(a, 2, b, 2 * c)
    if a % grid_a != 0:
        grid_a = 1
    ta = a // grid_a
    out = pl.pallas_call(
        functools.partial(_pool_kernel, c=c),
        out_shape=jax.ShapeDtypeStruct((a, b, c), jnp.float32),
        grid_spec=pltpu.PrefetchScalarGridSpec(
            num_scalar_prefetch=0,
            grid=(grid_a,),
            in_specs=[pl.BlockSpec((ta, 2, b, 2 * c), lambda i: (i, 0, 0, 0))],
            out_specs=pl.BlockSpec((ta, b, c), lambda i: (i, 0, 0)),
        ),
        compiler_params=pltpu.CompilerParams(
            dimension_semantics=("parallel",),
            vmem_limit_bytes=VMEM_LIMIT,
        ),
    )(x)
    return out.reshape(n, ho // 2, wo // 2, c)


def _fc_fused_kernel(x_ref, w1_ref, b1_ref, w2_ref, b2_ref, o_ref, acc_ref):
    """K-tiled fc1 (+relu) with fc2 (+sigmoid) fused into the final step.
    x:(M,tk) w1:(tk,128) b1:(1,128) w2:(1,128) b2:(1,1) o:(M,1)."""
    k = pl.program_id(0)

    @pl.when(k == 0)
    def _():
        acc_ref[...] = jnp.zeros_like(acc_ref)

    acc_ref[...] += jnp.dot(x_ref[...], w1_ref[...],
                            preferred_element_type=jnp.float32)

    @pl.when(k == pl.num_programs(0) - 1)
    def _():
        h = jnp.maximum(acc_ref[...] + b1_ref[...], 0.0)                  # fc1+relu
        z = jnp.sum(h * w2_ref[...], axis=1, keepdims=True) + b2_ref[...]  # fc2
        o_ref[...] = 1.0 / (1.0 + jnp.exp(-z))                            # sigmoid


def fc1_fc2_fused(x, w1, b1, w2, b2, *, tk=1792):
    """x:(M,K) w1:(K,128) b1:(1,128) w2:(1,128) b2:(1,1) -> (M,1)."""
    M, K = x.shape
    _, N = w1.shape
    if K % tk != 0 or tk % 128 != 0:
        tk = K
    nk = K // tk
    return pl.pallas_call(
        _fc_fused_kernel,
        out_shape=jax.ShapeDtypeStruct((M, 1), jnp.float32),
        grid_spec=pltpu.PrefetchScalarGridSpec(
            num_scalar_prefetch=0,
            grid=(nk,),
            in_specs=[
                pl.BlockSpec((M, tk), lambda k: (0, k)),
                pl.BlockSpec((tk, N), lambda k: (k, 0)),
                pl.BlockSpec((1, N), lambda k: (0, 0)),
                pl.BlockSpec((1, N), lambda k: (0, 0)),
                pl.BlockSpec((1, 1), lambda k: (0, 0)),
            ],
            out_specs=pl.BlockSpec((M, 1), lambda k: (0, 0)),
            scratch_shapes=[pltpu.VMEM((M, N), jnp.float32)],
        ),
        compiler_params=pltpu.CompilerParams(
            dimension_semantics=("arbitrary",),
            vmem_limit_bytes=VMEM_LIMIT,
        ),
    )(x, w1, b1, w2, b2)


# ---------------------------------------------------------------------------
# Glue: im2col + parameter preparation + forward pass
# ---------------------------------------------------------------------------
def im2col(x, kh, kw):
    """x: (N,H,W,C) -> (N*Ho*Wo, kh*kw*C), valid conv, stride 1."""
    n, h, w, c = x.shape
    ho, wo = h - kh + 1, w - kw + 1
    cols = []
    for i in range(kh):
        for j in range(kw):
            cols.append(x[:, i:i + ho, j:j + wo, :])
    patches = jnp.stack(cols, axis=3)              # (N, Ho, Wo, kh*kw, C)
    return patches.reshape(n * ho * wo, kh * kw * c), (n, ho, wo)


def prepare_params(params):
    """One-time conversion of PyTorch-layout params to kernel layouts."""
    w1, b1, w2, b2, fw1, fb1, fw2, fb2 = params
    # conv weights (Cout,Cin,kh,kw) -> (kh*kw*Cin, Cout), matching im2col order
    w1m = jnp.transpose(w1, (2, 3, 1, 0)).reshape(-1, w1.shape[0])       # (27, 32)
    w2m = jnp.transpose(w2, (2, 3, 1, 0)).reshape(-1, w2.shape[0])       # (288, 64)
    # Fold the NCHW flatten permutation into fc1's weight: fw1 columns are in
    # (c, h, w) order; reorder to NHWC (h, w, c) and transpose to (K, 128) so
    # no runtime transpose of the activation is needed.
    fw1m = fw1.reshape(128, 64, 14, 14).transpose(2, 3, 1, 0).reshape(-1, 128)
    return (w1m, b1.reshape(1, -1), w2m, b2.reshape(1, -1),
            fw1m, fb1.reshape(1, -1), fw2.reshape(1, -1), fb2.reshape(1, 1))


def simple_binary_cnn_forward(x_nchw, prepared):
    w1m, b1r, w2m, b2r, fw1m, fb1r, fw2r, fb2r = prepared
    x = jnp.transpose(x_nchw, (0, 2, 3, 1))        # NCHW -> NHWC

    # conv1 (3->32, k=3, s=1) + relu, then fused 2x2 max pool
    cols, (n, ho, wo) = im2col(x, 3, 3)            # (7200, 27)
    y = conv_mm_relu(cols, w1m, b1r)               # (7200, 32)
    y = maxpool2x2_fused(y, n, ho, wo, 32)         # (N, 30, 30, 32)

    # conv2 (32->64, k=3, s=1) + relu, then fused 2x2 max pool
    cols, (n, ho, wo) = im2col(y, 3, 3)            # (1568, 288)
    y = conv_mm_relu(cols, w2m, b2r)               # (1568, 64)
    y = maxpool2x2_fused(y, n, ho, wo, 64)         # (N, 14, 14, 64)

    # NHWC flatten (fc1 weight columns were pre-permuted to match)
    y = y.reshape(n, -1)                           # (N, 12544)

    # fc1 + relu and fc2 + sigmoid, fused in one K-tiled kernel
    return fc1_fc2_fused(y, fw1m, fb1r, fw2r, fb2r)  # (N, 1)


# ---------------------------------------------------------------------------
# Pure-JAX reference (for verification only)
# ---------------------------------------------------------------------------
def reference_forward(x, params):
    w1, b1, w2, b2, fw1, fb1, fw2, fb2 = params
    dn = ("NCHW", "OIHW", "NCHW")
    y = lax.conv_general_dilated(x, w1, (1, 1), "VALID", dimension_numbers=dn)
    y = jnp.maximum(y + b1[None, :, None, None], 0.0)
    y = lax.reduce_window(y, -jnp.inf, lax.max, (1, 1, 2, 2), (1, 1, 2, 2), "VALID")
    y = lax.conv_general_dilated(y, w2, (1, 1), "VALID", dimension_numbers=dn)
    y = jnp.maximum(y + b2[None, :, None, None], 0.0)
    y = lax.reduce_window(y, -jnp.inf, lax.max, (1, 1, 2, 2), (1, 1, 2, 2), "VALID")
    y = y.reshape(y.shape[0], -1)
    y = jnp.maximum(y @ fw1.T + fb1, 0.0)
    return 1.0 / (1.0 + jnp.exp(-(y @ fw2.T + fb2)))


# ---------------------------------------------------------------------------
if __name__ == "__main__":
    key = jax.random.PRNGKey(0)
    ks = jax.random.split(key, 9)

    # Deterministic synthetic parameters (PyTorch-layout shapes).
    w1 = jax.random.normal(ks[0], (32, 3, 3, 3), jnp.float32) * 0.10
    b1 = jax.random.normal(ks[1], (32,), jnp.float32) * 0.10
    w2 = jax.random.normal(ks[2], (64, 32, 3, 3), jnp.float32) * 0.05
    b2 = jax.random.normal(ks[3], (64,), jnp.float32) * 0.05
    fw1 = jax.random.normal(ks[4], (128, 64 * 14 * 14), jnp.float32) * 0.01
    fb1 = jax.random.normal(ks[5], (128,), jnp.float32) * 0.01
    fw2 = jax.random.normal(ks[6], (1, 128), jnp.float32) * 0.05
    fb2 = jax.random.normal(ks[7], (1,), jnp.float32) * 0.05
    params = (w1, b1, w2, b2, fw1, fb1, fw2, fb2)

    # Input: batch=2, NCHW, 62x62 spatial (-> 14x14 after two conv+pool stages).
    x = jax.random.normal(ks[8], (2, 3, 62, 62), jnp.float32)

    prepared = prepare_params(params)              # one-time layout prep
    out = jax.jit(simple_binary_cnn_forward)(x, prepared)
    out = jax.block_until_ready(out)
    assert out.shape == (2, 1), out.shape

    ref = reference_forward(x, params)
    if not bool(jnp.allclose(out, ref, rtol=1e-3, atol=1e-3)):
        raise AssertionError(f"mismatch: pallas={out} ref={ref}")

    print("KERNEL_OK")
</pallas_src>

<mosaic_0001>
module attributes {stable_mosaic.version = 11 : i64} {
  func.func @_mm_bias_relu_kernel(%arg0: i32, %arg1: memref<3600x27xf32, #tpu.memory_space<vmem>>, %arg2: memref<27x32xf32, #tpu.memory_space<vmem>>, %arg3: memref<1x32xf32, #tpu.memory_space<vmem>>, %arg4: memref<3600x32xf32, #tpu.memory_space<vmem>>) attributes {dimension_semantics = [#tpu.dimension_semantics<parallel>], iteration_bounds = array<i64: 2>, scalar_prefetch = 0 : i64, scratch_operands = 0 : i64, tpu.core_type = #tpu.core_type<tc>, window_params = [{transform_indices = @transform_0, window_bounds = array<i64: 3600, 27>}, {pipeline_mode = #tpu.pipeline_mode<synchronous>, transform_indices = @transform_1, window_bounds = array<i64: 27, 32>}, {pipeline_mode = #tpu.pipeline_mode<synchronous>, transform_indices = @transform_2, window_bounds = array<i64: 1, 32>}, {transform_indices = @transform_3, window_bounds = array<i64: 3600, 32>}]} {
    %c0 = arith.constant 0 : index
    %c0_0 = arith.constant 0 : index
    %0 = vector.load %arg1[%c0, %c0_0] : memref<3600x27xf32, #tpu.memory_space<vmem>>, vector<3600x27xf32>
    %c0_1 = arith.constant 0 : index
    %c0_2 = arith.constant 0 : index
    %1 = vector.load %arg2[%c0_1, %c0_2] : memref<27x32xf32, #tpu.memory_space<vmem>>, vector<27x32xf32>
    %cst = arith.constant dense<0.000000e+00> : vector<3600x32xf32>
    %2 = tpu.matmul %0, %1, %cst {dimension_numbers = #tpu.dot_dimension_numbers<[1], [0], [0], [1], [0, 0, 1, 1], [], []>} : vector<3600x27xf32>, vector<27x32xf32>, vector<3600x32xf32> -> vector<3600x32xf32>
    %c0_3 = arith.constant 0 : index
    %c0_4 = arith.constant 0 : index
    %3 = vector.load %arg3[%c0_3, %c0_4] : memref<1x32xf32, #tpu.memory_space<vmem>>, vector<1x32xf32>
    %4 = vector.broadcast %3 : vector<1x32xf32> to vector<3600x32xf32>
    %5 = arith.addf %2, %4 : vector<3600x32xf32>
    %cst_5 = arith.constant 0.000000e+00 : f32
    %6 = vector.broadcast %cst_5 : f32 to vector<3600x32xf32>
    %7 = arith.maximumf %5, %6 : vector<3600x32xf32>
    %c0_6 = arith.constant 0 : index
    %c0_7 = arith.constant 0 : index
    %8 = vector.load %arg4[%c0_6, %c0_7] : memref<3600x32xf32, #tpu.memory_space<vmem>>, vector<3600x32xf32>
    tpu.vector_store %arg4[%c0_6, %c0_7], %7 {strides = array<i32>} : memref<3600x32xf32, #tpu.memory_space<vmem>>, vector<3600x32xf32>,
    return
  }
  func.func @transform_0(%arg0: i32) -> (i32, i32) {
    %c0_i32 = arith.constant 0 : i32
    %c0_i32_0 = arith.constant 0 : i32
    return %arg0, %c0_i32 : i32, i32
  }
  func.func @transform_1(%arg0: i32) -> (i32, i32) {
    %c0_i32 = arith.constant 0 : i32
    %c0_i32_0 = arith.constant 0 : i32
    %c0_i32_1 = arith.constant 0 : i32
    return %c0_i32, %c0_i32_0 : i32, i32
  }
  func.func @transform_2(%arg0: i32) -> (i32, i32) {
    %c0_i32 = arith.constant 0 : i32
    %c0_i32_0 = arith.constant 0 : i32
    %c0_i32_1 = arith.constant 0 : i32
    return %c0_i32, %c0_i32_0 : i32, i32
  }
  func.func @transform_3(%arg0: i32) -> (i32, i32) {
    %c0_i32 = arith.constant 0 : i32
    %c0_i32_0 = arith.constant 0 : i32
    return %arg0, %c0_i32 : i32, i32
  }
}

module attributes {stable_mosaic.version = 11 : i64} {
  func.func @_pool_kernel(%arg0: i32, %arg1: memref<30x2x30x64xf32, #tpu.memory_space<vmem>>, %arg2: memref<30x30x32xf32, #tpu.memory_space<vmem>>) attributes {dimension_semantics = [#tpu.dimension_semantics<parallel>], iteration_bounds = array<i64: 2>, scalar_prefetch = 0 : i64, scratch_operands = 0 : i64, tpu.core_type = #tpu.core_type<tc>, window_params = [{transform_indices = @transform_0, window_bounds = array<i64: 30, 2, 30, 64>}, {transform_indices = @transform_1, window_bounds = array<i64: 30, 30, 32>}]} {
    %c0 = arith.constant 0 : index
    %c0_0 = arith.constant 0 : index
    %c0_1 = arith.constant 0 : index
    %c0_2 = arith.constant 0 : index
    %0 = vector.load %arg1[%c0, %c0_0, %c0_1, %c0_2] : memref<30x2x30x64xf32, #tpu.memory_space<vmem>>, vector<30x1x30x64xf32>
    %1 = vector.shape_cast %0 : vector<30x1x30x64xf32> to vector<30x30x64xf32>
    %c0_3 = arith.constant 0 : index
    %c1 = arith.constant 1 : index
    %c0_4 = arith.constant 0 : index
    %c0_5 = arith.constant 0 : index
    %2 = vector.load %arg1[%c0_3, %c1, %c0_4, %c0_5] : memref<30x2x30x64xf32, #tpu.memory_space<vmem>>, vector<30x1x30x64xf32>
    %3 = vector.shape_cast %2 : vector<30x1x30x64xf32> to vector<30x30x64xf32>
    %4 = arith.maximumf %1, %3 : vector<30x30x64xf32>
    %5 = vector.extract_strided_slice %4 {offsets = [0, 0, 0], sizes = [30, 30, 32], strides = [1, 1, 1]} : vector<30x30x64xf32> to vector<30x30x32xf32>
    %6 = vector.extract_strided_slice %4 {offsets = [0, 0, 32], sizes = [30, 30, 32], strides = [1, 1, 1]} : vector<30x30x64xf32> to vector<30x30x32xf32>
    %7 = arith.maximumf %5, %6 : vector<30x30x32xf32>
    %c0_6 = arith.constant 0 : index
    %c0_7 = arith.constant 0 : index
    %c0_8 = arith.constant 0 : index
    %8 = vector.load %arg2[%c0_6, %c0_7, %c0_8] : memref<30x30x32xf32, #tpu.memory_space<vmem>>, vector<30x30x32xf32>
    tpu.vector_store %arg2[%c0_6, %c0_7, %c0_8], %7 {strides = array<i32>} : memref<30x30x32xf32, #tpu.memory_space<vmem>>, vector<30x30x32xf32>,
    return
  }
  func.func @transform_0(%arg0: i32) -> (i32, i32, i32, i32) {
    %c0_i32 = arith.constant 0 : i32
    %c0_i32_0 = arith.constant 0 : i32
    %c0_i32_1 = arith.constant 0 : i32
    %c0_i32_2 = arith.constant 0 : i32
    return %arg0, %c0_i32, %c0_i32_0, %c0_i32_1 : i32, i32, i32, i32
  }
  func.func @transform_1(%arg0: i32) -> (i32, i32, i32) {
    %c0_i32 = arith.constant 0 : i32
    %c0_i32_0 = arith.constant 0 : i32
    %c0_i32_1 = arith.constant 0 : i32
    return %arg0, %c0_i32, %c0_i32_0 : i32, i32, i32
  }
}

module attributes {stable_mosaic.version = 11 : i64} {
  func.func @_mm_bias_relu_kernel(%arg0: i32, %arg1: memref<784x288xf32, #tpu.memory_space<vmem>>, %arg2: memref<288x64xf32, #tpu.memory_space<vmem>>, %arg3: memref<1x64xf32, #tpu.memory_space<vmem>>, %arg4: memref<784x64xf32, #tpu.memory_space<vmem>>) attributes {dimension_semantics = [#tpu.dimension_semantics<parallel>], iteration_bounds = array<i64: 2>, scalar_prefetch = 0 : i64, scratch_operands = 0 : i64, tpu.core_type = #tpu.core_type<tc>, window_params = [{transform_indices = @transform_0, window_bounds = array<i64: 784, 288>}, {pipeline_mode = #tpu.pipeline_mode<synchronous>, transform_indices = @transform_1, window_bounds = array<i64: 288, 64>}, {pipeline_mode = #tpu.pipeline_mode<synchronous>, transform_indices = @transform_2, window_bounds = array<i64: 1, 64>}, {transform_indices = @transform_3, window_bounds = array<i64: 784, 64>}]} {
    %c0 = arith.constant 0 : index
    %c0_0 = arith.constant 0 : index
    %0 = vector.load %arg1[%c0, %c0_0] : memref<784x288xf32, #tpu.memory_space<vmem>>, vector<784x288xf32>
    %c0_1 = arith.constant 0 : index
    %c0_2 = arith.constant 0 : index
    %1 = vector.load %arg2[%c0_1, %c0_2] : memref<288x64xf32, #tpu.memory_space<vmem>>, vector<288x64xf32>
    %cst = arith.constant dense<0.000000e+00> : vector<784x64xf32>
    %2 = tpu.matmul %0, %1, %cst {dimension_numbers = #tpu.dot_dimension_numbers<[1], [0], [0], [1], [0, 0, 1, 1], [], []>} : vector<784x288xf32>, vector<288x64xf32>, vector<784x64xf32> -> vector<784x64xf32>
    %c0_3 = arith.constant 0 : index
    %c0_4 = arith.constant 0 : index
    %3 = vector.load %arg3[%c0_3, %c0_4] : memref<1x64xf32, #tpu.memory_space<vmem>>, vector<1x64xf32>
    %4 = vector.broadcast %3 : vector<1x64xf32> to vector<784x64xf32>
    %5 = arith.addf %2, %4 : vector<784x64xf32>
    %cst_5 = arith.constant 0.000000e+00 : f32
    %6 = vector.broadcast %cst_5 : f32 to vector<784x64xf32>
    %7 = arith.maximumf %5, %6 : vector<784x64xf32>
    %c0_6 = arith.constant 0 : index
    %c0_7 = arith.constant 0 : index
    %8 = vector.load %arg4[%c0_6, %c0_7] : memref<784x64xf32, #tpu.memory_space<vmem>>, vector<784x64xf32>
    tpu.vector_store %arg4[%c0_6, %c0_7], %7 {strides = array<i32>} : memref<784x64xf32, #tpu.memory_space<vmem>>, vector<784x64xf32>,
    return
  }
  func.func @transform_0(%arg0: i32) -> (i32, i32) {
    %c0_i32 = arith.constant 0 : i32
    %c0_i32_0 = arith.constant 0 : i32
    return %arg0, %c0_i32 : i32, i32
  }
  func.func @transform_1(%arg0: i32) -> (i32, i32) {
    %c0_i32 = arith.constant 0 : i32
    %c0_i32_0 = arith.constant 0 : i32
    %c0_i32_1 = arith.constant 0 : i32
    return %c0_i32, %c0_i32_0 : i32, i32
  }
  func.func @transform_2(%arg0: i32) -> (i32, i32) {
    %c0_i32 = arith.constant 0 : i32
    %c0_i32_0 = arith.constant 0 : i32
    %c0_i32_1 = arith.constant 0 : i32
    return %c0_i32, %c0_i32_0 : i32, i32
  }
  func.func @transform_3(%arg0: i32) -> (i32, i32) {
    %c0_i32 = arith.constant 0 : i32
    %c0_i32_0 = arith.constant 0 : i32
    return %arg0, %c0_i32 : i32, i32
  }
}

module attributes {stable_mosaic.version = 11 : i64} {
  func.func @_pool_kernel(%arg0: i32, %arg1: memref<14x2x14x128xf32, #tpu.memory_space<vmem>>, %arg2: memref<14x14x64xf32, #tpu.memory_space<vmem>>) attributes {dimension_semantics = [#tpu.dimension_semantics<parallel>], iteration_bounds = array<i64: 2>, scalar_prefetch = 0 : i64, scratch_operands = 0 : i64, tpu.core_type = #tpu.core_type<tc>, window_params = [{transform_indices = @transform_0, window_bounds = array<i64: 14, 2, 14, 128>}, {transform_indices = @transform_1, window_bounds = array<i64: 14, 14, 64>}]} {
    %c0 = arith.constant 0 : index
    %c0_0 = arith.constant 0 : index
    %c0_1 = arith.constant 0 : index
    %c0_2 = arith.constant 0 : index
    %0 = vector.load %arg1[%c0, %c0_0, %c0_1, %c0_2] : memref<14x2x14x128xf32, #tpu.memory_space<vmem>>, vector<14x1x14x128xf32>
    %1 = vector.shape_cast %0 : vector<14x1x14x128xf32> to vector<14x14x128xf32>
    %c0_3 = arith.constant 0 : index
    %c1 = arith.constant 1 : index
    %c0_4 = arith.constant 0 : index
    %c0_5 = arith.constant 0 : index
    %2 = vector.load %arg1[%c0_3, %c1, %c0_4, %c0_5] : memref<14x2x14x128xf32, #tpu.memory_space<vmem>>, vector<14x1x14x128xf32>
    %3 = vector.shape_cast %2 : vector<14x1x14x128xf32> to vector<14x14x128xf32>
    %4 = arith.maximumf %1, %3 : vector<14x14x128xf32>
    %5 = vector.extract_strided_slice %4 {offsets = [0, 0, 0], sizes = [14, 14, 64], strides = [1, 1, 1]} : vector<14x14x128xf32> to vector<14x14x64xf32>
    %6 = vector.extract_strided_slice %4 {offsets = [0, 0, 64], sizes = [14, 14, 64], strides = [1, 1, 1]} : vector<14x14x128xf32> to vector<14x14x64xf32>
    %7 = arith.maximumf %5, %6 : vector<14x14x64xf32>
    %c0_6 = arith.constant 0 : index
    %c0_7 = arith.constant 0 : index
    %c0_8 = arith.constant 0 : index
    %8 = vector.load %arg2[%c0_6, %c0_7, %c0_8] : memref<14x14x64xf32, #tpu.memory_space<vmem>>, vector<14x14x64xf32>
    tpu.vector_store %arg2[%c0_6, %c0_7, %c0_8], %7 {strides = array<i32>} : memref<14x14x64xf32, #tpu.memory_space<vmem>>, vector<14x14x64xf32>,
    return
  }
  func.func @transform_0(%arg0: i32) -> (i32, i32, i32, i32) {
    %c0_i32 = arith.constant 0 : i32
    %c0_i32_0 = arith.constant 0 : i32
    %c0_i32_1 = arith.constant 0 : i32
    %c0_i32_2 = arith.constant 0 : i32
    return %arg0, %c0_i32, %c0_i32_0, %c0_i32_1 : i32, i32, i32, i32
  }
  func.func @transform_1(%arg0: i32) -> (i32, i32, i32) {
    %c0_i32 = arith.constant 0 : i32
    %c0_i32_0 = arith.constant 0 : i32
    %c0_i32_1 = arith.constant 0 : i32
    return %arg0, %c0_i32, %c0_i32_0 : i32, i32, i32
  }
}

module attributes {stable_mosaic.version = 11 : i64} {
  func.func @_fc_fused_kernel(%arg0: i32, %arg1: memref<2x1792xf32, #tpu.memory_space<vmem>>, %arg2: memref<1792x128xf32, #tpu.memory_space<vmem>>, %arg3: memref<1x128xf32, #tpu.memory_space<vmem>>, %arg4: memref<1x128xf32, #tpu.memory_space<vmem>>, %arg5: memref<1x1xf32, #tpu.memory_space<vmem>>, %arg6: memref<2x1xf32, #tpu.memory_space<vmem>>, %arg7: memref<2x128xf32, #tpu.memory_space<vmem>>) attributes {dimension_semantics = [#tpu.dimension_semantics<arbitrary>], iteration_bounds = array<i64: 7>, scalar_prefetch = 0 : i64, scratch_operands = 1 : i64, tpu.core_type = #tpu.core_type<tc>, window_params = [{transform_indices = @transform_0, window_bounds = array<i64: 2, 1792>}, {transform_indices = @transform_1, window_bounds = array<i64: 1792, 128>}, {pipeline_mode = #tpu.pipeline_mode<synchronous>, transform_indices = @transform_2, window_bounds = array<i64: 1, 128>}, {pipeline_mode = #tpu.pipeline_mode<synchronous>, transform_indices = @transform_3, window_bounds = array<i64: 1, 128>}, {pipeline_mode = #tpu.pipeline_mode<synchronous>, transform_indices = @transform_4, window_bounds = array<i64: 1, 1>}, {pipeline_mode = #tpu.pipeline_mode<synchronous>, transform_indices = @transform_5, window_bounds = array<i64: 2, 1>}]} {
    %c0_i32 = arith.constant 0 : i32
    %0 = arith.cmpi eq, %arg0, %c0_i32 : i32
    %1 = arith.extui %0 : i1 to i32
    %c0_i32_0 = arith.constant 0 : i32
    %2 = arith.cmpi ne, %1, %c0_i32_0 : i32
    scf.if %2 {
      %cst_9 = arith.constant 0.000000e+00 : f32
      %12 = vector.broadcast %cst_9 : f32 to vector<2x128xf32>
      %c0_10 = arith.constant 0 : index
      %c0_11 = arith.constant 0 : index
      %13 = vector.load %arg7[%c0_10, %c0_11] : memref<2x128xf32, #tpu.memory_space<vmem>>, vector<2x128xf32>
      tpu.vector_store %arg7[%c0_10, %c0_11], %12 {strides = array<i32>} : memref<2x128xf32, #tpu.memory_space<vmem>>, vector<2x128xf32>,
    } else {
    }
    %c0 = arith.constant 0 : index
    %c0_1 = arith.constant 0 : index
    %3 = vector.load %arg7[%c0, %c0_1] : memref<2x128xf32, #tpu.memory_space<vmem>>, vector<2x128xf32>
    %c0_2 = arith.constant 0 : index
    %c0_3 = arith.constant 0 : index
    %4 = vector.load %arg1[%c0_2, %c0_3] : memref<2x1792xf32, #tpu.memory_space<vmem>>, vector<2x1792xf32>
    %c0_4 = arith.constant 0 : index
    %c0_5 = arith.constant 0 : index
    %5 = vector.load %arg2[%c0_4, %c0_5] : memref<1792x128xf32, #tpu.memory_space<vmem>>, vector<1792x128xf32>
    %cst = arith.constant dense<0.000000e+00> : vector<2x128xf32>
    %6 = tpu.matmul %4, %5, %cst {dimension_numbers = #tpu.dot_dimension_numbers<[1], [0], [0], [1], [0, 0, 1, 1], [], []>} : vector<2x1792xf32>, vector<1792x128xf32>, vector<2x128xf32> -> vector<2x128xf32>
    %7 = arith.addf %3, %6 : vector<2x128xf32>
    %c0_6 = arith.constant 0 : index
    %c0_7 = arith.constant 0 : index
    %8 = vector.load %arg7[%c0_6, %c0_7] : memref<2x128xf32, #tpu.memory_space<vmem>>, vector<2x128xf32>
    tpu.vector_store %arg7[%c0_6, %c0_7], %7 {strides = array<i32>} : memref<2x128xf32, #tpu.memory_space<vmem>>, vector<2x128xf32>,
    %c6_i32 = arith.constant 6 : i32
    %9 = arith.cmpi eq, %arg0, %c6_i32 : i32
    %10 = arith.extui %9 : i1 to i32
    %c0_i32_8 = arith.constant 0 : i32
    %11 = arith.cmpi ne, %10, %c0_i32_8 : i32
    scf.if %11 {
      %c0_9 = arith.constant 0 : index
      %c0_10 = arith.constant 0 : index
      %12 = vector.load %arg7[%c0_9, %c0_10] : memref<2x128xf32, #tpu.memory_space<vmem>>, vector<2x128xf32>
      %c0_11 = arith.constant 0 : index
      %c0_12 = arith.constant 0 : index
      %13 = vector.load %arg3[%c0_11, %c0_12] : memref<1x128xf32, #tpu.memory_space<vmem>>, vector<1x128xf32>
      %14 = vector.broadcast %13 : vector<1x128xf32> to vector<2x128xf32>
      %15 = arith.addf %12, %14 : vector<2x128xf32>
      %cst_13 = arith.constant 0.000000e+00 : f32
      %16 = vector.broadcast %cst_13 : f32 to vector<2x128xf32>
      %17 = arith.maximumf %15, %16 : vector<2x128xf32>
      %c0_14 = arith.constant 0 : index
      %c0_15 = arith.constant 0 : index
      %18 = vector.load %arg4[%c0_14, %c0_15] : memref<1x128xf32, #tpu.memory_space<vmem>>, vector<1x128xf32>
      %19 = vector.broadcast %18 : vector<1x128xf32> to vector<2x128xf32>
      %20 = arith.mulf %17, %19 : vector<2x128xf32>
      %cst_16 = arith.constant dense<0.000000e+00> : vector<2xf32>
      %21 = vector.multi_reduction <add>, %20, %cst_16 [1] : vector<2x128xf32> to vector<2xf32>
      %22 = vector.shape_cast %21 : vector<2xf32> to vector<2x1xf32>
      %c0_17 = arith.constant 0 : index
      %c0_18 = arith.constant 0 : index
      %23 = vector.load %arg5[%c0_17, %c0_18] : memref<1x1xf32, #tpu.memory_space<vmem>>, vector<1x1xf32>
      %24 = vector.broadcast %23 : vector<1x1xf32> to vector<2x1xf32>
      %25 = arith.addf %22, %24 : vector<2x1xf32>
      %cst_19 = arith.constant 0.000000e+00 : f32
      %26 = vector.broadcast %cst_19 : f32 to vector<2x1xf32>
      %27 = arith.subf %26, %25 : vector<2x1xf32>
      %28 = math.exp %27 : vector<2x1xf32>
      %cst_20 = arith.constant 1.000000e+00 : f32
      %29 = vector.broadcast %cst_20 : f32 to vector<2x1xf32>
      %30 = arith.addf %29, %28 : vector<2x1xf32>
      %cst_21 = arith.constant 1.000000e+00 : f32
      %31 = vector.broadcast %cst_21 : f32 to vector<2x1xf32>
      %32 = arith.divf %31, %30 : vector<2x1xf32>
      %c0_22 = arith.constant 0 : index
      %c0_23 = arith.constant 0 : index
      %33 = vector.load %arg6[%c0_22, %c0_23] : memref<2x1xf32, #tpu.memory_space<vmem>>, vector<2x1xf32>
      tpu.vector_store %arg6[%c0_22, %c0_23], %32 {strides = array<i32>} : memref<2x1xf32, #tpu.memory_space<vmem>>, vector<2x1xf32>,
    } else {
    }
    return
  }
  func.func @transform_0(%arg0: i32) -> (i32, i32) {
    %c0_i32 = arith.constant 0 : i32
    %c0_i32_0 = arith.constant 0 : i32
    return %c0_i32, %arg0 : i32, i32
  }
  func.func @transform_1(%arg0: i32) -> (i32, i32) {
    %c0_i32 = arith.constant 0 : i32
    %c0_i32_0 = arith.constant 0 : i32
    return %arg0, %c0_i32 : i32, i32
  }
  func.func @transform_2(%arg0: i32) -> (i32, i32) {
    %c0_i32 = arith.constant 0 : i32
    %c0_i32_0 = arith.constant 0 : i32
    %c0_i32_1 = arith.constant 0 : i32
    return %c0_i32, %c0_i32_0 : i32, i32
  }
  func.func @transform_3(%arg0: i32) -> (i32, i32) {
    %c0_i32 = arith.constant 0 : i32
    %c0_i32_0 = arith.constant 0 : i32
    %c0_i32_1 = arith.constant 0 : i32
    return %c0_i32, %c0_i32_0 : i32, i32
  }
  func.func @transform_4(%arg0: i32) -> (i32, i32) {
    %c0_i32 = arith.constant 0 : i32
    %c0_i32_0 = arith.constant 0 : i32
    %c0_i32_1 = arith.constant 0 : i32
    return %c0_i32, %c0_i32_0 : i32, i32
  }
  func.func @transform_5(%arg0: i32) -> (i32, i32) {
    %c0_i32 = arith.constant 0 : i32
    %c0_i32_0 = arith.constant 0 : i32
    %c0_i32_1 = arith.constant 0 : i32
    return %c0_i32, %c0_i32_0 : i32, i32
  }
}

</mosaic_0001>

<llo_original>
// kernel: simple_binary_cnn_forward.6
$region0: #{simple_binary_cnn_forward.6}
  #allocation0 [shape = 'u32[]', space=smem, size = 0x4, offset = 0x4, fixed_abs, tag = 'smem constant byte address 0x4 - core index']
  #allocation1 [shape = 'u32[144,128]{1,0:T(1,128)}', space=vmem, size = 0x12000, scoped, tag = 'internal scratch']
  %s0 = inlined_call_operand.vmem [shape: f32[60,2,30,64], index: 0, kind: input, shape index: {}]
  %s1 = inlined_call_operand.vmem [shape: f32[60,30,32], index: 1, kind: output, shape index: {}]
  %s2 = sld [smem:[#allocation0]]
  $region37: #{simple_binary_cnn_forward.6} parent=0
    _
  %s4 = ssub.s32 1, %s2
  %s5 = scalar_select 0, %s4, %s2
  loop: start=0, step=1, limit=4
  $region2: #{simple_binary_cnn_forward.6} parent=0 // loop_pre_header
    _
  $region3: #{simple_binary_cnn_forward.6} parent=0 // loop_header
    %s7 = sphi 0, %s11
    %p8 = scmp.ge.s32.totalorder %s7, 4
    %s17 = sphi 0, %s19
    %s20 = sphi 0, %s17
    %s21 = sphi 0, %s20
    %s37 = sphi 0, %s21
    %s43 = sphi 0, %s45
    %s46 = sphi 0, %s43
    %s47 = sphi 0, %s46
    %s63 = sphi 0, %s47
  $region4: #{simple_binary_cnn_forward.6} parent=0 // loop_header_branch
    %10 = sbr.rel (%p8) target = $region8
  $region5: #{simple_binary_cnn_forward.6} parent=0 // loop_body
    %s12 = ssub.s32 %s7, 1
    %s13 = ssub.s32 %s7, 2
    %s14 = sadd.s32 %s7, 1
    %s15 = ssub.s32 %s7, %s14
    %p16 = scmp.eq.s32.totalorder %s15, 0
    %s18 = sadd.s32 %s17, 1
    %s19 = scalar_select %p16, %s17, %s18
    %p22 = pneg %p16
    %p23 = scmp.eq.s32.totalorder %s7, 1
    %p24 = por %p22, %p23
    %p25 = scmp.ne.s32.totalorder %s17, %s20
    %p26 = scmp.eq.s32.totalorder %s7, 0
    %p27 = por %p25, %p26
    %p28 = scmp.ne.s32.totalorder %s17, %s20
    %p29 = scmp.eq.s32.totalorder %s12, 1
    %p30 = por %p28, %p29
    %p31 = scmp.ne.s32.totalorder %s20, %s21
    %p32 = scmp.eq.s32.totalorder %s12, 0
    %p33 = por %p31, %p32
    %p34 = scmp.ne.s32.totalorder %s20, %s21
    %p35 = scmp.eq.s32.totalorder %s13, 1
    %p36 = por %p34, %p35
    %p38 = scmp.ne.s32.totalorder %s21, %s37
    %p39 = scmp.eq.s32.totalorder %s13, 0
    %p40 = por %p38, %p39
    %s41 = ssub.s32 %s7, %s14
    %p42 = scmp.eq.s32.totalorder %s41, 0
    %s44 = sadd.s32 %s43, 1
    %s45 = scalar_select %p42, %s43, %s44
    %p48 = pneg %p42
    %p49 = scmp.eq.s32.totalorder %s7, 1
    %p50 = por %p48, %p49
    %p51 = scmp.ne.s32.totalorder %s43, %s46
    %p52 = scmp.eq.s32.totalorder %s7, 0
    %p53 = por %p51, %p52
    %p54 = scmp.ne.s32.totalorder %s43, %s46
    %p55 = scmp.eq.s32.totalorder %s12, 1
    %p56 = por %p54, %p55
    %p57 = scmp.ne.s32.totalorder %s46, %s47
    %p58 = scmp.eq.s32.totalorder %s12, 0
    %p59 = por %p57, %p58
    %p60 = scmp.ne.s32.totalorder %s46, %s47
    %p61 = scmp.eq.s32.totalorder %s13, 1
    %p62 = por %p60, %p61
    %p64 = scmp.ne.s32.totalorder %s47, %s63
    %p65 = scmp.eq.s32.totalorder %s13, 0
    %p66 = por %p64, %p65
    %p67 = scmp.le.s32.totalorder 1, %s7
    %p68 = scmp.lt.s32.totalorder %s7, 3
    %p69 = pnand %p67, %p68
    %p70 = pneg %p69
    // Predicated region
    $region9: #{simple_binary_cnn_forward.6} parent=5 // pred_check
      _
    $region10: #{simple_binary_cnn_forward.6} parent=5 // pred_check_branch
      %72 = sbr.rel (%p69) target = $region12
    $region11: #{simple_binary_cnn_forward.6} parent=5 // pred_region
      %s73 = ssub.s32 %s7, 1
    $region12: #{simple_binary_cnn_forward.6} parent=5 // pred_fallthru
      _
    %p74 = scmp.lt.s32.totalorder %s7, 2
    // Predicated region
    $region13: #{simple_binary_cnn_forward.6} parent=5 // pred_check
      %p75 = pneg %p74
    $region14: #{simple_binary_cnn_forward.6} parent=5 // pred_check_branch
      %77 = sbr.rel (%p75) target = $region16
    $region15: #{simple_binary_cnn_forward.6} parent=5 // pred_region
      // Predicated region
      $region17: #{simple_binary_cnn_forward.6} parent=15 // pred_check
        %p78 = pneg %p27
      $region18: #{simple_binary_cnn_forward.6} parent=15 // pred_check_branch
        %80 = sbr.rel (%p78) target = $region20
      $region19: #{simple_binary_cnn_forward.6} parent=15 // pred_region
        %s81 = smul.u32 30, %s7
        %p82 = scmp.lt.s32.totalorder %s81, 59
        %s83 = scalar_select %p82, %s81, 59
        %s84 = smul.addr %s83, 8
        %s85 = smul.addr %s84, 8
        %s86 = scalar_lea.vmem %s0, %s85
        %s87 = smul.u32 30, %s7
      $region20: #{simple_binary_cnn_forward.6} parent=15 // pred_fallthru
        _
    $region16: #{simple_binary_cnn_forward.6} parent=5 // pred_fallthru
      _
    %p88 = scmp.le.s32.totalorder 1, %s7
    %p89 = scmp.lt.s32.totalorder %s7, 3
    %p90 = pnand %p88, %p89
    %p91 = pneg %p90
    // Predicated region
    $region21: #{simple_binary_cnn_forward.6} parent=5 // pred_check
      _
    $region22: #{simple_binary_cnn_forward.6} parent=5 // pred_check_branch
      %93 = sbr.rel (%p90) target = $region24
    $region23: #{simple_binary_cnn_forward.6} parent=5 // pred_region
      %s94 = ssub.s32 %s7, 1
      %s95 = smul.u32 30, %s12
      %p96 = scmp.lt.s32.totalorder %s95, 59
      %s97 = scalar_select %p96, %s95, 59
      %s98 = smul.addr %s97, 8
      %s99 = smul.addr %s98, 8
      %s100 = scalar_lea.vmem %s0, %s99
      %p101 = pneg %p33
      %p102 = pneg %p30
      %p103 = pneg %p59
      %p104 = pneg %p56
      %s105 = smul.u32 30, %s12
      %p106 = scmp.lt.s32.totalorder %s105, 59
      %s107 = scalar_select %p106, %s105, 59
      %s108 = smul.addr %s107, 4
      %s109 = smul.addr %s108, 8
      %s110 = scalar_lea.vmem %s1, %s109
      %s111 = smul.u32 30, %s12
      %p112 = scmp.lt.s32.totalorder %s111, 59
      %s113 = scalar_select %p112, %s111, 59
      %s114 = smul.addr %s113, 8
      %s115 = smul.addr %s114, 8
      %s116 = scalar_lea.vmem %s0, %s115
      %s117 = smul.u32 30, %s12
      %s118 = smul.u32 30, %s12
      %p119 = scmp.lt.s32.totalorder %s118, 59
      %s120 = scalar_select %p119, %s118, 59
      %s121 = smul.addr %s120, 4
      %s122 = smul.addr %s121, 8
      %s123 = scalar_lea.vmem %s1, %s122
      %s124 = smul.u32 30, %s12
      %v125 = vld [vmem:[%s116] sm:$0xff]
      %v126 = vld [vmem:[%s116 + $0x8] sm:$0xff]
      %v127 = vld [vmem:[%s116 + $0x10] sm:$0xff]
      %v128 = vld [vmem:[%s116 + $0x18] sm:$0x3f]
      %v129 = vld [vmem:[%s116 + $0x40] sm:$0xff]
      %v130 = vld [vmem:[%s116 + $0x48] sm:$0xff]
      %v131 = vld [vmem:[%s116 + $0x50] sm:$0xff]
      %v132 = vld [vmem:[%s116 + $0x58] sm:$0x3f]
      %v133 = vld [vmem:[%s116 + $0x80] sm:$0xff]
      %v134 = vld [vmem:[%s116 + $0x88] sm:$0xff]
      %v135 = vld [vmem:[%s116 + $0x90] sm:$0xff]
      %v136 = vld [vmem:[%s116 + $0x98] sm:$0x3f]
      %v137 = vld [vmem:[%s116 + $0xc0] sm:$0xff]
      %v138 = vld [vmem:[%s116 + $0xc8] sm:$0xff]
      %v139 = vld [vmem:[%s116 + $0xd0] sm:$0xff]
      %v140 = vld [vmem:[%s116 + $0xd8] sm:$0x3f]
      %v141 = vld [vmem:[%s116 + $0x100] sm:$0xff]
      %v142 = vld [vmem:[%s116 + $0x108] sm:$0xff]
      %v143 = vld [vmem:[%s116 + $0x110] sm:$0xff]
      %v144 = vld [vmem:[%s116 + $0x118] sm:$0x3f]
      %v145 = vld [vmem:[%s116 + $0x140] sm:$0xff]
      %v146 = vld [vmem:[%s116 + $0x148] sm:$0xff]
      %v147 = vld [vmem:[%s116 + $0x150] sm:$0xff]
      %v148 = vld [vmem:[%s116 + $0x158] sm:$0x3f]
      %v149 = vld [vmem:[%s116 + $0x180] sm:$0xff]
      %v150 = vld [vmem:[%s116 + $0x188] sm:$0xff]
      %v151 = vld [vmem:[%s116 + $0x190] sm:$0xff]
      %v152 = vld [vmem:[%s116 + $0x198] sm:$0x3f]
      %v153 = vld [vmem:[%s116 + $0x1c0] sm:$0xff]
      %v154 = vld [vmem:[%s116 + $0x1c8] sm:$0xff]
      %v155 = vld [vmem:[%s116 + $0x1d0] sm:$0xff]
      %v156 = vld [vmem:[%s116 + $0x1d8] sm:$0x3f]
      %v157 = vld [vmem:[%s116 + $0x200] sm:$0xff]
      %v158 = vld [vmem:[%s116 + $0x208] sm:$0xff]
      %v159 = vld [vmem:[%s116 + $0x210] sm:$0xff]
      %v160 = vld [vmem:[%s116 + $0x218] sm:$0x3f]
      %v161 = vld [vmem:[%s116 + $0x240] sm:$0xff]
      %v162 = vld [vmem:[%s116 + $0x248] sm:$0xff]
      %v163 = vld [vmem:[%s116 + $0x250] sm:$0xff]
      %v164 = vld [vmem:[%s116 + $0x258] sm:$0x3f]
      %v165 = vld [vmem:[%s116 + $0x280] sm:$0xff]
      %v166 = vld [vmem:[%s116 + $0x288] sm:$0xff]
      %v167 = vld [vmem:[%s116 + $0x290] sm:$0xff]
      %v168 = vld [vmem:[%s116 + $0x298] sm:$0x3f]
      %v169 = vld [vmem:[%s116 + $0x2c0] sm:$0xff]
      %v170 = vld [vmem:[%s116 + $0x2c8] sm:$0xff]
      %v171 = vld [vmem:[%s116 + $0x2d0] sm:$0xff]
      %v172 = vld [vmem:[%s116 + $0x2d8] sm:$0x3f]
      %v173 = vld [vmem:[%s116 + $0x300] sm:$0xff]
      %v174 = vld [vmem:[%s116 + $0x308] sm:$0xff]
      %v175 = vld [vmem:[%s116 + $0x310] sm:$0xff]
      %v176 = vld [vmem:[%s116 + $0x318] sm:$0x3f]
      %v177 = vld [vmem:[%s116 + $0x340] sm:$0xff]
      %v178 = vld [vmem:[%s116 + $0x348] sm:$0xff]
      %v179 = vld [vmem:[%s116 + $0x350] sm:$0xff]
      %v180 = vld [vmem:[%s116 + $0x358] sm:$0x3f]
      %v181 = vld [vmem:[%s116 + $0x380] sm:$0xff]
      %v182 = vld [vmem:[%s116 + $0x388] sm:$0xff]
      %v183 = vld [vmem:[%s116 + $0x390] sm:$0xff]
      %v184 = vld [vmem:[%s116 + $0x398] sm:$0x3f]
      %v185 = vld [vmem:[%s116 + $0x3c0] sm:$0xff]
      %v186 = vld [vmem:[%s116 + $0x3c8] sm:$0xff]
      %v187 = vld [vmem:[%s116 + $0x3d0] sm:$0xff]
      %v188 = vld [vmem:[%s116 + $0x3d8] sm:$0x3f]
      %v189 = vld [vmem:[%s116 + $0x400] sm:$0xff]
      %v190 = vld [vmem:[%s116 + $0x408] sm:$0xff]
      %v191 = vld [vmem:[%s116 + $0x410] sm:$0xff]
      %v192 = vld [vmem:[%s116 + $0x418] sm:$0x3f]
      %v193 = vld [vmem:[%s116 + $0x440] sm:$0xff]
      %v194 = vld [vmem:[%s116 + $0x448] sm:$0xff]
      %v195 = vld [vmem:[%s116 + $0x450] sm:$0xff]
      %v196 = vld [vmem:[%s116 + $0x458] sm:$0x3f]
      %v197 = vld [vmem:[%s116 + $0x480] sm:$0xff]
      %v198 = vld [vmem:[%s116 + $0x488] sm:$0xff]
      %v199 = vld [vmem:[%s116 + $0x490] sm:$0xff]
      %v200 = vld [vmem:[%s116 + $0x498] sm:$0x3f]
      %v201 = vld [vmem:[%s116 + $0x4c0] sm:$0xff]
      %v202 = vld [vmem:[%s116 + $0x4c8] sm:$0xff]
      %v203 = vld [vmem:[%s116 + $0x4d0] sm:$0xff]
      %v204 = vld [vmem:[%s116 + $0x4d8] sm:$0x3f]
      %v205 = vld [vmem:[%s116 + $0x500] sm:$0xff]
      %v206 = vld [vmem:[%s116 + $0x508] sm:$0xff]
      %v207 = vld [vmem:[%s116 + $0x510] sm:$0xff]
      %v208 = vld [vmem:[%s116 + $0x518] sm:$0x3f]
      %v209 = vld [vmem:[%s116 + $0x540] sm:$0xff]
      %v210 = vld [vmem:[%s116 + $0x548] sm:$0xff]
      %v211 = vld [vmem:[%s116 + $0x550] sm:$0xff]
      %v212 = vld [vmem:[%s116 + $0x558] sm:$0x3f]
      %v213 = vld [vmem:[%s116 + $0x580] sm:$0xff]
      %v214 = vld [vmem:[%s116 + $0x588] sm:$0xff]
      %v215 = vld [vmem:[%s116 + $0x590] sm:$0xff]
      %v216 = vld [vmem:[%s116 + $0x598] sm:$0x3f]
      %v217 = vld [vmem:[%s116 + $0x5c0] sm:$0xff]
      %v218 = vld [vmem:[%s116 + $0x5c8] sm:$0xff]
      %v219 = vld [vmem:[%s116 + $0x5d0] sm:$0xff]
      %v220 = vld [vmem:[%s116 + $0x5d8] sm:$0x3f]
      %v221 = vld [vmem:[%s116 + $0x600] sm:$0xff]
      %v222 = vld [vmem:[%s116 + $0x608] sm:$0xff]
      %v223 = vld [vmem:[%s116 + $0x610] sm:$0xff]
      %v224 = vld [vmem:[%s116 + $0x618] sm:$0x3f]
      %v225 = vld [vmem:[%s116 + $0x640] sm:$0xff]
      %v226 = vld [vmem:[%s116 + $0x648] sm:$0xff]
      %v227 = vld [vmem:[%s116 + $0x650] sm:$0xff]
      %v228 = vld [vmem:[%s116 + $0x658] sm:$0x3f]
      %v229 = vld [vmem:[%s116 + $0x680] sm:$0xff]
      %v230 = vld [vmem:[%s116 + $0x688] sm:$0xff]
      %v231 = vld [vmem:[%s116 + $0x690] sm:$0xff]
      %v232 = vld [vmem:[%s116 + $0x698] sm:$0x3f]
      %v233 = vld [vmem:[%s116 + $0x6c0] sm:$0xff]
      %v234 = vld [vmem:[%s116 + $0x6c8] sm:$0xff]
      %v235 = vld [vmem:[%s116 + $0x6d0] sm:$0xff]
      %v236 = vld [vmem:[%s116 + $0x6d8] sm:$0x3f]
      %v237 = vld [vmem:[%s116 + $0x700] sm:$0xff]
      %v238 = vld [vmem:[%s116 + $0x708] sm:$0xff]
      %v239 = vld [vmem:[%s116 + $0x710] sm:$0xff]
      %v240 = vld [vmem:[%s116 + $0x718] sm:$0x3f]
      %v241 = vld [vmem:[%s116 + $0x740] sm:$0xff]
      %v242 = vld [vmem:[%s116 + $0x748] sm:$0xff]
      %v243 = vld [vmem:[%s116 + $0x750] sm:$0xff]
      %v244 = vld [vmem:[%s116 + $0x758] sm:$0x3f]
      %s245 = scalar_lea.vmem %s116, 32
      %v246 = vld [vmem:[%s245] sm:$0xff]
      %v247 = vld [vmem:[%s245 + $0x8] sm:$0xff]
      %v248 = vld [vmem:[%s245 + $0x10] sm:$0xff]
      %v249 = vld [vmem:[%s245 + $0x18] sm:$0x3f]
      %v250 = vld [vmem:[%s245 + $0x40] sm:$0xff]
      %v251 = vld [vmem:[%s245 + $0x48] sm:$0xff]
      %v252 = vld [vmem:[%s245 + $0x50] sm:$0xff]
      %v253 = vld [vmem:[%s245 + $0x58] sm:$0x3f]
      %v254 = vld [vmem:[%s245 + $0x80] sm:$0xff]
      %v255 = vld [vmem:[%s245 + $0x88] sm:$0xff]
      %v256 = vld [vmem:[%s245 + $0x90] sm:$0xff]
      %v257 = vld [vmem:[%s245 + $0x98] sm:$0x3f]
      %v258 = vld [vmem:[%s245 + $0xc0] sm:$0xff]
      %v259 = vld [vmem:[%s245 + $0xc8] sm:$0xff]
      %v260 = vld [vmem:[%s245 + $0xd0] sm:$0xff]
      %v261 = vld [vmem:[%s245 + $0xd8] sm:$0x3f]
      %v262 = vld [vmem:[%s245 + $0x100] sm:$0xff]
      %v263 = vld [vmem:[%s245 + $0x108] sm:$0xff]
      %v264 = vld [vmem:[%s245 + $0x110] sm:$0xff]
      %v265 = vld [vmem:[%s245 + $0x118] sm:$0x3f]
      %v266 = vld [vmem:[%s245 + $0x140] sm:$0xff]
      %v267 = vld [vmem:[%s245 + $0x148] sm:$0xff]
      %v268 = vld [vmem:[%s245 + $0x150] sm:$0xff]
      %v269 = vld [vmem:[%s245 + $0x158] sm:$0x3f]
      %v270 = vld [vmem:[%s245 + $0x180] sm:$0xff]
      %v271 = vld [vmem:[%s245 + $0x188] sm:$0xff]
      %v272 = vld [vmem:[%s245 + $0x190] sm:$0xff]
      %v273 = vld [vmem:[%s245 + $0x198] sm:$0x3f]
      %v274 = vld [vmem:[%s245 + $0x1c0] sm:$0xff]
      %v275 = vld [vmem:[%s245 + $0x1c8] sm:$0xff]
      %v276 = vld [vmem:[%s245 + $0x1d0] sm:$0xff]
      %v277 = vld [vmem:[%s245 + $0x1d8] sm:$0x3f]
      %v278 = vld [vmem:[%s245 + $0x200] sm:$0xff]
      %v279 = vld [vmem:[%s245 + $0x208] sm:$0xff]
      %v280 = vld [vmem:[%s245 + $0x210] sm:$0xff]
      %v281 = vld [vmem:[%s245 + $0x218] sm:$0x3f]
      %v282 = vld [vmem:[%s245 + $0x240] sm:$0xff]
      %v283 = vld [vmem:[%s245 + $0x248] sm:$0xff]
      %v284 = vld [vmem:[%s245 + $0x250] sm:$0xff]
      %v285 = vld [vmem:[%s245 + $0x258] sm:$0x3f]
      %v286 = vld [vmem:[%s245 + $0x280] sm:$0xff]
      %v287 = vld [vmem:[%s245 + $0x288] sm:$0xff]
      %v288 = vld [vmem:[%s245 + $0x290] sm:$0xff]
      %v289 = vld [vmem:[%s245 + $0x298] sm:$0x3f]
      %v290 = vld [vmem:[%s245 + $0x2c0] sm:$0xff]
      %v291 = vld [vmem:[%s245 + $0x2c8] sm:$0xff]
      %v292 = vld [vmem:[%s245 + $0x2d0] sm:$0xff]
      %v293 = vld [vmem:[%s245 + $0x2d8] sm:$0x3f]
      %v294 = vld [vmem:[%s245 + $0x300] sm:$0xff]
      %v295 = vld [vmem:[%s245 + $0x308] sm:$0xff]
      %v296 = vld [vmem:[%s245 + $0x310] sm:$0xff]
      %v297 = vld [vmem:[%s245 + $0x318] sm:$0x3f]
      %v298 = vld [vmem:[%s245 + $0x340] sm:$0xff]
      %v299 = vld [vmem:[%s245 + $0x348] sm:$0xff]
      %v300 = vld [vmem:[%s245 + $0x350] sm:$0xff]
      %v301 = vld [vmem:[%s245 + $0x358] sm:$0x3f]
      %v302 = vld [vmem:[%s245 + $0x380] sm:$0xff]
      %v303 = vld [vmem:[%s245 + $0x388] sm:$0xff]
      %v304 = vld [vmem:[%s245 + $0x390] sm:$0xff]
      %v305 = vld [vmem:[%s245 + $0x398] sm:$0x3f]
      %v306 = vld [vmem:[%s245 + $0x3c0] sm:$0xff]
      %v307 = vld [vmem:[%s245 + $0x3c8] sm:$0xff]
      %v308 = vld [vmem:[%s245 + $0x3d0] sm:$0xff]
      %v309 = vld [vmem:[%s245 + $0x3d8] sm:$0x3f]
      %v310 = vld [vmem:[%s245 + $0x400] sm:$0xff]
      %v311 = vld [vmem:[%s245 + $0x408] sm:$0xff]
      %v312 = vld [vmem:[%s245 + $0x410] sm:$0xff]
      %v313 = vld [vmem:[%s245 + $0x418] sm:$0x3f]
      %v314 = vld [vmem:[%s245 + $0x440] sm:$0xff]
      %v315 = vld [vmem:[%s245 + $0x448] sm:$0xff]
      %v316 = vld [vmem:[%s245 + $0x450] sm:$0xff]
      %v317 = vld [vmem:[%s245 + $0x458] sm:$0x3f]
      %v318 = vld [vmem:[%s245 + $0x480] sm:$0xff]
      %v319 = vld [vmem:[%s245 + $0x488] sm:$0xff]
      %v320 = vld [vmem:[%s245 + $0x490] sm:$0xff]
      %v321 = vld [vmem:[%s245 + $0x498] sm:$0x3f]
      %v322 = vld [vmem:[%s245 + $0x4c0] sm:$0xff]
      %v323 = vld [vmem:[%s245 + $0x4c8] sm:$0xff]
      %v324 = vld [vmem:[%s245 + $0x4d0] sm:$0xff]
      %v325 = vld [vmem:[%s245 + $0x4d8] sm:$0x3f]
      %v326 = vld [vmem:[%s245 + $0x500] sm:$0xff]
      %v327 = vld [vmem:[%s245 + $0x508] sm:$0xff]
      %v328 = vld [vmem:[%s245 + $0x510] sm:$0xff]
      %v329 = vld [vmem:[%s245 + $0x518] sm:$0x3f]
      %v330 = vld [vmem:[%s245 + $0x540] sm:$0xff]
      %v331 = vld [vmem:[%s245 + $0x548] sm:$0xff]
      %v332 = vld [vmem:[%s245 + $0x550] sm:$0xff]
      %v333 = vld [vmem:[%s245 + $0x558] sm:$0x3f]
      %v334 = vld [vmem:[%s245 + $0x580] sm:$0xff]
      %v335 = vld [vmem:[%s245 + $0x588] sm:$0xff]
      %v336 = vld [vmem:[%s245 + $0x590] sm:$0xff]
      %v337 = vld [vmem:[%s245 + $0x598] sm:$0x3f]
      %v338 = vld [vmem:[%s245 + $0x5c0] sm:$0xff]
      %v339 = vld [vmem:[%s245 + $0x5c8] sm:$0xff]
      %v340 = vld [vmem:[%s245 + $0x5d0] sm:$0xff]
      %v341 = vld [vmem:[%s245 + $0x5d8] sm:$0x3f]
      %v342 = vld [vmem:[%s245 + $0x600] sm:$0xff]
      %v343 = vld [vmem:[%s245 + $0x608] sm:$0xff]
      %v344 = vld [vmem:[%s245 + $0x610] sm:$0xff]
      %v345 = vld [vmem:[%s245 + $0x618] sm:$0x3f]
      %v346 = vld [vmem:[%s245 + $0x640] sm:$0xff]
      %v347 = vld [vmem:[%s245 + $0x648] sm:$0xff]
      %v348 = vld [vmem:[%s245 + $0x650] sm:$0xff]
      %v349 = vld [vmem:[%s245 + $0x658] sm:$0x3f]
      %v350 = vld [vmem:[%s245 + $0x680] sm:$0xff]
      %v351 = vld [vmem:[%s245 + $0x688] sm:$0xff]
      %v352 = vld [vmem:[%s245 + $0x690] sm:$0xff]
      %v353 = vld [vmem:[%s245 + $0x698] sm:$0x3f]
      %v354 = vld [vmem:[%s245 + $0x6c0] sm:$0xff]
      %v355 = vld [vmem:[%s245 + $0x6c8] sm:$0xff]
      %v356 = vld [vmem:[%s245 + $0x6d0] sm:$0xff]
      %v357 = vld [vmem:[%s245 + $0x6d8] sm:$0x3f]
      %v358 = vld [vmem:[%s245 + $0x700] sm:$0xff]
      %v359 = vld [vmem:[%s245 + $0x708] sm:$0xff]
      %v360 = vld [vmem:[%s245 + $0x710] sm:$0xff]
      %v361 = vld [vmem:[%s245 + $0x718] sm:$0x3f]
      %v362 = vld [vmem:[%s245 + $0x740] sm:$0xff]
      %v363 = vld [vmem:[%s245 + $0x748] sm:$0xff]
      %v364 = vld [vmem:[%s245 + $0x750] sm:$0xff]
      %v365 = vld [vmem:[%s245 + $0x758] sm:$0x3f]
      %v366 = vmax.f32 %v125, %v246
      %v367 = vmax.f32 %v126, %v247
      %v368 = vmax.f32 %v127, %v248
      %v369 = vmax.f32 %v128, %v249
      %v370 = vmax.f32 %v129, %v250
      %v371 = vmax.f32 %v130, %v251
      %v372 = vmax.f32 %v131, %v252
      %v373 = vmax.f32 %v132, %v253
      %v374 = vmax.f32 %v133, %v254
      %v375 = vmax.f32 %v134, %v255
      %v376 = vmax.f32 %v135, %v256
      %v377 = vmax.f32 %v136, %v257
      %v378 = vmax.f32 %v137, %v258
      %v379 = vmax.f32 %v138, %v259
      %v380 = vmax.f32 %v139, %v260
      %v381 = vmax.f32 %v140, %v261
      %v382 = vmax.f32 %v141, %v262
      %v383 = vmax.f32 %v142, %v263
      %v384 = vmax.f32 %v143, %v264
      %v385 = vmax.f32 %v144, %v265
      %v386 = vmax.f32 %v145, %v266
      %v387 = vmax.f32 %v146, %v267
      %v388 = vmax.f32 %v147, %v268
      %v389 = vmax.f32 %v148, %v269
      %v390 = vmax.f32 %v149, %v270
      %v391 = vmax.f32 %v150, %v271
      %v392 = vmax.f32 %v151, %v272
      %v393 = vmax.f32 %v152, %v273
      %v394 = vmax.f32 %v153, %v274
      %v395 = vmax.f32 %v154, %v275
      %v396 = vmax.f32 %v155, %v276
      %v397 = vmax.f32 %v156, %v277
      %v398 = vmax.f32 %v157, %v278
      %v399 = vmax.f32 %v158, %v279
      %v400 = vmax.f32 %v159, %v280
      %v401 = vmax.f32 %v160, %v281
      %v402 = vmax.f32 %v161, %v282
      %v403 = vmax.f32 %v162, %v283
      %v404 = vmax.f32 %v163, %v284
      %v405 = vmax.f32 %v164, %v285
      %v406 = vmax.f32 %v165, %v286
      %v407 = vmax.f32 %v166, %v287
      %v408 = vmax.f32 %v167, %v288
      %v409 = vmax.f32 %v168, %v289
      %v410 = vmax.f32 %v169, %v290
      %v411 = vmax.f32 %v170, %v291
      %v412 = vmax.f32 %v171, %v292
      %v413 = vmax.f32 %v172, %v293
      %v414 = vmax.f32 %v173, %v294
      %v415 = vmax.f32 %v174, %v295
      %v416 = vmax.f32 %v175, %v296
      %v417 = vmax.f32 %v176, %v297
      %v418 = vmax.f32 %v177, %v298
      %v419 = vmax.f32 %v178, %v299
      %v420 = vmax.f32 %v179, %v300
      %v421 = vmax.f32 %v180, %v301
      %v422 = vmax.f32 %v181, %v302
      %v423 = vmax.f32 %v182, %v303
      %v424 = vmax.f32 %v183, %v304
      %v425 = vmax.f32 %v184, %v305
      %v426 = vmax.f32 %v185, %v306
      %v427 = vmax.f32 %v186, %v307
      %v428 = vmax.f32 %v187, %v308
      %v429 = vmax.f32 %v188, %v309
      %v430 = vmax.f32 %v189, %v310
      %v431 = vmax.f32 %v190, %v311
      %v432 = vmax.f32 %v191, %v312
      %v433 = vmax.f32 %v192, %v313
      %v434 = vmax.f32 %v193, %v314
      %v435 = vmax.f32 %v194, %v315
      %v436 = vmax.f32 %v195, %v316
      %v437 = vmax.f32 %v196, %v317
      %v438 = vmax.f32 %v197, %v318
      %v439 = vmax.f32 %v198, %v319
      %v440 = vmax.f32 %v199, %v320
      %v441 = vmax.f32 %v200, %v321
      %v442 = vmax.f32 %v201, %v322
      %v443 = vmax.f32 %v202, %v323
      %v444 = vmax.f32 %v203, %v324
      %v445 = vmax.f32 %v204, %v325
      %v446 = vmax.f32 %v205, %v326
      %v447 = vmax.f32 %v206, %v327
      %v448 = vmax.f32 %v207, %v328
      %v449 = vmax.f32 %v208, %v329
      %v450 = vmax.f32 %v209, %v330
      %v451 = vmax.f32 %v210, %v331
      %v452 = vmax.f32 %v211, %v332
      %v453 = vmax.f32 %v212, %v333
      %v454 = vmax.f32 %v213, %v334
      %v455 = vmax.f32 %v214, %v335
      %v456 = vmax.f32 %v215, %v336
      %v457 = vmax.f32 %v216, %v337
      %v458 = vmax.f32 %v217, %v338
      %v459 = vmax.f32 %v218, %v339
      %v460 = vmax.f32 %v219, %v340
      %v461 = vmax.f32 %v220, %v341
      %v462 = vmax.f32 %v221, %v342
      %v463 = vmax.f32 %v222, %v343
      %v464 = vmax.f32 %v223, %v344
      %v465 = vmax.f32 %v224, %v345
      %v466 = vmax.f32 %v225, %v346
      %v467 = vmax.f32 %v226, %v347
      %v468 = vmax.f32 %v227, %v348
      %v469 = vmax.f32 %v228, %v349
      %v470 = vmax.f32 %v229, %v350
      %v471 = vmax.f32 %v230, %v351
      %v472 = vmax.f32 %v231, %v352
      %v473 = vmax.f32 %v232, %v353
      %v474 = vmax.f32 %v233, %v354
      %v475 = vmax.f32 %v234, %v355
      %v476 = vmax.f32 %v235, %v356
      %v477 = vmax.f32 %v236, %v357
      %v478 = vmax.f32 %v237, %v358
      %v479 = vmax.f32 %v238, %v359
      %v480 = vmax.f32 %v239, %v360
      %v481 = vmax.f32 %v240, %v361
      %v482 = vmax.f32 %v241, %v362
      %v483 = vmax.f32 %v242, %v363
      %v484 = vmax.f32 %v243, %v364
      %v485 = vmax.f32 %v244, %v365
      %606 = vrot.lane.b32.xlu0 %v366, 96
      %v607 = vpop.permute.xlu0 %606
      %608 = vrot.lane.b32.xlu0 %v367, 96
      %v609 = vpop.permute.xlu0 %608
      %610 = vrot.lane.b32.xlu0 %v368, 96
      %v611 = vpop.permute.xlu0 %610
      %612 = vrot.lane.b32.xlu0 %v369, 96
      %v613 = vpop.permute.xlu0 %612
      %614 = vrot.lane.b32.xlu0 %v370, 96
      %v615 = vpop.permute.xlu0 %614
      %616 = vrot.lane.b32.xlu0 %v371, 96
      %v617 = vpop.permute.xlu0 %616
      %618 = vrot.lane.b32.xlu0 %v372, 96
      %v619 = vpop.permute.xlu0 %618
      %620 = vrot.lane.b32.xlu0 %v373, 96
      %v621 = vpop.permute.xlu0 %620
      %622 = vrot.lane.b32.xlu0 %v374, 96
      %v623 = vpop.permute.xlu0 %622
      %624 = vrot.lane.b32.xlu0 %v375, 96
      %v625 = vpop.permute.xlu0 %624
      %626 = vrot.lane.b32.xlu0 %v376, 96
      %v627 = vpop.permute.xlu0 %626
      %628 = vrot.lane.b32.xlu0 %v377, 96
      %v629 = vpop.permute.xlu0 %628
      %630 = vrot.lane.b32.xlu0 %v378, 96
      %v631 = vpop.permute.xlu0 %630
      %632 = vrot.lane.b32.xlu0 %v379, 96
      %v633 = vpop.permute.xlu0 %632
      %634 = vrot.lane.b32.xlu0 %v380, 96
      %v635 = vpop.permute.xlu0 %634
      %636 = vrot.lane.b32.xlu0 %v381, 96
      %v637 = vpop.permute.xlu0 %636
      %638 = vrot.lane.b32.xlu0 %v382, 96
      %v639 = vpop.permute.xlu0 %638
      %640 = vrot.lane.b32.xlu0 %v383, 96
      %v641 = vpop.permute.xlu0 %640
      %642 = vrot.lane.b32.xlu0 %v384, 96
      %v643 = vpop.permute.xlu0 %642
      %644 = vrot.lane.b32.xlu0 %v385, 96
      %v645 = vpop.permute.xlu0 %644
      %646 = vrot.lane.b32.xlu0 %v386, 96
      %v647 = vpop.permute.xlu0 %646
      %648 = vrot.lane.b32.xlu0 %v387, 96
      %v649 = vpop.permute.xlu0 %648
      %650 = vrot.lane.b32.xlu0 %v388, 96
      %v651 = vpop.permute.xlu0 %650
      %652 = vrot.lane.b32.xlu0 %v389, 96
      %v653 = vpop.permute.xlu0 %652
      %654 = vrot.lane.b32.xlu0 %v390, 96
      %v655 = vpop.permute.xlu0 %654
      %656 = vrot.lane.b32.xlu0 %v391, 96
      %v657 = vpop.permute.xlu0 %656
      %658 = vrot.lane.b32.xlu0 %v392, 96
      %v659 = vpop.permute.xlu0 %658
      %660 = vrot.lane.b32.xlu0 %v393, 96
      %v661 = vpop.permute.xlu0 %660
      %662 = vrot.lane.b32.xlu0 %v394, 96
      %v663 = vpop.permute.xlu0 %662
      %664 = vrot.lane.b32.xlu0 %v395, 96
      %v665 = vpop.permute.xlu0 %664
      %666 = vrot.lane.b32.xlu0 %v396, 96
      %v667 = vpop.permute.xlu0 %666
      %668 = vrot.lane.b32.xlu0 %v397, 96
      %v669 = vpop.permute.xlu0 %668
      %670 = vrot.lane.b32.xlu0 %v398, 96
      %v671 = vpop.permute.xlu0 %670
      %672 = vrot.lane.b32.xlu0 %v399, 96
      %v673 = vpop.permute.xlu0 %672
      %674 = vrot.lane.b32.xlu0 %v400, 96
      %v675 = vpop.permute.xlu0 %674
      %676 = vrot.lane.b32.xlu0 %v401, 96
      %v677 = vpop.permute.xlu0 %676
      %678 = vrot.lane.b32.xlu0 %v402, 96
      %v679 = vpop.permute.xlu0 %678
      %680 = vrot.lane.b32.xlu0 %v403, 96
      %v681 = vpop.permute.xlu0 %680
      %682 = vrot.lane.b32.xlu0 %v404, 96
      %v683 = vpop.permute.xlu0 %682
      %684 = vrot.lane.b32.xlu0 %v405, 96
      %v685 = vpop.permute.xlu0 %684
      %686 = vrot.lane.b32.xlu0 %v406, 96
      %v687 = vpop.permute.xlu0 %686
      %688 = vrot.lane.b32.xlu0 %v407, 96
      %v689 = vpop.permute.xlu0 %688
      %690 = vrot.lane.b32.xlu0 %v408, 96
      %v691 = vpop.permute.xlu0 %690
      %692 = vrot.lane.b32.xlu0 %v409, 96
      %v693 = vpop.permute.xlu0 %692
      %694 = vrot.lane.b32.xlu0 %v410, 96
      %v695 = vpop.permute.xlu0 %694
      %696 = vrot.lane.b32.xlu0 %v411, 96
      %v697 = vpop.permute.xlu0 %696
      %698 = vrot.lane.b32.xlu0 %v412, 96
      %v699 = vpop.permute.xlu0 %698
      %700 = vrot.lane.b32.xlu0 %v413, 96
      %v701 = vpop.permute.xlu0 %700
      %702 = vrot.lane.b32.xlu0 %v414, 96
      %v703 = vpop.permute.xlu0 %702
      %704 = vrot.lane.b32.xlu0 %v415, 96
      %v705 = vpop.permute.xlu0 %704
      %706 = vrot.lane.b32.xlu0 %v416, 96
      %v707 = vpop.permute.xlu0 %706
      %708 = vrot.lane.b32.xlu0 %v417, 96
      %v709 = vpop.permute.xlu0 %708
      %710 = vrot.lane.b32.xlu0 %v418, 96
      %v711 = vpop.permute.xlu0 %710
      %712 = vrot.lane.b32.xlu0 %v419, 96
      %v713 = vpop.permute.xlu0 %712
      %714 = vrot.lane.b32.xlu0 %v420, 96
      %v715 = vpop.permute.xlu0 %714
      %716 = vrot.lane.b32.xlu0 %v421, 96
      %v717 = vpop.permute.xlu0 %716
      %718 = vrot.lane.b32.xlu0 %v422, 96
      %v719 = vpop.permute.xlu0 %718
      %720 = vrot.lane.b32.xlu0 %v423, 96
      %v721 = vpop.permute.xlu0 %720
      %722 = vrot.lane.b32.xlu0 %v424, 96
      %v723 = vpop.permute.xlu0 %722
      %724 = vrot.lane.b32.xlu0 %v425, 96
      %v725 = vpop.permute.xlu0 %724
      %726 = vrot.lane.b32.xlu0 %v426, 96
      %v727 = vpop.permute.xlu0 %726
      %728 = vrot.lane.b32.xlu0 %v427, 96
      %v729 = vpop.permute.xlu0 %728
      %730 = vrot.lane.b32.xlu0 %v428, 96
      %v731 = vpop.permute.xlu0 %730
      %732 = vrot.lane.b32.xlu0 %v429, 96
      %v733 = vpop.permute.xlu0 %732
      %734 = vrot.lane.b32.xlu0 %v430, 96
      %v735 = vpop.permute.xlu0 %734
      %736 = vrot.lane.b32.xlu0 %v431, 96
      %v737 = vpop.permute.xlu0 %736
      %738 = vrot.lane.b32.xlu0 %v432, 96
      %v739 = vpop.permute.xlu0 %738
      %740 = vrot.lane.b32.xlu0 %v433, 96
      %v741 = vpop.permute.xlu0 %740
      %742 = vrot.lane.b32.xlu0 %v434, 96
      %v743 = vpop.permute.xlu0 %742
      %744 = vrot.lane.b32.xlu0 %v435, 96
      %v745 = vpop.permute.xlu0 %744
      %746 = vrot.lane.b32.xlu0 %v436, 96
      %v747 = vpop.permute.xlu0 %746
      %748 = vrot.lane.b32.xlu0 %v437, 96
      %v749 = vpop.permute.xlu0 %748
      %750 = vrot.lane.b32.xlu0 %v438, 96
      %v751 = vpop.permute.xlu0 %750
      %752 = vrot.lane.b32.xlu0 %v439, 96
      %v753 = vpop.permute.xlu0 %752
      %754 = vrot.lane.b32.xlu0 %v440, 96
      %v755 = vpop.permute.xlu0 %754
      %756 = vrot.lane.b32.xlu0 %v441, 96
      %v757 = vpop.permute.xlu0 %756
      %758 = vrot.lane.b32.xlu0 %v442, 96
      %v759 = vpop.permute.xlu0 %758
      %760 = vrot.lane.b32.xlu0 %v443, 96
      %v761 = vpop.permute.xlu0 %760
      %762 = vrot.lane.b32.xlu0 %v444, 96
      %v763 = vpop.permute.xlu0 %762
      %764 = vrot.lane.b32.xlu0 %v445, 96
      %v765 = vpop.permute.xlu0 %764
      %766 = vrot.lane.b32.xlu0 %v446, 96
      %v767 = vpop.permute.xlu0 %766
      %768 = vrot.lane.b32.xlu0 %v447, 96
      %v769 = vpop.permute.xlu0 %768
      %770 = vrot.lane.b32.xlu0 %v448, 96
      %v771 = vpop.permute.xlu0 %770
      %772 = vrot.lane.b32.xlu0 %v449, 96
      %v773 = vpop.permute.xlu0 %772
      %774 = vrot.lane.b32.xlu0 %v450, 96
      %v775 = vpop.permute.xlu0 %774
      %776 = vrot.lane.b32.xlu0 %v451, 96
      %v777 = vpop.permute.xlu0 %776
      %778 = vrot.lane.b32.xlu0 %v452, 96
      %v779 = vpop.permute.xlu0 %778
      %780 = vrot.lane.b32.xlu0 %v453, 96
      %v781 = vpop.permute.xlu0 %780
      %782 = vrot.lane.b32.xlu0 %v454, 96
      %v783 = vpop.permute.xlu0 %782
      %784 = vrot.lane.b32.xlu0 %v455, 96
      %v785 = vpop.permute.xlu0 %784
      %786 = vrot.lane.b32.xlu0 %v456, 96
      %v787 = vpop.permute.xlu0 %786
      %788 = vrot.lane.b32.xlu0 %v457, 96
      %v789 = vpop.permute.xlu0 %788
      %790 = vrot.lane.b32.xlu0 %v458, 96
      %v791 = vpop.permute.xlu0 %790
      %792 = vrot.lane.b32.xlu0 %v459, 96
      %v793 = vpop.permute.xlu0 %792
      %794 = vrot.lane.b32.xlu0 %v460, 96
      %v795 = vpop.permute.xlu0 %794
      %796 = vrot.lane.b32.xlu0 %v461, 96
      %v797 = vpop.permute.xlu0 %796
      %798 = vrot.lane.b32.xlu0 %v462, 96
      %v799 = vpop.permute.xlu0 %798
      %800 = vrot.lane.b32.xlu0 %v463, 96
      %v801 = vpop.permute.xlu0 %800
      %802 = vrot.lane.b32.xlu0 %v464, 96
      %v803 = vpop.permute.xlu0 %802
      %804 = vrot.lane.b32.xlu0 %v465, 96
      %v805 = vpop.permute.xlu0 %804
      %806 = vrot.lane.b32.xlu0 %v466, 96
      %v807 = vpop.permute.xlu0 %806
      %808 = vrot.lane.b32.xlu0 %v467, 96
      %v809 = vpop.permute.xlu0 %808
      %810 = vrot.lane.b32.xlu0 %v468, 96
      %v811 = vpop.permute.xlu0 %810
      %812 = vrot.lane.b32.xlu0 %v469, 96
      %v813 = vpop.permute.xlu0 %812
      %814 = vrot.lane.b32.xlu0 %v470, 96
      %v815 = vpop.permute.xlu0 %814
      %816 = vrot.lane.b32.xlu0 %v471, 96
      %v817 = vpop.permute.xlu0 %816
      %818 = vrot.lane.b32.xlu0 %v472, 96
      %v819 = vpop.permute.xlu0 %818
      %820 = vrot.lane.b32.xlu0 %v473, 96
      %v821 = vpop.permute.xlu0 %820
      %822 = vrot.lane.b32.xlu0 %v474, 96
      %v823 = vpop.permute.xlu0 %822
      %824 = vrot.lane.b32.xlu0 %v475, 96
      %v825 = vpop.permute.xlu0 %824
      %826 = vrot.lane.b32.xlu0 %v476, 96
      %v827 = vpop.permute.xlu0 %826
      %828 = vrot.lane.b32.xlu0 %v477, 96
      %v829 = vpop.permute.xlu0 %828
      %830 = vrot.lane.b32.xlu0 %v478, 96
      %v831 = vpop.permute.xlu0 %830
      %832 = vrot.lane.b32.xlu0 %v479, 96
      %v833 = vpop.permute.xlu0 %832
      %834 = vrot.lane.b32.xlu0 %v480, 96
      %v835 = vpop.permute.xlu0 %834
      %836 = vrot.lane.b32.xlu0 %v481, 96
      %v837 = vpop.permute.xlu0 %836
      %838 = vrot.lane.b32.xlu0 %v482, 96
      %v839 = vpop.permute.xlu0 %838
      %840 = vrot.lane.b32.xlu0 %v483, 96
      %v841 = vpop.permute.xlu0 %840
      %842 = vrot.lane.b32.xlu0 %v484, 96
      %v843 = vpop.permute.xlu0 %842
      %844 = vrot.lane.b32.xlu0 %v485, 96
      %v845 = vpop.permute.xlu0 %844
      %v966 = vmax.f32 %v366, %v607
      %v967 = vmax.f32 %v367, %v609
      %v968 = vmax.f32 %v368, %v611
      %v969 = vmax.f32 %v369, %v613
      %v970 = vmax.f32 %v370, %v615
      %v971 = vmax.f32 %v371, %v617
      %v972 = vmax.f32 %v372, %v619
      %v973 = vmax.f32 %v373, %v621
      %v974 = vmax.f32 %v374, %v623
      %v975 = vmax.f32 %v375, %v625
      %v976 = vmax.f32 %v376, %v627
      %v977 = vmax.f32 %v377, %v629
      %v978 = vmax.f32 %v378, %v631
      %v979 = vmax.f32 %v379, %v633
      %v980 = vmax.f32 %v380, %v635
      %v981 = vmax.f32 %v381, %v637
      %v982 = vmax.f32 %v382, %v639
      %v983 = vmax.f32 %v383, %v641
      %v984 = vmax.f32 %v384, %v643
      %v985 = vmax.f32 %v385, %v645
      %v986 = vmax.f32 %v386, %v647
      %v987 = vmax.f32 %v387, %v649
      %v988 = vmax.f32 %v388, %v651
      %v989 = vmax.f32 %v389, %v653
      %v990 = vmax.f32 %v390, %v655
      %v991 = vmax.f32 %v391, %v657
      %v992 = vmax.f32 %v392, %v659
      %v993 = vmax.f32 %v393, %v661
      %v994 = vmax.f32 %v394, %v663
      %v995 = vmax.f32 %v395, %v665
      %v996 = vmax.f32 %v396, %v667
      %v997 = vmax.f32 %v397, %v669
      %v998 = vmax.f32 %v398, %v671
      %v999 = vmax.f32 %v399, %v673
      %v1000 = vmax.f32 %v400, %v675
      %v1001 = vmax.f32 %v401, %v677
      %v1002 = vmax.f32 %v402, %v679
      %v1003 = vmax.f32 %v403, %v681
      %v1004 = vmax.f32 %v404, %v683
      %v1005 = vmax.f32 %v405, %v685
      %v1006 = vmax.f32 %v406, %v687
      %v1007 = vmax.f32 %v407, %v689
      %v1008 = vmax.f32 %v408, %v691
      %v1009 = vmax.f32 %v409, %v693
      %v1010 = vmax.f32 %v410, %v695
      %v1011 = vmax.f32 %v411, %v697
      %v1012 = vmax.f32 %v412, %v699
      %v1013 = vmax.f32 %v413, %v701
      %v1014 = vmax.f32 %v414, %v703
      %v1015 = vmax.f32 %v415, %v705
      %v1016 = vmax.f32 %v416, %v707
      %v1017 = vmax.f32 %v417, %v709
      %v1018 = vmax.f32 %v418, %v711
      %v1019 = vmax.f32 %v419, %v713
      %v1020 = vmax.f32 %v420, %v715
      %v1021 = vmax.f32 %v421, %v717
      %v1022 = vmax.f32 %v422, %v719
      %v1023 = vmax.f32 %v423, %v721
      %v1024 = vmax.f32 %v424, %v723
      %v1025 = vmax.f32 %v425, %v725
      %v1026 = vmax.f32 %v426, %v727
      %v1027 = vmax.f32 %v427, %v729
      %v1028 = vmax.f32 %v428, %v731
      %v1029 = vmax.f32 %v429, %v733
      %v1030 = vmax.f32 %v430, %v735
      %v1031 = vmax.f32 %v431, %v737
      %v1032 = vmax.f32 %v432, %v739
      %v1033 = vmax.f32 %v433, %v741
      %v1034 = vmax.f32 %v434, %v743
      %v1035 = vmax.f32 %v435, %v745
      %v1036 = vmax.f32 %v436, %v747
      %v1037 = vmax.f32 %v437, %v749
      %v1038 = vmax.f32 %v438, %v751
      %v1039 = vmax.f32 %v439, %v753
      %v1040 = vmax.f32 %v440, %v755
      %v1041 = vmax.f32 %v441, %v757
      %v1042 = vmax.f32 %v442, %v759
      %v1043 = vmax.f32 %v443, %v761
      %v1044 = vmax.f32 %v444, %v763
      %v1045 = vmax.f32 %v445, %v765
      %v1046 = vmax.f32 %v446, %v767
      %v1047 = vmax.f32 %v447, %v769
      %v1048 = vmax.f32 %v448, %v771
      %v1049 = vmax.f32 %v449, %v773
      %v1050 = vmax.f32 %v450, %v775
      %v1051 = vmax.f32 %v451, %v777
      %v1052 = vmax.f32 %v452, %v779
      %v1053 = vmax.f32 %v453, %v781
      %v1054 = vmax.f32 %v454, %v783
      %v1055 = vmax.f32 %v455, %v785
      %v1056 = vmax.f32 %v456, %v787
      %v1057 = vmax.f32 %v457, %v789
      %v1058 = vmax.f32 %v458, %v791
      %v1059 = vmax.f32 %v459, %v793
      %v1060 = vmax.f32 %v460, %v795
      %v1061 = vmax.f32 %v461, %v797
      %v1062 = vmax.f32 %v462, %v799
      %v1063 = vmax.f32 %v463, %v801
      %v1064 = vmax.f32 %v464, %v803
      %v1065 = vmax.f32 %v465, %v805
      %v1066 = vmax.f32 %v466, %v807
      %v1067 = vmax.f32 %v467, %v809
      %v1068 = vmax.f32 %v468, %v811
      %v1069 = vmax.f32 %v469, %v813
      %v1070 = vmax.f32 %v470, %v815
      %v1071 = vmax.f32 %v471, %v817
      %v1072 = vmax.f32 %v472, %v819
      %v1073 = vmax.f32 %v473, %v821
      %v1074 = vmax.f32 %v474, %v823
      %v1075 = vmax.f32 %v475, %v825
      %v1076 = vmax.f32 %v476, %v827
      %v1077 = vmax.f32 %v477, %v829
      %v1078 = vmax.f32 %v478, %v831
      %v1079 = vmax.f32 %v479, %v833
      %v1080 = vmax.f32 %v480, %v835
      %v1081 = vmax.f32 %v481, %v837
      %v1082 = vmax.f32 %v482, %v839
      %v1083 = vmax.f32 %v483, %v841
      %v1084 = vmax.f32 %v484, %v843
      %v1085 = vmax.f32 %v485, %v845
      %vm1086 = vcmask 261120
      %1087 = vst.msk [vmem:[%s123] sm:$0xff] %vm1086, %v966
      %1088 = vst.msk [vmem:[%s123 + $0x8] sm:$0xff] %vm1086, %v967
      %1089 = vst.msk [vmem:[%s123 + $0x10] sm:$0xff] %vm1086, %v968
      %vm1090 = vcmask 259072
      %1091 = vst.msk [vmem:[%s123 + $0x18] sm:$0x3f] %vm1090, %v969
      %1092 = vst.msk [vmem:[%s123 + $0x20] sm:$0xff] %vm1086, %v970
      %1093 = vst.msk [vmem:[%s123 + $0x28] sm:$0xff] %vm1086, %v971
      %1094 = vst.msk [vmem:[%s123 + $0x30] sm:$0xff] %vm1086, %v972
      %1095 = vst.msk [vmem:[%s123 + $0x38] sm:$0x3f] %vm1090, %v973
      %1096 = vst.msk [vmem:[%s123 + $0x40] sm:$0xff] %vm1086, %v974
      %1097 = vst.msk [vmem:[%s123 + $0x48] sm:$0xff] %vm1086, %v975
      %1098 = vst.msk [vmem:[%s123 + $0x50] sm:$0xff] %vm1086, %v976
      %1099 = vst.msk [vmem:[%s123 + $0x58] sm:$0x3f] %vm1090, %v977
      %1100 = vst.msk [vmem:[%s123 + $0x60] sm:$0xff] %vm1086, %v978
      %1101 = vst.msk [vmem:[%s123 + $0x68] sm:$0xff] %vm1086, %v979
      %1102 = vst.msk [vmem:[%s123 + $0x70] sm:$0xff] %vm1086, %v980
      %1103 = vst.msk [vmem:[%s123 + $0x78] sm:$0x3f] %vm1090, %v981
      %1104 = vst.msk [vmem:[%s123 + $0x80] sm:$0xff] %vm1086, %v982
      %1105 = vst.msk [vmem:[%s123 + $0x88] sm:$0xff] %vm1086, %v983
      %1106 = vst.msk [vmem:[%s123 + $0x90] sm:$0xff] %vm1086, %v984
      %1107 = vst.msk [vmem:[%s123 + $0x98] sm:$0x3f] %vm1090, %v985
      %1108 = vst.msk [vmem:[%s123 + $0xa0] sm:$0xff] %vm1086, %v986
      %1109 = vst.msk [vmem:[%s123 + $0xa8] sm:$0xff] %vm1086, %v987
      %1110 = vst.msk [vmem:[%s123 + $0xb0] sm:$0xff] %vm1086, %v988
      %1111 = vst.msk [vmem:[%s123 + $0xb8] sm:$0x3f] %vm1090, %v989
      %1112 = vst.msk [vmem:[%s123 + $0xc0] sm:$0xff] %vm1086, %v990
      %1113 = vst.msk [vmem:[%s123 + $0xc8] sm:$0xff] %vm1086, %v991
      %1114 = vst.msk [vmem:[%s123 + $0xd0] sm:$0xff] %vm1086, %v992
      %1115 = vst.msk [vmem:[%s123 + $0xd8] sm:$0x3f] %vm1090, %v993
      %1116 = vst.msk [vmem:[%s123 + $0xe0] sm:$0xff] %vm1086, %v994
      %1117 = vst.msk [vmem:[%s123 + $0xe8] sm:$0xff] %vm1086, %v995
      %1118 = vst.msk [vmem:[%s123 + $0xf0] sm:$0xff] %vm1086, %v996
      %1119 = vst.msk [vmem:[%s123 + $0xf8] sm:$0x3f] %vm1090, %v997
      %1120 = vst.msk [vmem:[%s123 + $0x100] sm:$0xff] %vm1086, %v998
      %1121 = vst.msk [vmem:[%s123 + $0x108] sm:$0xff] %vm1086, %v999
      %1122 = vst.msk [vmem:[%s123 + $0x110] sm:$0xff] %vm1086, %v1000
      %1123 = vst.msk [vmem:[%s123 + $0x118] sm:$0x3f] %vm1090, %v1001
      %1124 = vst.msk [vmem:[%s123 + $0x120] sm:$0xff] %vm1086, %v1002
      %1125 = vst.msk [vmem:[%s123 + $0x128] sm:$0xff] %vm1086, %v1003
      %1126 = vst.msk [vmem:[%s123 + $0x130] sm:$0xff] %vm1086, %v1004
      %1127 = vst.msk [vmem:[%s123 + $0x138] sm:$0x3f] %vm1090, %v1005
      %1128 = vst.msk [vmem:[%s123 + $0x140] sm:$0xff] %vm1086, %v1006
      %1129 = vst.msk [vmem:[%s123 + $0x148] sm:$0xff] %vm1086, %v1007
      %1130 = vst.msk [vmem:[%s123 + $0x150] sm:$0xff] %vm1086, %v1008
      %1131 = vst.msk [vmem:[%s123 + $0x158] sm:$0x3f] %vm1090, %v1009
      %1132 = vst.msk [vmem:[%s123 + $0x160] sm:$0xff] %vm1086, %v1010
      %1133 = vst.msk [vmem:[%s123 + $0x168] sm:$0xff] %vm1086, %v1011
      %1134 = vst.msk [vmem:[%s123 + $0x170] sm:$0xff] %vm1086, %v1012
      %1135 = vst.msk [vmem:[%s123 + $0x178] sm:$0x3f] %vm1090, %v1013
      %1136 = vst.msk [vmem:[%s123 + $0x180] sm:$0xff] %vm1086, %v1014
      %1137 = vst.msk [vmem:[%s123 + $0x188] sm:$0xff] %vm1086, %v1015
      %1138 = vst.msk [vmem:[%s123 + $0x190] sm:$0xff] %vm1086, %v1016
      %1139 = vst.msk [vmem:[%s123 + $0x198] sm:$0x3f] %vm1090, %v1017
      %1140 = vst.msk [vmem:[%s123 + $0x1a0] sm:$0xff] %vm1086, %v1018
      %1141 = vst.msk [vmem:[%s123 + $0x1a8] sm:$0xff] %vm1086, %v1019
      %1142 = vst.msk [vmem:[%s123 + $0x1b0] sm:$0xff] %vm1086, %v1020
      %1143 = vst.msk [vmem:[%s123 + $0x1b8] sm:$0x3f] %vm1090, %v1021
      %1144 = vst.msk [vmem:[%s123 + $0x1c0] sm:$0xff] %vm1086, %v1022
      %1145 = vst.msk [vmem:[%s123 + $0x1c8] sm:$0xff] %vm1086, %v1023
      %1146 = vst.msk [vmem:[%s123 + $0x1d0] sm:$0xff] %vm1086, %v1024
      %1147 = vst.msk [vmem:[%s123 + $0x1d8] sm:$0x3f] %vm1090, %v1025
      %1148 = vst.msk [vmem:[%s123 + $0x1e0] sm:$0xff] %vm1086, %v1026
      %1149 = vst.msk [vmem:[%s123 + $0x1e8] sm:$0xff] %vm1086, %v1027
      %1150 = vst.msk [vmem:[%s123 + $0x1f0] sm:$0xff] %vm1086, %v1028
      %1151 = vst.msk [vmem:[%s123 + $0x1f8] sm:$0x3f] %vm1090, %v1029
      %1152 = vst.msk [vmem:[%s123 + $0x200] sm:$0xff] %vm1086, %v1030
      %1153 = vst.msk [vmem:[%s123 + $0x208] sm:$0xff] %vm1086, %v1031
      %1154 = vst.msk [vmem:[%s123 + $0x210] sm:$0xff] %vm1086, %v1032
      %1155 = vst.msk [vmem:[%s123 + $0x218] sm:$0x3f] %vm1090, %v1033
      %1156 = vst.msk [vmem:[%s123 + $0x220] sm:$0xff] %vm1086, %v1034
      %1157 = vst.msk [vmem:[%s123 + $0x228] sm:$0xff] %vm1086, %v1035
      %1158 = vst.msk [vmem:[%s123 + $0x230] sm:$0xff] %vm1086, %v1036
      %1159 = vst.msk [vmem:[%s123 + $0x238] sm:$0x3f] %vm1090, %v1037
      %1160 = vst.msk [vmem:[%s123 + $0x240] sm:$0xff] %vm1086, %v1038
      %1161 = vst.msk [vmem:[%s123 + $0x248] sm:$0xff] %vm1086, %v1039
      %1162 = vst.msk [vmem:[%s123 + $0x250] sm:$0xff] %vm1086, %v1040
      %1163 = vst.msk [vmem:[%s123 + $0x258] sm:$0x3f] %vm1090, %v1041
      %1164 = vst.msk [vmem:[%s123 + $0x260] sm:$0xff] %vm1086, %v1042
      %1165 = vst.msk [vmem:[%s123 + $0x268] sm:$0xff] %vm1086, %v1043
      %1166 = vst.msk [vmem:[%s123 + $0x270] sm:$0xff] %vm1086, %v1044
      %1167 = vst.msk [vmem:[%s123 + $0x278] sm:$0x3f] %vm1090, %v1045
      %1168 = vst.msk [vmem:[%s123 + $0x280] sm:$0xff] %vm1086, %v1046
      %1169 = vst.msk [vmem:[%s123 + $0x288] sm:$0xff] %vm1086, %v1047
      %1170 = vst.msk [vmem:[%s123 + $0x290] sm:$0xff] %vm1086, %v1048
      %1171 = vst.msk [vmem:[%s123 + $0x298] sm:$0x3f] %vm1090, %v1049
      %1172 = vst.msk [vmem:[%s123 + $0x2a0] sm:$0xff] %vm1086, %v1050
      %1173 = vst.msk [vmem:[%s123 + $0x2a8] sm:$0xff] %vm1086, %v1051
      %1174 = vst.msk [vmem:[%s123 + $0x2b0] sm:$0xff] %vm1086, %v1052
      %1175 = vst.msk [vmem:[%s123 + $0x2b8] sm:$0x3f] %vm1090, %v1053
      %1176 = vst.msk [vmem:[%s123 + $0x2c0] sm:$0xff] %vm1086, %v1054
      %1177 = vst.msk [vmem:[%s123 + $0x2c8] sm:$0xff] %vm1086, %v1055
      %1178 = vst.msk [vmem:[%s123 + $0x2d0] sm:$0xff] %vm1086, %v1056
      %1179 = vst.msk [vmem:[%s123 + $0x2d8] sm:$0x3f] %vm1090, %v1057
      %1180 = vst.msk [vmem:[%s123 + $0x2e0] sm:$0xff] %vm1086, %v1058
      %1181 = vst.msk [vmem:[%s123 + $0x2e8] sm:$0xff] %vm1086, %v1059
      %1182 = vst.msk [vmem:[%s123 + $0x2f0] sm:$0xff] %vm1086, %v1060
      %1183 = vst.msk [vmem:[%s123 + $0x2f8] sm:$0x3f] %vm1090, %v1061
      %1184 = vst.msk [vmem:[%s123 + $0x300] sm:$0xff] %vm1086, %v1062
      %1185 = vst.msk [vmem:[%s123 + $0x308] sm:$0xff] %vm1086, %v1063
      %1186 = vst.msk [vmem:[%s123 + $0x310] sm:$0xff] %vm1086, %v1064
      %1187 = vst.msk [vmem:[%s123 + $0x318] sm:$0x3f] %vm1090, %v1065
      %1188 = vst.msk [vmem:[%s123 + $0x320] sm:$0xff] %vm1086, %v1066
      %1189 = vst.msk [vmem:[%s123 + $0x328] sm:$0xff] %vm1086, %v1067
      %1190 = vst.msk [vmem:[%s123 + $0x330] sm:$0xff] %vm1086, %v1068
      %1191 = vst.msk [vmem:[%s123 + $0x338] sm:$0x3f] %vm1090, %v1069
      %1192 = vst.msk [vmem:[%s123 + $0x340] sm:$0xff] %vm1086, %v1070
      %1193 = vst.msk [vmem:[%s123 + $0x348] sm:$0xff] %vm1086, %v1071
      %1194 = vst.msk [vmem:[%s123 + $0x350] sm:$0xff] %vm1086, %v1072
      %1195 = vst.msk [vmem:[%s123 + $0x358] sm:$0x3f] %vm1090, %v1073
      %1196 = vst.msk [vmem:[%s123 + $0x360] sm:$0xff] %vm1086, %v1074
      %1197 = vst.msk [vmem:[%s123 + $0x368] sm:$0xff] %vm1086, %v1075
      %1198 = vst.msk [vmem:[%s123 + $0x370] sm:$0xff] %vm1086, %v1076
      %1199 = vst.msk [vmem:[%s123 + $0x378] sm:$0x3f] %vm1090, %v1077
      %1200 = vst.msk [vmem:[%s123 + $0x380] sm:$0xff] %vm1086, %v1078
      %1201 = vst.msk [vmem:[%s123 + $0x388] sm:$0xff] %vm1086, %v1079
      %1202 = vst.msk [vmem:[%s123 + $0x390] sm:$0xff] %vm1086, %v1080
      %1203 = vst.msk [vmem:[%s123 + $0x398] sm:$0x3f] %vm1090, %v1081
      %1204 = vst.msk [vmem:[%s123 + $0x3a0] sm:$0xff] %vm1086, %v1082
      %1205 = vst.msk [vmem:[%s123 + $0x3a8] sm:$0xff] %vm1086, %v1083
      %1206 = vst.msk [vmem:[%s123 + $0x3b0] sm:$0xff] %vm1086, %v1084
      %1207 = vst.msk [vmem:[%s123 + $0x3b8] sm:$0x3f] %vm1090, %v1085
      %s1208 = smul.u32 30, %s12
      %p1209 = scmp.lt.s32.totalorder %s1208, 59
      %s1210 = scalar_select %p1209, %s1208, 59
      %s1211 = smul.addr %s1210, 4
      %s1212 = smul.addr %s1211, 8
      %s1213 = scalar_lea.vmem %s1, %s1212
      // Predicated region
      $region25: #{simple_binary_cnn_forward.6} parent=23 // pred_check
        %p1214 = pneg %p56
      $region26: #{simple_binary_cnn_forward.6} parent=23 // pred_check_branch
        %1216 = sbr.rel (%p1214) target = $region28
      $region27: #{simple_binary_cnn_forward.6} parent=23 // pred_region
        %s1217 = smul.u32 30, %s12
      $region28: #{simple_binary_cnn_forward.6} parent=23 // pred_fallthru
        _
    $region24: #{simple_binary_cnn_forward.6} parent=5 // pred_fallthru
      _
    %p1218 = scmp.le.s32.totalorder 2, %s7
    // Predicated region
    $region29: #{simple_binary_cnn_forward.6} parent=5 // pred_check
      %p1219 = pneg %p1218
    $region30: #{simple_binary_cnn_forward.6} parent=5 // pred_check_branch
      %1221 = sbr.rel (%p1219) target = $region32
    $region31: #{simple_binary_cnn_forward.6} parent=5 // pred_region
      %s1222 = ssub.s32 %s7, 2
      // Predicated region
      $region33: #{simple_binary_cnn_forward.6} parent=31 // pred_check
        %p1223 = pneg %p62
      $region34: #{simple_binary_cnn_forward.6} parent=31 // pred_check_branch
        %1225 = sbr.rel (%p1223) target = $region36
      $region35: #{simple_binary_cnn_forward.6} parent=31 // pred_region
        %s1226 = smul.u32 30, %s13
        %p1227 = scmp.lt.s32.totalorder %s1226, 59
        %s1228 = scalar_select %p1227, %s1226, 59
        %s1229 = smul.addr %s1228, 4
        %s1230 = smul.addr %s1229, 8
        %s1231 = scalar_lea.vmem %s1, %s1230
      $region36: #{simple_binary_cnn_forward.6} parent=31 // pred_fallthru
        _
    $region32: #{simple_binary_cnn_forward.6} parent=5 // pred_fallthru
      _
  $region6: #{simple_binary_cnn_forward.6} parent=0 // loop_footer
    %s11 = sadd.s32 1, %s7
  $region7: #{simple_binary_cnn_forward.6} parent=0 // loop_footer_branch
    %6 = sbr.rel target = $region3
  $region8: #{simple_binary_cnn_forward.6} parent=0 // loop_exit
    _

// kernel: simple_binary_cnn_forward.5
$region0: #{simple_binary_cnn_forward.5}
  #allocation0 [shape = 'u32[]', space=smem, size = 0x4, offset = 0x4, fixed_abs, tag = 'smem constant byte address 0x4 - core index']
  #allocation1 [shape = 'u32[144,128]{1,0:T(1,128)}', space=vmem, size = 0x12000, scoped, tag = 'internal scratch']
  %s0 = inlined_call_operand.vmem [shape: f32[7200,27], index: 0, kind: input, shape index: {}]
  %s1 = inlined_call_operand.vmem [shape: f32[27,32], index: 1, kind: input, shape index: {}]
  %s2 = inlined_call_operand.vmem [shape: f32[1,32], index: 2, kind: input, shape index: {}]
  %s3 = inlined_call_operand.vmem [shape: f32[7200,32], index: 3, kind: output, shape index: {}]
  %s4 = sld [smem:[#allocation0]]
  $region45: #{simple_binary_cnn_forward.5} parent=0
    _
  %s6 = ssub.s32 1, %s4
  %s7 = scalar_select 0, %s6, %s4
  loop: start=0, step=1, limit=4
  $region2: #{simple_binary_cnn_forward.5} parent=0 // loop_pre_header
    _
  $region3: #{simple_binary_cnn_forward.5} parent=0 // loop_header
    %s9 = sphi 0, %s13
    %p10 = scmp.ge.s32.totalorder %s9, 4
    %s19 = sphi 0, %s21
    %s22 = sphi 0, %s19
    %s23 = sphi 0, %s22
    %s39 = sphi 0, %s23
    %s43 = sphi 0, %s43
    %s45 = sphi 0, %s43
    %s46 = sphi 0, %s45
    %s60 = sphi 0, %s46
    %s64 = sphi 0, %s64
    %s66 = sphi 0, %s64
    %s67 = sphi 0, %s66
    %s81 = sphi 0, %s67
    %s87 = sphi 0, %s89
    %s90 = sphi 0, %s87
    %s91 = sphi 0, %s90
    %s107 = sphi 0, %s91
  $region4: #{simple_binary_cnn_forward.5} parent=0 // loop_header_branch
    %12 = sbr.rel (%p10) target = $region8
  $region5: #{simple_binary_cnn_forward.5} parent=0 // loop_body
    %s14 = ssub.s32 %s9, 1
    %s15 = ssub.s32 %s9, 2
    %s16 = sadd.s32 %s9, 1
    %s17 = ssub.s32 %s9, %s16
    %p18 = scmp.eq.s32.totalorder %s17, 0
    %s20 = sadd.s32 %s19, 1
    %s21 = scalar_select %p18, %s19, %s20
    %p24 = pneg %p18
    %p25 = scmp.eq.s32.totalorder %s9, 1
    %p26 = por %p24, %p25
    %p27 = scmp.ne.s32.totalorder %s19, %s22
    %p28 = scmp.eq.s32.totalorder %s9, 0
    %p29 = por %p27, %p28
    %p30 = scmp.ne.s32.totalorder %s19, %s22
    %p31 = scmp.eq.s32.totalorder %s14, 1
    %p32 = por %p30, %p31
    %p33 = scmp.ne.s32.totalorder %s22, %s23
    %p34 = scmp.eq.s32.totalorder %s14, 0
    %p35 = por %p33, %p34
    %p36 = scmp.ne.s32.totalorder %s22, %s23
    %p37 = scmp.eq.s32.totalorder %s15, 1
    %p38 = por %p36, %p37
    %p40 = scmp.ne.s32.totalorder %s23, %s39
    %p41 = scmp.eq.s32.totalorder %s15, 0
    %p42 = por %p40, %p41
    %s44 = sadd.s32 %s43, 1
    %p47 = scmp.eq.s32.totalorder %s9, 1
    %p48 = scmp.ne.s32.totalorder %s43, %s45
    %p49 = scmp.eq.s32.totalorder %s9, 0
    %p50 = por %p48, %p49
    %p51 = scmp.ne.s32.totalorder %s43, %s45
    %p52 = scmp.eq.s32.totalorder %s14, 1
    %p53 = por %p51, %p52
    %p54 = scmp.ne.s32.totalorder %s45, %s46
    %p55 = scmp.eq.s32.totalorder %s14, 0
    %p56 = por %p54, %p55
    %p57 = scmp.ne.s32.totalorder %s45, %s46
    %p58 = scmp.eq.s32.totalorder %s15, 1
    %p59 = por %p57, %p58
    %p61 = scmp.ne.s32.totalorder %s46, %s60
    %p62 = scmp.eq.s32.totalorder %s15, 0
    %p63 = por %p61, %p62
    %s65 = sadd.s32 %s64, 1
    %p68 = scmp.eq.s32.totalorder %s9, 1
    %p69 = scmp.ne.s32.totalorder %s64, %s66
    %p70 = scmp.eq.s32.totalorder %s9, 0
    %p71 = por %p69, %p70
    %p72 = scmp.ne.s32.totalorder %s64, %s66
    %p73 = scmp.eq.s32.totalorder %s14, 1
    %p74 = por %p72, %p73
    %p75 = scmp.ne.s32.totalorder %s66, %s67
    %p76 = scmp.eq.s32.totalorder %s14, 0
    %p77 = por %p75, %p76
    %p78 = scmp.ne.s32.totalorder %s66, %s67
    %p79 = scmp.eq.s32.totalorder %s15, 1
    %p80 = por %p78, %p79
    %p82 = scmp.ne.s32.totalorder %s67, %s81
    %p83 = scmp.eq.s32.totalorder %s15, 0
    %p84 = por %p82, %p83
    %s85 = ssub.s32 %s9, %s16
    %p86 = scmp.eq.s32.totalorder %s85, 0
    %s88 = sadd.s32 %s87, 1
    %s89 = scalar_select %p86, %s87, %s88
    %p92 = pneg %p86
    %p93 = scmp.eq.s32.totalorder %s9, 1
    %p94 = por %p92, %p93
    %p95 = scmp.ne.s32.totalorder %s87, %s90
    %p96 = scmp.eq.s32.totalorder %s9, 0
    %p97 = por %p95, %p96
    %p98 = scmp.ne.s32.totalorder %s87, %s90
    %p99 = scmp.eq.s32.totalorder %s14, 1
    %p100 = por %p98, %p99
    %p101 = scmp.ne.s32.totalorder %s90, %s91
    %p102 = scmp.eq.s32.totalorder %s14, 0
    %p103 = por %p101, %p102
    %p104 = scmp.ne.s32.totalorder %s90, %s91
    %p105 = scmp.eq.s32.totalorder %s15, 1
    %p106 = por %p104, %p105
    %p108 = scmp.ne.s32.totalorder %s91, %s107
    %p109 = scmp.eq.s32.totalorder %s15, 0
    %p110 = por %p108, %p109
    %p111 = scmp.le.s32.totalorder 1, %s9
    %p112 = scmp.lt.s32.totalorder %s9, 3
    %p113 = pnand %p111, %p112
    %p114 = pneg %p113
    // Predicated region
    $region9: #{simple_binary_cnn_forward.5} parent=5 // pred_check
      _
    $region10: #{simple_binary_cnn_forward.5} parent=5 // pred_check_branch
      %116 = sbr.rel (%p113) target = $region12
    $region11: #{simple_binary_cnn_forward.5} parent=5 // pred_region
      %s117 = ssub.s32 %s9, 1
      // Predicated region
      $region13: #{simple_binary_cnn_forward.5} parent=11 // pred_check
        %p118 = pneg %p56
      $region14: #{simple_binary_cnn_forward.5} parent=11 // pred_check_branch
        %120 = sbr.rel (%p118) target = $region16
      $region15: #{simple_binary_cnn_forward.5} parent=11 // pred_region
        _
      $region16: #{simple_binary_cnn_forward.5} parent=11 // pred_fallthru
        _
      // Predicated region
      $region17: #{simple_binary_cnn_forward.5} parent=11 // pred_check
        %p121 = pneg %p77
      $region18: #{simple_binary_cnn_forward.5} parent=11 // pred_check_branch
        %123 = sbr.rel (%p121) target = $region20
      $region19: #{simple_binary_cnn_forward.5} parent=11 // pred_region
        _
      $region20: #{simple_binary_cnn_forward.5} parent=11 // pred_fallthru
        _
    $region12: #{simple_binary_cnn_forward.5} parent=5 // pred_fallthru
      _
    %p124 = scmp.lt.s32.totalorder %s9, 2
    // Predicated region
    $region21: #{simple_binary_cnn_forward.5} parent=5 // pred_check
      %p125 = pneg %p124
    $region22: #{simple_binary_cnn_forward.5} parent=5 // pred_check_branch
      %127 = sbr.rel (%p125) target = $region24
    $region23: #{simple_binary_cnn_forward.5} parent=5 // pred_region
      // Predicated region
      $region25: #{simple_binary_cnn_forward.5} parent=23 // pred_check
        %p128 = pneg %p29
      $region26: #{simple_binary_cnn_forward.5} parent=23 // pred_check_branch
        %130 = sbr.rel (%p128) target = $region28
      $region27: #{simple_binary_cnn_forward.5} parent=23 // pred_region
        %s131 = smul.u32 450, %s9
        %p132 = scmp.lt.s32.totalorder %s131, 899
        %s133 = scalar_select %p132, %s131, 899
        %s134 = smul.addr %s133, 8
        %s135 = scalar_lea.vmem %s0, %s134
        %s136 = smul.u32 450, %s9
      $region28: #{simple_binary_cnn_forward.5} parent=23 // pred_fallthru
        _
    $region24: #{simple_binary_cnn_forward.5} parent=5 // pred_fallthru
      _
    %p137 = scmp.le.s32.totalorder 1, %s9
    %p138 = scmp.lt.s32.totalorder %s9, 3
    %p139 = pnand %p137, %p138
    %p140 = pneg %p139
    // Predicated region
    $region29: #{simple_binary_cnn_forward.5} parent=5 // pred_check
      _
    $region30: #{simple_binary_cnn_forward.5} parent=5 // pred_check_branch
      %142 = sbr.rel (%p139) target = $region32
    $region31: #{simple_binary_cnn_forward.5} parent=5 // pred_region
      %s143 = ssub.s32 %s9, 1
      %s144 = smul.u32 450, %s14
      %p145 = scmp.lt.s32.totalorder %s144, 899
      %s146 = scalar_select %p145, %s144, 899
      %s147 = smul.addr %s146, 8
      %s148 = scalar_lea.vmem %s0, %s147
      %p149 = pneg %p35
      %p150 = pneg %p32
      %p151 = pneg %p56
      %p152 = pneg %p53
      %p153 = pneg %p77
      %p154 = pneg %p74
      %p155 = pneg %p103
      %p156 = pneg %p100
      %s157 = smul.u32 450, %s14
      %p158 = scmp.lt.s32.totalorder %s157, 899
      %s159 = scalar_select %p158, %s157, 899
      %s160 = smul.addr %s159, 8
      %s161 = scalar_lea.vmem %s3, %s160
      %s162 = smul.u32 450, %s14
      %p163 = scmp.lt.s32.totalorder %s162, 899
      %s164 = scalar_select %p163, %s162, 899
      %s165 = smul.addr %s164, 8
      %s166 = scalar_lea.vmem %s0, %s165
      %s167 = smul.u32 450, %s14
      %s168 = smul.u32 450, %s14
      %p169 = scmp.lt.s32.totalorder %s168, 899
      %s170 = scalar_select %p169, %s168, 899
      %s171 = smul.addr %s170, 8
      %s172 = scalar_lea.vmem %s3, %s171
      %s173 = smul.u32 450, %s14
      %v174 = vld [vmem:[%s166] sm:$0xff]
      %v175 = vld [vmem:[%s166 + $0x8] sm:$0xff]
      %v176 = vld [vmem:[%s166 + $0x10] sm:$0xff]
      %v177 = vld [vmem:[%s166 + $0x18] sm:$0xff]
      %v178 = vld [vmem:[%s166 + $0x20] sm:$0xff]
      %v179 = vld [vmem:[%s166 + $0x28] sm:$0xff]
      %v180 = vld [vmem:[%s166 + $0x30] sm:$0xff]
      %v181 = vld [vmem:[%s166 + $0x38] sm:$0xff]
      %v182 = vld [vmem:[%s166 + $0x40] sm:$0xff]
      %v183 = vld [vmem:[%s166 + $0x48] sm:$0xff]
      %v184 = vld [vmem:[%s166 + $0x50] sm:$0xff]
      %v185 = vld [vmem:[%s166 + $0x58] sm:$0xff]
      %v186 = vld [vmem:[%s166 + $0x60] sm:$0xff]
      %v187 = vld [vmem:[%s166 + $0x68] sm:$0xff]
      %v188 = vld [vmem:[%s166 + $0x70] sm:$0xff]
      %v189 = vld [vmem:[%s166 + $0x78] sm:$0xff]
      %v190 = vld [vmem:[%s166 + $0x80] sm:$0xff]
      %v191 = vld [vmem:[%s166 + $0x88] sm:$0xff]
      %v192 = vld [vmem:[%s166 + $0x90] sm:$0xff]
      %v193 = vld [vmem:[%s166 + $0x98] sm:$0xff]
      %v194 = vld [vmem:[%s166 + $0xa0] sm:$0xff]
      %v195 = vld [vmem:[%s166 + $0xa8] sm:$0xff]
      %v196 = vld [vmem:[%s166 + $0xb0] sm:$0xff]
      %v197 = vld [vmem:[%s166 + $0xb8] sm:$0xff]
      %v198 = vld [vmem:[%s166 + $0xc0] sm:$0xff]
      %v199 = vld [vmem:[%s166 + $0xc8] sm:$0xff]
      %v200 = vld [vmem:[%s166 + $0xd0] sm:$0xff]
      %v201 = vld [vmem:[%s166 + $0xd8] sm:$0xff]
      %v202 = vld [vmem:[%s166 + $0xe0] sm:$0xff]
      %v203 = vld [vmem:[%s166 + $0xe8] sm:$0xff]
      %v204 = vld [vmem:[%s166 + $0xf0] sm:$0xff]
      %v205 = vld [vmem:[%s166 + $0xf8] sm:$0xff]
      %v206 = vld [vmem:[%s166 + $0x100] sm:$0xff]
      %v207 = vld [vmem:[%s166 + $0x108] sm:$0xff]
      %v208 = vld [vmem:[%s166 + $0x110] sm:$0xff]
      %v209 = vld [vmem:[%s166 + $0x118] sm:$0xff]
      %v210 = vld [vmem:[%s166 + $0x120] sm:$0xff]
      %v211 = vld [vmem:[%s166 + $0x128] sm:$0xff]
      %v212 = vld [vmem:[%s166 + $0x130] sm:$0xff]
      %v213 = vld [vmem:[%s166 + $0x138] sm:$0xff]
      %v214 = vld [vmem:[%s166 + $0x140] sm:$0xff]
      %v215 = vld [vmem:[%s166 + $0x148] sm:$0xff]
      %v216 = vld [vmem:[%s166 + $0x150] sm:$0xff]
      %v217 = vld [vmem:[%s166 + $0x158] sm:$0xff]
      %v218 = vld [vmem:[%s166 + $0x160] sm:$0xff]
      %v219 = vld [vmem:[%s166 + $0x168] sm:$0xff]
      %v220 = vld [vmem:[%s166 + $0x170] sm:$0xff]
      %v221 = vld [vmem:[%s166 + $0x178] sm:$0xff]
      %v222 = vld [vmem:[%s166 + $0x180] sm:$0xff]
      %v223 = vld [vmem:[%s166 + $0x188] sm:$0xff]
      %v224 = vld [vmem:[%s166 + $0x190] sm:$0xff]
      %v225 = vld [vmem:[%s166 + $0x198] sm:$0xff]
      %v226 = vld [vmem:[%s166 + $0x1a0] sm:$0xff]
      %v227 = vld [vmem:[%s166 + $0x1a8] sm:$0xff]
      %v228 = vld [vmem:[%s166 + $0x1b0] sm:$0xff]
      %v229 = vld [vmem:[%s166 + $0x1b8] sm:$0xff]
      %v230 = vld [vmem:[%s166 + $0x1c0] sm:$0xff]
      %v231 = vld [vmem:[%s166 + $0x1c8] sm:$0xff]
      %v232 = vld [vmem:[%s166 + $0x1d0] sm:$0xff]
      %v233 = vld [vmem:[%s166 + $0x1d8] sm:$0xff]
      %v234 = vld [vmem:[%s166 + $0x1e0] sm:$0xff]
      %v235 = vld [vmem:[%s166 + $0x1e8] sm:$0xff]
      %v236 = vld [vmem:[%s166 + $0x1f0] sm:$0xff]
      %v237 = vld [vmem:[%s166 + $0x1f8] sm:$0xff]
      %v238 = vld [vmem:[%s166 + $0x200] sm:$0xff]
      %v239 = vld [vmem:[%s166 + $0x208] sm:$0xff]
      %v240 = vld [vmem:[%s166 + $0x210] sm:$0xff]
      %v241 = vld [vmem:[%s166 + $0x218] sm:$0xff]
      %v242 = vld [vmem:[%s166 + $0x220] sm:$0xff]
      %v243 = vld [vmem:[%s166 + $0x228] sm:$0xff]
      %v244 = vld [vmem:[%s166 + $0x230] sm:$0xff]
      %v245 = vld [vmem:[%s166 + $0x238] sm:$0xff]
      %v246 = vld [vmem:[%s166 + $0x240] sm:$0xff]
      %v247 = vld [vmem:[%s166 + $0x248] sm:$0xff]
      %v248 = vld [vmem:[%s166 + $0x250] sm:$0xff]
      %v249 = vld [vmem:[%s166 + $0x258] sm:$0xff]
      %v250 = vld [vmem:[%s166 + $0x260] sm:$0xff]
      %v251 = vld [vmem:[%s166 + $0x268] sm:$0xff]
      %v252 = vld [vmem:[%s166 + $0x270] sm:$0xff]
      %v253 = vld [vmem:[%s166 + $0x278] sm:$0xff]
      %v254 = vld [vmem:[%s166 + $0x280] sm:$0xff]
      %v255 = vld [vmem:[%s166 + $0x288] sm:$0xff]
      %v256 = vld [vmem:[%s166 + $0x290] sm:$0xff]
      %v257 = vld [vmem:[%s166 + $0x298] sm:$0xff]
      %v258 = vld [vmem:[%s166 + $0x2a0] sm:$0xff]
      %v259 = vld [vmem:[%s166 + $0x2a8] sm:$0xff]
      %v260 = vld [vmem:[%s166 + $0x2b0] sm:$0xff]
      %v261 = vld [vmem:[%s166 + $0x2b8] sm:$0xff]
      %v262 = vld [vmem:[%s166 + $0x2c0] sm:$0xff]
      %v263 = vld [vmem:[%s166 + $0x2c8] sm:$0xff]
      %v264 = vld [vmem:[%s166 + $0x2d0] sm:$0xff]
      %v265 = vld [vmem:[%s166 + $0x2d8] sm:$0xff]
      %v266 = vld [vmem:[%s166 + $0x2e0] sm:$0xff]
      %v267 = vld [vmem:[%s166 + $0x2e8] sm:$0xff]
      %v268 = vld [vmem:[%s166 + $0x2f0] sm:$0xff]
      %v269 = vld [vmem:[%s166 + $0x2f8] sm:$0xff]
      %v270 = vld [vmem:[%s166 + $0x300] sm:$0xff]
      %v271 = vld [vmem:[%s166 + $0x308] sm:$0xff]
      %v272 = vld [vmem:[%s166 + $0x310] sm:$0xff]
      %v273 = vld [vmem:[%s166 + $0x318] sm:$0xff]
      %v274 = vld [vmem:[%s166 + $0x320] sm:$0xff]
      %v275 = vld [vmem:[%s166 + $0x328] sm:$0xff]
      %v276 = vld [vmem:[%s166 + $0x330] sm:$0xff]
      %v277 = vld [vmem:[%s166 + $0x338] sm:$0xff]
      %v278 = vld [vmem:[%s166 + $0x340] sm:$0xff]
      %v279 = vld [vmem:[%s166 + $0x348] sm:$0xff]
      %v280 = vld [vmem:[%s166 + $0x350] sm:$0xff]
      %v281 = vld [vmem:[%s166 + $0x358] sm:$0xff]
      %v282 = vld [vmem:[%s166 + $0x360] sm:$0xff]
      %v283 = vld [vmem:[%s166 + $0x368] sm:$0xff]
      %v284 = vld [vmem:[%s166 + $0x370] sm:$0xff]
      %v285 = vld [vmem:[%s166 + $0x378] sm:$0xff]
      %v286 = vld [vmem:[%s166 + $0x380] sm:$0xff]
      %v287 = vld [vmem:[%s166 + $0x388] sm:$0xff]
      %v288 = vld [vmem:[%s166 + $0x390] sm:$0xff]
      %v289 = vld [vmem:[%s166 + $0x398] sm:$0xff]
      %v290 = vld [vmem:[%s166 + $0x3a0] sm:$0xff]
      %v291 = vld [vmem:[%s166 + $0x3a8] sm:$0xff]
      %v292 = vld [vmem:[%s166 + $0x3b0] sm:$0xff]
      %v293 = vld [vmem:[%s166 + $0x3b8] sm:$0xff]
      %v294 = vld [vmem:[%s166 + $0x3c0] sm:$0xff]
      %v295 = vld [vmem:[%s166 + $0x3c8] sm:$0xff]
      %v296 = vld [vmem:[%s166 + $0x3d0] sm:$0xff]
      %v297 = vld [vmem:[%s166 + $0x3d8] sm:$0xff]
      %v298 = vld [vmem:[%s166 + $0x3e0] sm:$0xff]
      %v299 = vld [vmem:[%s166 + $0x3e8] sm:$0xff]
      %v300 = vld [vmem:[%s166 + $0x3f0] sm:$0xff]
      %v301 = vld [vmem:[%s166 + $0x3f8] sm:$0xff]
      %v302 = vld [vmem:[%s166 + $0x400] sm:$0xff]
      %v303 = vld [vmem:[%s166 + $0x408] sm:$0xff]
      %v304 = vld [vmem:[%s166 + $0x410] sm:$0xff]
      %v305 = vld [vmem:[%s166 + $0x418] sm:$0xff]
      %v306 = vld [vmem:[%s166 + $0x420] sm:$0xff]
      %v307 = vld [vmem:[%s166 + $0x428] sm:$0xff]
      %v308 = vld [vmem:[%s166 + $0x430] sm:$0xff]
      %v309 = vld [vmem:[%s166 + $0x438] sm:$0xff]
      %v310 = vld [vmem:[%s166 + $0x440] sm:$0xff]
      %v311 = vld [vmem:[%s166 + $0x448] sm:$0xff]
      %v312 = vld [vmem:[%s166 + $0x450] sm:$0xff]
      %v313 = vld [vmem:[%s166 + $0x458] sm:$0xff]
      %v314 = vld [vmem:[%s166 + $0x460] sm:$0xff]
      %v315 = vld [vmem:[%s166 + $0x468] sm:$0xff]
      %v316 = vld [vmem:[%s166 + $0x470] sm:$0xff]
      %v317 = vld [vmem:[%s166 + $0x478] sm:$0xff]
      %v318 = vld [vmem:[%s166 + $0x480] sm:$0xff]
      %v319 = vld [vmem:[%s166 + $0x488] sm:$0xff]
      %v320 = vld [vmem:[%s166 + $0x490] sm:$0xff]
      %v321 = vld [vmem:[%s166 + $0x498] sm:$0xff]
      %v322 = vld [vmem:[%s166 + $0x4a0] sm:$0xff]
      %v323 = vld [vmem:[%s166 + $0x4a8] sm:$0xff]
      %v324 = vld [vmem:[%s166 + $0x4b0] sm:$0xff]
      %v325 = vld [vmem:[%s166 + $0x4b8] sm:$0xff]
      %v326 = vld [vmem:[%s166 + $0x4c0] sm:$0xff]
      %v327 = vld [vmem:[%s166 + $0x4c8] sm:$0xff]
      %v328 = vld [vmem:[%s166 + $0x4d0] sm:$0xff]
      %v329 = vld [vmem:[%s166 + $0x4d8] sm:$0xff]
      %v330 = vld [vmem:[%s166 + $0x4e0] sm:$0xff]
      %v331 = vld [vmem:[%s166 + $0x4e8] sm:$0xff]
      %v332 = vld [vmem:[%s166 + $0x4f0] sm:$0xff]
      %v333 = vld [vmem:[%s166 + $0x4f8] sm:$0xff]
      %v334 = vld [vmem:[%s166 + $0x500] sm:$0xff]
      %v335 = vld [vmem:[%s166 + $0x508] sm:$0xff]
      %v336 = vld [vmem:[%s166 + $0x510] sm:$0xff]
      %v337 = vld [vmem:[%s166 + $0x518] sm:$0xff]
      %v338 = vld [vmem:[%s166 + $0x520] sm:$0xff]
      %v339 = vld [vmem:[%s166 + $0x528] sm:$0xff]
      %v340 = vld [vmem:[%s166 + $0x530] sm:$0xff]
      %v341 = vld [vmem:[%s166 + $0x538] sm:$0xff]
      %v342 = vld [vmem:[%s166 + $0x540] sm:$0xff]
      %v343 = vld [vmem:[%s166 + $0x548] sm:$0xff]
      %v344 = vld [vmem:[%s166 + $0x550] sm:$0xff]
      %v345 = vld [vmem:[%s166 + $0x558] sm:$0xff]
      %v346 = vld [vmem:[%s166 + $0x560] sm:$0xff]
      %v347 = vld [vmem:[%s166 + $0x568] sm:$0xff]
      %v348 = vld [vmem:[%s166 + $0x570] sm:$0xff]
      %v349 = vld [vmem:[%s166 + $0x578] sm:$0xff]
      %v350 = vld [vmem:[%s166 + $0x580] sm:$0xff]
      %v351 = vld [vmem:[%s166 + $0x588] sm:$0xff]
      %v352 = vld [vmem:[%s166 + $0x590] sm:$0xff]
      %v353 = vld [vmem:[%s166 + $0x598] sm:$0xff]
      %v354 = vld [vmem:[%s166 + $0x5a0] sm:$0xff]
      %v355 = vld [vmem:[%s166 + $0x5a8] sm:$0xff]
      %v356 = vld [vmem:[%s166 + $0x5b0] sm:$0xff]
      %v357 = vld [vmem:[%s166 + $0x5b8] sm:$0xff]
      %v358 = vld [vmem:[%s166 + $0x5c0] sm:$0xff]
      %v359 = vld [vmem:[%s166 + $0x5c8] sm:$0xff]
      %v360 = vld [vmem:[%s166 + $0x5d0] sm:$0xff]
      %v361 = vld [vmem:[%s166 + $0x5d8] sm:$0xff]
      %v362 = vld [vmem:[%s166 + $0x5e0] sm:$0xff]
      %v363 = vld [vmem:[%s166 + $0x5e8] sm:$0xff]
      %v364 = vld [vmem:[%s166 + $0x5f0] sm:$0xff]
      %v365 = vld [vmem:[%s166 + $0x5f8] sm:$0xff]
      %v366 = vld [vmem:[%s166 + $0x600] sm:$0xff]
      %v367 = vld [vmem:[%s166 + $0x608] sm:$0xff]
      %v368 = vld [vmem:[%s166 + $0x610] sm:$0xff]
      %v369 = vld [vmem:[%s166 + $0x618] sm:$0xff]
      %v370 = vld [vmem:[%s166 + $0x620] sm:$0xff]
      %v371 = vld [vmem:[%s166 + $0x628] sm:$0xff]
      %v372 = vld [vmem:[%s166 + $0x630] sm:$0xff]
      %v373 = vld [vmem:[%s166 + $0x638] sm:$0xff]
      %v374 = vld [vmem:[%s166 + $0x640] sm:$0xff]
      %v375 = vld [vmem:[%s166 + $0x648] sm:$0xff]
      %v376 = vld [vmem:[%s166 + $0x650] sm:$0xff]
      %v377 = vld [vmem:[%s166 + $0x658] sm:$0xff]
      %v378 = vld [vmem:[%s166 + $0x660] sm:$0xff]
      %v379 = vld [vmem:[%s166 + $0x668] sm:$0xff]
      %v380 = vld [vmem:[%s166 + $0x670] sm:$0xff]
      %v381 = vld [vmem:[%s166 + $0x678] sm:$0xff]
      %v382 = vld [vmem:[%s166 + $0x680] sm:$0xff]
      %v383 = vld [vmem:[%s166 + $0x688] sm:$0xff]
      %v384 = vld [vmem:[%s166 + $0x690] sm:$0xff]
      %v385 = vld [vmem:[%s166 + $0x698] sm:$0xff]
      %v386 = vld [vmem:[%s166 + $0x6a0] sm:$0xff]
      %v387 = vld [vmem:[%s166 + $0x6a8] sm:$0xff]
      %v388 = vld [vmem:[%s166 + $0x6b0] sm:$0xff]
      %v389 = vld [vmem:[%s166 + $0x6b8] sm:$0xff]
      %v390 = vld [vmem:[%s166 + $0x6c0] sm:$0xff]
      %v391 = vld [vmem:[%s166 + $0x6c8] sm:$0xff]
      %v392 = vld [vmem:[%s166 + $0x6d0] sm:$0xff]
      %v393 = vld [vmem:[%s166 + $0x6d8] sm:$0xff]
      %v394 = vld [vmem:[%s166 + $0x6e0] sm:$0xff]
      %v395 = vld [vmem:[%s166 + $0x6e8] sm:$0xff]
      %v396 = vld [vmem:[%s166 + $0x6f0] sm:$0xff]
      %v397 = vld [vmem:[%s166 + $0x6f8] sm:$0xff]
      %v398 = vld [vmem:[%s166 + $0x700] sm:$0xff]
      %v399 = vld [vmem:[%s166 + $0x708] sm:$0xff]
      %v400 = vld [vmem:[%s166 + $0x710] sm:$0xff]
      %v401 = vld [vmem:[%s166 + $0x718] sm:$0xff]
      %v402 = vld [vmem:[%s166 + $0x720] sm:$0xff]
      %v403 = vld [vmem:[%s166 + $0x728] sm:$0xff]
      %v404 = vld [vmem:[%s166 + $0x730] sm:$0xff]
      %v405 = vld [vmem:[%s166 + $0x738] sm:$0xff]
      %v406 = vld [vmem:[%s166 + $0x740] sm:$0xff]
      %v407 = vld [vmem:[%s166 + $0x748] sm:$0xff]
      %v408 = vld [vmem:[%s166 + $0x750] sm:$0xff]
      %v409 = vld [vmem:[%s166 + $0x758] sm:$0xff]
      %v410 = vld [vmem:[%s166 + $0x760] sm:$0xff]
      %v411 = vld [vmem:[%s166 + $0x768] sm:$0xff]
      %v412 = vld [vmem:[%s166 + $0x770] sm:$0xff]
      %v413 = vld [vmem:[%s166 + $0x778] sm:$0xff]
      %v414 = vld [vmem:[%s166 + $0x780] sm:$0xff]
      %v415 = vld [vmem:[%s166 + $0x788] sm:$0xff]
      %v416 = vld [vmem:[%s166 + $0x790] sm:$0xff]
      %v417 = vld [vmem:[%s166 + $0x798] sm:$0xff]
      %v418 = vld [vmem:[%s166 + $0x7a0] sm:$0xff]
      %v419 = vld [vmem:[%s166 + $0x7a8] sm:$0xff]
      %v420 = vld [vmem:[%s166 + $0x7b0] sm:$0xff]
      %v421 = vld [vmem:[%s166 + $0x7b8] sm:$0xff]
      %v422 = vld [vmem:[%s166 + $0x7c0] sm:$0xff]
      %v423 = vld [vmem:[%s166 + $0x7c8] sm:$0xff]
      %v424 = vld [vmem:[%s166 + $0x7d0] sm:$0xff]
      %v425 = vld [vmem:[%s166 + $0x7d8] sm:$0xff]
      %v426 = vld [vmem:[%s166 + $0x7e0] sm:$0xff]
      %v427 = vld [vmem:[%s166 + $0x7e8] sm:$0xff]
      %v428 = vld [vmem:[%s166 + $0x7f0] sm:$0xff]
      %v429 = vld [vmem:[%s166 + $0x7f8] sm:$0xff]
      %v430 = vld [vmem:[%s166 + $0x800] sm:$0xff]
      %v431 = vld [vmem:[%s166 + $0x808] sm:$0xff]
      %v432 = vld [vmem:[%s166 + $0x810] sm:$0xff]
      %v433 = vld [vmem:[%s166 + $0x818] sm:$0xff]
      %v434 = vld [vmem:[%s166 + $0x820] sm:$0xff]
      %v435 = vld [vmem:[%s166 + $0x828] sm:$0xff]
      %v436 = vld [vmem:[%s166 + $0x830] sm:$0xff]
      %v437 = vld [vmem:[%s166 + $0x838] sm:$0xff]
      %v438 = vld [vmem:[%s166 + $0x840] sm:$0xff]
      %v439 = vld [vmem:[%s166 + $0x848] sm:$0xff]
      %v440 = vld [vmem:[%s166 + $0x850] sm:$0xff]
      %v441 = vld [vmem:[%s166 + $0x858] sm:$0xff]
      %v442 = vld [vmem:[%s166 + $0x860] sm:$0xff]
      %v443 = vld [vmem:[%s166 + $0x868] sm:$0xff]
      %v444 = vld [vmem:[%s166 + $0x870] sm:$0xff]
      %v445 = vld [vmem:[%s166 + $0x878] sm:$0xff]
      %v446 = vld [vmem:[%s166 + $0x880] sm:$0xff]
      %v447 = vld [vmem:[%s166 + $0x888] sm:$0xff]
      %v448 = vld [vmem:[%s166 + $0x890] sm:$0xff]
      %v449 = vld [vmem:[%s166 + $0x898] sm:$0xff]
      %v450 = vld [vmem:[%s166 + $0x8a0] sm:$0xff]
      %v451 = vld [vmem:[%s166 + $0x8a8] sm:$0xff]
      %v452 = vld [vmem:[%s166 + $0x8b0] sm:$0xff]
      %v453 = vld [vmem:[%s166 + $0x8b8] sm:$0xff]
      %v454 = vld [vmem:[%s166 + $0x8c0] sm:$0xff]
      %v455 = vld [vmem:[%s166 + $0x8c8] sm:$0xff]
      %v456 = vld [vmem:[%s166 + $0x8d0] sm:$0xff]
      %v457 = vld [vmem:[%s166 + $0x8d8] sm:$0xff]
      %v458 = vld [vmem:[%s166 + $0x8e0] sm:$0xff]
      %v459 = vld [vmem:[%s166 + $0x8e8] sm:$0xff]
      %v460 = vld [vmem:[%s166 + $0x8f0] sm:$0xff]
      %v461 = vld [vmem:[%s166 + $0x8f8] sm:$0xff]
      %v462 = vld [vmem:[%s166 + $0x900] sm:$0xff]
      %v463 = vld [vmem:[%s166 + $0x908] sm:$0xff]
      %v464 = vld [vmem:[%s166 + $0x910] sm:$0xff]
      %v465 = vld [vmem:[%s166 + $0x918] sm:$0xff]
      %v466 = vld [vmem:[%s166 + $0x920] sm:$0xff]
      %v467 = vld [vmem:[%s166 + $0x928] sm:$0xff]
      %v468 = vld [vmem:[%s166 + $0x930] sm:$0xff]
      %v469 = vld [vmem:[%s166 + $0x938] sm:$0xff]
      %v470 = vld [vmem:[%s166 + $0x940] sm:$0xff]
      %v471 = vld [vmem:[%s166 + $0x948] sm:$0xff]
      %v472 = vld [vmem:[%s166 + $0x950] sm:$0xff]
      %v473 = vld [vmem:[%s166 + $0x958] sm:$0xff]
      %v474 = vld [vmem:[%s166 + $0x960] sm:$0xff]
      %v475 = vld [vmem:[%s166 + $0x968] sm:$0xff]
      %v476 = vld [vmem:[%s166 + $0x970] sm:$0xff]
      %v477 = vld [vmem:[%s166 + $0x978] sm:$0xff]
      %v478 = vld [vmem:[%s166 + $0x980] sm:$0xff]
      %v479 = vld [vmem:[%s166 + $0x988] sm:$0xff]
      %v480 = vld [vmem:[%s166 + $0x990] sm:$0xff]
      %v481 = vld [vmem:[%s166 + $0x998] sm:$0xff]
      %v482 = vld [vmem:[%s166 + $0x9a0] sm:$0xff]
      %v483 = vld [vmem:[%s166 + $0x9a8] sm:$0xff]
      %v484 = vld [vmem:[%s166 + $0x9b0] sm:$0xff]
      %v485 = vld [vmem:[%s166 + $0x9b8] sm:$0xff]
      %v486 = vld [vmem:[%s166 + $0x9c0] sm:$0xff]
      %v487 = vld [vmem:[%s166 + $0x9c8] sm:$0xff]
      %v488 = vld [vmem:[%s166 + $0x9d0] sm:$0xff]
      %v489 = vld [vmem:[%s166 + $0x9d8] sm:$0xff]
      %v490 = vld [vmem:[%s166 + $0x9e0] sm:$0xff]
      %v491 = vld [vmem:[%s166 + $0x9e8] sm:$0xff]
      %v492 = vld [vmem:[%s166 + $0x9f0] sm:$0xff]
      %v493 = vld [vmem:[%s166 + $0x9f8] sm:$0xff]
      %v494 = vld [vmem:[%s166 + $0xa00] sm:$0xff]
      %v495 = vld [vmem:[%s166 + $0xa08] sm:$0xff]
      %v496 = vld [vmem:[%s166 + $0xa10] sm:$0xff]
      %v497 = vld [vmem:[%s166 + $0xa18] sm:$0xff]
      %v498 = vld [vmem:[%s166 + $0xa20] sm:$0xff]
      %v499 = vld [vmem:[%s166 + $0xa28] sm:$0xff]
      %v500 = vld [vmem:[%s166 + $0xa30] sm:$0xff]
      %v501 = vld [vmem:[%s166 + $0xa38] sm:$0xff]
      %v502 = vld [vmem:[%s166 + $0xa40] sm:$0xff]
      %v503 = vld [vmem:[%s166 + $0xa48] sm:$0xff]
      %v504 = vld [vmem:[%s166 + $0xa50] sm:$0xff]
      %v505 = vld [vmem:[%s166 + $0xa58] sm:$0xff]
      %v506 = vld [vmem:[%s166 + $0xa60] sm:$0xff]
      %v507 = vld [vmem:[%s166 + $0xa68] sm:$0xff]
      %v508 = vld [vmem:[%s166 + $0xa70] sm:$0xff]
      %v509 = vld [vmem:[%s166 + $0xa78] sm:$0xff]
      %v510 = vld [vmem:[%s166 + $0xa80] sm:$0xff]
      %v511 = vld [vmem:[%s166 + $0xa88] sm:$0xff]
      %v512 = vld [vmem:[%s166 + $0xa90] sm:$0xff]
      %v513 = vld [vmem:[%s166 + $0xa98] sm:$0xff]
      %v514 = vld [vmem:[%s166 + $0xaa0] sm:$0xff]
      %v515 = vld [vmem:[%s166 + $0xaa8] sm:$0xff]
      %v516 = vld [vmem:[%s166 + $0xab0] sm:$0xff]
      %v517 = vld [vmem:[%s166 + $0xab8] sm:$0xff]
      %v518 = vld [vmem:[%s166 + $0xac0] sm:$0xff]
      %v519 = vld [vmem:[%s166 + $0xac8] sm:$0xff]
      %v520 = vld [vmem:[%s166 + $0xad0] sm:$0xff]
      %v521 = vld [vmem:[%s166 + $0xad8] sm:$0xff]
      %v522 = vld [vmem:[%s166 + $0xae0] sm:$0xff]
      %v523 = vld [vmem:[%s166 + $0xae8] sm:$0xff]
      %v524 = vld [vmem:[%s166 + $0xaf0] sm:$0xff]
      %v525 = vld [vmem:[%s166 + $0xaf8] sm:$0xff]
      %v526 = vld [vmem:[%s166 + $0xb00] sm:$0xff]
      %v527 = vld [vmem:[%s166 + $0xb08] sm:$0xff]
      %v528 = vld [vmem:[%s166 + $0xb10] sm:$0xff]
      %v529 = vld [vmem:[%s166 + $0xb18] sm:$0xff]
      %v530 = vld [vmem:[%s166 + $0xb20] sm:$0xff]
      %v531 = vld [vmem:[%s166 + $0xb28] sm:$0xff]
      %v532 = vld [vmem:[%s166 + $0xb30] sm:$0xff]
      %v533 = vld [vmem:[%s166 + $0xb38] sm:$0xff]
      %v534 = vld [vmem:[%s166 + $0xb40] sm:$0xff]
      %v535 = vld [vmem:[%s166 + $0xb48] sm:$0xff]
      %v536 = vld [vmem:[%s166 + $0xb50] sm:$0xff]
      %v537 = vld [vmem:[%s166 + $0xb58] sm:$0xff]
      %v538 = vld [vmem:[%s166 + $0xb60] sm:$0xff]
      %v539 = vld [vmem:[%s166 + $0xb68] sm:$0xff]
      %v540 = vld [vmem:[%s166 + $0xb70] sm:$0xff]
      %v541 = vld [vmem:[%s166 + $0xb78] sm:$0xff]
      %v542 = vld [vmem:[%s166 + $0xb80] sm:$0xff]
      %v543 = vld [vmem:[%s166 + $0xb88] sm:$0xff]
      %v544 = vld [vmem:[%s166 + $0xb90] sm:$0xff]
      %v545 = vld [vmem:[%s166 + $0xb98] sm:$0xff]
      %v546 = vld [vmem:[%s166 + $0xba0] sm:$0xff]
      %v547 = vld [vmem:[%s166 + $0xba8] sm:$0xff]
      %v548 = vld [vmem:[%s166 + $0xbb0] sm:$0xff]
      %v549 = vld [vmem:[%s166 + $0xbb8] sm:$0xff]
      %v550 = vld [vmem:[%s166 + $0xbc0] sm:$0xff]
      %v551 = vld [vmem:[%s166 + $0xbc8] sm:$0xff]
      %v552 = vld [vmem:[%s166 + $0xbd0] sm:$0xff]
      %v553 = vld [vmem:[%s166 + $0xbd8] sm:$0xff]
      %v554 = vld [vmem:[%s166 + $0xbe0] sm:$0xff]
      %v555 = vld [vmem:[%s166 + $0xbe8] sm:$0xff]
      %v556 = vld [vmem:[%s166 + $0xbf0] sm:$0xff]
      %v557 = vld [vmem:[%s166 + $0xbf8] sm:$0xff]
      %v558 = vld [vmem:[%s166 + $0xc00] sm:$0xff]
      %v559 = vld [vmem:[%s166 + $0xc08] sm:$0xff]
      %v560 = vld [vmem:[%s166 + $0xc10] sm:$0xff]
      %v561 = vld [vmem:[%s166 + $0xc18] sm:$0xff]
      %v562 = vld [vmem:[%s166 + $0xc20] sm:$0xff]
      %v563 = vld [vmem:[%s166 + $0xc28] sm:$0xff]
      %v564 = vld [vmem:[%s166 + $0xc30] sm:$0xff]
      %v565 = vld [vmem:[%s166 + $0xc38] sm:$0xff]
      %v566 = vld [vmem:[%s166 + $0xc40] sm:$0xff]
      %v567 = vld [vmem:[%s166 + $0xc48] sm:$0xff]
      %v568 = vld [vmem:[%s166 + $0xc50] sm:$0xff]
      %v569 = vld [vmem:[%s166 + $0xc58] sm:$0xff]
      %v570 = vld [vmem:[%s166 + $0xc60] sm:$0xff]
      %v571 = vld [vmem:[%s166 + $0xc68] sm:$0xff]
      %v572 = vld [vmem:[%s166 + $0xc70] sm:$0xff]
      %v573 = vld [vmem:[%s166 + $0xc78] sm:$0xff]
      %v574 = vld [vmem:[%s166 + $0xc80] sm:$0xff]
      %v575 = vld [vmem:[%s166 + $0xc88] sm:$0xff]
      %v576 = vld [vmem:[%s166 + $0xc90] sm:$0xff]
      %v577 = vld [vmem:[%s166 + $0xc98] sm:$0xff]
      %v578 = vld [vmem:[%s166 + $0xca0] sm:$0xff]
      %v579 = vld [vmem:[%s166 + $0xca8] sm:$0xff]
      %v580 = vld [vmem:[%s166 + $0xcb0] sm:$0xff]
      %v581 = vld [vmem:[%s166 + $0xcb8] sm:$0xff]
      %v582 = vld [vmem:[%s166 + $0xcc0] sm:$0xff]
      %v583 = vld [vmem:[%s166 + $0xcc8] sm:$0xff]
      %v584 = vld [vmem:[%s166 + $0xcd0] sm:$0xff]
      %v585 = vld [vmem:[%s166 + $0xcd8] sm:$0xff]
      %v586 = vld [vmem:[%s166 + $0xce0] sm:$0xff]
      %v587 = vld [vmem:[%s166 + $0xce8] sm:$0xff]
      %v588 = vld [vmem:[%s166 + $0xcf0] sm:$0xff]
      %v589 = vld [vmem:[%s166 + $0xcf8] sm:$0xff]
      %v590 = vld [vmem:[%s166 + $0xd00] sm:$0xff]
      %v591 = vld [vmem:[%s166 + $0xd08] sm:$0xff]
      %v592 = vld [vmem:[%s166 + $0xd10] sm:$0xff]
      %v593 = vld [vmem:[%s166 + $0xd18] sm:$0xff]
      %v594 = vld [vmem:[%s166 + $0xd20] sm:$0xff]
      %v595 = vld [vmem:[%s166 + $0xd28] sm:$0xff]
      %v596 = vld [vmem:[%s166 + $0xd30] sm:$0xff]
      %v597 = vld [vmem:[%s166 + $0xd38] sm:$0xff]
      %v598 = vld [vmem:[%s166 + $0xd40] sm:$0xff]
      %v599 = vld [vmem:[%s166 + $0xd48] sm:$0xff]
      %v600 = vld [vmem:[%s166 + $0xd50] sm:$0xff]
      %v601 = vld [vmem:[%s166 + $0xd58] sm:$0xff]
      %v602 = vld [vmem:[%s166 + $0xd60] sm:$0xff]
      %v603 = vld [vmem:[%s166 + $0xd68] sm:$0xff]
      %v604 = vld [vmem:[%s166 + $0xd70] sm:$0xff]
      %v605 = vld [vmem:[%s166 + $0xd78] sm:$0xff]
      %v606 = vld [vmem:[%s166 + $0xd80] sm:$0xff]
      %v607 = vld [vmem:[%s166 + $0xd88] sm:$0xff]
      %v608 = vld [vmem:[%s166 + $0xd90] sm:$0xff]
      %v609 = vld [vmem:[%s166 + $0xd98] sm:$0xff]
      %v610 = vld [vmem:[%s166 + $0xda0] sm:$0xff]
      %v611 = vld [vmem:[%s166 + $0xda8] sm:$0xff]
      %v612 = vld [vmem:[%s166 + $0xdb0] sm:$0xff]
      %v613 = vld [vmem:[%s166 + $0xdb8] sm:$0xff]
      %v614 = vld [vmem:[%s166 + $0xdc0] sm:$0xff]
      %v615 = vld [vmem:[%s166 + $0xdc8] sm:$0xff]
      %v616 = vld [vmem:[%s166 + $0xdd0] sm:$0xff]
      %v617 = vld [vmem:[%s166 + $0xdd8] sm:$0xff]
      %v618 = vld [vmem:[%s166 + $0xde0] sm:$0xff]
      %v619 = vld [vmem:[%s166 + $0xde8] sm:$0xff]
      %v620 = vld [vmem:[%s166 + $0xdf0] sm:$0xff]
      %v621 = vld [vmem:[%s166 + $0xdf8] sm:$0xff]
      %v622 = vld [vmem:[%s166 + $0xe00] sm:$0xff]
      %v623 = vld [vmem:[%s166 + $0xe08] sm:$0xff]
      %v624 = vld [vmem:[%s1] sm:$0xff]
      %v625 = vld [vmem:[%s1 + $0x8] sm:$0xff]
      %v626 = vld [vmem:[%s1 + $0x10] sm:$0xff]
      %v627 = vld [vmem:[%s1 + $0x18] sm:$0x7]
      %v628 = vld [vmem:[%s2] sm:$0x1]
      %v630 = vlaneseq
      %v631 = vshrl.u32 %v630, 7
      %v632 = vsub.s32 0, %v631
      %v633 = vrot.slane %v628, %v632
      %vm635 = vcmask 220160
      %v637 = vsel %vm635, %v174, 0
      %v640 = vsel %vm635, %v175, 0
      %v643 = vsel %vm635, %v176, 0
      %v646 = vsel %vm635, %v177, 0
      %v649 = vsel %vm635, %v178, 0
      %v652 = vsel %vm635, %v179, 0
      %v655 = vsel %vm635, %v180, 0
      %v658 = vsel %vm635, %v181, 0
      %v661 = vsel %vm635, %v182, 0
      %v664 = vsel %vm635, %v183, 0
      %v667 = vsel %vm635, %v184, 0
      %v670 = vsel %vm635, %v185, 0
      %v673 = vsel %vm635, %v186, 0
      %v676 = vsel %vm635, %v187, 0
      %v679 = vsel %vm635, %v188, 0
      %v682 = vsel %vm635, %v189, 0
      %v685 = vsel %vm635, %v190, 0
      %v688 = vsel %vm635, %v191, 0
      %v691 = vsel %vm635, %v192, 0
      %v694 = vsel %vm635, %v193, 0
      %v697 = vsel %vm635, %v194, 0
      %v700 = vsel %vm635, %v195, 0
      %v703 = vsel %vm635, %v196, 0
      %v706 = vsel %vm635, %v197, 0
      %v709 = vsel %vm635, %v198, 0
      %v712 = vsel %vm635, %v199, 0
      %v715 = vsel %vm635, %v200, 0
      %v718 = vsel %vm635, %v201, 0
      %v721 = vsel %vm635, %v202, 0
      %v724 = vsel %vm635, %v203, 0
      %v727 = vsel %vm635, %v204, 0
      %v730 = vsel %vm635, %v205, 0
      %v733 = vsel %vm635, %v206, 0
      %v736 = vsel %vm635, %v207, 0
      %v739 = vsel %vm635, %v208, 0
      %v742 = vsel %vm635, %v209, 0
      %v745 = vsel %vm635, %v210, 0
      %v748 = vsel %vm635, %v211, 0
      %v751 = vsel %vm635, %v212, 0
      %v754 = vsel %vm635, %v213, 0
      %v757 = vsel %vm635, %v214, 0
      %v760 = vsel %vm635, %v215, 0
      %v763 = vsel %vm635, %v216, 0
      %v766 = vsel %vm635, %v217, 0
      %v769 = vsel %vm635, %v218, 0
      %v772 = vsel %vm635, %v219, 0
      %v775 = vsel %vm635, %v220, 0
      %v778 = vsel %vm635, %v221, 0
      %v781 = vsel %vm635, %v222, 0
      %v784 = vsel %vm635, %v223, 0
      %v787 = vsel %vm635, %v224, 0
      %v790 = vsel %vm635, %v225, 0
      %v793 = vsel %vm635, %v226, 0
      %v796 = vsel %vm635, %v227, 0
      %v799 = vsel %vm635, %v228, 0
      %v802 = vsel %vm635, %v229, 0
      %v805 = vsel %vm635, %v230, 0
      %v808 = vsel %vm635, %v231, 0
      %v811 = vsel %vm635, %v232, 0
      %v814 = vsel %vm635, %v233, 0
      %v817 = vsel %vm635, %v234, 0
      %v820 = vsel %vm635, %v235, 0
      %v823 = vsel %vm635, %v236, 0
      %v826 = vsel %vm635, %v237, 0
      %v829 = vsel %vm635, %v238, 0
      %v832 = vsel %vm635, %v239, 0
      %v835 = vsel %vm635, %v240, 0
      %v838 = vsel %vm635, %v241, 0
      %v841 = vsel %vm635, %v242, 0
      %v844 = vsel %vm635, %v243, 0
      %v847 = vsel %vm635, %v244, 0
      %v850 = vsel %vm635, %v245, 0
      %v853 = vsel %vm635, %v246, 0
      %v856 = vsel %vm635, %v247, 0
      %v859 = vsel %vm635, %v248, 0
      %v862 = vsel %vm635, %v249, 0
      %v865 = vsel %vm635, %v250, 0
      %v868 = vsel %vm635, %v251, 0
      %v871 = vsel %vm635, %v252, 0
      %v874 = vsel %vm635, %v253, 0
      %v877 = vsel %vm635, %v254, 0
      %v880 = vsel %vm635, %v255, 0
      %v883 = vsel %vm635, %v256, 0
      %v886 = vsel %vm635, %v257, 0
      %v889 = vsel %vm635, %v258, 0
      %v892 = vsel %vm635, %v259, 0
      %v895 = vsel %vm635, %v260, 0
      %v898 = vsel %vm635, %v261, 0
      %v901 = vsel %vm635, %v262, 0
      %v904 = vsel %vm635, %v263, 0
      %v907 = vsel %vm635, %v264, 0
      %v910 = vsel %vm635, %v265, 0
      %v913 = vsel %vm635, %v266, 0
      %v916 = vsel %vm635, %v267, 0
      %v919 = vsel %vm635, %v268, 0
      %v922 = vsel %vm635, %v269, 0
      %v925 = vsel %vm635, %v270, 0
      %v928 = vsel %vm635, %v271, 0
      %v931 = vsel %vm635, %v272, 0
      %v934 = vsel %vm635, %v273, 0
      %v937 = vsel %vm635, %v274, 0
      %v940 = vsel %vm635, %v275, 0
      %v943 = vsel %vm635, %v276, 0
      %v946 = vsel %vm635, %v277, 0
      %v949 = vsel %vm635, %v278, 0
      %v952 = vsel %vm635, %v279, 0
      %v955 = vsel %vm635, %v280, 0
      %v958 = vsel %vm635, %v281, 0
      %v961 = vsel %vm635, %v282, 0
      %v964 = vsel %vm635, %v283, 0
      %v967 = vsel %vm635, %v284, 0
      %v970 = vsel %vm635, %v285, 0
      %v973 = vsel %vm635, %v286, 0
      %v976 = vsel %vm635, %v287, 0
      %v979 = vsel %vm635, %v288, 0
      %v982 = vsel %vm635, %v289, 0
      %v985 = vsel %vm635, %v290, 0
      %v988 = vsel %vm635, %v291, 0
      %v991 = vsel %vm635, %v292, 0
      %v994 = vsel %vm635, %v293, 0
      %v997 = vsel %vm635, %v294, 0
      %v1000 = vsel %vm635, %v295, 0
      %v1003 = vsel %vm635, %v296, 0
      %v1006 = vsel %vm635, %v297, 0
      %v1009 = vsel %vm635, %v298, 0
      %v1012 = vsel %vm635, %v299, 0
      %v1015 = vsel %vm635, %v300, 0
      %v1018 = vsel %vm635, %v301, 0
      %v1021 = vsel %vm635, %v302, 0
      %v1024 = vsel %vm635, %v303, 0
      %v1027 = vsel %vm635, %v304, 0
      %v1030 = vsel %vm635, %v305, 0
      %v1033 = vsel %vm635, %v306, 0
      %v1036 = vsel %vm635, %v307, 0
      %v1039 = vsel %vm635, %v308, 0
      %v1042 = vsel %vm635, %v309, 0
      %v1045 = vsel %vm635, %v310, 0
      %v1048 = vsel %vm635, %v311, 0
      %v1051 = vsel %vm635, %v312, 0
      %v1054 = vsel %vm635, %v313, 0
      %v1057 = vsel %vm635, %v314, 0
      %v1060 = vsel %vm635, %v315, 0
      %v1063 = vsel %vm635, %v316, 0
      %v1066 = vsel %vm635, %v317, 0
      %v1069 = vsel %vm635, %v318, 0
      %v1072 = vsel %vm635, %v319, 0
      %v1075 = vsel %vm635, %v320, 0
      %v1078 = vsel %vm635, %v321, 0
      %v1081 = vsel %vm635, %v322, 0
      %v1084 = vsel %vm635, %v323, 0
      %v1087 = vsel %vm635, %v324, 0
      %v1090 = vsel %vm635, %v325, 0
      %v1093 = vsel %vm635, %v326, 0
      %v1096 = vsel %vm635, %v327, 0
      %v1099 = vsel %vm635, %v328, 0
      %v1102 = vsel %vm635, %v329, 0
      %v1105 = vsel %vm635, %v330, 0
      %v1108 = vsel %vm635, %v331, 0
      %v1111 = vsel %vm635, %v332, 0
      %v1114 = vsel %vm635, %v333, 0
      %v1117 = vsel %vm635, %v334, 0
      %v1120 = vsel %vm635, %v335, 0
      %v1123 = vsel %vm635, %v336, 0
      %v1126 = vsel %vm635, %v337, 0
      %v1129 = vsel %vm635, %v338, 0
      %v1132 = vsel %vm635, %v339, 0
      %v1135 = vsel %vm635, %v340, 0
      %v1138 = vsel %vm635, %v341, 0
      %v1141 = vsel %vm635, %v342, 0
      %v1144 = vsel %vm635, %v343, 0
      %v1147 = vsel %vm635, %v344, 0
      %v1150 = vsel %vm635, %v345, 0
      %v1153 = vsel %vm635, %v346, 0
      %v1156 = vsel %vm635, %v347, 0
      %v1159 = vsel %vm635, %v348, 0
      %v1162 = vsel %vm635, %v349, 0
      %v1165 = vsel %vm635, %v350, 0
      %v1168 = vsel %vm635, %v351, 0
      %v1171 = vsel %vm635, %v352, 0
      %v1174 = vsel %vm635, %v353, 0
      %v1177 = vsel %vm635, %v354, 0
      %v1180 = vsel %vm635, %v355, 0
      %v1183 = vsel %vm635, %v356, 0
      %v1186 = vsel %vm635, %v357, 0
      %v1189 = vsel %vm635, %v358, 0
      %v1192 = vsel %vm635, %v359, 0
      %v1195 = vsel %vm635, %v360, 0
      %v1198 = vsel %vm635, %v361, 0
      %v1201 = vsel %vm635, %v362, 0
      %v1204 = vsel %vm635, %v363, 0
      %v1207 = vsel %vm635, %v364, 0
      %v1210 = vsel %vm635, %v365, 0
      %v1213 = vsel %vm635, %v366, 0
      %v1216 = vsel %vm635, %v367, 0
      %v1219 = vsel %vm635, %v368, 0
      %v1222 = vsel %vm635, %v369, 0
      %v1225 = vsel %vm635, %v370, 0
      %v1228 = vsel %vm635, %v371, 0
      %v1231 = vsel %vm635, %v372, 0
      %v1234 = vsel %vm635, %v373, 0
      %v1237 = vsel %vm635, %v374, 0
      %v1240 = vsel %vm635, %v375, 0
      %v1243 = vsel %vm635, %v376, 0
      %v1246 = vsel %vm635, %v377, 0
      %v1249 = vsel %vm635, %v378, 0
      %v1252 = vsel %vm635, %v379, 0
      %v1255 = vsel %vm635, %v380, 0
      %v1258 = vsel %vm635, %v381, 0
      %v1261 = vsel %vm635, %v382, 0
      %v1264 = vsel %vm635, %v383, 0
      %v1267 = vsel %vm635, %v384, 0
      %v1270 = vsel %vm635, %v385, 0
      %v1273 = vsel %vm635, %v386, 0
      %v1276 = vsel %vm635, %v387, 0
      %v1279 = vsel %vm635, %v388, 0
      %v1282 = vsel %vm635, %v389, 0
      %v1285 = vsel %vm635, %v390, 0
      %v1288 = vsel %vm635, %v391, 0
      %v1291 = vsel %vm635, %v392, 0
      %v1294 = vsel %vm635, %v393, 0
      %v1297 = vsel %vm635, %v394, 0
      %v1300 = vsel %vm635, %v395, 0
      %v1303 = vsel %vm635, %v396, 0
      %v1306 = vsel %vm635, %v397, 0
      %v1309 = vsel %vm635, %v398, 0
      %v1312 = vsel %vm635, %v399, 0
      %v1315 = vsel %vm635, %v400, 0
      %v1318 = vsel %vm635, %v401, 0
      %v1321 = vsel %vm635, %v402, 0
      %v1324 = vsel %vm635, %v403, 0
      %v1327 = vsel %vm635, %v404, 0
      %v1330 = vsel %vm635, %v405, 0
      %v1333 = vsel %vm635, %v406, 0
      %v1336 = vsel %vm635, %v407, 0
      %v1339 = vsel %vm635, %v408, 0
      %v1342 = vsel %vm635, %v409, 0
      %v1345 = vsel %vm635, %v410, 0
      %v1348 = vsel %vm635, %v411, 0
      %v1351 = vsel %vm635, %v412, 0
      %v1354 = vsel %vm635, %v413, 0
      %v1357 = vsel %vm635, %v414, 0
      %v1360 = vsel %vm635, %v415, 0
      %v1363 = vsel %vm635, %v416, 0
      %v1366 = vsel %vm635, %v417, 0
      %v1369 = vsel %vm635, %v418, 0
      %v1372 = vsel %vm635, %v419, 0
      %v1375 = vsel %vm635, %v420, 0
      %v1378 = vsel %vm635, %v421, 0
      %v1381 = vsel %vm635, %v422, 0
      %v1384 = vsel %vm635, %v423, 0
      %v1387 = vsel %vm635, %v424, 0
      %v1390 = vsel %vm635, %v425, 0
      %v1393 = vsel %vm635, %v426, 0
      %v1396 = vsel %vm635, %v427, 0
      %v1399 = vsel %vm635, %v428, 0
      %v1402 = vsel %vm635, %v429, 0
      %v1405 = vsel %vm635, %v430, 0
      %v1408 = vsel %vm635, %v431, 0
      %v1411 = vsel %vm635, %v432, 0
      %v1414 = vsel %vm635, %v433, 0
      %v1417 = vsel %vm635, %v434, 0
      %v1420 = vsel %vm635, %v435, 0
      %v1423 = vsel %vm635, %v436, 0
      %v1426 = vsel %vm635, %v437, 0
      %v1429 = vsel %vm635, %v438, 0
      %v1432 = vsel %vm635, %v439, 0
      %v1435 = vsel %vm635, %v440, 0
      %v1438 = vsel %vm635, %v441, 0
      %v1441 = vsel %vm635, %v442, 0
      %v1444 = vsel %vm635, %v443, 0
      %v1447 = vsel %vm635, %v444, 0
      %v1450 = vsel %vm635, %v445, 0
      %v1453 = vsel %vm635, %v446, 0
      %v1456 = vsel %vm635, %v447, 0
      %v1459 = vsel %vm635, %v448, 0
      %v1462 = vsel %vm635, %v449, 0
      %v1465 = vsel %vm635, %v450, 0
      %v1468 = vsel %vm635, %v451, 0
      %v1471 = vsel %vm635, %v452, 0
      %v1474 = vsel %vm635, %v453, 0
      %v1477 = vsel %vm635, %v454, 0
      %v1480 = vsel %vm635, %v455, 0
      %v1483 = vsel %vm635, %v456, 0
      %v1486 = vsel %vm635, %v457, 0
      %v1489 = vsel %vm635, %v458, 0
      %v1492 = vsel %vm635, %v459, 0
      %v1495 = vsel %vm635, %v460, 0
      %v1498 = vsel %vm635, %v461, 0
      %v1501 = vsel %vm635, %v462, 0
      %v1504 = vsel %vm635, %v463, 0
      %v1507 = vsel %vm635, %v464, 0
      %v1510 = vsel %vm635, %v465, 0
      %v1513 = vsel %vm635, %v466, 0
      %v1516 = vsel %vm635, %v467, 0
      %v1519 = vsel %vm635, %v468, 0
      %v1522 = vsel %vm635, %v469, 0
      %v1525 = vsel %vm635, %v470, 0
      %v1528 = vsel %vm635, %v471, 0
      %v1531 = vsel %vm635, %v472, 0
      %v1534 = vsel %vm635, %v473, 0
      %v1537 = vsel %vm635, %v474, 0
      %v1540 = vsel %vm635, %v475, 0
      %v1543 = vsel %vm635, %v476, 0
      %v1546 = vsel %vm635, %v477, 0
      %v1549 = vsel %vm635, %v478, 0
      %v1552 = vsel %vm635, %v479, 0
      %v1555 = vsel %vm635, %v480, 0
      %v1558 = vsel %vm635, %v481, 0
      %v1561 = vsel %vm635, %v482, 0
      %v1564 = vsel %vm635, %v483, 0
      %v1567 = vsel %vm635, %v484, 0
      %v1570 = vsel %vm635, %v485, 0
      %v1573 = vsel %vm635, %v486, 0
      %v1576 = vsel %vm635, %v487, 0
      %v1579 = vsel %vm635, %v488, 0
      %v1582 = vsel %vm635, %v489, 0
      %v1585 = vsel %vm635, %v490, 0
      %v1588 = vsel %vm635, %v491, 0
      %v1591 = vsel %vm635, %v492, 0
      %v1594 = vsel %vm635, %v493, 0
      %v1597 = vsel %vm635, %v494, 0
      %v1600 = vsel %vm635, %v495, 0
      %v1603 = vsel %vm635, %v496, 0
      %v1606 = vsel %vm635, %v497, 0
      %v1609 = vsel %vm635, %v498, 0
      %v1612 = vsel %vm635, %v499, 0
      %v1615 = vsel %vm635, %v500, 0
      %v1618 = vsel %vm635, %v501, 0
      %v1621 = vsel %vm635, %v502, 0
      %v1624 = vsel %vm635, %v503, 0
      %v1627 = vsel %vm635, %v504, 0
      %v1630 = vsel %vm635, %v505, 0
      %v1633 = vsel %vm635, %v506, 0
      %v1636 = vsel %vm635, %v507, 0
      %v1639 = vsel %vm635, %v508, 0
      %v1642 = vsel %vm635, %v509, 0
      %v1645 = vsel %vm635, %v510, 0
      %v1648 = vsel %vm635, %v511, 0
      %v1651 = vsel %vm635, %v512, 0
      %v1654 = vsel %vm635, %v513, 0
      %v1657 = vsel %vm635, %v514, 0
      %v1660 = vsel %vm635, %v515, 0
      %v1663 = vsel %vm635, %v516, 0
      %v1666 = vsel %vm635, %v517, 0
      %v1669 = vsel %vm635, %v518, 0
      %v1672 = vsel %vm635, %v519, 0
      %v1675 = vsel %vm635, %v520, 0
      %v1678 = vsel %vm635, %v521, 0
      %v1681 = vsel %vm635, %v522, 0
      %v1684 = vsel %vm635, %v523, 0
      %v1687 = vsel %vm635, %v524, 0
      %v1690 = vsel %vm635, %v525, 0
      %v1693 = vsel %vm635, %v526, 0
      %v1696 = vsel %vm635, %v527, 0
      %v1699 = vsel %vm635, %v528, 0
      %v1702 = vsel %vm635, %v529, 0
      %v1705 = vsel %vm635, %v530, 0
      %v1708 = vsel %vm635, %v531, 0
      %v1711 = vsel %vm635, %v532, 0
      %v1714 = vsel %vm635, %v533, 0
      %v1717 = vsel %vm635, %v534, 0
      %v1720 = vsel %vm635, %v535, 0
      %v1723 = vsel %vm635, %v536, 0
      %v1726 = vsel %vm635, %v537, 0
      %v1729 = vsel %vm635, %v538, 0
      %v1732 = vsel %vm635, %v539, 0
      %v1735 = vsel %vm635, %v540, 0
      %v1738 = vsel %vm635, %v541, 0
      %v1741 = vsel %vm635, %v542, 0
      %v1744 = vsel %vm635, %v543, 0
      %v1747 = vsel %vm635, %v544, 0
      %v1750 = vsel %vm635, %v545, 0
      %v1753 = vsel %vm635, %v546, 0
      %v1756 = vsel %vm635, %v547, 0
      %v1759 = vsel %vm635, %v548, 0
      %v1762 = vsel %vm635, %v549, 0
      %v1765 = vsel %vm635, %v550, 0
      %v1768 = vsel %vm635, %v551, 0
      %v1771 = vsel %vm635, %v552, 0
      %v1774 = vsel %vm635, %v553, 0
      %v1777 = vsel %vm635, %v554, 0
      %v1780 = vsel %vm635, %v555, 0
      %v1783 = vsel %vm635, %v556, 0
      %v1786 = vsel %vm635, %v557, 0
      %v1789 = vsel %vm635, %v558, 0
      %v1792 = vsel %vm635, %v559, 0
      %v1795 = vsel %vm635, %v560, 0
      %v1798 = vsel %vm635, %v561, 0
      %v1801 = vsel %vm635, %v562, 0
      %v1804 = vsel %vm635, %v563, 0
      %v1807 = vsel %vm635, %v564, 0
      %v1810 = vsel %vm635, %v565, 0
      %v1813 = vsel %vm635, %v566, 0
      %v1816 = vsel %vm635, %v567, 0
      %v1819 = vsel %vm635, %v568, 0
      %v1822 = vsel %vm635, %v569, 0
      %v1825 = vsel %vm635, %v570, 0
      %v1828 = vsel %vm635, %v571, 0
      %v1831 = vsel %vm635, %v572, 0
      %v1834 = vsel %vm635, %v573, 0
      %v1837 = vsel %vm635, %v574, 0
      %v1840 = vsel %vm635, %v575, 0
      %v1843 = vsel %vm635, %v576, 0
      %v1846 = vsel %vm635, %v577, 0
      %v1849 = vsel %vm635, %v578, 0
      %v1852 = vsel %vm635, %v579, 0
      %v1855 = vsel %vm635, %v580, 0
      %v1858 = vsel %vm635, %v581, 0
      %v1861 = vsel %vm635, %v582, 0
      %v1864 = vsel %vm635, %v583, 0
      %v1867 = vsel %vm635, %v584, 0
      %v1870 = vsel %vm635, %v585, 0
      %v1873 = vsel %vm635, %v586, 0
      %v1876 = vsel %vm635, %v587, 0
      %v1879 = vsel %vm635, %v588, 0
      %v1882 = vsel %vm635, %v589, 0
      %v1885 = vsel %vm635, %v590, 0
      %v1888 = vsel %vm635, %v591, 0
      %v1891 = vsel %vm635, %v592, 0
      %v1894 = vsel %vm635, %v593, 0
      %v1897 = vsel %vm635, %v594, 0
      %v1900 = vsel %vm635, %v595, 0
      %v1903 = vsel %vm635, %v596, 0
      %v1906 = vsel %vm635, %v597, 0
      %v1909 = vsel %vm635, %v598, 0
      %v1912 = vsel %vm635, %v599, 0
      %v1915 = vsel %vm635, %v600, 0
      %v1918 = vsel %vm635, %v601, 0
      %v1921 = vsel %vm635, %v602, 0
      %v1924 = vsel %vm635, %v603, 0
      %v1927 = vsel %vm635, %v604, 0
      %v1930 = vsel %vm635, %v605, 0
      %v1933 = vsel %vm635, %v606, 0
      %v1936 = vsel %vm635, %v607, 0
      %v1939 = vsel %vm635, %v608, 0
      %v1942 = vsel %vm635, %v609, 0
      %v1945 = vsel %vm635, %v610, 0
      %v1948 = vsel %vm635, %v611, 0
      %v1951 = vsel %vm635, %v612, 0
      %v1954 = vsel %vm635, %v613, 0
      %v1957 = vsel %vm635, %v614, 0
      %v1960 = vsel %vm635, %v615, 0
      %v1963 = vsel %vm635, %v616, 0
      %v1966 = vsel %vm635, %v617, 0
      %v1969 = vsel %vm635, %v618, 0
      %v1972 = vsel %vm635, %v619, 0
      %v1975 = vsel %vm635, %v620, 0
      %v1978 = vsel %vm635, %v621, 0
      %v1981 = vsel %vm635, %v622, 0
      %v1984 = vsel %vm635, %v623, 0
      %vm1986 = vcmask 1042432
      %v1988 = vsel %vm1986, %v627, 0
      %1990 = vmatprep.subr.mxu0 0.0
      %1991 = vmatpush1.msra.mxu0 %v624
      %1992 = vmatprep.subr.mxu0 0.0
      %1993 = vmatpush1.msra.mxu0 %v625
      %1994 = vmatprep.subr.mxu0 0.0
      %1995 = vmatpush1.msra.mxu0 %v626
      %1996 = vmatprep.subr.mxu0 0.0
      %1997 = vmatpush1.msra.mxu0 %v1988
      %1998 = vmatprep.subr.mxu0 0.0
      %1999 = vmatpush1.msra.mxu0 0.0
      %2000 = vmatprep.subr.mxu0 0.0
      %2001 = vmatpush1.msra.mxu0 0.0
      %2002 = vmatprep.subr.mxu0 0.0
      %2003 = vmatpush1.msra.mxu0 0.0
      %2004 = vmatprep.subr.mxu0 0.0
      %2005 = vmatpush1.msra.mxu0 0.0
      %2006 = vmatprep.subr.mxu0 0.0
      %2007 = vmatpush1.msra.mxu0 0.0
      %2008 = vmatprep.subr.mxu0 0.0
      %2009 = vmatpush1.msra.mxu0 0.0
      %2010 = vmatprep.subr.mxu0 0.0
      %2011 = vmatpush1.msra.mxu0 0.0
      %2012 = vmatprep.subr.mxu0 0.0
      %2013 = vmatpush1.msra.mxu0 0.0
      %2014 = vmatprep.subr.mxu0 0.0
      %2015 = vmatpush1.msra.mxu0 0.0
      %2016 = vmatprep.subr.mxu0 0.0
      %2017 = vmatpush1.msra.mxu0 0.0
      %2018 = vmatprep.subr.mxu0 0.0
      %2019 = vmatpush1.msra.mxu0 0.0
      %2020 = vmatprep.subr.mxu0 0.0
      %2021 = vmatpush1.msra.mxu0 0.0
      %2022 = vmatprep.subr.mxu0 0.0
      %2023 = vmatpush1.msra.mxu0 0.0
      %2024 = vmatprep.subr.mxu0 0.0
      %2025 = vmatpush1.msra.mxu0 0.0
      %2026 = vmatprep.subr.mxu0 0.0
      %2027 = vmatpush1.msra.mxu0 0.0
      %2028 = vmatprep.subr.mxu0 0.0
      %2029 = vmatpush1.msra.mxu0 0.0
      %2030 = vmatprep.subr.mxu0 0.0
      %2031 = vmatpush1.msra.mxu0 0.0
      %2032 = vmatprep.subr.mxu0 0.0
      %2033 = vmatpush1.msra.mxu0 0.0
      %2034 = vmatprep.subr.mxu0 0.0
      %2035 = vmatpush1.msra.mxu0 0.0
      %2036 = vmatprep.subr.mxu0 0.0
      %2037 = vmatpush1.msra.mxu0 0.0
      %2038 = vmatprep.subr.mxu0 0.0
      %2039 = vmatpush1.msra.mxu0 0.0
      %2040 = vmatprep.subr.mxu0 0.0
      %2041 = vmatpush1.msra.mxu0 0.0
      %2042 = vmatprep.subr.mxu0 0.0
      %2043 = vmatpush1.msra.mxu0 0.0
      %2044 = vmatprep.subr.mxu0 0.0
      %2045 = vmatpush1.msra.mxu0 0.0
      %2046 = vmatprep.subr.mxu0 0.0
      %2047 = vmatpush1.msra.mxu0 0.0
      %2048 = vmatprep.subr.mxu0 0.0
      %2049 = vmatpush1.msra.mxu0 0.0
      %2050 = vmatprep.subr.mxu0 0.0
      %2051 = vmatpush1.msra.mxu0 0.0
      %2052 = vmatprep.subr.mxu0 0.0
      %2053 = vmatpush1.msra.mxu0 0.0
      %2054 = vmatprep.mubr.f32.mxu0 0.0
      %2055 = vmatmul.mubr.f32.gmra.mrb[0].mxu0 %v637
      %v2056 = vpop.f32.mrb[0].mxu0
      %v2057 = vadd.f32 %v633, %v2056
      %v2058 = vpop.f32.mrb[0].mxu0
      %2059 = vmatprep.mubr.f32.mxu0 0.0
      %2060 = vmatmul.mubr.f32.gmra.mrb[0].mxu0 %v640
      %v2061 = vpop.f32.mrb[0].mxu0
      %v2062 = vadd.f32 %v633, %v2061
      %v2063 = vpop.f32.mrb[0].mxu0
      %2064 = vmatprep.mubr.f32.mxu0 0.0
      %2065 = vmatmul.mubr.f32.gmra.mrb[0].mxu0 %v643
      %v2066 = vpop.f32.mrb[0].mxu0
      %v2067 = vadd.f32 %v633, %v2066
      %v2068 = vpop.f32.mrb[0].mxu0
      %2069 = vmatprep.mubr.f32.mxu0 0.0
      %2070 = vmatmul.mubr.f32.gmra.mrb[0].mxu0 %v646
      %v2071 = vpop.f32.mrb[0].mxu0
      %v2072 = vadd.f32 %v633, %v2071
      %v2073 = vpop.f32.mrb[0].mxu0
      %2074 = vmatprep.mubr.f32.mxu0 0.0
      %2075 = vmatmul.mubr.f32.gmra.mrb[0].mxu0 %v649
      %v2076 = vpop.f32.mrb[0].mxu0
      %v2077 = vadd.f32 %v633, %v2076
      %v2078 = vpop.f32.mrb[0].mxu0
      %2079 = vmatprep.mubr.f32.mxu0 0.0
      %2080 = vmatmul.mubr.f32.gmra.mrb[0].mxu0 %v652
      %v2081 = vpop.f32.mrb[0].mxu0
      %v2082 = vadd.f32 %v633, %v2081
      %v2083 = vpop.f32.mrb[0].mxu0
      %2084 = vmatprep.mubr.f32.mxu0 0.0
      %2085 = vmatmul.mubr.f32.gmra.mrb[0].mxu0 %v655
      %v2086 = vpop.f32.mrb[0].mxu0
      %v2087 = vadd.f32 %v633, %v2086
      %v2088 = vpop.f32.mrb[0].mxu0
      %2089 = vmatprep.mubr.f32.mxu0 0.0
      %2090 = vmatmul.mubr.f32.gmra.mrb[0].mxu0 %v658
      %v2091 = vpop.f32.mrb[0].mxu0
      %v2092 = vadd.f32 %v633, %v2091
      %v2093 = vpop.f32.mrb[0].mxu0
      %2094 = vmatprep.mubr.f32.mxu0 0.0
      %2095 = vmatmul.mubr.f32.gmra.mrb[0].mxu0 %v661
      %v2096 = vpop.f32.mrb[0].mxu0
      %v2097 = vadd.f32 %v633, %v2096
      %v2098 = vpop.f32.mrb[0].mxu0
      %2099 = vmatprep.mubr.f32.mxu0 0.0
      %2100 = vmatmul.mubr.f32.gmra.mrb[0].mxu0 %v664
      %v2101 = vpop.f32.mrb[0].mxu0
      %v2102 = vadd.f32 %v633, %v2101
      %v2103 = vpop.f32.mrb[0].mxu0
      %2104 = vmatprep.mubr.f32.mxu0 0.0
      %2105 = vmatmul.mubr.f32.gmra.mrb[0].mxu0 %v667
      %v2106 = vpop.f32.mrb[0].mxu0
      %v2107 = vadd.f32 %v633, %v2106
      %v2108 = vpop.f32.mrb[0].mxu0
      %2109 = vmatprep.mubr.f32.mxu0 0.0
      %2110 = vmatmul.mubr.f32.gmra.mrb[0].mxu0 %v670
      %v2111 = vpop.f32.mrb[0].mxu0
      %v2112 = vadd.f32 %v633, %v2111
      %v2113 = vpop.f32.mrb[0].mxu0
      %2114 = vmatprep.mubr.f32.mxu0 0.0
      %2115 = vmatmul.mubr.f32.gmra.mrb[0].mxu0 %v673
      %v2116 = vpop.f32.mrb[0].mxu0
      %v2117 = vadd.f32 %v633, %v2116
      %v2118 = vpop.f32.mrb[0].mxu0
      %2119 = vmatprep.mubr.f32.mxu0 0.0
      %2120 = vmatmul.mubr.f32.gmra.mrb[0].mxu0 %v676
      %v2121 = vpop.f32.mrb[0].mxu0
      %v2122 = vadd.f32 %v633, %v2121
      %v2123 = vpop.f32.mrb[0].mxu0
      %2124 = vmatprep.mubr.f32.mxu0 0.0
      %2125 = vmatmul.mubr.f32.gmra.mrb[0].mxu0 %v679
      %v2126 = vpop.f32.mrb[0].mxu0
      %v2127 = vadd.f32 %v633, %v2126
      %v2128 = vpop.f32.mrb[0].mxu0
      %2129 = vmatprep.mubr.f32.mxu0 0.0
      %2130 = vmatmul.mubr.f32.gmra.mrb[0].mxu0 %v682
      %v2131 = vpop.f32.mrb[0].mxu0
      %v2132 = vadd.f32 %v633, %v2131
      %v2133 = vpop.f32.mrb[0].mxu0
      %2134 = vmatprep.mubr.f32.mxu0 0.0
      %2135 = vmatmul.mubr.f32.gmra.mrb[0].mxu0 %v685
      %v2136 = vpop.f32.mrb[0].mxu0
      %v2137 = vadd.f32 %v633, %v2136
      %v2138 = vpop.f32.mrb[0].mxu0
      %2139 = vmatprep.mubr.f32.mxu0 0.0
      %2140 = vmatmul.mubr.f32.gmra.mrb[0].mxu0 %v688
      %v2141 = vpop.f32.mrb[0].mxu0
      %v2142 = vadd.f32 %v633, %v2141
      %v2143 = vpop.f32.mrb[0].mxu0
      %2144 = vmatprep.mubr.f32.mxu0 0.0
      %2145 = vmatmul.mubr.f32.gmra.mrb[0].mxu0 %v691
      %v2146 = vpop.f32.mrb[0].mxu0
      %v2147 = vadd.f32 %v633, %v2146
      %v2148 = vpop.f32.mrb[0].mxu0
      %2149 = vmatprep.mubr.f32.mxu0 0.0
      %2150 = vmatmul.mubr.f32.gmra.mrb[0].mxu0 %v694
      %v2151 = vpop.f32.mrb[0].mxu0
      %v2152 = vadd.f32 %v633, %v2151
      %v2153 = vpop.f32.mrb[0].mxu0
      %2154 = vmatprep.mubr.f32.mxu0 0.0
      %2155 = vmatmul.mubr.f32.gmra.mrb[0].mxu0 %v697
      %v2156 = vpop.f32.mrb[0].mxu0
      %v2157 = vadd.f32 %v633, %v2156
      %v2158 = vpop.f32.mrb[0].mxu0
      %2159 = vmatprep.mubr.f32.mxu0 0.0
      %2160 = vmatmul.mubr.f32.gmra.mrb[0].mxu0 %v700
      %v2161 = vpop.f32.mrb[0].mxu0
      %v2162 = vadd.f32 %v633, %v2161
      %v2163 = vpop.f32.mrb[0].mxu0
      %2164 = vmatprep.mubr.f32.mxu0 0.0
      %2165 = vmatmul.mubr.f32.gmra.mrb[0].mxu0 %v703
      %v2166 = vpop.f32.mrb[0].mxu0
      %v2167 = vadd.f32 %v633, %v2166
      %v2168 = vpop.f32.mrb[0].mxu0
      %2169 = vmatprep.mubr.f32.mxu0 0.0
      %2170 = vmatmul.mubr.f32.gmra.mrb[0].mxu0 %v706
      %v2171 = vpop.f32.mrb[0].mxu0
      %v2172 = vadd.f32 %v633, %v2171
      %v2173 = vpop.f32.mrb[0].mxu0
      %2174 = vmatprep.mubr.f32.mxu0 0.0
      %2175 = vmatmul.mubr.f32.gmra.mrb[0].mxu0 %v709
      %v2176 = vpop.f32.mrb[0].mxu0
      %v2177 = vadd.f32 %v633, %v2176
      %v2178 = vpop.f32.mrb[0].mxu0
      %2179 = vmatprep.mubr.f32.mxu0 0.0
      %2180 = vmatmul.mubr.f32.gmra.mrb[0].mxu0 %v712
      %v2181 = vpop.f32.mrb[0].mxu0
      %v2182 = vadd.f32 %v633, %v2181
      %v2183 = vpop.f32.mrb[0].mxu0
      %2184 = vmatprep.mubr.f32.mxu0 0.0
      %2185 = vmatmul.mubr.f32.gmra.mrb[0].mxu0 %v715
      %v2186 = vpop.f32.mrb[0].mxu0
      %v2187 = vadd.f32 %v633, %v2186
      %v2188 = vpop.f32.mrb[0].mxu0
      %2189 = vmatprep.mubr.f32.mxu0 0.0
      %2190 = vmatmul.mubr.f32.gmra.mrb[0].mxu0 %v718
      %v2191 = vpop.f32.mrb[0].mxu0
      %v2192 = vadd.f32 %v633, %v2191
      %v2193 = vpop.f32.mrb[0].mxu0
      %2194 = vmatprep.mubr.f32.mxu0 0.0
      %2195 = vmatmul.mubr.f32.gmra.mrb[0].mxu0 %v721
      %v2196 = vpop.f32.mrb[0].mxu0
      %v2197 = vadd.f32 %v633, %v2196
      %v2198 = vpop.f32.mrb[0].mxu0
      %2199 = vmatprep.mubr.f32.mxu0 0.0
      %2200 = vmatmul.mubr.f32.gmra.mrb[0].mxu0 %v724
      %v2201 = vpop.f32.mrb[0].mxu0
      %v2202 = vadd.f32 %v633, %v2201
      %v2203 = vpop.f32.mrb[0].mxu0
      %2204 = vmatprep.mubr.f32.mxu0 0.0
      %2205 = vmatmul.mubr.f32.gmra.mrb[0].mxu0 %v727
      %v2206 = vpop.f32.mrb[0].mxu0
      %v2207 = vadd.f32 %v633, %v2206
      %v2208 = vpop.f32.mrb[0].mxu0
      %2209 = vmatprep.mubr.f32.mxu0 0.0
      %2210 = vmatmul.mubr.f32.gmra.mrb[0].mxu0 %v730
      %v2211 = vpop.f32.mrb[0].mxu0
      %v2212 = vadd.f32 %v633, %v2211
      %v2213 = vpop.f32.mrb[0].mxu0
      %2214 = vmatprep.mubr.f32.mxu0 0.0
      %2215 = vmatmul.mubr.f32.gmra.mrb[0].mxu0 %v733
      %v2216 = vpop.f32.mrb[0].mxu0
      %v2217 = vadd.f32 %v633, %v2216
      %v2218 = vpop.f32.mrb[0].mxu0
      %2219 = vmatprep.mubr.f32.mxu0 0.0
      %2220 = vmatmul.mubr.f32.gmra.mrb[0].mxu0 %v736
      %v2221 = vpop.f32.mrb[0].mxu0
      %v2222 = vadd.f32 %v633, %v2221
      %v2223 = vpop.f32.mrb[0].mxu0
      %2224 = vmatprep.mubr.f32.mxu0 0.0
      %2225 = vmatmul.mubr.f32.gmra.mrb[0].mxu0 %v739
      %v2226 = vpop.f32.mrb[0].mxu0
      %v2227 = vadd.f32 %v633, %v2226
      %v2228 = vpop.f32.mrb[0].mxu0
      %2229 = vmatprep.mubr.f32.mxu0 0.0
      %2230 = vmatmul.mubr.f32.gmra.mrb[0].mxu0 %v742
      %v2231 = vpop.f32.mrb[0].mxu0
      %v2232 = vadd.f32 %v633, %v2231
      %v2233 = vpop.f32.mrb[0].mxu0
      %2234 = vmatprep.mubr.f32.mxu0 0.0
      %2235 = vmatmul.mubr.f32.gmra.mrb[0].mxu0 %v745
      %v2236 = vpop.f32.mrb[0].mxu0
      %v2237 = vadd.f32 %v633, %v2236
      %v2238 = vpop.f32.mrb[0].mxu0
      %2239 = vmatprep.mubr.f32.mxu0 0.0
      %2240 = vmatmul.mubr.f32.gmra.mrb[0].mxu0 %v748
      %v2241 = vpop.f32.mrb[0].mxu0
      %v2242 = vadd.f32 %v633, %v2241
      %v2243 = vpop.f32.mrb[0].mxu0
      %2244 = vmatprep.mubr.f32.mxu0 0.0
      %2245 = vmatmul.mubr.f32.gmra.mrb[0].mxu0 %v751
      %v2246 = vpop.f32.mrb[0].mxu0
      %v2247 = vadd.f32 %v633, %v2246
      %v2248 = vpop.f32.mrb[0].mxu0
      %2249 = vmatprep.mubr.f32.mxu0 0.0
      %2250 = vmatmul.mubr.f32.gmra.mrb[0].mxu0 %v754
      %v2251 = vpop.f32.mrb[0].mxu0
      %v2252 = vadd.f32 %v633, %v2251
      %v2253 = vpop.f32.mrb[0].mxu0
      %2254 = vmatprep.mubr.f32.mxu0 0.0
      %2255 = vmatmul.mubr.f32.gmra.mrb[0].mxu0 %v757
      %v2256 = vpop.f32.mrb[0].mxu0
      %v2257 = vadd.f32 %v633, %v2256
      %v2258 = vpop.f32.mrb[0].mxu0
      %2259 = vmatprep.mubr.f32.mxu0 0.0
      %2260 = vmatmul.mubr.f32.gmra.mrb[0].mxu0 %v760
      %v2261 = vpop.f32.mrb[0].mxu0
      %v2262 = vadd.f32 %v633, %v2261
      %v2263 = vpop.f32.mrb[0].mxu0
      %2264 = vmatprep.mubr.f32.mxu0 0.0
      %2265 = vmatmul.mubr.f32.gmra.mrb[0].mxu0 %v763
      %v2266 = vpop.f32.mrb[0].mxu0
      %v2267 = vadd.f32 %v633, %v2266
      %v2268 = vpop.f32.mrb[0].mxu0
      %2269 = vmatprep.mubr.f32.mxu0 0.0
      %2270 = vmatmul.mubr.f32.gmra.mrb[0].mxu0 %v766
      %v2271 = vpop.f32.mrb[0].mxu0
      %v2272 = vadd.f32 %v633, %v2271
      %v2273 = vpop.f32.mrb[0].mxu0
      %2274 = vmatprep.mubr.f32.mxu0 0.0
      %2275 = vmatmul.mubr.f32.gmra.mrb[0].mxu0 %v769
      %v2276 = vpop.f32.mrb[0].mxu0
      %v2277 = vadd.f32 %v633, %v2276
      %v2278 = vpop.f32.mrb[0].mxu0
      %2279 = vmatprep.mubr.f32.mxu0 0.0
      %2280 = vmatmul.mubr.f32.gmra.mrb[0].mxu0 %v772
      %v2281 = vpop.f32.mrb[0].mxu0
      %v2282 = vadd.f32 %v633, %v2281
      %v2283 = vpop.f32.mrb[0].mxu0
      %2284 = vmatprep.mubr.f32.mxu0 0.0
      %2285 = vmatmul.mubr.f32.gmra.mrb[0].mxu0 %v775
      %v2286 = vpop.f32.mrb[0].mxu0
      %v2287 = vadd.f32 %v633, %v2286
      %v2288 = vpop.f32.mrb[0].mxu0
      %2289 = vmatprep.mubr.f32.mxu0 0.0
      %2290 = vmatmul.mubr.f32.gmra.mrb[0].mxu0 %v778
      %v2291 = vpop.f32.mrb[0].mxu0
      %v2292 = vadd.f32 %v633, %v2291
      %v2293 = vpop.f32.mrb[0].mxu0
      %2294 = vmatprep.mubr.f32.mxu0 0.0
      %2295 = vmatmul.mubr.f32.gmra.mrb[0].mxu0 %v781
      %v2296 = vpop.f32.mrb[0].mxu0
      %v2297 = vadd.f32 %v633, %v2296
      %v2298 = vpop.f32.mrb[0].mxu0
      %2299 = vmatprep.mubr.f32.mxu0 0.0
      %2300 = vmatmul.mubr.f32.gmra.mrb[0].mxu0 %v784
      %v2301 = vpop.f32.mrb[0].mxu0
      %v2302 = vadd.f32 %v633, %v2301
      %v2303 = vpop.f32.mrb[0].mxu0
      %2304 = vmatprep.mubr.f32.mxu0 0.0
      %2305 = vmatmul.mubr.f32.gmra.mrb[0].mxu0 %v787
      %v2306 = vpop.f32.mrb[0].mxu0
      %v2307 = vadd.f32 %v633, %v2306
      %v2308 = vpop.f32.mrb[0].mxu0
      %2309 = vmatprep.mubr.f32.mxu0 0.0
      %2310 = vmatmul.mubr.f32.gmra.mrb[0].mxu0 %v790
      %v2311 = vpop.f32.mrb[0].mxu0
      %v2312 = vadd.f32 %v633, %v2311
      %v2313 = vpop.f32.mrb[0].mxu0
      %2314 = vmatprep.mubr.f32.mxu0 0.0
      %2315 = vmatmul.mubr.f32.gmra.mrb[0].mxu0 %v793
      %v2316 = vpop.f32.mrb[0].mxu0
      %v2317 = vadd.f32 %v633, %v2316
      %v2318 = vpop.f32.mrb[0].mxu0
      %2319 = vmatprep.mubr.f32.mxu0 0.0
      %2320 = vmatmul.mubr.f32.gmra.mrb[0].mxu0 %v796
      %v2321 = vpop.f32.mrb[0].mxu0
      %v2322 = vadd.f32 %v633, %v2321
      %v2323 = vpop.f32.mrb[0].mxu0
      %2324 = vmatprep.mubr.f32.mxu0 0.0
      %2325 = vmatmul.mubr.f32.gmra.mrb[0].mxu0 %v799
      %v2326 = vpop.f32.mrb[0].mxu0
      %v2327 = vadd.f32 %v633, %v2326
      %v2328 = vpop.f32.mrb[0].mxu0
      %2329 = vmatprep.mubr.f32.mxu0 0.0
      %2330 = vmatmul.mubr.f32.gmra.mrb[0].mxu0 %v802
      %v2331 = vpop.f32.mrb[0].mxu0
      %v2332 = vadd.f32 %v633, %v2331
      %v2333 = vpop.f32.mrb[0].mxu0
      %2334 = vmatprep.mubr.f32.mxu0 0.0
      %2335 = vmatmul.mubr.f32.gmra.mrb[0].mxu0 %v805
      %v2336 = vpop.f32.mrb[0].mxu0
      %v2337 = vadd.f32 %v633, %v2336
      %v2338 = vpop.f32.mrb[0].mxu0
      %2339 = vmatprep.mubr.f32.mxu0 0.0
      %2340 = vmatmul.mubr.f32.gmra.mrb[0].mxu0 %v808
      %v2341 = vpop.f32.mrb[0].mxu0
      %v2342 = vadd.f32 %v633, %v2341
      %v2343 = vpop.f32.mrb[0].mxu0
      %2344 = vmatprep.mubr.f32.mxu0 0.0
      %2345 = vmatmul.mubr.f32.gmra.mrb[0].mxu0 %v811
      %v2346 = vpop.f32.mrb[0].mxu0
      %v2347 = vadd.f32 %v633, %v2346
      %v2348 = vpop.f32.mrb[0].mxu0
      %2349 = vmatprep.mubr.f32.mxu0 0.0
      %2350 = vmatmul.mubr.f32.gmra.mrb[0].mxu0 %v814
      %v2351 = vpop.f32.mrb[0].mxu0
      %v2352 = vadd.f32 %v633, %v2351
      %v2353 = vpop.f32.mrb[0].mxu0
      %2354 = vmatprep.mubr.f32.mxu0 0.0
      %2355 = vmatmul.mubr.f32.gmra.mrb[0].mxu0 %v817
      %v2356 = vpop.f32.mrb[0].mxu0
      %v2357 = vadd.f32 %v633, %v2356
      %v2358 = vpop.f32.mrb[0].mxu0
      %2359 = vmatprep.mubr.f32.mxu0 0.0
      %2360 = vmatmul.mubr.f32.gmra.mrb[0].mxu0 %v820
      %v2361 = vpop.f32.mrb[0].mxu0
      %v2362 = vadd.f32 %v633, %v2361
      %v2363 = vpop.f32.mrb[0].mxu0
      %2364 = vmatprep.mubr.f32.mxu0 0.0
      %2365 = vmatmul.mubr.f32.gmra.mrb[0].mxu0 %v823
      %v2366 = vpop.f32.mrb[0].mxu0
      %v2367 = vadd.f32 %v633, %v2366
      %v2368 = vpop.f32.mrb[0].mxu0
      %2369 = vmatprep.mubr.f32.mxu0 0.0
      %2370 = vmatmul.mubr.f32.gmra.mrb[0].mxu0 %v826
      %v2371 = vpop.f32.mrb[0].mxu0
      %v2372 = vadd.f32 %v633, %v2371
      %v2373 = vpop.f32.mrb[0].mxu0
      %2374 = vmatprep.mubr.f32.mxu0 0.0
      %2375 = vmatmul.mubr.f32.gmra.mrb[0].mxu0 %v829
      %v2376 = vpop.f32.mrb[0].mxu0
      %v2377 = vadd.f32 %v633, %v2376
      %v2378 = vpop.f32.mrb[0].mxu0
      %2379 = vmatprep.mubr.f32.mxu0 0.0
      %2380 = vmatmul.mubr.f32.gmra.mrb[0].mxu0 %v832
      %v2381 = vpop.f32.mrb[0].mxu0
      %v2382 = vadd.f32 %v633, %v2381
      %v2383 = vpop.f32.mrb[0].mxu0
      %2384 = vmatprep.mubr.f32.mxu0 0.0
      %2385 = vmatmul.mubr.f32.gmra.mrb[0].mxu0 %v835
      %v2386 = vpop.f32.mrb[0].mxu0
      %v2387 = vadd.f32 %v633, %v2386
      %v2388 = vpop.f32.mrb[0].mxu0
      %2389 = vmatprep.mubr.f32.mxu0 0.0
      %2390 = vmatmul.mubr.f32.gmra.mrb[0].mxu0 %v838
      %v2391 = vpop.f32.mrb[0].mxu0
      %v2392 = vadd.f32 %v633, %v2391
      %v2393 = vpop.f32.mrb[0].mxu0
      %2394 = vmatprep.mubr.f32.mxu0 0.0
      %2395 = vmatmul.mubr.f32.gmra.mrb[0].mxu0 %v841
      %v2396 = vpop.f32.mrb[0].mxu0
      %v2397 = vadd.f32 %v633, %v2396
      %v2398 = vpop.f32.mrb[0].mxu0
      %2399 = vmatprep.mubr.f32.mxu0 0.0
      %2400 = vmatmul.mubr.f32.gmra.mrb[0].mxu0 %v844
      %v2401 = vpop.f32.mrb[0].mxu0
      %v2402 = vadd.f32 %v633, %v2401
      %v2403 = vpop.f32.mrb[0].mxu0
      %2404 = vmatprep.mubr.f32.mxu0 0.0
      %2405 = vmatmul.mubr.f32.gmra.mrb[0].mxu0 %v847
      %v2406 = vpop.f32.mrb[0].mxu0
      %v2407 = vadd.f32 %v633, %v2406
      %v2408 = vpop.f32.mrb[0].mxu0
      %2409 = vmatprep.mubr.f32.mxu0 0.0
      %2410 = vmatmul.mubr.f32.gmra.mrb[0].mxu0 %v850
      %v2411 = vpop.f32.mrb[0].mxu0
      %v2412 = vadd.f32 %v633, %v2411
      %v2413 = vpop.f32.mrb[0].mxu0
      %2414 = vmatprep.mubr.f32.mxu0 0.0
      %2415 = vmatmul.mubr.f32.gmra.mrb[0].mxu0 %v853
      %v2416 = vpop.f32.mrb[0].mxu0
      %v2417 = vadd.f32 %v633, %v2416
      %v2418 = vpop.f32.mrb[0].mxu0
      %2419 = vmatprep.mubr.f32.mxu0 0.0
      %2420 = vmatmul.mubr.f32.gmra.mrb[0].mxu0 %v856
      %v2421 = vpop.f32.mrb[0].mxu0
      %v2422 = vadd.f32 %v633, %v2421
      %v2423 = vpop.f32.mrb[0].mxu0
      %2424 = vmatprep.mubr.f32.mxu0 0.0
      %2425 = vmatmul.mubr.f32.gmra.mrb[0].mxu0 %v859
      %v2426 = vpop.f32.mrb[0].mxu0
      %v2427 = vadd.f32 %v633, %v2426
      %v2428 = vpop.f32.mrb[0].mxu0
      %2429 = vmatprep.mubr.f32.mxu0 0.0
      %2430 = vmatmul.mubr.f32.gmra.mrb[0].mxu0 %v862
      %v2431 = vpop.f32.mrb[0].mxu0
      %v2432 = vadd.f32 %v633, %v2431
      %v2433 = vpop.f32.mrb[0].mxu0
      %2434 = vmatprep.mubr.f32.mxu0 0.0
      %2435 = vmatmul.mubr.f32.gmra.mrb[0].mxu0 %v865
      %v2436 = vpop.f32.mrb[0].mxu0
      %v2437 = vadd.f32 %v633, %v2436
      %v2438 = vpop.f32.mrb[0].mxu0
      %2439 = vmatprep.mubr.f32.mxu0 0.0
      %2440 = vmatmul.mubr.f32.gmra.mrb[0].mxu0 %v868
      %v2441 = vpop.f32.mrb[0].mxu0
      %v2442 = vadd.f32 %v633, %v2441
      %v2443 = vpop.f32.mrb[0].mxu0
      %2444 = vmatprep.mubr.f32.mxu0 0.0
      %2445 = vmatmul.mubr.f32.gmra.mrb[0].mxu0 %v871
      %v2446 = vpop.f32.mrb[0].mxu0
      %v2447 = vadd.f32 %v633, %v2446
      %v2448 = vpop.f32.mrb[0].mxu0
      %2449 = vmatprep.mubr.f32.mxu0 0.0
      %2450 = vmatmul.mubr.f32.gmra.mrb[0].mxu0 %v874
      %v2451 = vpop.f32.mrb[0].mxu0
      %v2452 = vadd.f32 %v633, %v2451
      %v2453 = vpop.f32.mrb[0].mxu0
      %2454 = vmatprep.mubr.f32.mxu0 0.0
      %2455 = vmatmul.mubr.f32.gmra.mrb[0].mxu0 %v877
      %v2456 = vpop.f32.mrb[0].mxu0
      %v2457 = vadd.f32 %v633, %v2456
      %v2458 = vpop.f32.mrb[0].mxu0
      %2459 = vmatprep.mubr.f32.mxu0 0.0
      %2460 = vmatmul.mubr.f32.gmra.mrb[0].mxu0 %v880
      %v2461 = vpop.f32.mrb[0].mxu0
      %v2462 = vadd.f32 %v633, %v2461
      %v2463 = vpop.f32.mrb[0].mxu0
      %2464 = vmatprep.mubr.f32.mxu0 0.0
      %2465 = vmatmul.mubr.f32.gmra.mrb[0].mxu0 %v883
      %v2466 = vpop.f32.mrb[0].mxu0
      %v2467 = vadd.f32 %v633, %v2466
      %v2468 = vpop.f32.mrb[0].mxu0
      %2469 = vmatprep.mubr.f32.mxu0 0.0
      %2470 = vmatmul.mubr.f32.gmra.mrb[0].mxu0 %v886
      %v2471 = vpop.f32.mrb[0].mxu0
      %v2472 = vadd.f32 %v633, %v2471
      %v2473 = vpop.f32.mrb[0].mxu0
      %2474 = vmatprep.mubr.f32.mxu0 0.0
      %2475 = vmatmul.mubr.f32.gmra.mrb[0].mxu0 %v889
      %v2476 = vpop.f32.mrb[0].mxu0
      %v2477 = vadd.f32 %v633, %v2476
      %v2478 = vpop.f32.mrb[0].mxu0
      %2479 = vmatprep.mubr.f32.mxu0 0.0
      %2480 = vmatmul.mubr.f32.gmra.mrb[0].mxu0 %v892
      %v2481 = vpop.f32.mrb[0].mxu0
      %v2482 = vadd.f32 %v633, %v2481
      %v2483 = vpop.f32.mrb[0].mxu0
      %2484 = vmatprep.mubr.f32.mxu0 0.0
      %2485 = vmatmul.mubr.f32.gmra.mrb[0].mxu0 %v895
      %v2486 = vpop.f32.mrb[0].mxu0
      %v2487 = vadd.f32 %v633, %v2486
      %v2488 = vpop.f32.mrb[0].mxu0
      %2489 = vmatprep.mubr.f32.mxu0 0.0
      %2490 = vmatmul.mubr.f32.gmra.mrb[0].mxu0 %v898
      %v2491 = vpop.f32.mrb[0].mxu0
      %v2492 = vadd.f32 %v633, %v2491
      %v2493 = vpop.f32.mrb[0].mxu0
      %2494 = vmatprep.mubr.f32.mxu0 0.0
      %2495 = vmatmul.mubr.f32.gmra.mrb[0].mxu0 %v901
      %v2496 = vpop.f32.mrb[0].mxu0
      %v2497 = vadd.f32 %v633, %v2496
      %v2498 = vpop.f32.mrb[0].mxu0
      %2499 = vmatprep.mubr.f32.mxu0 0.0
      %2500 = vmatmul.mubr.f32.gmra.mrb[0].mxu0 %v904
      %v2501 = vpop.f32.mrb[0].mxu0
      %v2502 = vadd.f32 %v633, %v2501
      %v2503 = vpop.f32.mrb[0].mxu0
      %2504 = vmatprep.mubr.f32.mxu0 0.0
      %2505 = vmatmul.mubr.f32.gmra.mrb[0].mxu0 %v907
      %v2506 = vpop.f32.mrb[0].mxu0
      %v2507 = vadd.f32 %v633, %v2506
      %v2508 = vpop.f32.mrb[0].mxu0
      %2509 = vmatprep.mubr.f32.mxu0 0.0
      %2510 = vmatmul.mubr.f32.gmra.mrb[0].mxu0 %v910
      %v2511 = vpop.f32.mrb[0].mxu0
      %v2512 = vadd.f32 %v633, %v2511
      %v2513 = vpop.f32.mrb[0].mxu0
      %2514 = vmatprep.mubr.f32.mxu0 0.0
      %2515 = vmatmul.mubr.f32.gmra.mrb[0].mxu0 %v913
      %v2516 = vpop.f32.mrb[0].mxu0
      %v2517 = vadd.f32 %v633, %v2516
      %v2518 = vpop.f32.mrb[0].mxu0
      %2519 = vmatprep.mubr.f32.mxu0 0.0
      %2520 = vmatmul.mubr.f32.gmra.mrb[0].mxu0 %v916
      %v2521 = vpop.f32.mrb[0].mxu0
      %v2522 = vadd.f32 %v633, %v2521
      %v2523 = vpop.f32.mrb[0].mxu0
      %2524 = vmatprep.mubr.f32.mxu0 0.0
      %2525 = vmatmul.mubr.f32.gmra.mrb[0].mxu0 %v919
      %v2526 = vpop.f32.mrb[0].mxu0
      %v2527 = vadd.f32 %v633, %v2526
      %v2528 = vpop.f32.mrb[0].mxu0
      %2529 = vmatprep.mubr.f32.mxu0 0.0
      %2530 = vmatmul.mubr.f32.gmra.mrb[0].mxu0 %v922
      %v2531 = vpop.f32.mrb[0].mxu0
      %v2532 = vadd.f32 %v633, %v2531
      %v2533 = vpop.f32.mrb[0].mxu0
      %2534 = vmatprep.mubr.f32.mxu0 0.0
      %2535 = vmatmul.mubr.f32.gmra.mrb[0].mxu0 %v925
      %v2536 = vpop.f32.mrb[0].mxu0
      %v2537 = vadd.f32 %v633, %v2536
      %v2538 = vpop.f32.mrb[0].mxu0
      %2539 = vmatprep.mubr.f32.mxu0 0.0
      %2540 = vmatmul.mubr.f32.gmra.mrb[0].mxu0 %v928
      %v2541 = vpop.f32.mrb[0].mxu0
      %v2542 = vadd.f32 %v633, %v2541
      %v2543 = vpop.f32.mrb[0].mxu0
      %2544 = vmatprep.mubr.f32.mxu0 0.0
      %2545 = vmatmul.mubr.f32.gmra.mrb[0].mxu0 %v931
      %v2546 = vpop.f32.mrb[0].mxu0
      %v2547 = vadd.f32 %v633, %v2546
      %v2548 = vpop.f32.mrb[0].mxu0
      %2549 = vmatprep.mubr.f32.mxu0 0.0
      %2550 = vmatmul.mubr.f32.gmra.mrb[0].mxu0 %v934
      %v2551 = vpop.f32.mrb[0].mxu0
      %v2552 = vadd.f32 %v633, %v2551
      %v2553 = vpop.f32.mrb[0].mxu0
      %2554 = vmatprep.mubr.f32.mxu0 0.0
      %2555 = vmatmul.mubr.f32.gmra.mrb[0].mxu0 %v937
      %v2556 = vpop.f32.mrb[0].mxu0
      %v2557 = vadd.f32 %v633, %v2556
      %v2558 = vpop.f32.mrb[0].mxu0
      %2559 = vmatprep.mubr.f32.mxu0 0.0
      %2560 = vmatmul.mubr.f32.gmra.mrb[0].mxu0 %v940
      %v2561 = vpop.f32.mrb[0].mxu0
      %v2562 = vadd.f32 %v633, %v2561
      %v2563 = vpop.f32.mrb[0].mxu0
      %2564 = vmatprep.mubr.f32.mxu0 0.0
      %2565 = vmatmul.mubr.f32.gmra.mrb[0].mxu0 %v943
      %v2566 = vpop.f32.mrb[0].mxu0
      %v2567 = vadd.f32 %v633, %v2566
      %v2568 = vpop.f32.mrb[0].mxu0
      %2569 = vmatprep.mubr.f32.mxu0 0.0
      %2570 = vmatmul.mubr.f32.gmra.mrb[0].mxu0 %v946
      %v2571 = vpop.f32.mrb[0].mxu0
      %v2572 = vadd.f32 %v633, %v2571
      %v2573 = vpop.f32.mrb[0].mxu0
      %2574 = vmatprep.mubr.f32.mxu0 0.0
      %2575 = vmatmul.mubr.f32.gmra.mrb[0].mxu0 %v949
      %v2576 = vpop.f32.mrb[0].mxu0
      %v2577 = vadd.f32 %v633, %v2576
      %v2578 = vpop.f32.mrb[0].mxu0
      %2579 = vmatprep.mubr.f32.mxu0 0.0
      %2580 = vmatmul.mubr.f32.gmra.mrb[0].mxu0 %v952
      %v2581 = vpop.f32.mrb[0].mxu0
      %v2582 = vadd.f32 %v633, %v2581
      %v2583 = vpop.f32.mrb[0].mxu0
      %2584 = vmatprep.mubr.f32.mxu0 0.0
      %2585 = vmatmul.mubr.f32.gmra.mrb[0].mxu0 %v955
      %v2586 = vpop.f32.mrb[0].mxu0
      %v2587 = vadd.f32 %v633, %v2586
      %v2588 = vpop.f32.mrb[0].mxu0
      %2589 = vmatprep.mubr.f32.mxu0 0.0
      %2590 = vmatmul.mubr.f32.gmra.mrb[0].mxu0 %v958
      %v2591 = vpop.f32.mrb[0].mxu0
      %v2592 = vadd.f32 %v633, %v2591
      %v2593 = vpop.f32.mrb[0].mxu0
      %2594 = vmatprep.mubr.f32.mxu0 0.0
      %2595 = vmatmul.mubr.f32.gmra.mrb[0].mxu0 %v961
      %v2596 = vpop.f32.mrb[0].mxu0
      %v2597 = vadd.f32 %v633, %v2596
      %v2598 = vpop.f32.mrb[0].mxu0
      %2599 = vmatprep.mubr.f32.mxu0 0.0
      %2600 = vmatmul.mubr.f32.gmra.mrb[0].mxu0 %v964
      %v2601 = vpop.f32.mrb[0].mxu0
      %v2602 = vadd.f32 %v633, %v2601
      %v2603 = vpop.f32.mrb[0].mxu0
      %2604 = vmatprep.mubr.f32.mxu0 0.0
      %2605 = vmatmul.mubr.f32.gmra.mrb[0].mxu0 %v967
      %v2606 = vpop.f32.mrb[0].mxu0
      %v2607 = vadd.f32 %v633, %v2606
      %v2608 = vpop.f32.mrb[0].mxu0
      %2609 = vmatprep.mubr.f32.mxu0 0.0
      %2610 = vmatmul.mubr.f32.gmra.mrb[0].mxu0 %v970
      %v2611 = vpop.f32.mrb[0].mxu0
      %v2612 = vadd.f32 %v633, %v2611
      %v2613 = vpop.f32.mrb[0].mxu0
      %2614 = vmatprep.mubr.f32.mxu0 0.0
      %2615 = vmatmul.mubr.f32.gmra.mrb[0].mxu0 %v973
      %v2616 = vpop.f32.mrb[0].mxu0
      %v2617 = vadd.f32 %v633, %v2616
      %v2618 = vpop.f32.mrb[0].mxu0
      %2619 = vmatprep.mubr.f32.mxu0 0.0
      %2620 = vmatmul.mubr.f32.gmra.mrb[0].mxu0 %v976
      %v2621 = vpop.f32.mrb[0].mxu0
      %v2622 = vadd.f32 %v633, %v2621
      %v2623 = vpop.f32.mrb[0].mxu0
      %2624 = vmatprep.mubr.f32.mxu0 0.0
      %2625 = vmatmul.mubr.f32.gmra.mrb[0].mxu0 %v979
      %v2626 = vpop.f32.mrb[0].mxu0
      %v2627 = vadd.f32 %v633, %v2626
      %v2628 = vpop.f32.mrb[0].mxu0
      %2629 = vmatprep.mubr.f32.mxu0 0.0
      %2630 = vmatmul.mubr.f32.gmra.mrb[0].mxu0 %v982
      %v2631 = vpop.f32.mrb[0].mxu0
      %v2632 = vadd.f32 %v633, %v2631
      %v2633 = vpop.f32.mrb[0].mxu0
      %2634 = vmatprep.mubr.f32.mxu0 0.0
      %2635 = vmatmul.mubr.f32.gmra.mrb[0].mxu0 %v985
      %v2636 = vpop.f32.mrb[0].mxu0
      %v2637 = vadd.f32 %v633, %v2636
      %v2638 = vpop.f32.mrb[0].mxu0
      %2639 = vmatprep.mubr.f32.mxu0 0.0
      %2640 = vmatmul.mubr.f32.gmra.mrb[0].mxu0 %v988
      %v2641 = vpop.f32.mrb[0].mxu0
      %v2642 = vadd.f32 %v633, %v2641
      %v2643 = vpop.f32.mrb[0].mxu0
      %2644 = vmatprep.mubr.f32.mxu0 0.0
      %2645 = vmatmul.mubr.f32.gmra.mrb[0].mxu0 %v991
      %v2646 = vpop.f32.mrb[0].mxu0
      %v2647 = vadd.f32 %v633, %v2646
      %v2648 = vpop.f32.mrb[0].mxu0
      %2649 = vmatprep.mubr.f32.mxu0 0.0
      %2650 = vmatmul.mubr.f32.gmra.mrb[0].mxu0 %v994
      %v2651 = vpop.f32.mrb[0].mxu0
      %v2652 = vadd.f32 %v633, %v2651
      %v2653 = vpop.f32.mrb[0].mxu0
      %2654 = vmatprep.mubr.f32.mxu0 0.0
      %2655 = vmatmul.mubr.f32.gmra.mrb[0].mxu0 %v997
      %v2656 = vpop.f32.mrb[0].mxu0
      %v2657 = vadd.f32 %v633, %v2656
      %v2658 = vpop.f32.mrb[0].mxu0
      %2659 = vmatprep.mubr.f32.mxu0 0.0
      %2660 = vmatmul.mubr.f32.gmra.mrb[0].mxu0 %v1000
      %v2661 = vpop.f32.mrb[0].mxu0
      %v2662 = vadd.f32 %v633, %v2661
      %v2663 = vpop.f32.mrb[0].mxu0
      %2664 = vmatprep.mubr.f32.mxu0 0.0
      %2665 = vmatmul.mubr.f32.gmra.mrb[0].mxu0 %v1003
      %v2666 = vpop.f32.mrb[0].mxu0
      %v2667 = vadd.f32 %v633, %v2666
      %v2668 = vpop.f32.mrb[0].mxu0
      %2669 = vmatprep.mubr.f32.mxu0 0.0
      %2670 = vmatmul.mubr.f32.gmra.mrb[0].mxu0 %v1006
      %v2671 = vpop.f32.mrb[0].mxu0
      %v2672 = vadd.f32 %v633, %v2671
      %v2673 = vpop.f32.mrb[0].mxu0
      %2674 = vmatprep.mubr.f32.mxu0 0.0
      %2675 = vmatmul.mubr.f32.gmra.mrb[0].mxu0 %v1009
      %v2676 = vpop.f32.mrb[0].mxu0
      %v2677 = vadd.f32 %v633, %v2676
      %v2678 = vpop.f32.mrb[0].mxu0
      %2679 = vmatprep.mubr.f32.mxu0 0.0
      %2680 = vmatmul.mubr.f32.gmra.mrb[0].mxu0 %v1012
      %v2681 = vpop.f32.mrb[0].mxu0
      %v2682 = vadd.f32 %v633, %v2681
      %v2683 = vpop.f32.mrb[0].mxu0
      %2684 = vmatprep.mubr.f32.mxu0 0.0
      %2685 = vmatmul.mubr.f32.gmra.mrb[0].mxu0 %v1015
      %v2686 = vpop.f32.mrb[0].mxu0
      %v2687 = vadd.f32 %v633, %v2686
      %v2688 = vpop.f32.mrb[0].mxu0
      %2689 = vmatprep.mubr.f32.mxu0 0.0
      %2690 = vmatmul.mubr.f32.gmra.mrb[0].mxu0 %v1018
      %v2691 = vpop.f32.mrb[0].mxu0
      %v2692 = vadd.f32 %v633, %v2691
      %v2693 = vpop.f32.mrb[0].mxu0
      %2694 = vmatprep.mubr.f32.mxu0 0.0
      %2695 = vmatmul.mubr.f32.gmra.mrb[0].mxu0 %v1021
      %v2696 = vpop.f32.mrb[0].mxu0
      %v2697 = vadd.f32 %v633, %v2696
      %v2698 = vpop.f32.mrb[0].mxu0
      %2699 = vmatprep.mubr.f32.mxu0 0.0
      %2700 = vmatmul.mubr.f32.gmra.mrb[0].mxu0 %v1024
      %v2701 = vpop.f32.mrb[0].mxu0
      %v2702 = vadd.f32 %v633, %v2701
      %v2703 = vpop.f32.mrb[0].mxu0
      %2704 = vmatprep.mubr.f32.mxu0 0.0
      %2705 = vmatmul.mubr.f32.gmra.mrb[0].mxu0 %v1027
      %v2706 = vpop.f32.mrb[0].mxu0
      %v2707 = vadd.f32 %v633, %v2706
      %v2708 = vpop.f32.mrb[0].mxu0
      %2709 = vmatprep.mubr.f32.mxu0 0.0
      %2710 = vmatmul.mubr.f32.gmra.mrb[0].mxu0 %v1030
      %v2711 = vpop.f32.mrb[0].mxu0
      %v2712 = vadd.f32 %v633, %v2711
      %v2713 = vpop.f32.mrb[0].mxu0
      %2714 = vmatprep.mubr.f32.mxu0 0.0
      %2715 = vmatmul.mubr.f32.gmra.mrb[0].mxu0 %v1033
      %v2716 = vpop.f32.mrb[0].mxu0
      %v2717 = vadd.f32 %v633, %v2716
      %v2718 = vpop.f32.mrb[0].mxu0
      %2719 = vmatprep.mubr.f32.mxu0 0.0
      %2720 = vmatmul.mubr.f32.gmra.mrb[0].mxu0 %v1036
      %v2721 = vpop.f32.mrb[0].mxu0
      %v2722 = vadd.f32 %v633, %v2721
      %v2723 = vpop.f32.mrb[0].mxu0
      %2724 = vmatprep.mubr.f32.mxu0 0.0
      %2725 = vmatmul.mubr.f32.gmra.mrb[0].mxu0 %v1039
      %v2726 = vpop.f32.mrb[0].mxu0
      %v2727 = vadd.f32 %v633, %v2726
      %v2728 = vpop.f32.mrb[0].mxu0
      %2729 = vmatprep.mubr.f32.mxu0 0.0
      %2730 = vmatmul.mubr.f32.gmra.mrb[0].mxu0 %v1042
      %v2731 = vpop.f32.mrb[0].mxu0
      %v2732 = vadd.f32 %v633, %v2731
      %v2733 = vpop.f32.mrb[0].mxu0
      %2734 = vmatprep.mubr.f32.mxu0 0.0
      %2735 = vmatmul.mubr.f32.gmra.mrb[0].mxu0 %v1045
      %v2736 = vpop.f32.mrb[0].mxu0
      %v2737 = vadd.f32 %v633, %v2736
      %v2738 = vpop.f32.mrb[0].mxu0
      %2739 = vmatprep.mubr.f32.mxu0 0.0
      %2740 = vmatmul.mubr.f32.gmra.mrb[0].mxu0 %v1048
      %v2741 = vpop.f32.mrb[0].mxu0
      %v2742 = vadd.f32 %v633, %v2741
      %v2743 = vpop.f32.mrb[0].mxu0
      %2744 = vmatprep.mubr.f32.mxu0 0.0
      %2745 = vmatmul.mubr.f32.gmra.mrb[0].mxu0 %v1051
      %v2746 = vpop.f32.mrb[0].mxu0
      %v2747 = vadd.f32 %v633, %v2746
      %v2748 = vpop.f32.mrb[0].mxu0
      %2749 = vmatprep.mubr.f32.mxu0 0.0
      %2750 = vmatmul.mubr.f32.gmra.mrb[0].mxu0 %v1054
      %v2751 = vpop.f32.mrb[0].mxu0
      %v2752 = vadd.f32 %v633, %v2751
      %v2753 = vpop.f32.mrb[0].mxu0
      %2754 = vmatprep.mubr.f32.mxu0 0.0
      %2755 = vmatmul.mubr.f32.gmra.mrb[0].mxu0 %v1057
      %v2756 = vpop.f32.mrb[0].mxu0
      %v2757 = vadd.f32 %v633, %v2756
      %v2758 = vpop.f32.mrb[0].mxu0
      %2759 = vmatprep.mubr.f32.mxu0 0.0
      %2760 = vmatmul.mubr.f32.gmra.mrb[0].mxu0 %v1060
      %v2761 = vpop.f32.mrb[0].mxu0
      %v2762 = vadd.f32 %v633, %v2761
      %v2763 = vpop.f32.mrb[0].mxu0
      %2764 = vmatprep.mubr.f32.mxu0 0.0
      %2765 = vmatmul.mubr.f32.gmra.mrb[0].mxu0 %v1063
      %v2766 = vpop.f32.mrb[0].mxu0
      %v2767 = vadd.f32 %v633, %v2766
      %v2768 = vpop.f32.mrb[0].mxu0
      %2769 = vmatprep.mubr.f32.mxu0 0.0
      %2770 = vmatmul.mubr.f32.gmra.mrb[0].mxu0 %v1066
      %v2771 = vpop.f32.mrb[0].mxu0
      %v2772 = vadd.f32 %v633, %v2771
      %v2773 = vpop.f32.mrb[0].mxu0
      %2774 = vmatprep.mubr.f32.mxu0 0.0
      %2775 = vmatmul.mubr.f32.gmra.mrb[0].mxu0 %v1069
      %v2776 = vpop.f32.mrb[0].mxu0
      %v2777 = vadd.f32 %v633, %v2776
      %v2778 = vpop.f32.mrb[0].mxu0
      %2779 = vmatprep.mubr.f32.mxu0 0.0
      %2780 = vmatmul.mubr.f32.gmra.mrb[0].mxu0 %v1072
      %v2781 = vpop.f32.mrb[0].mxu0
      %v2782 = vadd.f32 %v633, %v2781
      %v2783 = vpop.f32.mrb[0].mxu0
      %2784 = vmatprep.mubr.f32.mxu0 0.0
      %2785 = vmatmul.mubr.f32.gmra.mrb[0].mxu0 %v1075
      %v2786 = vpop.f32.mrb[0].mxu0
      %v2787 = vadd.f32 %v633, %v2786
      %v2788 = vpop.f32.mrb[0].mxu0
      %2789 = vmatprep.mubr.f32.mxu0 0.0
      %2790 = vmatmul.mubr.f32.gmra.mrb[0].mxu0 %v1078
      %v2791 = vpop.f32.mrb[0].mxu0
      %v2792 = vadd.f32 %v633, %v2791
      %v2793 = vpop.f32.mrb[0].mxu0
      %2794 = vmatprep.mubr.f32.mxu0 0.0
      %2795 = vmatmul.mubr.f32.gmra.mrb[0].mxu0 %v1081
      %v2796 = vpop.f32.mrb[0].mxu0
      %v2797 = vadd.f32 %v633, %v2796
      %v2798 = vpop.f32.mrb[0].mxu0
      %2799 = vmatprep.mubr.f32.mxu0 0.0
      %2800 = vmatmul.mubr.f32.gmra.mrb[0].mxu0 %v1084
      %v2801 = vpop.f32.mrb[0].mxu0
      %v2802 = vadd.f32 %v633, %v2801
      %v2803 = vpop.f32.mrb[0].mxu0
      %2804 = vmatprep.mubr.f32.mxu0 0.0
      %2805 = vmatmul.mubr.f32.gmra.mrb[0].mxu0 %v1087
      %v2806 = vpop.f32.mrb[0].mxu0
      %v2807 = vadd.f32 %v633, %v2806
      %v2808 = vpop.f32.mrb[0].mxu0
      %2809 = vmatprep.mubr.f32.mxu0 0.0
      %2810 = vmatmul.mubr.f32.gmra.mrb[0].mxu0 %v1090
      %v2811 = vpop.f32.mrb[0].mxu0
      %v2812 = vadd.f32 %v633, %v2811
      %v2813 = vpop.f32.mrb[0].mxu0
      %2814 = vmatprep.mubr.f32.mxu0 0.0
      %2815 = vmatmul.mubr.f32.gmra.mrb[0].mxu0 %v1093
      %v2816 = vpop.f32.mrb[0].mxu0
      %v2817 = vadd.f32 %v633, %v2816
      %v2818 = vpop.f32.mrb[0].mxu0
      %2819 = vmatprep.mubr.f32.mxu0 0.0
      %2820 = vmatmul.mubr.f32.gmra.mrb[0].mxu0 %v1096
      %v2821 = vpop.f32.mrb[0].mxu0
      %v2822 = vadd.f32 %v633, %v2821
      %v2823 = vpop.f32.mrb[0].mxu0
      %2824 = vmatprep.mubr.f32.mxu0 0.0
      %2825 = vmatmul.mubr.f32.gmra.mrb[0].mxu0 %v1099
      %v2826 = vpop.f32.mrb[0].mxu0
      %v2827 = vadd.f32 %v633, %v2826
      %v2828 = vpop.f32.mrb[0].mxu0
      %2829 = vmatprep.mubr.f32.mxu0 0.0
      %2830 = vmatmul.mubr.f32.gmra.mrb[0].mxu0 %v1102
      %v2831 = vpop.f32.mrb[0].mxu0
      %v2832 = vadd.f32 %v633, %v2831
      %v2833 = vpop.f32.mrb[0].mxu0
      %2834 = vmatprep.mubr.f32.mxu0 0.0
      %2835 = vmatmul.mubr.f32.gmra.mrb[0].mxu0 %v1105
      %v2836 = vpop.f32.mrb[0].mxu0
      %v2837 = vadd.f32 %v633, %v2836
      %v2838 = vpop.f32.mrb[0].mxu0
      %2839 = vmatprep.mubr.f32.mxu0 0.0
      %2840 = vmatmul.mubr.f32.gmra.mrb[0].mxu0 %v1108
      %v2841 = vpop.f32.mrb[0].mxu0
      %v2842 = vadd.f32 %v633, %v2841
      %v2843 = vpop.f32.mrb[0].mxu0
      %2844 = vmatprep.mubr.f32.mxu0 0.0
      %2845 = vmatmul.mubr.f32.gmra.mrb[0].mxu0 %v1111
      %v2846 = vpop.f32.mrb[0].mxu0
      %v2847 = vadd.f32 %v633, %v2846
      %v2848 = vpop.f32.mrb[0].mxu0
      %2849 = vmatprep.mubr.f32.mxu0 0.0
      %2850 = vmatmul.mubr.f32.gmra.mrb[0].mxu0 %v1114
      %v2851 = vpop.f32.mrb[0].mxu0
      %v2852 = vadd.f32 %v633, %v2851
      %v2853 = vpop.f32.mrb[0].mxu0
      %2854 = vmatprep.mubr.f32.mxu0 0.0
      %2855 = vmatmul.mubr.f32.gmra.mrb[0].mxu0 %v1117
      %v2856 = vpop.f32.mrb[0].mxu0
      %v2857 = vadd.f32 %v633, %v2856
      %v2858 = vpop.f32.mrb[0].mxu0
      %2859 = vmatprep.mubr.f32.mxu0 0.0
      %2860 = vmatmul.mubr.f32.gmra.mrb[0].mxu0 %v1120
      %v2861 = vpop.f32.mrb[0].mxu0
      %v2862 = vadd.f32 %v633, %v2861
      %v2863 = vpop.f32.mrb[0].mxu0
      %2864 = vmatprep.mubr.f32.mxu0 0.0
      %2865 = vmatmul.mubr.f32.gmra.mrb[0].mxu0 %v1123
      %v2866 = vpop.f32.mrb[0].mxu0
      %v2867 = vadd.f32 %v633, %v2866
      %v2868 = vpop.f32.mrb[0].mxu0
      %2869 = vmatprep.mubr.f32.mxu0 0.0
      %2870 = vmatmul.mubr.f32.gmra.mrb[0].mxu0 %v1126
      %v2871 = vpop.f32.mrb[0].mxu0
      %v2872 = vadd.f32 %v633, %v2871
      %v2873 = vpop.f32.mrb[0].mxu0
      %2874 = vmatprep.mubr.f32.mxu0 0.0
      %2875 = vmatmul.mubr.f32.gmra.mrb[0].mxu0 %v1129
      %v2876 = vpop.f32.mrb[0].mxu0
      %v2877 = vadd.f32 %v633, %v2876
      %v2878 = vpop.f32.mrb[0].mxu0
      %2879 = vmatprep.mubr.f32.mxu0 0.0
      %2880 = vmatmul.mubr.f32.gmra.mrb[0].mxu0 %v1132
      %v2881 = vpop.f32.mrb[0].mxu0
      %v2882 = vadd.f32 %v633, %v2881
      %v2883 = vpop.f32.mrb[0].mxu0
      %2884 = vmatprep.mubr.f32.mxu0 0.0
      %2885 = vmatmul.mubr.f32.gmra.mrb[0].mxu0 %v1135
      %v2886 = vpop.f32.mrb[0].mxu0
      %v2887 = vadd.f32 %v633, %v2886
      %v2888 = vpop.f32.mrb[0].mxu0
      %2889 = vmatprep.mubr.f32.mxu0 0.0
      %2890 = vmatmul.mubr.f32.gmra.mrb[0].mxu0 %v1138
      %v2891 = vpop.f32.mrb[0].mxu0
      %v2892 = vadd.f32 %v633, %v2891
      %v2893 = vpop.f32.mrb[0].mxu0
      %2894 = vmatprep.mubr.f32.mxu0 0.0
      %2895 = vmatmul.mubr.f32.gmra.mrb[0].mxu0 %v1141
      %v2896 = vpop.f32.mrb[0].mxu0
      %v2897 = vadd.f32 %v633, %v2896
      %v2898 = vpop.f32.mrb[0].mxu0
      %2899 = vmatprep.mubr.f32.mxu0 0.0
      %2900 = vmatmul.mubr.f32.gmra.mrb[0].mxu0 %v1144
      %v2901 = vpop.f32.mrb[0].mxu0
      %v2902 = vadd.f32 %v633, %v2901
      %v2903 = vpop.f32.mrb[0].mxu0
      %2904 = vmatprep.mubr.f32.mxu0 0.0
      %2905 = vmatmul.mubr.f32.gmra.mrb[0].mxu0 %v1147
      %v2906 = vpop.f32.mrb[0].mxu0
      %v2907 = vadd.f32 %v633, %v2906
      %v2908 = vpop.f32.mrb[0].mxu0
      %2909 = vmatprep.mubr.f32.mxu0 0.0
      %2910 = vmatmul.mubr.f32.gmra.mrb[0].mxu0 %v1150
      %v2911 = vpop.f32.mrb[0].mxu0
      %v2912 = vadd.f32 %v633, %v2911
      %v2913 = vpop.f32.mrb[0].mxu0
      %2914 = vmatprep.mubr.f32.mxu0 0.0
      %2915 = vmatmul.mubr.f32.gmra.mrb[0].mxu0 %v1153
      %v2916 = vpop.f32.mrb[0].mxu0
      %v2917 = vadd.f32 %v633, %v2916
      %v2918 = vpop.f32.mrb[0].mxu0
      %2919 = vmatprep.mubr.f32.mxu0 0.0
      %2920 = vmatmul.mubr.f32.gmra.mrb[0].mxu0 %v1156
      %v2921 = vpop.f32.mrb[0].mxu0
      %v2922 = vadd.f32 %v633, %v2921
      %v2923 = vpop.f32.mrb[0].mxu0
      %2924 = vmatprep.mubr.f32.mxu0 0.0
      %2925 = vmatmul.mubr.f32.gmra.mrb[0].mxu0 %v1159
      %v2926 = vpop.f32.mrb[0].mxu0
      %v2927 = vadd.f32 %v633, %v2926
      %v2928 = vpop.f32.mrb[0].mxu0
      %2929 = vmatprep.mubr.f32.mxu0 0.0
      %2930 = vmatmul.mubr.f32.gmra.mrb[0].mxu0 %v1162
      %v2931 = vpop.f32.mrb[0].mxu0
      %v2932 = vadd.f32 %v633, %v2931
      %v2933 = vpop.f32.mrb[0].mxu0
      %2934 = vmatprep.mubr.f32.mxu0 0.0
      %2935 = vmatmul.mubr.f32.gmra.mrb[0].mxu0 %v1165
      %v2936 = vpop.f32.mrb[0].mxu0
      %v2937 = vadd.f32 %v633, %v2936
      %v2938 = vpop.f32.mrb[0].mxu0
      %2939 = vmatprep.mubr.f32.mxu0 0.0
      %2940 = vmatmul.mubr.f32.gmra.mrb[0].mxu0 %v1168
      %v2941 = vpop.f32.mrb[0].mxu0
      %v2942 = vadd.f32 %v633, %v2941
      %v2943 = vpop.f32.mrb[0].mxu0
      %2944 = vmatprep.mubr.f32.mxu0 0.0
      %2945 = vmatmul.mubr.f32.gmra.mrb[0].mxu0 %v1171
      %v2946 = vpop.f32.mrb[0].mxu0
      %v2947 = vadd.f32 %v633, %v2946
      %v2948 = vpop.f32.mrb[0].mxu0
      %2949 = vmatprep.mubr.f32.mxu0 0.0
      %2950 = vmatmul.mubr.f32.gmra.mrb[0].mxu0 %v1174
      %v2951 = vpop.f32.mrb[0].mxu0
      %v2952 = vadd.f32 %v633, %v2951
      %v2953 = vpop.f32.mrb[0].mxu0
      %2954 = vmatprep.mubr.f32.mxu0 0.0
      %2955 = vmatmul.mubr.f32.gmra.mrb[0].mxu0 %v1177
      %v2956 = vpop.f32.mrb[0].mxu0
      %v2957 = vadd.f32 %v633, %v2956
      %v2958 = vpop.f32.mrb[0].mxu0
      %2959 = vmatprep.mubr.f32.mxu0 0.0
      %2960 = vmatmul.mubr.f32.gmra.mrb[0].mxu0 %v1180
      %v2961 = vpop.f32.mrb[0].mxu0
      %v2962 = vadd.f32 %v633, %v2961
      %v2963 = vpop.f32.mrb[0].mxu0
      %2964 = vmatprep.mubr.f32.mxu0 0.0
      %2965 = vmatmul.mubr.f32.gmra.mrb[0].mxu0 %v1183
      %v2966 = vpop.f32.mrb[0].mxu0
      %v2967 = vadd.f32 %v633, %v2966
      %v2968 = vpop.f32.mrb[0].mxu0
      %2969 = vmatprep.mubr.f32.mxu0 0.0
      %2970 = vmatmul.mubr.f32.gmra.mrb[0].mxu0 %v1186
      %v2971 = vpop.f32.mrb[0].mxu0
      %v2972 = vadd.f32 %v633, %v2971
      %v2973 = vpop.f32.mrb[0].mxu0
      %2974 = vmatprep.mubr.f32.mxu0 0.0
      %2975 = vmatmul.mubr.f32.gmra.mrb[0].mxu0 %v1189
      %v2976 = vpop.f32.mrb[0].mxu0
      %v2977 = vadd.f32 %v633, %v2976
      %v2978 = vpop.f32.mrb[0].mxu0
      %2979 = vmatprep.mubr.f32.mxu0 0.0
      %2980 = vmatmul.mubr.f32.gmra.mrb[0].mxu0 %v1192
      %v2981 = vpop.f32.mrb[0].mxu0
      %v2982 = vadd.f32 %v633, %v2981
      %v2983 = vpop.f32.mrb[0].mxu0
      %2984 = vmatprep.mubr.f32.mxu0 0.0
      %2985 = vmatmul.mubr.f32.gmra.mrb[0].mxu0 %v1195
      %v2986 = vpop.f32.mrb[0].mxu0
      %v2987 = vadd.f32 %v633, %v2986
      %v2988 = vpop.f32.mrb[0].mxu0
      %2989 = vmatprep.mubr.f32.mxu0 0.0
      %2990 = vmatmul.mubr.f32.gmra.mrb[0].mxu0 %v1198
      %v2991 = vpop.f32.mrb[0].mxu0
      %v2992 = vadd.f32 %v633, %v2991
      %v2993 = vpop.f32.mrb[0].mxu0
      %2994 = vmatprep.mubr.f32.mxu0 0.0
      %2995 = vmatmul.mubr.f32.gmra.mrb[0].mxu0 %v1201
      %v2996 = vpop.f32.mrb[0].mxu0
      %v2997 = vadd.f32 %v633, %v2996
      %v2998 = vpop.f32.mrb[0].mxu0
      %2999 = vmatprep.mubr.f32.mxu0 0.0
      %3000 = vmatmul.mubr.f32.gmra.mrb[0].mxu0 %v1204
      %v3001 = vpop.f32.mrb[0].mxu0
      %v3002 = vadd.f32 %v633, %v3001
      %v3003 = vpop.f32.mrb[0].mxu0
      %3004 = vmatprep.mubr.f32.mxu0 0.0
      %3005 = vmatmul.mubr.f32.gmra.mrb[0].mxu0 %v1207
      %v3006 = vpop.f32.mrb[0].mxu0
      %v3007 = vadd.f32 %v633, %v3006
      %v3008 = vpop.f32.mrb[0].mxu0
      %3009 = vmatprep.mubr.f32.mxu0 0.0
      %3010 = vmatmul.mubr.f32.gmra.mrb[0].mxu0 %v1210
      %v3011 = vpop.f32.mrb[0].mxu0
      %v3012 = vadd.f32 %v633, %v3011
      %v3013 = vpop.f32.mrb[0].mxu0
      %3014 = vmatprep.mubr.f32.mxu0 0.0
      %3015 = vmatmul.mubr.f32.gmra.mrb[0].mxu0 %v1213
      %v3016 = vpop.f32.mrb[0].mxu0
      %v3017 = vadd.f32 %v633, %v3016
      %v3018 = vpop.f32.mrb[0].mxu0
      %3019 = vmatprep.mubr.f32.mxu0 0.0
      %3020 = vmatmul.mubr.f32.gmra.mrb[0].mxu0 %v1216
      %v3021 = vpop.f32.mrb[0].mxu0
      %v3022 = vadd.f32 %v633, %v3021
      %v3023 = vpop.f32.mrb[0].mxu0
      %3024 = vmatprep.mubr.f32.mxu0 0.0
      %3025 = vmatmul.mubr.f32.gmra.mrb[0].mxu0 %v1219
      %v3026 = vpop.f32.mrb[0].mxu0
      %v3027 = vadd.f32 %v633, %v3026
      %v3028 = vpop.f32.mrb[0].mxu0
      %3029 = vmatprep.mubr.f32.mxu0 0.0
      %3030 = vmatmul.mubr.f32.gmra.mrb[0].mxu0 %v1222
      %v3031 = vpop.f32.mrb[0].mxu0
      %v3032 = vadd.f32 %v633, %v3031
      %v3033 = vpop.f32.mrb[0].mxu0
      %3034 = vmatprep.mubr.f32.mxu0 0.0
      %3035 = vmatmul.mubr.f32.gmra.mrb[0].mxu0 %v1225
      %v3036 = vpop.f32.mrb[0].mxu0
      %v3037 = vadd.f32 %v633, %v3036
      %v3038 = vpop.f32.mrb[0].mxu0
      %3039 = vmatprep.mubr.f32.mxu0 0.0
      %3040 = vmatmul.mubr.f32.gmra.mrb[0].mxu0 %v1228
      %v3041 = vpop.f32.mrb[0].mxu0
      %v3042 = vadd.f32 %v633, %v3041
      %v3043 = vpop.f32.mrb[0].mxu0
      %3044 = vmatprep.mubr.f32.mxu0 0.0
      %3045 = vmatmul.mubr.f32.gmra.mrb[0].mxu0 %v1231
      %v3046 = vpop.f32.mrb[0].mxu0
      %v3047 = vadd.f32 %v633, %v3046
      %v3048 = vpop.f32.mrb[0].mxu0
      %3049 = vmatprep.mubr.f32.mxu0 0.0
      %3050 = vmatmul.mubr.f32.gmra.mrb[0].mxu0 %v1234
      %v3051 = vpop.f32.mrb[0].mxu0
      %v3052 = vadd.f32 %v633, %v3051
      %v3053 = vpop.f32.mrb[0].mxu0
      %3054 = vmatprep.mubr.f32.mxu0 0.0
      %3055 = vmatmul.mubr.f32.gmra.mrb[0].mxu0 %v1237
      %v3056 = vpop.f32.mrb[0].mxu0
      %v3057 = vadd.f32 %v633, %v3056
      %v3058 = vpop.f32.mrb[0].mxu0
      %3059 = vmatprep.mubr.f32.mxu0 0.0
      %3060 = vmatmul.mubr.f32.gmra.mrb[0].mxu0 %v1240
      %v3061 = vpop.f32.mrb[0].mxu0
      %v3062 = vadd.f32 %v633, %v3061
      %v3063 = vpop.f32.mrb[0].mxu0
      %3064 = vmatprep.mubr.f32.mxu0 0.0
      %3065 = vmatmul.mubr.f32.gmra.mrb[0].mxu0 %v1243
      %v3066 = vpop.f32.mrb[0].mxu0
      %v3067 = vadd.f32 %v633, %v3066
      %v3068 = vpop.f32.mrb[0].mxu0
      %3069 = vmatprep.mubr.f32.mxu0 0.0
      %3070 = vmatmul.mubr.f32.gmra.mrb[0].mxu0 %v1246
      %v3071 = vpop.f32.mrb[0].mxu0
      %v3072 = vadd.f32 %v633, %v3071
      %v3073 = vpop.f32.mrb[0].mxu0
      %3074 = vmatprep.mubr.f32.mxu0 0.0
      %3075 = vmatmul.mubr.f32.gmra.mrb[0].mxu0 %v1249
      %v3076 = vpop.f32.mrb[0].mxu0
      %v3077 = vadd.f32 %v633, %v3076
      %v3078 = vpop.f32.mrb[0].mxu0
      %3079 = vmatprep.mubr.f32.mxu0 0.0
      %3080 = vmatmul.mubr.f32.gmra.mrb[0].mxu0 %v1252
      %v3081 = vpop.f32.mrb[0].mxu0
      %v3082 = vadd.f32 %v633, %v3081
      %v3083 = vpop.f32.mrb[0].mxu0
      %3084 = vmatprep.mubr.f32.mxu0 0.0
      %3085 = vmatmul.mubr.f32.gmra.mrb[0].mxu0 %v1255
      %v3086 = vpop.f32.mrb[0].mxu0
      %v3087 = vadd.f32 %v633, %v3086
      %v3088 = vpop.f32.mrb[0].mxu0
      %3089 = vmatprep.mubr.f32.mxu0 0.0
      %3090 = vmatmul.mubr.f32.gmra.mrb[0].mxu0 %v1258
      %v3091 = vpop.f32.mrb[0].mxu0
      %v3092 = vadd.f32 %v633, %v3091
      %v3093 = vpop.f32.mrb[0].mxu0
      %3094 = vmatprep.mubr.f32.mxu0 0.0
      %3095 = vmatmul.mubr.f32.gmra.mrb[0].mxu0 %v1261
      %v3096 = vpop.f32.mrb[0].mxu0
      %v3097 = vadd.f32 %v633, %v3096
      %v3098 = vpop.f32.mrb[0].mxu0
      %3099 = vmatprep.mubr.f32.mxu0 0.0
      %3100 = vmatmul.mubr.f32.gmra.mrb[0].mxu0 %v1264
      %v3101 = vpop.f32.mrb[0].mxu0
      %v3102 = vadd.f32 %v633, %v3101
      %v3103 = vpop.f32.mrb[0].mxu0
      %3104 = vmatprep.mubr.f32.mxu0 0.0
      %3105 = vmatmul.mubr.f32.gmra.mrb[0].mxu0 %v1267
      %v3106 = vpop.f32.mrb[0].mxu0
      %v3107 = vadd.f32 %v633, %v3106
      %v3108 = vpop.f32.mrb[0].mxu0
      %3109 = vmatprep.mubr.f32.mxu0 0.0
      %3110 = vmatmul.mubr.f32.gmra.mrb[0].mxu0 %v1270
      %v3111 = vpop.f32.mrb[0].mxu0
      %v3112 = vadd.f32 %v633, %v3111
      %v3113 = vpop.f32.mrb[0].mxu0
      %3114 = vmatprep.mubr.f32.mxu0 0.0
      %3115 = vmatmul.mubr.f32.gmra.mrb[0].mxu0 %v1273
      %v3116 = vpop.f32.mrb[0].mxu0
      %v3117 = vadd.f32 %v633, %v3116
      %v3118 = vpop.f32.mrb[0].mxu0
      %3119 = vmatprep.mubr.f32.mxu0 0.0
      %3120 = vmatmul.mubr.f32.gmra.mrb[0].mxu0 %v1276
      %v3121 = vpop.f32.mrb[0].mxu0
      %v3122 = vadd.f32 %v633, %v3121
      %v3123 = vpop.f32.mrb[0].mxu0
      %3124 = vmatprep.mubr.f32.mxu0 0.0
      %3125 = vmatmul.mubr.f32.gmra.mrb[0].mxu0 %v1279
      %v3126 = vpop.f32.mrb[0].mxu0
      %v3127 = vadd.f32 %v633, %v3126
      %v3128 = vpop.f32.mrb[0].mxu0
      %3129 = vmatprep.mubr.f32.mxu0 0.0
      %3130 = vmatmul.mubr.f32.gmra.mrb[0].mxu0 %v1282
      %v3131 = vpop.f32.mrb[0].mxu0
      %v3132 = vadd.f32 %v633, %v3131
      %v3133 = vpop.f32.mrb[0].mxu0
      %3134 = vmatprep.mubr.f32.mxu0 0.0
      %3135 = vmatmul.mubr.f32.gmra.mrb[0].mxu0 %v1285
      %v3136 = vpop.f32.mrb[0].mxu0
      %v3137 = vadd.f32 %v633, %v3136
      %v3138 = vpop.f32.mrb[0].mxu0
      %3139 = vmatprep.mubr.f32.mxu0 0.0
      %3140 = vmatmul.mubr.f32.gmra.mrb[0].mxu0 %v1288
      %v3141 = vpop.f32.mrb[0].mxu0
      %v3142 = vadd.f32 %v633, %v3141
      %v3143 = vpop.f32.mrb[0].mxu0
      %3144 = vmatprep.mubr.f32.mxu0 0.0
      %3145 = vmatmul.mubr.f32.gmra.mrb[0].mxu0 %v1291
      %v3146 = vpop.f32.mrb[0].mxu0
      %v3147 = vadd.f32 %v633, %v3146
      %v3148 = vpop.f32.mrb[0].mxu0
      %3149 = vmatprep.mubr.f32.mxu0 0.0
      %3150 = vmatmul.mubr.f32.gmra.mrb[0].mxu0 %v1294
      %v3151 = vpop.f32.mrb[0].mxu0
      %v3152 = vadd.f32 %v633, %v3151
      %v3153 = vpop.f32.mrb[0].mxu0
      %3154 = vmatprep.mubr.f32.mxu0 0.0
      %3155 = vmatmul.mubr.f32.gmra.mrb[0].mxu0 %v1297
      %v3156 = vpop.f32.mrb[0].mxu0
      %v3157 = vadd.f32 %v633, %v3156
      %v3158 = vpop.f32.mrb[0].mxu0
      %3159 = vmatprep.mubr.f32.mxu0 0.0
      %3160 = vmatmul.mubr.f32.gmra.mrb[0].mxu0 %v1300
      %v3161 = vpop.f32.mrb[0].mxu0
      %v3162 = vadd.f32 %v633, %v3161
      %v3163 = vpop.f32.mrb[0].mxu0
      %3164 = vmatprep.mubr.f32.mxu0 0.0
      %3165 = vmatmul.mubr.f32.gmra.mrb[0].mxu0 %v1303
      %v3166 = vpop.f32.mrb[0].mxu0
      %v3167 = vadd.f32 %v633, %v3166
      %v3168 = vpop.f32.mrb[0].mxu0
      %3169 = vmatprep.mubr.f32.mxu0 0.0
      %3170 = vmatmul.mubr.f32.gmra.mrb[0].mxu0 %v1306
      %v3171 = vpop.f32.mrb[0].mxu0
      %v3172 = vadd.f32 %v633, %v3171
      %v3173 = vpop.f32.mrb[0].mxu0
      %3174 = vmatprep.mubr.f32.mxu0 0.0
      %3175 = vmatmul.mubr.f32.gmra.mrb[0].mxu0 %v1309
      %v3176 = vpop.f32.mrb[0].mxu0
      %v3177 = vadd.f32 %v633, %v3176
      %v3178 = vpop.f32.mrb[0].mxu0
      %3179 = vmatprep.mubr.f32.mxu0 0.0
      %3180 = vmatmul.mubr.f32.gmra.mrb[0].mxu0 %v1312
      %v3181 = vpop.f32.mrb[0].mxu0
      %v3182 = vadd.f32 %v633, %v3181
      %v3183 = vpop.f32.mrb[0].mxu0
      %3184 = vmatprep.mubr.f32.mxu0 0.0
      %3185 = vmatmul.mubr.f32.gmra.mrb[0].mxu0 %v1315
      %v3186 = vpop.f32.mrb[0].mxu0
      %v3187 = vadd.f32 %v633, %v3186
      %v3188 = vpop.f32.mrb[0].mxu0
      %3189 = vmatprep.mubr.f32.mxu0 0.0
      %3190 = vmatmul.mubr.f32.gmra.mrb[0].mxu0 %v1318
      %v3191 = vpop.f32.mrb[0].mxu0
      %v3192 = vadd.f32 %v633, %v3191
      %v3193 = vpop.f32.mrb[0].mxu0
      %3194 = vmatprep.mubr.f32.mxu0 0.0
      %3195 = vmatmul.mubr.f32.gmra.mrb[0].mxu0 %v1321
      %v3196 = vpop.f32.mrb[0].mxu0
      %v3197 = vadd.f32 %v633, %v3196
      %v3198 = vpop.f32.mrb[0].mxu0
      %3199 = vmatprep.mubr.f32.mxu0 0.0
      %3200 = vmatmul.mubr.f32.gmra.mrb[0].mxu0 %v1324
      %v3201 = vpop.f32.mrb[0].mxu0
      %v3202 = vadd.f32 %v633, %v3201
      %v3203 = vpop.f32.mrb[0].mxu0
      %3204 = vmatprep.mubr.f32.mxu0 0.0
      %3205 = vmatmul.mubr.f32.gmra.mrb[0].mxu0 %v1327
      %v3206 = vpop.f32.mrb[0].mxu0
      %v3207 = vadd.f32 %v633, %v3206
      %v3208 = vpop.f32.mrb[0].mxu0
      %3209 = vmatprep.mubr.f32.mxu0 0.0
      %3210 = vmatmul.mubr.f32.gmra.mrb[0].mxu0 %v1330
      %v3211 = vpop.f32.mrb[0].mxu0
      %v3212 = vadd.f32 %v633, %v3211
      %v3213 = vpop.f32.mrb[0].mxu0
      %3214 = vmatprep.mubr.f32.mxu0 0.0
      %3215 = vmatmul.mubr.f32.gmra.mrb[0].mxu0 %v1333
      %v3216 = vpop.f32.mrb[0].mxu0
      %v3217 = vadd.f32 %v633, %v3216
      %v3218 = vpop.f32.mrb[0].mxu0
      %3219 = vmatprep.mubr.f32.mxu0 0.0
      %3220 = vmatmul.mubr.f32.gmra.mrb[0].mxu0 %v1336
      %v3221 = vpop.f32.mrb[0].mxu0
      %v3222 = vadd.f32 %v633, %v3221
      %v3223 = vpop.f32.mrb[0].mxu0
      %3224 = vmatprep.mubr.f32.mxu0 0.0
      %3225 = vmatmul.mubr.f32.gmra.mrb[0].mxu0 %v1339
      %v3226 = vpop.f32.mrb[0].mxu0
      %v3227 = vadd.f32 %v633, %v3226
      %v3228 = vpop.f32.mrb[0].mxu0
      %3229 = vmatprep.mubr.f32.mxu0 0.0
      %3230 = vmatmul.mubr.f32.gmra.mrb[0].mxu0 %v1342
      %v3231 = vpop.f32.mrb[0].mxu0
      %v3232 = vadd.f32 %v633, %v3231
      %v3233 = vpop.f32.mrb[0].mxu0
      %3234 = vmatprep.mubr.f32.mxu0 0.0
      %3235 = vmatmul.mubr.f32.gmra.mrb[0].mxu0 %v1345
      %v3236 = vpop.f32.mrb[0].mxu0
      %v3237 = vadd.f32 %v633, %v3236
      %v3238 = vpop.f32.mrb[0].mxu0
      %3239 = vmatprep.mubr.f32.mxu0 0.0
      %3240 = vmatmul.mubr.f32.gmra.mrb[0].mxu0 %v1348
      %v3241 = vpop.f32.mrb[0].mxu0
      %v3242 = vadd.f32 %v633, %v3241
      %v3243 = vpop.f32.mrb[0].mxu0
      %3244 = vmatprep.mubr.f32.mxu0 0.0
      %3245 = vmatmul.mubr.f32.gmra.mrb[0].mxu0 %v1351
      %v3246 = vpop.f32.mrb[0].mxu0
      %v3247 = vadd.f32 %v633, %v3246
      %v3248 = vpop.f32.mrb[0].mxu0
      %3249 = vmatprep.mubr.f32.mxu0 0.0
      %3250 = vmatmul.mubr.f32.gmra.mrb[0].mxu0 %v1354
      %v3251 = vpop.f32.mrb[0].mxu0
      %v3252 = vadd.f32 %v633, %v3251
      %v3253 = vpop.f32.mrb[0].mxu0
      %3254 = vmatprep.mubr.f32.mxu0 0.0
      %3255 = vmatmul.mubr.f32.gmra.mrb[0].mxu0 %v1357
      %v3256 = vpop.f32.mrb[0].mxu0
      %v3257 = vadd.f32 %v633, %v3256
      %v3258 = vpop.f32.mrb[0].mxu0
      %3259 = vmatprep.mubr.f32.mxu0 0.0
      %3260 = vmatmul.mubr.f32.gmra.mrb[0].mxu0 %v1360
      %v3261 = vpop.f32.mrb[0].mxu0
      %v3262 = vadd.f32 %v633, %v3261
      %v3263 = vpop.f32.mrb[0].mxu0
      %3264 = vmatprep.mubr.f32.mxu0 0.0
      %3265 = vmatmul.mubr.f32.gmra.mrb[0].mxu0 %v1363
      %v3266 = vpop.f32.mrb[0].mxu0
      %v3267 = vadd.f32 %v633, %v3266
      %v3268 = vpop.f32.mrb[0].mxu0
      %3269 = vmatprep.mubr.f32.mxu0 0.0
      %3270 = vmatmul.mubr.f32.gmra.mrb[0].mxu0 %v1366
      %v3271 = vpop.f32.mrb[0].mxu0
      %v3272 = vadd.f32 %v633, %v3271
      %v3273 = vpop.f32.mrb[0].mxu0
      %3274 = vmatprep.mubr.f32.mxu0 0.0
      %3275 = vmatmul.mubr.f32.gmra.mrb[0].mxu0 %v1369
      %v3276 = vpop.f32.mrb[0].mxu0
      %v3277 = vadd.f32 %v633, %v3276
      %v3278 = vpop.f32.mrb[0].mxu0
      %3279 = vmatprep.mubr.f32.mxu0 0.0
      %3280 = vmatmul.mubr.f32.gmra.mrb[0].mxu0 %v1372
      %v3281 = vpop.f32.mrb[0].mxu0
      %v3282 = vadd.f32 %v633, %v3281
      %v3283 = vpop.f32.mrb[0].mxu0
      %3284 = vmatprep.mubr.f32.mxu0 0.0
      %3285 = vmatmul.mubr.f32.gmra.mrb[0].mxu0 %v1375
      %v3286 = vpop.f32.mrb[0].mxu0
      %v3287 = vadd.f32 %v633, %v3286
      %v3288 = vpop.f32.mrb[0].mxu0
      %3289 = vmatprep.mubr.f32.mxu0 0.0
      %3290 = vmatmul.mubr.f32.gmra.mrb[0].mxu0 %v1378
      %v3291 = vpop.f32.mrb[0].mxu0
      %v3292 = vadd.f32 %v633, %v3291
      %v3293 = vpop.f32.mrb[0].mxu0
      %3294 = vmatprep.mubr.f32.mxu0 0.0
      %3295 = vmatmul.mubr.f32.gmra.mrb[0].mxu0 %v1381
      %v3296 = vpop.f32.mrb[0].mxu0
      %v3297 = vadd.f32 %v633, %v3296
      %v3298 = vpop.f32.mrb[0].mxu0
      %3299 = vmatprep.mubr.f32.mxu0 0.0
      %3300 = vmatmul.mubr.f32.gmra.mrb[0].mxu0 %v1384
      %v3301 = vpop.f32.mrb[0].mxu0
      %v3302 = vadd.f32 %v633, %v3301
      %v3303 = vpop.f32.mrb[0].mxu0
      %3304 = vmatprep.mubr.f32.mxu0 0.0
      %3305 = vmatmul.mubr.f32.gmra.mrb[0].mxu0 %v1387
      %v3306 = vpop.f32.mrb[0].mxu0
      %v3307 = vadd.f32 %v633, %v3306
      %v3308 = vpop.f32.mrb[0].mxu0
      %3309 = vmatprep.mubr.f32.mxu0 0.0
      %3310 = vmatmul.mubr.f32.gmra.mrb[0].mxu0 %v1390
      %v3311 = vpop.f32.mrb[0].mxu0
      %v3312 = vadd.f32 %v633, %v3311
      %v3313 = vpop.f32.mrb[0].mxu0
      %3314 = vmatprep.mubr.f32.mxu0 0.0
      %3315 = vmatmul.mubr.f32.gmra.mrb[0].mxu0 %v1393
      %v3316 = vpop.f32.mrb[0].mxu0
      %v3317 = vadd.f32 %v633, %v3316
      %v3318 = vpop.f32.mrb[0].mxu0
      %3319 = vmatprep.mubr.f32.mxu0 0.0
      %3320 = vmatmul.mubr.f32.gmra.mrb[0].mxu0 %v1396
      %v3321 = vpop.f32.mrb[0].mxu0
      %v3322 = vadd.f32 %v633, %v3321
      %v3323 = vpop.f32.mrb[0].mxu0
      %3324 = vmatprep.mubr.f32.mxu0 0.0
      %3325 = vmatmul.mubr.f32.gmra.mrb[0].mxu0 %v1399
      %v3326 = vpop.f32.mrb[0].mxu0
      %v3327 = vadd.f32 %v633, %v3326
      %v3328 = vpop.f32.mrb[0].mxu0
      %3329 = vmatprep.mubr.f32.mxu0 0.0
      %3330 = vmatmul.mubr.f32.gmra.mrb[0].mxu0 %v1402
      %v3331 = vpop.f32.mrb[0].mxu0
      %v3332 = vadd.f32 %v633, %v3331
      %v3333 = vpop.f32.mrb[0].mxu0
      %3334 = vmatprep.mubr.f32.mxu0 0.0
      %3335 = vmatmul.mubr.f32.gmra.mrb[0].mxu0 %v1405
      %v3336 = vpop.f32.mrb[0].mxu0
      %v3337 = vadd.f32 %v633, %v3336
      %v3338 = vpop.f32.mrb[0].mxu0
      %3339 = vmatprep.mubr.f32.mxu0 0.0
      %3340 = vmatmul.mubr.f32.gmra.mrb[0].mxu0 %v1408
      %v3341 = vpop.f32.mrb[0].mxu0
      %v3342 = vadd.f32 %v633, %v3341
      %v3343 = vpop.f32.mrb[0].mxu0
      %3344 = vmatprep.mubr.f32.mxu0 0.0
      %3345 = vmatmul.mubr.f32.gmra.mrb[0].mxu0 %v1411
      %v3346 = vpop.f32.mrb[0].mxu0
      %v3347 = vadd.f32 %v633, %v3346
      %v3348 = vpop.f32.mrb[0].mxu0
      %3349 = vmatprep.mubr.f32.mxu0 0.0
      %3350 = vmatmul.mubr.f32.gmra.mrb[0].mxu0 %v1414
      %v3351 = vpop.f32.mrb[0].mxu0
      %v3352 = vadd.f32 %v633, %v3351
      %v3353 = vpop.f32.mrb[0].mxu0
      %3354 = vmatprep.mubr.f32.mxu0 0.0
      %3355 = vmatmul.mubr.f32.gmra.mrb[0].mxu0 %v1417
      %v3356 = vpop.f32.mrb[0].mxu0
      %v3357 = vadd.f32 %v633, %v3356
      %v3358 = vpop.f32.mrb[0].mxu0
      %3359 = vmatprep.mubr.f32.mxu0 0.0
      %3360 = vmatmul.mubr.f32.gmra.mrb[0].mxu0 %v1420
      %v3361 = vpop.f32.mrb[0].mxu0
      %v3362 = vadd.f32 %v633, %v3361
      %v3363 = vpop.f32.mrb[0].mxu0
      %3364 = vmatprep.mubr.f32.mxu0 0.0
      %3365 = vmatmul.mubr.f32.gmra.mrb[0].mxu0 %v1423
      %v3366 = vpop.f32.mrb[0].mxu0
      %v3367 = vadd.f32 %v633, %v3366
      %v3368 = vpop.f32.mrb[0].mxu0
      %3369 = vmatprep.mubr.f32.mxu0 0.0
      %3370 = vmatmul.mubr.f32.gmra.mrb[0].mxu0 %v1426
      %v3371 = vpop.f32.mrb[0].mxu0
      %v3372 = vadd.f32 %v633, %v3371
      %v3373 = vpop.f32.mrb[0].mxu0
      %3374 = vmatprep.mubr.f32.mxu0 0.0
      %3375 = vmatmul.mubr.f32.gmra.mrb[0].mxu0 %v1429
      %v3376 = vpop.f32.mrb[0].mxu0
      %v3377 = vadd.f32 %v633, %v3376
      %v3378 = vpop.f32.mrb[0].mxu0
      %3379 = vmatprep.mubr.f32.mxu0 0.0
      %3380 = vmatmul.mubr.f32.gmra.mrb[0].mxu0 %v1432
      %v3381 = vpop.f32.mrb[0].mxu0
      %v3382 = vadd.f32 %v633, %v3381
      %v3383 = vpop.f32.mrb[0].mxu0
      %3384 = vmatprep.mubr.f32.mxu0 0.0
      %3385 = vmatmul.mubr.f32.gmra.mrb[0].mxu0 %v1435
      %v3386 = vpop.f32.mrb[0].mxu0
      %v3387 = vadd.f32 %v633, %v3386
      %v3388 = vpop.f32.mrb[0].mxu0
      %3389 = vmatprep.mubr.f32.mxu0 0.0
      %3390 = vmatmul.mubr.f32.gmra.mrb[0].mxu0 %v1438
      %v3391 = vpop.f32.mrb[0].mxu0
      %v3392 = vadd.f32 %v633, %v3391
      %v3393 = vpop.f32.mrb[0].mxu0
      %3394 = vmatprep.mubr.f32.mxu0 0.0
      %3395 = vmatmul.mubr.f32.gmra.mrb[0].mxu0 %v1441
      %v3396 = vpop.f32.mrb[0].mxu0
      %v3397 = vadd.f32 %v633, %v3396
      %v3398 = vpop.f32.mrb[0].mxu0
      %3399 = vmatprep.mubr.f32.mxu0 0.0
      %3400 = vmatmul.mubr.f32.gmra.mrb[0].mxu0 %v1444
      %v3401 = vpop.f32.mrb[0].mxu0
      %v3402 = vadd.f32 %v633, %v3401
      %v3403 = vpop.f32.mrb[0].mxu0
      %3404 = vmatprep.mubr.f32.mxu0 0.0
      %3405 = vmatmul.mubr.f32.gmra.mrb[0].mxu0 %v1447
      %v3406 = vpop.f32.mrb[0].mxu0
      %v3407 = vadd.f32 %v633, %v3406
      %v3408 = vpop.f32.mrb[0].mxu0
      %3409 = vmatprep.mubr.f32.mxu0 0.0
      %3410 = vmatmul.mubr.f32.gmra.mrb[0].mxu0 %v1450
      %v3411 = vpop.f32.mrb[0].mxu0
      %v3412 = vadd.f32 %v633, %v3411
      %v3413 = vpop.f32.mrb[0].mxu0
      %3414 = vmatprep.mubr.f32.mxu0 0.0
      %3415 = vmatmul.mubr.f32.gmra.mrb[0].mxu0 %v1453
      %v3416 = vpop.f32.mrb[0].mxu0
      %v3417 = vadd.f32 %v633, %v3416
      %v3418 = vpop.f32.mrb[0].mxu0
      %3419 = vmatprep.mubr.f32.mxu0 0.0
      %3420 = vmatmul.mubr.f32.gmra.mrb[0].mxu0 %v1456
      %v3421 = vpop.f32.mrb[0].mxu0
      %v3422 = vadd.f32 %v633, %v3421
      %v3423 = vpop.f32.mrb[0].mxu0
      %3424 = vmatprep.mubr.f32.mxu0 0.0
      %3425 = vmatmul.mubr.f32.gmra.mrb[0].mxu0 %v1459
      %v3426 = vpop.f32.mrb[0].mxu0
      %v3427 = vadd.f32 %v633, %v3426
      %v3428 = vpop.f32.mrb[0].mxu0
      %3429 = vmatprep.mubr.f32.mxu0 0.0
      %3430 = vmatmul.mubr.f32.gmra.mrb[0].mxu0 %v1462
      %v3431 = vpop.f32.mrb[0].mxu0
      %v3432 = vadd.f32 %v633, %v3431
      %v3433 = vpop.f32.mrb[0].mxu0
      %3434 = vmatprep.mubr.f32.mxu0 0.0
      %3435 = vmatmul.mubr.f32.gmra.mrb[0].mxu0 %v1465
      %v3436 = vpop.f32.mrb[0].mxu0
      %v3437 = vadd.f32 %v633, %v3436
      %v3438 = vpop.f32.mrb[0].mxu0
      %3439 = vmatprep.mubr.f32.mxu0 0.0
      %3440 = vmatmul.mubr.f32.gmra.mrb[0].mxu0 %v1468
      %v3441 = vpop.f32.mrb[0].mxu0
      %v3442 = vadd.f32 %v633, %v3441
      %v3443 = vpop.f32.mrb[0].mxu0
      %3444 = vmatprep.mubr.f32.mxu0 0.0
      %3445 = vmatmul.mubr.f32.gmra.mrb[0].mxu0 %v1471
      %v3446 = vpop.f32.mrb[0].mxu0
      %v3447 = vadd.f32 %v633, %v3446
      %v3448 = vpop.f32.mrb[0].mxu0
      %3449 = vmatprep.mubr.f32.mxu0 0.0
      %3450 = vmatmul.mubr.f32.gmra.mrb[0].mxu0 %v1474
      %v3451 = vpop.f32.mrb[0].mxu0
      %v3452 = vadd.f32 %v633, %v3451
      %v3453 = vpop.f32.mrb[0].mxu0
      %3454 = vmatprep.mubr.f32.mxu0 0.0
      %3455 = vmatmul.mubr.f32.gmra.mrb[0].mxu0 %v1477
      %v3456 = vpop.f32.mrb[0].mxu0
      %v3457 = vadd.f32 %v633, %v3456
      %v3458 = vpop.f32.mrb[0].mxu0
      %3459 = vmatprep.mubr.f32.mxu0 0.0
      %3460 = vmatmul.mubr.f32.gmra.mrb[0].mxu0 %v1480
      %v3461 = vpop.f32.mrb[0].mxu0
      %v3462 = vadd.f32 %v633, %v3461
      %v3463 = vpop.f32.mrb[0].mxu0
      %3464 = vmatprep.mubr.f32.mxu0 0.0
      %3465 = vmatmul.mubr.f32.gmra.mrb[0].mxu0 %v1483
      %v3466 = vpop.f32.mrb[0].mxu0
      %v3467 = vadd.f32 %v633, %v3466
      %v3468 = vpop.f32.mrb[0].mxu0
      %3469 = vmatprep.mubr.f32.mxu0 0.0
      %3470 = vmatmul.mubr.f32.gmra.mrb[0].mxu0 %v1486
      %v3471 = vpop.f32.mrb[0].mxu0
      %v3472 = vadd.f32 %v633, %v3471
      %v3473 = vpop.f32.mrb[0].mxu0
      %3474 = vmatprep.mubr.f32.mxu0 0.0
      %3475 = vmatmul.mubr.f32.gmra.mrb[0].mxu0 %v1489
      %v3476 = vpop.f32.mrb[0].mxu0
      %v3477 = vadd.f32 %v633, %v3476
      %v3478 = vpop.f32.mrb[0].mxu0
      %3479 = vmatprep.mubr.f32.mxu0 0.0
      %3480 = vmatmul.mubr.f32.gmra.mrb[0].mxu0 %v1492
      %v3481 = vpop.f32.mrb[0].mxu0
      %v3482 = vadd.f32 %v633, %v3481
      %v3483 = vpop.f32.mrb[0].mxu0
      %3484 = vmatprep.mubr.f32.mxu0 0.0
      %3485 = vmatmul.mubr.f32.gmra.mrb[0].mxu0 %v1495
      %v3486 = vpop.f32.mrb[0].mxu0
      %v3487 = vadd.f32 %v633, %v3486
      %v3488 = vpop.f32.mrb[0].mxu0
      %3489 = vmatprep.mubr.f32.mxu0 0.0
      %3490 = vmatmul.mubr.f32.gmra.mrb[0].mxu0 %v1498
      %v3491 = vpop.f32.mrb[0].mxu0
      %v3492 = vadd.f32 %v633, %v3491
      %v3493 = vpop.f32.mrb[0].mxu0
      %3494 = vmatprep.mubr.f32.mxu0 0.0
      %3495 = vmatmul.mubr.f32.gmra.mrb[0].mxu0 %v1501
      %v3496 = vpop.f32.mrb[0].mxu0
      %v3497 = vadd.f32 %v633, %v3496
      %v3498 = vpop.f32.mrb[0].mxu0
      %3499 = vmatprep.mubr.f32.mxu0 0.0
      %3500 = vmatmul.mubr.f32.gmra.mrb[0].mxu0 %v1504
      %v3501 = vpop.f32.mrb[0].mxu0
      %v3502 = vadd.f32 %v633, %v3501
      %v3503 = vpop.f32.mrb[0].mxu0
      %3504 = vmatprep.mubr.f32.mxu0 0.0
      %3505 = vmatmul.mubr.f32.gmra.mrb[0].mxu0 %v1507
      %v3506 = vpop.f32.mrb[0].mxu0
      %v3507 = vadd.f32 %v633, %v3506
      %v3508 = vpop.f32.mrb[0].mxu0
      %3509 = vmatprep.mubr.f32.mxu0 0.0
      %3510 = vmatmul.mubr.f32.gmra.mrb[0].mxu0 %v1510
      %v3511 = vpop.f32.mrb[0].mxu0
      %v3512 = vadd.f32 %v633, %v3511
      %v3513 = vpop.f32.mrb[0].mxu0
      %3514 = vmatprep.mubr.f32.mxu0 0.0
      %3515 = vmatmul.mubr.f32.gmra.mrb[0].mxu0 %v1513
      %v3516 = vpop.f32.mrb[0].mxu0
      %v3517 = vadd.f32 %v633, %v3516
      %v3518 = vpop.f32.mrb[0].mxu0
      %3519 = vmatprep.mubr.f32.mxu0 0.0
      %3520 = vmatmul.mubr.f32.gmra.mrb[0].mxu0 %v1516
      %v3521 = vpop.f32.mrb[0].mxu0
      %v3522 = vadd.f32 %v633, %v3521
      %v3523 = vpop.f32.mrb[0].mxu0
      %3524 = vmatprep.mubr.f32.mxu0 0.0
      %3525 = vmatmul.mubr.f32.gmra.mrb[0].mxu0 %v1519
      %v3526 = vpop.f32.mrb[0].mxu0
      %v3527 = vadd.f32 %v633, %v3526
      %v3528 = vpop.f32.mrb[0].mxu0
      %3529 = vmatprep.mubr.f32.mxu0 0.0
      %3530 = vmatmul.mubr.f32.gmra.mrb[0].mxu0 %v1522
      %v3531 = vpop.f32.mrb[0].mxu0
      %v3532 = vadd.f32 %v633, %v3531
      %v3533 = vpop.f32.mrb[0].mxu0
      %3534 = vmatprep.mubr.f32.mxu0 0.0
      %3535 = vmatmul.mubr.f32.gmra.mrb[0].mxu0 %v1525
      %v3536 = vpop.f32.mrb[0].mxu0
      %v3537 = vadd.f32 %v633, %v3536
      %v3538 = vpop.f32.mrb[0].mxu0
      %3539 = vmatprep.mubr.f32.mxu0 0.0
      %3540 = vmatmul.mubr.f32.gmra.mrb[0].mxu0 %v1528
      %v3541 = vpop.f32.mrb[0].mxu0
      %v3542 = vadd.f32 %v633, %v3541
      %v3543 = vpop.f32.mrb[0].mxu0
      %3544 = vmatprep.mubr.f32.mxu0 0.0
      %3545 = vmatmul.mubr.f32.gmra.mrb[0].mxu0 %v1531
      %v3546 = vpop.f32.mrb[0].mxu0
      %v3547 = vadd.f32 %v633, %v3546
      %v3548 = vpop.f32.mrb[0].mxu0
      %3549 = vmatprep.mubr.f32.mxu0 0.0
      %3550 = vmatmul.mubr.f32.gmra.mrb[0].mxu0 %v1534
      %v3551 = vpop.f32.mrb[0].mxu0
      %v3552 = vadd.f32 %v633, %v3551
      %v3553 = vpop.f32.mrb[0].mxu0
      %3554 = vmatprep.mubr.f32.mxu0 0.0
      %3555 = vmatmul.mubr.f32.gmra.mrb[0].mxu0 %v1537
      %v3556 = vpop.f32.mrb[0].mxu0
      %v3557 = vadd.f32 %v633, %v3556
      %v3558 = vpop.f32.mrb[0].mxu0
      %3559 = vmatprep.mubr.f32.mxu0 0.0
      %3560 = vmatmul.mubr.f32.gmra.mrb[0].mxu0 %v1540
      %v3561 = vpop.f32.mrb[0].mxu0
      %v3562 = vadd.f32 %v633, %v3561
      %v3563 = vpop.f32.mrb[0].mxu0
      %3564 = vmatprep.mubr.f32.mxu0 0.0
      %3565 = vmatmul.mubr.f32.gmra.mrb[0].mxu0 %v1543
      %v3566 = vpop.f32.mrb[0].mxu0
      %v3567 = vadd.f32 %v633, %v3566
      %v3568 = vpop.f32.mrb[0].mxu0
      %3569 = vmatprep.mubr.f32.mxu0 0.0
      %3570 = vmatmul.mubr.f32.gmra.mrb[0].mxu0 %v1546
      %v3571 = vpop.f32.mrb[0].mxu0
      %v3572 = vadd.f32 %v633, %v3571
      %v3573 = vpop.f32.mrb[0].mxu0
      %3574 = vmatprep.mubr.f32.mxu0 0.0
      %3575 = vmatmul.mubr.f32.gmra.mrb[0].mxu0 %v1549
      %v3576 = vpop.f32.mrb[0].mxu0
      %v3577 = vadd.f32 %v633, %v3576
      %v3578 = vpop.f32.mrb[0].mxu0
      %3579 = vmatprep.mubr.f32.mxu0 0.0
      %3580 = vmatmul.mubr.f32.gmra.mrb[0].mxu0 %v1552
      %v3581 = vpop.f32.mrb[0].mxu0
      %v3582 = vadd.f32 %v633, %v3581
      %v3583 = vpop.f32.mrb[0].mxu0
      %3584 = vmatprep.mubr.f32.mxu0 0.0
      %3585 = vmatmul.mubr.f32.gmra.mrb[0].mxu0 %v1555
      %v3586 = vpop.f32.mrb[0].mxu0
      %v3587 = vadd.f32 %v633, %v3586
      %v3588 = vpop.f32.mrb[0].mxu0
      %3589 = vmatprep.mubr.f32.mxu0 0.0
      %3590 = vmatmul.mubr.f32.gmra.mrb[0].mxu0 %v1558
      %v3591 = vpop.f32.mrb[0].mxu0
      %v3592 = vadd.f32 %v633, %v3591
      %v3593 = vpop.f32.mrb[0].mxu0
      %3594 = vmatprep.mubr.f32.mxu0 0.0
      %3595 = vmatmul.mubr.f32.gmra.mrb[0].mxu0 %v1561
      %v3596 = vpop.f32.mrb[0].mxu0
      %v3597 = vadd.f32 %v633, %v3596
      %v3598 = vpop.f32.mrb[0].mxu0
      %3599 = vmatprep.mubr.f32.mxu0 0.0
      %3600 = vmatmul.mubr.f32.gmra.mrb[0].mxu0 %v1564
      %v3601 = vpop.f32.mrb[0].mxu0
      %v3602 = vadd.f32 %v633, %v3601
      %v3603 = vpop.f32.mrb[0].mxu0
      %3604 = vmatprep.mubr.f32.mxu0 0.0
      %3605 = vmatmul.mubr.f32.gmra.mrb[0].mxu0 %v1567
      %v3606 = vpop.f32.mrb[0].mxu0
      %v3607 = vadd.f32 %v633, %v3606
      %v3608 = vpop.f32.mrb[0].mxu0
      %3609 = vmatprep.mubr.f32.mxu0 0.0
      %3610 = vmatmul.mubr.f32.gmra.mrb[0].mxu0 %v1570
      %v3611 = vpop.f32.mrb[0].mxu0
      %v3612 = vadd.f32 %v633, %v3611
      %v3613 = vpop.f32.mrb[0].mxu0
      %3614 = vmatprep.mubr.f32.mxu0 0.0
      %3615 = vmatmul.mubr.f32.gmra.mrb[0].mxu0 %v1573
      %v3616 = vpop.f32.mrb[0].mxu0
      %v3617 = vadd.f32 %v633, %v3616
      %v3618 = vpop.f32.mrb[0].mxu0
      %3619 = vmatprep.mubr.f32.mxu0 0.0
      %3620 = vmatmul.mubr.f32.gmra.mrb[0].mxu0 %v1576
      %v3621 = vpop.f32.mrb[0].mxu0
      %v3622 = vadd.f32 %v633, %v3621
      %v3623 = vpop.f32.mrb[0].mxu0
      %3624 = vmatprep.mubr.f32.mxu0 0.0
      %3625 = vmatmul.mubr.f32.gmra.mrb[0].mxu0 %v1579
      %v3626 = vpop.f32.mrb[0].mxu0
      %v3627 = vadd.f32 %v633, %v3626
      %v3628 = vpop.f32.mrb[0].mxu0
      %3629 = vmatprep.mubr.f32.mxu0 0.0
      %3630 = vmatmul.mubr.f32.gmra.mrb[0].mxu0 %v1582
      %v3631 = vpop.f32.mrb[0].mxu0
      %v3632 = vadd.f32 %v633, %v3631
      %v3633 = vpop.f32.mrb[0].mxu0
      %3634 = vmatprep.mubr.f32.mxu0 0.0
      %3635 = vmatmul.mubr.f32.gmra.mrb[0].mxu0 %v1585
      %v3636 = vpop.f32.mrb[0].mxu0
      %v3637 = vadd.f32 %v633, %v3636
      %v3638 = vpop.f32.mrb[0].mxu0
      %3639 = vmatprep.mubr.f32.mxu0 0.0
      %3640 = vmatmul.mubr.f32.gmra.mrb[0].mxu0 %v1588
      %v3641 = vpop.f32.mrb[0].mxu0
      %v3642 = vadd.f32 %v633, %v3641
      %v3643 = vpop.f32.mrb[0].mxu0
      %3644 = vmatprep.mubr.f32.mxu0 0.0
      %3645 = vmatmul.mubr.f32.gmra.mrb[0].mxu0 %v1591
      %v3646 = vpop.f32.mrb[0].mxu0
      %v3647 = vadd.f32 %v633, %v3646
      %v3648 = vpop.f32.mrb[0].mxu0
      %3649 = vmatprep.mubr.f32.mxu0 0.0
      %3650 = vmatmul.mubr.f32.gmra.mrb[0].mxu0 %v1594
      %v3651 = vpop.f32.mrb[0].mxu0
      %v3652 = vadd.f32 %v633, %v3651
      %v3653 = vpop.f32.mrb[0].mxu0
      %3654 = vmatprep.mubr.f32.mxu0 0.0
      %3655 = vmatmul.mubr.f32.gmra.mrb[0].mxu0 %v1597
      %v3656 = vpop.f32.mrb[0].mxu0
      %v3657 = vadd.f32 %v633, %v3656
      %v3658 = vpop.f32.mrb[0].mxu0
      %3659 = vmatprep.mubr.f32.mxu0 0.0
      %3660 = vmatmul.mubr.f32.gmra.mrb[0].mxu0 %v1600
      %v3661 = vpop.f32.mrb[0].mxu0
      %v3662 = vadd.f32 %v633, %v3661
      %v3663 = vpop.f32.mrb[0].mxu0
      %3664 = vmatprep.mubr.f32.mxu0 0.0
      %3665 = vmatmul.mubr.f32.gmra.mrb[0].mxu0 %v1603
      %v3666 = vpop.f32.mrb[0].mxu0
      %v3667 = vadd.f32 %v633, %v3666
      %v3668 = vpop.f32.mrb[0].mxu0
      %3669 = vmatprep.mubr.f32.mxu0 0.0
      %3670 = vmatmul.mubr.f32.gmra.mrb[0].mxu0 %v1606
      %v3671 = vpop.f32.mrb[0].mxu0
      %v3672 = vadd.f32 %v633, %v3671
      %v3673 = vpop.f32.mrb[0].mxu0
      %3674 = vmatprep.mubr.f32.mxu0 0.0
      %3675 = vmatmul.mubr.f32.gmra.mrb[0].mxu0 %v1609
      %v3676 = vpop.f32.mrb[0].mxu0
      %v3677 = vadd.f32 %v633, %v3676
      %v3678 = vpop.f32.mrb[0].mxu0
      %3679 = vmatprep.mubr.f32.mxu0 0.0
      %3680 = vmatmul.mubr.f32.gmra.mrb[0].mxu0 %v1612
      %v3681 = vpop.f32.mrb[0].mxu0
      %v3682 = vadd.f32 %v633, %v3681
      %v3683 = vpop.f32.mrb[0].mxu0
      %3684 = vmatprep.mubr.f32.mxu0 0.0
      %3685 = vmatmul.mubr.f32.gmra.mrb[0].mxu0 %v1615
      %v3686 = vpop.f32.mrb[0].mxu0
      %v3687 = vadd.f32 %v633, %v3686
      %v3688 = vpop.f32.mrb[0].mxu0
      %3689 = vmatprep.mubr.f32.mxu0 0.0
      %3690 = vmatmul.mubr.f32.gmra.mrb[0].mxu0 %v1618
      %v3691 = vpop.f32.mrb[0].mxu0
      %v3692 = vadd.f32 %v633, %v3691
      %v3693 = vpop.f32.mrb[0].mxu0
      %3694 = vmatprep.mubr.f32.mxu0 0.0
      %3695 = vmatmul.mubr.f32.gmra.mrb[0].mxu0 %v1621
      %v3696 = vpop.f32.mrb[0].mxu0
      %v3697 = vadd.f32 %v633, %v3696
      %v3698 = vpop.f32.mrb[0].mxu0
      %3699 = vmatprep.mubr.f32.mxu0 0.0
      %3700 = vmatmul.mubr.f32.gmra.mrb[0].mxu0 %v1624
      %v3701 = vpop.f32.mrb[0].mxu0
      %v3702 = vadd.f32 %v633, %v3701
      %v3703 = vpop.f32.mrb[0].mxu0
      %3704 = vmatprep.mubr.f32.mxu0 0.0
      %3705 = vmatmul.mubr.f32.gmra.mrb[0].mxu0 %v1627
      %v3706 = vpop.f32.mrb[0].mxu0
      %v3707 = vadd.f32 %v633, %v3706
      %v3708 = vpop.f32.mrb[0].mxu0
      %3709 = vmatprep.mubr.f32.mxu0 0.0
      %3710 = vmatmul.mubr.f32.gmra.mrb[0].mxu0 %v1630
      %v3711 = vpop.f32.mrb[0].mxu0
      %v3712 = vadd.f32 %v633, %v3711
      %v3713 = vpop.f32.mrb[0].mxu0
      %3714 = vmatprep.mubr.f32.mxu0 0.0
      %3715 = vmatmul.mubr.f32.gmra.mrb[0].mxu0 %v1633
      %v3716 = vpop.f32.mrb[0].mxu0
      %v3717 = vadd.f32 %v633, %v3716
      %v3718 = vpop.f32.mrb[0].mxu0
      %3719 = vmatprep.mubr.f32.mxu0 0.0
      %3720 = vmatmul.mubr.f32.gmra.mrb[0].mxu0 %v1636
      %v3721 = vpop.f32.mrb[0].mxu0
      %v3722 = vadd.f32 %v633, %v3721
      %v3723 = vpop.f32.mrb[0].mxu0
      %3724 = vmatprep.mubr.f32.mxu0 0.0
      %3725 = vmatmul.mubr.f32.gmra.mrb[0].mxu0 %v1639
      %v3726 = vpop.f32.mrb[0].mxu0
      %v3727 = vadd.f32 %v633, %v3726
      %v3728 = vpop.f32.mrb[0].mxu0
      %3729 = vmatprep.mubr.f32.mxu0 0.0
      %3730 = vmatmul.mubr.f32.gmra.mrb[0].mxu0 %v1642
      %v3731 = vpop.f32.mrb[0].mxu0
      %v3732 = vadd.f32 %v633, %v3731
      %v3733 = vpop.f32.mrb[0].mxu0
      %3734 = vmatprep.mubr.f32.mxu0 0.0
      %3735 = vmatmul.mubr.f32.gmra.mrb[0].mxu0 %v1645
      %v3736 = vpop.f32.mrb[0].mxu0
      %v3737 = vadd.f32 %v633, %v3736
      %v3738 = vpop.f32.mrb[0].mxu0
      %3739 = vmatprep.mubr.f32.mxu0 0.0
      %3740 = vmatmul.mubr.f32.gmra.mrb[0].mxu0 %v1648
      %v3741 = vpop.f32.mrb[0].mxu0
      %v3742 = vadd.f32 %v633, %v3741
      %v3743 = vpop.f32.mrb[0].mxu0
      %3744 = vmatprep.mubr.f32.mxu0 0.0
      %3745 = vmatmul.mubr.f32.gmra.mrb[0].mxu0 %v1651
      %v3746 = vpop.f32.mrb[0].mxu0
      %v3747 = vadd.f32 %v633, %v3746
      %v3748 = vpop.f32.mrb[0].mxu0
      %3749 = vmatprep.mubr.f32.mxu0 0.0
      %3750 = vmatmul.mubr.f32.gmra.mrb[0].mxu0 %v1654
      %v3751 = vpop.f32.mrb[0].mxu0
      %v3752 = vadd.f32 %v633, %v3751
      %v3753 = vpop.f32.mrb[0].mxu0
      %3754 = vmatprep.mubr.f32.mxu0 0.0
      %3755 = vmatmul.mubr.f32.gmra.mrb[0].mxu0 %v1657
      %v3756 = vpop.f32.mrb[0].mxu0
      %v3757 = vadd.f32 %v633, %v3756
      %v3758 = vpop.f32.mrb[0].mxu0
      %3759 = vmatprep.mubr.f32.mxu0 0.0
      %3760 = vmatmul.mubr.f32.gmra.mrb[0].mxu0 %v1660
      %v3761 = vpop.f32.mrb[0].mxu0
      %v3762 = vadd.f32 %v633, %v3761
      %v3763 = vpop.f32.mrb[0].mxu0
      %3764 = vmatprep.mubr.f32.mxu0 0.0
      %3765 = vmatmul.mubr.f32.gmra.mrb[0].mxu0 %v1663
      %v3766 = vpop.f32.mrb[0].mxu0
      %v3767 = vadd.f32 %v633, %v3766
      %v3768 = vpop.f32.mrb[0].mxu0
      %3769 = vmatprep.mubr.f32.mxu0 0.0
      %3770 = vmatmul.mubr.f32.gmra.mrb[0].mxu0 %v1666
      %v3771 = vpop.f32.mrb[0].mxu0
      %v3772 = vadd.f32 %v633, %v3771
      %v3773 = vpop.f32.mrb[0].mxu0
      %3774 = vmatprep.mubr.f32.mxu0 0.0
      %3775 = vmatmul.mubr.f32.gmra.mrb[0].mxu0 %v1669
      %v3776 = vpop.f32.mrb[0].mxu0
      %v3777 = vadd.f32 %v633, %v3776
      %v3778 = vpop.f32.mrb[0].mxu0
      %3779 = vmatprep.mubr.f32.mxu0 0.0
      %3780 = vmatmul.mubr.f32.gmra.mrb[0].mxu0 %v1672
      %v3781 = vpop.f32.mrb[0].mxu0
      %v3782 = vadd.f32 %v633, %v3781
      %v3783 = vpop.f32.mrb[0].mxu0
      %3784 = vmatprep.mubr.f32.mxu0 0.0
      %3785 = vmatmul.mubr.f32.gmra.mrb[0].mxu0 %v1675
      %v3786 = vpop.f32.mrb[0].mxu0
      %v3787 = vadd.f32 %v633, %v3786
      %v3788 = vpop.f32.mrb[0].mxu0
      %3789 = vmatprep.mubr.f32.mxu0 0.0
      %3790 = vmatmul.mubr.f32.gmra.mrb[0].mxu0 %v1678
      %v3791 = vpop.f32.mrb[0].mxu0
      %v3792 = vadd.f32 %v633, %v3791
      %v3793 = vpop.f32.mrb[0].mxu0
      %3794 = vmatprep.mubr.f32.mxu0 0.0
      %3795 = vmatmul.mubr.f32.gmra.mrb[0].mxu0 %v1681
      %v3796 = vpop.f32.mrb[0].mxu0
      %v3797 = vadd.f32 %v633, %v3796
      %v3798 = vpop.f32.mrb[0].mxu0
      %3799 = vmatprep.mubr.f32.mxu0 0.0
      %3800 = vmatmul.mubr.f32.gmra.mrb[0].mxu0 %v1684
      %v3801 = vpop.f32.mrb[0].mxu0
      %v3802 = vadd.f32 %v633, %v3801
      %v3803 = vpop.f32.mrb[0].mxu0
      %3804 = vmatprep.mubr.f32.mxu0 0.0
      %3805 = vmatmul.mubr.f32.gmra.mrb[0].mxu0 %v1687
      %v3806 = vpop.f32.mrb[0].mxu0
      %v3807 = vadd.f32 %v633, %v3806
      %v3808 = vpop.f32.mrb[0].mxu0
      %3809 = vmatprep.mubr.f32.mxu0 0.0
      %3810 = vmatmul.mubr.f32.gmra.mrb[0].mxu0 %v1690
      %v3811 = vpop.f32.mrb[0].mxu0
      %v3812 = vadd.f32 %v633, %v3811
      %v3813 = vpop.f32.mrb[0].mxu0
      %3814 = vmatprep.mubr.f32.mxu0 0.0
      %3815 = vmatmul.mubr.f32.gmra.mrb[0].mxu0 %v1693
      %v3816 = vpop.f32.mrb[0].mxu0
      %v3817 = vadd.f32 %v633, %v3816
      %v3818 = vpop.f32.mrb[0].mxu0
      %3819 = vmatprep.mubr.f32.mxu0 0.0
      %3820 = vmatmul.mubr.f32.gmra.mrb[0].mxu0 %v1696
      %v3821 = vpop.f32.mrb[0].mxu0
      %v3822 = vadd.f32 %v633, %v3821
      %v3823 = vpop.f32.mrb[0].mxu0
      %3824 = vmatprep.mubr.f32.mxu0 0.0
      %3825 = vmatmul.mubr.f32.gmra.mrb[0].mxu0 %v1699
      %v3826 = vpop.f32.mrb[0].mxu0
      %v3827 = vadd.f32 %v633, %v3826
      %v3828 = vpop.f32.mrb[0].mxu0
      %3829 = vmatprep.mubr.f32.mxu0 0.0
      %3830 = vmatmul.mubr.f32.gmra.mrb[0].mxu0 %v1702
      %v3831 = vpop.f32.mrb[0].mxu0
      %v3832 = vadd.f32 %v633, %v3831
      %v3833 = vpop.f32.mrb[0].mxu0
      %3834 = vmatprep.mubr.f32.mxu0 0.0
      %3835 = vmatmul.mubr.f32.gmra.mrb[0].mxu0 %v1705
      %v3836 = vpop.f32.mrb[0].mxu0
      %v3837 = vadd.f32 %v633, %v3836
      %v3838 = vpop.f32.mrb[0].mxu0
      %3839 = vmatprep.mubr.f32.mxu0 0.0
      %3840 = vmatmul.mubr.f32.gmra.mrb[0].mxu0 %v1708
      %v3841 = vpop.f32.mrb[0].mxu0
      %v3842 = vadd.f32 %v633, %v3841
      %v3843 = vpop.f32.mrb[0].mxu0
      %3844 = vmatprep.mubr.f32.mxu0 0.0
      %3845 = vmatmul.mubr.f32.gmra.mrb[0].mxu0 %v1711
      %v3846 = vpop.f32.mrb[0].mxu0
      %v3847 = vadd.f32 %v633, %v3846
      %v3848 = vpop.f32.mrb[0].mxu0
      %3849 = vmatprep.mubr.f32.mxu0 0.0
      %3850 = vmatmul.mubr.f32.gmra.mrb[0].mxu0 %v1714
      %v3851 = vpop.f32.mrb[0].mxu0
      %v3852 = vadd.f32 %v633, %v3851
      %v3853 = vpop.f32.mrb[0].mxu0
      %3854 = vmatprep.mubr.f32.mxu0 0.0
      %3855 = vmatmul.mubr.f32.gmra.mrb[0].mxu0 %v1717
      %v3856 = vpop.f32.mrb[0].mxu0
      %v3857 = vadd.f32 %v633, %v3856
      %v3858 = vpop.f32.mrb[0].mxu0
      %3859 = vmatprep.mubr.f32.mxu0 0.0
      %3860 = vmatmul.mubr.f32.gmra.mrb[0].mxu0 %v1720
      %v3861 = vpop.f32.mrb[0].mxu0
      %v3862 = vadd.f32 %v633, %v3861
      %v3863 = vpop.f32.mrb[0].mxu0
      %3864 = vmatprep.mubr.f32.mxu0 0.0
      %3865 = vmatmul.mubr.f32.gmra.mrb[0].mxu0 %v1723
      %v3866 = vpop.f32.mrb[0].mxu0
      %v3867 = vadd.f32 %v633, %v3866
      %v3868 = vpop.f32.mrb[0].mxu0
      %3869 = vmatprep.mubr.f32.mxu0 0.0
      %3870 = vmatmul.mubr.f32.gmra.mrb[0].mxu0 %v1726
      %v3871 = vpop.f32.mrb[0].mxu0
      %v3872 = vadd.f32 %v633, %v3871
      %v3873 = vpop.f32.mrb[0].mxu0
      %3874 = vmatprep.mubr.f32.mxu0 0.0
      %3875 = vmatmul.mubr.f32.gmra.mrb[0].mxu0 %v1729
      %v3876 = vpop.f32.mrb[0].mxu0
      %v3877 = vadd.f32 %v633, %v3876
      %v3878 = vpop.f32.mrb[0].mxu0
      %3879 = vmatprep.mubr.f32.mxu0 0.0
      %3880 = vmatmul.mubr.f32.gmra.mrb[0].mxu0 %v1732
      %v3881 = vpop.f32.mrb[0].mxu0
      %v3882 = vadd.f32 %v633, %v3881
      %v3883 = vpop.f32.mrb[0].mxu0
      %3884 = vmatprep.mubr.f32.mxu0 0.0
      %3885 = vmatmul.mubr.f32.gmra.mrb[0].mxu0 %v1735
      %v3886 = vpop.f32.mrb[0].mxu0
      %v3887 = vadd.f32 %v633, %v3886
      %v3888 = vpop.f32.mrb[0].mxu0
      %3889 = vmatprep.mubr.f32.mxu0 0.0
      %3890 = vmatmul.mubr.f32.gmra.mrb[0].mxu0 %v1738
      %v3891 = vpop.f32.mrb[0].mxu0
      %v3892 = vadd.f32 %v633, %v3891
      %v3893 = vpop.f32.mrb[0].mxu0
      %3894 = vmatprep.mubr.f32.mxu0 0.0
      %3895 = vmatmul.mubr.f32.gmra.mrb[0].mxu0 %v1741
      %v3896 = vpop.f32.mrb[0].mxu0
      %v3897 = vadd.f32 %v633, %v3896
      %v3898 = vpop.f32.mrb[0].mxu0
      %3899 = vmatprep.mubr.f32.mxu0 0.0
      %3900 = vmatmul.mubr.f32.gmra.mrb[0].mxu0 %v1744
      %v3901 = vpop.f32.mrb[0].mxu0
      %v3902 = vadd.f32 %v633, %v3901
      %v3903 = vpop.f32.mrb[0].mxu0
      %3904 = vmatprep.mubr.f32.mxu0 0.0
      %3905 = vmatmul.mubr.f32.gmra.mrb[0].mxu0 %v1747
      %v3906 = vpop.f32.mrb[0].mxu0
      %v3907 = vadd.f32 %v633, %v3906
      %v3908 = vpop.f32.mrb[0].mxu0
      %3909 = vmatprep.mubr.f32.mxu0 0.0
      %3910 = vmatmul.mubr.f32.gmra.mrb[0].mxu0 %v1750
      %v3911 = vpop.f32.mrb[0].mxu0
      %v3912 = vadd.f32 %v633, %v3911
      %v3913 = vpop.f32.mrb[0].mxu0
      %3914 = vmatprep.mubr.f32.mxu0 0.0
      %3915 = vmatmul.mubr.f32.gmra.mrb[0].mxu0 %v1753
      %v3916 = vpop.f32.mrb[0].mxu0
      %v3917 = vadd.f32 %v633, %v3916
      %v3918 = vpop.f32.mrb[0].mxu0
      %3919 = vmatprep.mubr.f32.mxu0 0.0
      %3920 = vmatmul.mubr.f32.gmra.mrb[0].mxu0 %v1756
      %v3921 = vpop.f32.mrb[0].mxu0
      %v3922 = vadd.f32 %v633, %v3921
      %v3923 = vpop.f32.mrb[0].mxu0
      %3924 = vmatprep.mubr.f32.mxu0 0.0
      %3925 = vmatmul.mubr.f32.gmra.mrb[0].mxu0 %v1759
      %v3926 = vpop.f32.mrb[0].mxu0
      %v3927 = vadd.f32 %v633, %v3926
      %v3928 = vpop.f32.mrb[0].mxu0
      %3929 = vmatprep.mubr.f32.mxu0 0.0
      %3930 = vmatmul.mubr.f32.gmra.mrb[0].mxu0 %v1762
      %v3931 = vpop.f32.mrb[0].mxu0
      %v3932 = vadd.f32 %v633, %v3931
      %v3933 = vpop.f32.mrb[0].mxu0
      %3934 = vmatprep.mubr.f32.mxu0 0.0
      %3935 = vmatmul.mubr.f32.gmra.mrb[0].mxu0 %v1765
      %v3936 = vpop.f32.mrb[0].mxu0
      %v3937 = vadd.f32 %v633, %v3936
      %v3938 = vpop.f32.mrb[0].mxu0
      %3939 = vmatprep.mubr.f32.mxu0 0.0
      %3940 = vmatmul.mubr.f32.gmra.mrb[0].mxu0 %v1768
      %v3941 = vpop.f32.mrb[0].mxu0
      %v3942 = vadd.f32 %v633, %v3941
      %v3943 = vpop.f32.mrb[0].mxu0
      %3944 = vmatprep.mubr.f32.mxu0 0.0
      %3945 = vmatmul.mubr.f32.gmra.mrb[0].mxu0 %v1771
      %v3946 = vpop.f32.mrb[0].mxu0
      %v3947 = vadd.f32 %v633, %v3946
      %v3948 = vpop.f32.mrb[0].mxu0
      %3949 = vmatprep.mubr.f32.mxu0 0.0
      %3950 = vmatmul.mubr.f32.gmra.mrb[0].mxu0 %v1774
      %v3951 = vpop.f32.mrb[0].mxu0
      %v3952 = vadd.f32 %v633, %v3951
      %v3953 = vpop.f32.mrb[0].mxu0
      %3954 = vmatprep.mubr.f32.mxu0 0.0
      %3955 = vmatmul.mubr.f32.gmra.mrb[0].mxu0 %v1777
      %v3956 = vpop.f32.mrb[0].mxu0
      %v3957 = vadd.f32 %v633, %v3956
      %v3958 = vpop.f32.mrb[0].mxu0
      %3959 = vmatprep.mubr.f32.mxu0 0.0
      %3960 = vmatmul.mubr.f32.gmra.mrb[0].mxu0 %v1780
      %v3961 = vpop.f32.mrb[0].mxu0
      %v3962 = vadd.f32 %v633, %v3961
      %v3963 = vpop.f32.mrb[0].mxu0
      %3964 = vmatprep.mubr.f32.mxu0 0.0
      %3965 = vmatmul.mubr.f32.gmra.mrb[0].mxu0 %v1783
      %v3966 = vpop.f32.mrb[0].mxu0
      %v3967 = vadd.f32 %v633, %v3966
      %v3968 = vpop.f32.mrb[0].mxu0
      %3969 = vmatprep.mubr.f32.mxu0 0.0
      %3970 = vmatmul.mubr.f32.gmra.mrb[0].mxu0 %v1786
      %v3971 = vpop.f32.mrb[0].mxu0
      %v3972 = vadd.f32 %v633, %v3971
      %v3973 = vpop.f32.mrb[0].mxu0
      %3974 = vmatprep.mubr.f32.mxu0 0.0
      %3975 = vmatmul.mubr.f32.gmra.mrb[0].mxu0 %v1789
      %v3976 = vpop.f32.mrb[0].mxu0
      %v3977 = vadd.f32 %v633, %v3976
      %v3978 = vpop.f32.mrb[0].mxu0
      %3979 = vmatprep.mubr.f32.mxu0 0.0
      %3980 = vmatmul.mubr.f32.gmra.mrb[0].mxu0 %v1792
      %v3981 = vpop.f32.mrb[0].mxu0
      %v3982 = vadd.f32 %v633, %v3981
      %v3983 = vpop.f32.mrb[0].mxu0
      %3984 = vmatprep.mubr.f32.mxu0 0.0
      %3985 = vmatmul.mubr.f32.gmra.mrb[0].mxu0 %v1795
      %v3986 = vpop.f32.mrb[0].mxu0
      %v3987 = vadd.f32 %v633, %v3986
      %v3988 = vpop.f32.mrb[0].mxu0
      %3989 = vmatprep.mubr.f32.mxu0 0.0
      %3990 = vmatmul.mubr.f32.gmra.mrb[0].mxu0 %v1798
      %v3991 = vpop.f32.mrb[0].mxu0
      %v3992 = vadd.f32 %v633, %v3991
      %v3993 = vpop.f32.mrb[0].mxu0
      %3994 = vmatprep.mubr.f32.mxu0 0.0
      %3995 = vmatmul.mubr.f32.gmra.mrb[0].mxu0 %v1801
      %v3996 = vpop.f32.mrb[0].mxu0
      %v3997 = vadd.f32 %v633, %v3996
      %v3998 = vpop.f32.mrb[0].mxu0
      %3999 = vmatprep.mubr.f32.mxu0 0.0
      %4000 = vmatmul.mubr.f32.gmra.mrb[0].mxu0 %v1804
      %v4001 = vpop.f32.mrb[0].mxu0
      %v4002 = vadd.f32 %v633, %v4001
      %v4003 = vpop.f32.mrb[0].mxu0
      %4004 = vmatprep.mubr.f32.mxu0 0.0
      %4005 = vmatmul.mubr.f32.gmra.mrb[0].mxu0 %v1807
      %v4006 = vpop.f32.mrb[0].mxu0
      %v4007 = vadd.f32 %v633, %v4006
      %v4008 = vpop.f32.mrb[0].mxu0
      %4009 = vmatprep.mubr.f32.mxu0 0.0
      %4010 = vmatmul.mubr.f32.gmra.mrb[0].mxu0 %v1810
      %v4011 = vpop.f32.mrb[0].mxu0
      %v4012 = vadd.f32 %v633, %v4011
      %v4013 = vpop.f32.mrb[0].mxu0
      %4014 = vmatprep.mubr.f32.mxu0 0.0
      %4015 = vmatmul.mubr.f32.gmra.mrb[0].mxu0 %v1813
      %v4016 = vpop.f32.mrb[0].mxu0
      %v4017 = vadd.f32 %v633, %v4016
      %v4018 = vpop.f32.mrb[0].mxu0
      %4019 = vmatprep.mubr.f32.mxu0 0.0
      %4020 = vmatmul.mubr.f32.gmra.mrb[0].mxu0 %v1816
      %v4021 = vpop.f32.mrb[0].mxu0
      %v4022 = vadd.f32 %v633, %v4021
      %v4023 = vpop.f32.mrb[0].mxu0
      %4024 = vmatprep.mubr.f32.mxu0 0.0
      %4025 = vmatmul.mubr.f32.gmra.mrb[0].mxu0 %v1819
      %v4026 = vpop.f32.mrb[0].mxu0
      %v4027 = vadd.f32 %v633, %v4026
      %v4028 = vpop.f32.mrb[0].mxu0
      %4029 = vmatprep.mubr.f32.mxu0 0.0
      %4030 = vmatmul.mubr.f32.gmra.mrb[0].mxu0 %v1822
      %v4031 = vpop.f32.mrb[0].mxu0
      %v4032 = vadd.f32 %v633, %v4031
      %v4033 = vpop.f32.mrb[0].mxu0
      %4034 = vmatprep.mubr.f32.mxu0 0.0
      %4035 = vmatmul.mubr.f32.gmra.mrb[0].mxu0 %v1825
      %v4036 = vpop.f32.mrb[0].mxu0
      %v4037 = vadd.f32 %v633, %v4036
      %v4038 = vpop.f32.mrb[0].mxu0
      %4039 = vmatprep.mubr.f32.mxu0 0.0
      %4040 = vmatmul.mubr.f32.gmra.mrb[0].mxu0 %v1828
      %v4041 = vpop.f32.mrb[0].mxu0
      %v4042 = vadd.f32 %v633, %v4041
      %v4043 = vpop.f32.mrb[0].mxu0
      %4044 = vmatprep.mubr.f32.mxu0 0.0
      %4045 = vmatmul.mubr.f32.gmra.mrb[0].mxu0 %v1831
      %v4046 = vpop.f32.mrb[0].mxu0
      %v4047 = vadd.f32 %v633, %v4046
      %v4048 = vpop.f32.mrb[0].mxu0
      %4049 = vmatprep.mubr.f32.mxu0 0.0
      %4050 = vmatmul.mubr.f32.gmra.mrb[0].mxu0 %v1834
      %v4051 = vpop.f32.mrb[0].mxu0
      %v4052 = vadd.f32 %v633, %v4051
      %v4053 = vpop.f32.mrb[0].mxu0
      %4054 = vmatprep.mubr.f32.mxu0 0.0
      %4055 = vmatmul.mubr.f32.gmra.mrb[0].mxu0 %v1837
      %v4056 = vpop.f32.mrb[0].mxu0
      %v4057 = vadd.f32 %v633, %v4056
      %v4058 = vpop.f32.mrb[0].mxu0
      %4059 = vmatprep.mubr.f32.mxu0 0.0
      %4060 = vmatmul.mubr.f32.gmra.mrb[0].mxu0 %v1840
      %v4061 = vpop.f32.mrb[0].mxu0
      %v4062 = vadd.f32 %v633, %v4061
      %v4063 = vpop.f32.mrb[0].mxu0
      %4064 = vmatprep.mubr.f32.mxu0 0.0
      %4065 = vmatmul.mubr.f32.gmra.mrb[0].mxu0 %v1843
      %v4066 = vpop.f32.mrb[0].mxu0
      %v4067 = vadd.f32 %v633, %v4066
      %v4068 = vpop.f32.mrb[0].mxu0
      %4069 = vmatprep.mubr.f32.mxu0 0.0
      %4070 = vmatmul.mubr.f32.gmra.mrb[0].mxu0 %v1846
      %v4071 = vpop.f32.mrb[0].mxu0
      %v4072 = vadd.f32 %v633, %v4071
      %v4073 = vpop.f32.mrb[0].mxu0
      %4074 = vmatprep.mubr.f32.mxu0 0.0
      %4075 = vmatmul.mubr.f32.gmra.mrb[0].mxu0 %v1849
      %v4076 = vpop.f32.mrb[0].mxu0
      %v4077 = vadd.f32 %v633, %v4076
      %v4078 = vpop.f32.mrb[0].mxu0
      %4079 = vmatprep.mubr.f32.mxu0 0.0
      %4080 = vmatmul.mubr.f32.gmra.mrb[0].mxu0 %v1852
      %v4081 = vpop.f32.mrb[0].mxu0
      %v4082 = vadd.f32 %v633, %v4081
      %v4083 = vpop.f32.mrb[0].mxu0
      %4084 = vmatprep.mubr.f32.mxu0 0.0
      %4085 = vmatmul.mubr.f32.gmra.mrb[0].mxu0 %v1855
      %v4086 = vpop.f32.mrb[0].mxu0
      %v4087 = vadd.f32 %v633, %v4086
      %v4088 = vpop.f32.mrb[0].mxu0
      %4089 = vmatprep.mubr.f32.mxu0 0.0
      %4090 = vmatmul.mubr.f32.gmra.mrb[0].mxu0 %v1858
      %v4091 = vpop.f32.mrb[0].mxu0
      %v4092 = vadd.f32 %v633, %v4091
      %v4093 = vpop.f32.mrb[0].mxu0
      %4094 = vmatprep.mubr.f32.mxu0 0.0
      %4095 = vmatmul.mubr.f32.gmra.mrb[0].mxu0 %v1861
      %v4096 = vpop.f32.mrb[0].mxu0
      %v4097 = vadd.f32 %v633, %v4096
      %v4098 = vpop.f32.mrb[0].mxu0
      %4099 = vmatprep.mubr.f32.mxu0 0.0
      %4100 = vmatmul.mubr.f32.gmra.mrb[0].mxu0 %v1864
      %v4101 = vpop.f32.mrb[0].mxu0
      %v4102 = vadd.f32 %v633, %v4101
      %v4103 = vpop.f32.mrb[0].mxu0
      %4104 = vmatprep.mubr.f32.mxu0 0.0
      %4105 = vmatmul.mubr.f32.gmra.mrb[0].mxu0 %v1867
      %v4106 = vpop.f32.mrb[0].mxu0
      %v4107 = vadd.f32 %v633, %v4106
      %v4108 = vpop.f32.mrb[0].mxu0
      %4109 = vmatprep.mubr.f32.mxu0 0.0
      %4110 = vmatmul.mubr.f32.gmra.mrb[0].mxu0 %v1870
      %v4111 = vpop.f32.mrb[0].mxu0
      %v4112 = vadd.f32 %v633, %v4111
      %v4113 = vpop.f32.mrb[0].mxu0
      %4114 = vmatprep.mubr.f32.mxu0 0.0
      %4115 = vmatmul.mubr.f32.gmra.mrb[0].mxu0 %v1873
      %v4116 = vpop.f32.mrb[0].mxu0
      %v4117 = vadd.f32 %v633, %v4116
      %v4118 = vpop.f32.mrb[0].mxu0
      %4119 = vmatprep.mubr.f32.mxu0 0.0
      %4120 = vmatmul.mubr.f32.gmra.mrb[0].mxu0 %v1876
      %v4121 = vpop.f32.mrb[0].mxu0
      %v4122 = vadd.f32 %v633, %v4121
      %v4123 = vpop.f32.mrb[0].mxu0
      %4124 = vmatprep.mubr.f32.mxu0 0.0
      %4125 = vmatmul.mubr.f32.gmra.mrb[0].mxu0 %v1879
      %v4126 = vpop.f32.mrb[0].mxu0
      %v4127 = vadd.f32 %v633, %v4126
      %v4128 = vpop.f32.mrb[0].mxu0
      %4129 = vmatprep.mubr.f32.mxu0 0.0
      %4130 = vmatmul.mubr.f32.gmra.mrb[0].mxu0 %v1882
      %v4131 = vpop.f32.mrb[0].mxu0
      %v4132 = vadd.f32 %v633, %v4131
      %v4133 = vpop.f32.mrb[0].mxu0
      %4134 = vmatprep.mubr.f32.mxu0 0.0
      %4135 = vmatmul.mubr.f32.gmra.mrb[0].mxu0 %v1885
      %v4136 = vpop.f32.mrb[0].mxu0
      %v4137 = vadd.f32 %v633, %v4136
      %v4138 = vpop.f32.mrb[0].mxu0
      %4139 = vmatprep.mubr.f32.mxu0 0.0
      %4140 = vmatmul.mubr.f32.gmra.mrb[0].mxu0 %v1888
      %v4141 = vpop.f32.mrb[0].mxu0
      %v4142 = vadd.f32 %v633, %v4141
      %v4143 = vpop.f32.mrb[0].mxu0
      %4144 = vmatprep.mubr.f32.mxu0 0.0
      %4145 = vmatmul.mubr.f32.gmra.mrb[0].mxu0 %v1891
      %v4146 = vpop.f32.mrb[0].mxu0
      %v4147 = vadd.f32 %v633, %v4146
      %v4148 = vpop.f32.mrb[0].mxu0
      %4149 = vmatprep.mubr.f32.mxu0 0.0
      %4150 = vmatmul.mubr.f32.gmra.mrb[0].mxu0 %v1894
      %v4151 = vpop.f32.mrb[0].mxu0
      %v4152 = vadd.f32 %v633, %v4151
      %v4153 = vpop.f32.mrb[0].mxu0
      %4154 = vmatprep.mubr.f32.mxu0 0.0
      %4155 = vmatmul.mubr.f32.gmra.mrb[0].mxu0 %v1897
      %v4156 = vpop.f32.mrb[0].mxu0
      %v4157 = vadd.f32 %v633, %v4156
      %v4158 = vpop.f32.mrb[0].mxu0
      %4159 = vmatprep.mubr.f32.mxu0 0.0
      %4160 = vmatmul.mubr.f32.gmra.mrb[0].mxu0 %v1900
      %v4161 = vpop.f32.mrb[0].mxu0
      %v4162 = vadd.f32 %v633, %v4161
      %v4163 = vpop.f32.mrb[0].mxu0
      %4164 = vmatprep.mubr.f32.mxu0 0.0
      %4165 = vmatmul.mubr.f32.gmra.mrb[0].mxu0 %v1903
      %v4166 = vpop.f32.mrb[0].mxu0
      %v4167 = vadd.f32 %v633, %v4166
      %v4168 = vpop.f32.mrb[0].mxu0
      %4169 = vmatprep.mubr.f32.mxu0 0.0
      %4170 = vmatmul.mubr.f32.gmra.mrb[0].mxu0 %v1906
      %v4171 = vpop.f32.mrb[0].mxu0
      %v4172 = vadd.f32 %v633, %v4171
      %v4173 = vpop.f32.mrb[0].mxu0
      %4174 = vmatprep.mubr.f32.mxu0 0.0
      %4175 = vmatmul.mubr.f32.gmra.mrb[0].mxu0 %v1909
      %v4176 = vpop.f32.mrb[0].mxu0
      %v4177 = vadd.f32 %v633, %v4176
      %v4178 = vpop.f32.mrb[0].mxu0
      %4179 = vmatprep.mubr.f32.mxu0 0.0
      %4180 = vmatmul.mubr.f32.gmra.mrb[0].mxu0 %v1912
      %v4181 = vpop.f32.mrb[0].mxu0
      %v4182 = vadd.f32 %v633, %v4181
      %v4183 = vpop.f32.mrb[0].mxu0
      %4184 = vmatprep.mubr.f32.mxu0 0.0
      %4185 = vmatmul.mubr.f32.gmra.mrb[0].mxu0 %v1915
      %v4186 = vpop.f32.mrb[0].mxu0
      %v4187 = vadd.f32 %v633, %v4186
      %v4188 = vpop.f32.mrb[0].mxu0
      %4189 = vmatprep.mubr.f32.mxu0 0.0
      %4190 = vmatmul.mubr.f32.gmra.mrb[0].mxu0 %v1918
      %v4191 = vpop.f32.mrb[0].mxu0
      %v4192 = vadd.f32 %v633, %v4191
      %v4193 = vpop.f32.mrb[0].mxu0
      %4194 = vmatprep.mubr.f32.mxu0 0.0
      %4195 = vmatmul.mubr.f32.gmra.mrb[0].mxu0 %v1921
      %v4196 = vpop.f32.mrb[0].mxu0
      %v4197 = vadd.f32 %v633, %v4196
      %v4198 = vpop.f32.mrb[0].mxu0
      %4199 = vmatprep.mubr.f32.mxu0 0.0
      %4200 = vmatmul.mubr.f32.gmra.mrb[0].mxu0 %v1924
      %v4201 = vpop.f32.mrb[0].mxu0
      %v4202 = vadd.f32 %v633, %v4201
      %v4203 = vpop.f32.mrb[0].mxu0
      %4204 = vmatprep.mubr.f32.mxu0 0.0
      %4205 = vmatmul.mubr.f32.gmra.mrb[0].mxu0 %v1927
      %v4206 = vpop.f32.mrb[0].mxu0
      %v4207 = vadd.f32 %v633, %v4206
      %v4208 = vpop.f32.mrb[0].mxu0
      %4209 = vmatprep.mubr.f32.mxu0 0.0
      %4210 = vmatmul.mubr.f32.gmra.mrb[0].mxu0 %v1930
      %v4211 = vpop.f32.mrb[0].mxu0
      %v4212 = vadd.f32 %v633, %v4211
      %v4213 = vpop.f32.mrb[0].mxu0
      %4214 = vmatprep.mubr.f32.mxu0 0.0
      %4215 = vmatmul.mubr.f32.gmra.mrb[0].mxu0 %v1933
      %v4216 = vpop.f32.mrb[0].mxu0
      %v4217 = vadd.f32 %v633, %v4216
      %v4218 = vpop.f32.mrb[0].mxu0
      %4219 = vmatprep.mubr.f32.mxu0 0.0
      %4220 = vmatmul.mubr.f32.gmra.mrb[0].mxu0 %v1936
      %v4221 = vpop.f32.mrb[0].mxu0
      %v4222 = vadd.f32 %v633, %v4221
      %v4223 = vpop.f32.mrb[0].mxu0
      %4224 = vmatprep.mubr.f32.mxu0 0.0
      %4225 = vmatmul.mubr.f32.gmra.mrb[0].mxu0 %v1939
      %v4226 = vpop.f32.mrb[0].mxu0
      %v4227 = vadd.f32 %v633, %v4226
      %v4228 = vpop.f32.mrb[0].mxu0
      %4229 = vmatprep.mubr.f32.mxu0 0.0
      %4230 = vmatmul.mubr.f32.gmra.mrb[0].mxu0 %v1942
      %v4231 = vpop.f32.mrb[0].mxu0
      %v4232 = vadd.f32 %v633, %v4231
      %v4233 = vpop.f32.mrb[0].mxu0
      %4234 = vmatprep.mubr.f32.mxu0 0.0
      %4235 = vmatmul.mubr.f32.gmra.mrb[0].mxu0 %v1945
      %v4236 = vpop.f32.mrb[0].mxu0
      %v4237 = vadd.f32 %v633, %v4236
      %v4238 = vpop.f32.mrb[0].mxu0
      %4239 = vmatprep.mubr.f32.mxu0 0.0
      %4240 = vmatmul.mubr.f32.gmra.mrb[0].mxu0 %v1948
      %v4241 = vpop.f32.mrb[0].mxu0
      %v4242 = vadd.f32 %v633, %v4241
      %v4243 = vpop.f32.mrb[0].mxu0
      %4244 = vmatprep.mubr.f32.mxu0 0.0
      %4245 = vmatmul.mubr.f32.gmra.mrb[0].mxu0 %v1951
      %v4246 = vpop.f32.mrb[0].mxu0
      %v4247 = vadd.f32 %v633, %v4246
      %v4248 = vpop.f32.mrb[0].mxu0
      %4249 = vmatprep.mubr.f32.mxu0 0.0
      %4250 = vmatmul.mubr.f32.gmra.mrb[0].mxu0 %v1954
      %v4251 = vpop.f32.mrb[0].mxu0
      %v4252 = vadd.f32 %v633, %v4251
      %v4253 = vpop.f32.mrb[0].mxu0
      %4254 = vmatprep.mubr.f32.mxu0 0.0
      %4255 = vmatmul.mubr.f32.gmra.mrb[0].mxu0 %v1957
      %v4256 = vpop.f32.mrb[0].mxu0
      %v4257 = vadd.f32 %v633, %v4256
      %v4258 = vpop.f32.mrb[0].mxu0
      %4259 = vmatprep.mubr.f32.mxu0 0.0
      %4260 = vmatmul.mubr.f32.gmra.mrb[0].mxu0 %v1960
      %v4261 = vpop.f32.mrb[0].mxu0
      %v4262 = vadd.f32 %v633, %v4261
      %v4263 = vpop.f32.mrb[0].mxu0
      %4264 = vmatprep.mubr.f32.mxu0 0.0
      %4265 = vmatmul.mubr.f32.gmra.mrb[0].mxu0 %v1963
      %v4266 = vpop.f32.mrb[0].mxu0
      %v4267 = vadd.f32 %v633, %v4266
      %v4268 = vpop.f32.mrb[0].mxu0
      %4269 = vmatprep.mubr.f32.mxu0 0.0
      %4270 = vmatmul.mubr.f32.gmra.mrb[0].mxu0 %v1966
      %v4271 = vpop.f32.mrb[0].mxu0
      %v4272 = vadd.f32 %v633, %v4271
      %v4273 = vpop.f32.mrb[0].mxu0
      %4274 = vmatprep.mubr.f32.mxu0 0.0
      %4275 = vmatmul.mubr.f32.gmra.mrb[0].mxu0 %v1969
      %v4276 = vpop.f32.mrb[0].mxu0
      %v4277 = vadd.f32 %v633, %v4276
      %v4278 = vpop.f32.mrb[0].mxu0
      %4279 = vmatprep.mubr.f32.mxu0 0.0
      %4280 = vmatmul.mubr.f32.gmra.mrb[0].mxu0 %v1972
      %v4281 = vpop.f32.mrb[0].mxu0
      %v4282 = vadd.f32 %v633, %v4281
      %v4283 = vpop.f32.mrb[0].mxu0
      %4284 = vmatprep.mubr.f32.mxu0 0.0
      %4285 = vmatmul.mubr.f32.gmra.mrb[0].mxu0 %v1975
      %v4286 = vpop.f32.mrb[0].mxu0
      %v4287 = vadd.f32 %v633, %v4286
      %v4288 = vpop.f32.mrb[0].mxu0
      %4289 = vmatprep.mubr.f32.mxu0 0.0
      %4290 = vmatmul.mubr.f32.gmra.mrb[0].mxu0 %v1978
      %v4291 = vpop.f32.mrb[0].mxu0
      %v4292 = vadd.f32 %v633, %v4291
      %v4293 = vpop.f32.mrb[0].mxu0
      %4294 = vmatprep.mubr.f32.mxu0 0.0
      %4295 = vmatmul.mubr.f32.gmra.mrb[0].mxu0 %v1981
      %v4296 = vpop.f32.mrb[0].mxu0
      %v4297 = vadd.f32 %v633, %v4296
      %v4298 = vpop.f32.mrb[0].mxu0
      %4299 = vmatprep.mubr.f32.mxu0 0.0
      %4300 = vmatmul.mubr.f32.gmra.mrb[0].mxu0 %v1984
      %v4301 = vpop.f32.mrb[0].mxu0
      %v4302 = vadd.f32 %v633, %v4301
      %v4303 = vpop.f32.mrb[0].mxu0
      %4304 = vdwg.mxu0
      %v4305 = vmax.f32 %v2057, 0.0
      %v4306 = vmax.f32 %v2062, 0.0
      %v4307 = vmax.f32 %v2067, 0.0
      %v4308 = vmax.f32 %v2072, 0.0
      %v4309 = vmax.f32 %v2077, 0.0
      %v4310 = vmax.f32 %v2082, 0.0
      %v4311 = vmax.f32 %v2087, 0.0
      %v4312 = vmax.f32 %v2092, 0.0
      %v4313 = vmax.f32 %v2097, 0.0
      %v4314 = vmax.f32 %v2102, 0.0
      %v4315 = vmax.f32 %v2107, 0.0
      %v4316 = vmax.f32 %v2112, 0.0
      %v4317 = vmax.f32 %v2117, 0.0
      %v4318 = vmax.f32 %v2122, 0.0
      %v4319 = vmax.f32 %v2127, 0.0
      %v4320 = vmax.f32 %v2132, 0.0
      %v4321 = vmax.f32 %v2137, 0.0
      %v4322 = vmax.f32 %v2142, 0.0
      %v4323 = vmax.f32 %v2147, 0.0
      %v4324 = vmax.f32 %v2152, 0.0
      %v4325 = vmax.f32 %v2157, 0.0
      %v4326 = vmax.f32 %v2162, 0.0
      %v4327 = vmax.f32 %v2167, 0.0
      %v4328 = vmax.f32 %v2172, 0.0
      %v4329 = vmax.f32 %v2177, 0.0
      %v4330 = vmax.f32 %v2182, 0.0
      %v4331 = vmax.f32 %v2187, 0.0
      %v4332 = vmax.f32 %v2192, 0.0
      %v4333 = vmax.f32 %v2197, 0.0
      %v4334 = vmax.f32 %v2202, 0.0
      %v4335 = vmax.f32 %v2207, 0.0
      %v4336 = vmax.f32 %v2212, 0.0
      %v4337 = vmax.f32 %v2217, 0.0
      %v4338 = vmax.f32 %v2222, 0.0
      %v4339 = vmax.f32 %v2227, 0.0
      %v4340 = vmax.f32 %v2232, 0.0
      %v4341 = vmax.f32 %v2237, 0.0
      %v4342 = vmax.f32 %v2242, 0.0
      %v4343 = vmax.f32 %v2247, 0.0
      %v4344 = vmax.f32 %v2252, 0.0
      %v4345 = vmax.f32 %v2257, 0.0
      %v4346 = vmax.f32 %v2262, 0.0
      %v4347 = vmax.f32 %v2267, 0.0
      %v4348 = vmax.f32 %v2272, 0.0
      %v4349 = vmax.f32 %v2277, 0.0
      %v4350 = vmax.f32 %v2282, 0.0
      %v4351 = vmax.f32 %v2287, 0.0
      %v4352 = vmax.f32 %v2292, 0.0
      %v4353 = vmax.f32 %v2297, 0.0
      %v4354 = vmax.f32 %v2302, 0.0
      %v4355 = vmax.f32 %v2307, 0.0
      %v4356 = vmax.f32 %v2312, 0.0
      %v4357 = vmax.f32 %v2317, 0.0
      %v4358 = vmax.f32 %v2322, 0.0
      %v4359 = vmax.f32 %v2327, 0.0
      %v4360 = vmax.f32 %v2332, 0.0
      %v4361 = vmax.f32 %v2337, 0.0
      %v4362 = vmax.f32 %v2342, 0.0
      %v4363 = vmax.f32 %v2347, 0.0
      %v4364 = vmax.f32 %v2352, 0.0
      %v4365 = vmax.f32 %v2357, 0.0
      %v4366 = vmax.f32 %v2362, 0.0
      %v4367 = vmax.f32 %v2367, 0.0
      %v4368 = vmax.f32 %v2372, 0.0
      %v4369 = vmax.f32 %v2377, 0.0
      %v4370 = vmax.f32 %v2382, 0.0
      %v4371 = vmax.f32 %v2387, 0.0
      %v4372 = vmax.f32 %v2392, 0.0
      %v4373 = vmax.f32 %v2397, 0.0
      %v4374 = vmax.f32 %v2402, 0.0
      %v4375 = vmax.f32 %v2407, 0.0
      %v4376 = vmax.f32 %v2412, 0.0
      %v4377 = vmax.f32 %v2417, 0.0
      %v4378 = vmax.f32 %v2422, 0.0
      %v4379 = vmax.f32 %v2427, 0.0
      %v4380 = vmax.f32 %v2432, 0.0
      %v4381 = vmax.f32 %v2437, 0.0
      %v4382 = vmax.f32 %v2442, 0.0
      %v4383 = vmax.f32 %v2447, 0.0
      %v4384 = vmax.f32 %v2452, 0.0
      %v4385 = vmax.f32 %v2457, 0.0
      %v4386 = vmax.f32 %v2462, 0.0
      %v4387 = vmax.f32 %v2467, 0.0
      %v4388 = vmax.f32 %v2472, 0.0
      %v4389 = vmax.f32 %v2477, 0.0
      %v4390 = vmax.f32 %v2482, 0.0
      %v4391 = vmax.f32 %v2487, 0.0
      %v4392 = vmax.f32 %v2492, 0.0
      %v4393 = vmax.f32 %v2497, 0.0
      %v4394 = vmax.f32 %v2502, 0.0
      %v4395 = vmax.f32 %v2507, 0.0
      %v4396 = vmax.f32 %v2512, 0.0
      %v4397 = vmax.f32 %v2517, 0.0
      %v4398 = vmax.f32 %v2522, 0.0
      %v4399 = vmax.f32 %v2527, 0.0
      %v4400 = vmax.f32 %v2532, 0.0
      %v4401 = vmax.f32 %v2537, 0.0
      %v4402 = vmax.f32 %v2542, 0.0
      %v4403 = vmax.f32 %v2547, 0.0
      %v4404 = vmax.f32 %v2552, 0.0
      %v4405 = vmax.f32 %v2557, 0.0
      %v4406 = vmax.f32 %v2562, 0.0
      %v4407 = vmax.f32 %v2567, 0.0
      %v4408 = vmax.f32 %v2572, 0.0
      %v4409 = vmax.f32 %v2577, 0.0
      %v4410 = vmax.f32 %v2582, 0.0
      %v4411 = vmax.f32 %v2587, 0.0
      %v4412 = vmax.f32 %v2592, 0.0
      %v4413 = vmax.f32 %v2597, 0.0
      %v4414 = vmax.f32 %v2602, 0.0
      %v4415 = vmax.f32 %v2607, 0.0
      %v4416 = vmax.f32 %v2612, 0.0
      %v4417 = vmax.f32 %v2617, 0.0
      %v4418 = vmax.f32 %v2622, 0.0
      %v4419 = vmax.f32 %v2627, 0.0
      %v4420 = vmax.f32 %v2632, 0.0
      %v4421 = vmax.f32 %v2637, 0.0
      %v4422 = vmax.f32 %v2642, 0.0
      %v4423 = vmax.f32 %v2647, 0.0
      %v4424 = vmax.f32 %v2652, 0.0
      %v4425 = vmax.f32 %v2657, 0.0
      %v4426 = vmax.f32 %v2662, 0.0
      %v4427 = vmax.f32 %v2667, 0.0
      %v4428 = vmax.f32 %v2672, 0.0
      %v4429 = vmax.f32 %v2677, 0.0
      %v4430 = vmax.f32 %v2682, 0.0
      %v4431 = vmax.f32 %v2687, 0.0
      %v4432 = vmax.f32 %v2692, 0.0
      %v4433 = vmax.f32 %v2697, 0.0
      %v4434 = vmax.f32 %v2702, 0.0
      %v4435 = vmax.f32 %v2707, 0.0
      %v4436 = vmax.f32 %v2712, 0.0
      %v4437 = vmax.f32 %v2717, 0.0
      %v4438 = vmax.f32 %v2722, 0.0
      %v4439 = vmax.f32 %v2727, 0.0
      %v4440 = vmax.f32 %v2732, 0.0
      %v4441 = vmax.f32 %v2737, 0.0
      %v4442 = vmax.f32 %v2742, 0.0
      %v4443 = vmax.f32 %v2747, 0.0
      %v4444 = vmax.f32 %v2752, 0.0
      %v4445 = vmax.f32 %v2757, 0.0
      %v4446 = vmax.f32 %v2762, 0.0
      %v4447 = vmax.f32 %v2767, 0.0
      %v4448 = vmax.f32 %v2772, 0.0
      %v4449 = vmax.f32 %v2777, 0.0
      %v4450 = vmax.f32 %v2782, 0.0
      %v4451 = vmax.f32 %v2787, 0.0
      %v4452 = vmax.f32 %v2792, 0.0
      %v4453 = vmax.f32 %v2797, 0.0
      %v4454 = vmax.f32 %v2802, 0.0
      %v4455 = vmax.f32 %v2807, 0.0
      %v4456 = vmax.f32 %v2812, 0.0
      %v4457 = vmax.f32 %v2817, 0.0
      %v4458 = vmax.f32 %v2822, 0.0
      %v4459 = vmax.f32 %v2827, 0.0
      %v4460 = vmax.f32 %v2832, 0.0
      %v4461 = vmax.f32 %v2837, 0.0
      %v4462 = vmax.f32 %v2842, 0.0
      %v4463 = vmax.f32 %v2847, 0.0
      %v4464 = vmax.f32 %v2852, 0.0
      %v4465 = vmax.f32 %v2857, 0.0
      %v4466 = vmax.f32 %v2862, 0.0
      %v4467 = vmax.f32 %v2867, 0.0
      %v4468 = vmax.f32 %v2872, 0.0
      %v4469 = vmax.f32 %v2877, 0.0
      %v4470 = vmax.f32 %v2882, 0.0
      %v4471 = vmax.f32 %v2887, 0.0
      %v4472 = vmax.f32 %v2892, 0.0
      %v4473 = vmax.f32 %v2897, 0.0
      %v4474 = vmax.f32 %v2902, 0.0
      %v4475 = vmax.f32 %v2907, 0.0
      %v4476 = vmax.f32 %v2912, 0.0
      %v4477 = vmax.f32 %v2917, 0.0
      %v4478 = vmax.f32 %v2922, 0.0
      %v4479 = vmax.f32 %v2927, 0.0
      %v4480 = vmax.f32 %v2932, 0.0
      %v4481 = vmax.f32 %v2937, 0.0
      %v4482 = vmax.f32 %v2942, 0.0
      %v4483 = vmax.f32 %v2947, 0.0
      %v4484 = vmax.f32 %v2952, 0.0
      %v4485 = vmax.f32 %v2957, 0.0
      %v4486 = vmax.f32 %v2962, 0.0
      %v4487 = vmax.f32 %v2967, 0.0
      %v4488 = vmax.f32 %v2972, 0.0
      %v4489 = vmax.f32 %v2977, 0.0
      %v4490 = vmax.f32 %v2982, 0.0
      %v4491 = vmax.f32 %v2987, 0.0
      %v4492 = vmax.f32 %v2992, 0.0
      %v4493 = vmax.f32 %v2997, 0.0
      %v4494 = vmax.f32 %v3002, 0.0
      %v4495 = vmax.f32 %v3007, 0.0
      %v4496 = vmax.f32 %v3012, 0.0
      %v4497 = vmax.f32 %v3017, 0.0
      %v4498 = vmax.f32 %v3022, 0.0
      %v4499 = vmax.f32 %v3027, 0.0
      %v4500 = vmax.f32 %v3032, 0.0
      %v4501 = vmax.f32 %v3037, 0.0
      %v4502 = vmax.f32 %v3042, 0.0
      %v4503 = vmax.f32 %v3047, 0.0
      %v4504 = vmax.f32 %v3052, 0.0
      %v4505 = vmax.f32 %v3057, 0.0
      %v4506 = vmax.f32 %v3062, 0.0
      %v4507 = vmax.f32 %v3067, 0.0
      %v4508 = vmax.f32 %v3072, 0.0
      %v4509 = vmax.f32 %v3077, 0.0
      %v4510 = vmax.f32 %v3082, 0.0
      %v4511 = vmax.f32 %v3087, 0.0
      %v4512 = vmax.f32 %v3092, 0.0
      %v4513 = vmax.f32 %v3097, 0.0
      %v4514 = vmax.f32 %v3102, 0.0
      %v4515 = vmax.f32 %v3107, 0.0
      %v4516 = vmax.f32 %v3112, 0.0
      %v4517 = vmax.f32 %v3117, 0.0
      %v4518 = vmax.f32 %v3122, 0.0
      %v4519 = vmax.f32 %v3127, 0.0
      %v4520 = vmax.f32 %v3132, 0.0
      %v4521 = vmax.f32 %v3137, 0.0
      %v4522 = vmax.f32 %v3142, 0.0
      %v4523 = vmax.f32 %v3147, 0.0
      %v4524 = vmax.f32 %v3152, 0.0
      %v4525 = vmax.f32 %v3157, 0.0
      %v4526 = vmax.f32 %v3162, 0.0
      %v4527 = vmax.f32 %v3167, 0.0
      %v4528 = vmax.f32 %v3172, 0.0
      %v4529 = vmax.f32 %v3177, 0.0
      %v4530 = vmax.f32 %v3182, 0.0
      %v4531 = vmax.f32 %v3187, 0.0
      %v4532 = vmax.f32 %v3192, 0.0
      %v4533 = vmax.f32 %v3197, 0.0
      %v4534 = vmax.f32 %v3202, 0.0
      %v4535 = vmax.f32 %v3207, 0.0
      %v4536 = vmax.f32 %v3212, 0.0
      %v4537 = vmax.f32 %v3217, 0.0
      %v4538 = vmax.f32 %v3222, 0.0
      %v4539 = vmax.f32 %v3227, 0.0
      %v4540 = vmax.f32 %v3232, 0.0
      %v4541 = vmax.f32 %v3237, 0.0
      %v4542 = vmax.f32 %v3242, 0.0
      %v4543 = vmax.f32 %v3247, 0.0
      %v4544 = vmax.f32 %v3252, 0.0
      %v4545 = vmax.f32 %v3257, 0.0
      %v4546 = vmax.f32 %v3262, 0.0
      %v4547 = vmax.f32 %v3267, 0.0
      %v4548 = vmax.f32 %v3272, 0.0
      %v4549 = vmax.f32 %v3277, 0.0
      %v4550 = vmax.f32 %v3282, 0.0
      %v4551 = vmax.f32 %v3287, 0.0
      %v4552 = vmax.f32 %v3292, 0.0
      %v4553 = vmax.f32 %v3297, 0.0
      %v4554 = vmax.f32 %v3302, 0.0
      %v4555 = vmax.f32 %v3307, 0.0
      %v4556 = vmax.f32 %v3312, 0.0
      %v4557 = vmax.f32 %v3317, 0.0
      %v4558 = vmax.f32 %v3322, 0.0
      %v4559 = vmax.f32 %v3327, 0.0
      %v4560 = vmax.f32 %v3332, 0.0
      %v4561 = vmax.f32 %v3337, 0.0
      %v4562 = vmax.f32 %v3342, 0.0
      %v4563 = vmax.f32 %v3347, 0.0
      %v4564 = vmax.f32 %v3352, 0.0
      %v4565 = vmax.f32 %v3357, 0.0
      %v4566 = vmax.f32 %v3362, 0.0
      %v4567 = vmax.f32 %v3367, 0.0
      %v4568 = vmax.f32 %v3372, 0.0
      %v4569 = vmax.f32 %v3377, 0.0
      %v4570 = vmax.f32 %v3382, 0.0
      %v4571 = vmax.f32 %v3387, 0.0
      %v4572 = vmax.f32 %v3392, 0.0
      %v4573 = vmax.f32 %v3397, 0.0
      %v4574 = vmax.f32 %v3402, 0.0
      %v4575 = vmax.f32 %v3407, 0.0
      %v4576 = vmax.f32 %v3412, 0.0
      %v4577 = vmax.f32 %v3417, 0.0
      %v4578 = vmax.f32 %v3422, 0.0
      %v4579 = vmax.f32 %v3427, 0.0
      %v4580 = vmax.f32 %v3432, 0.0
      %v4581 = vmax.f32 %v3437, 0.0
      %v4582 = vmax.f32 %v3442, 0.0
      %v4583 = vmax.f32 %v3447, 0.0
      %v4584 = vmax.f32 %v3452, 0.0
      %v4585 = vmax.f32 %v3457, 0.0
      %v4586 = vmax.f32 %v3462, 0.0
      %v4587 = vmax.f32 %v3467, 0.0
      %v4588 = vmax.f32 %v3472, 0.0
      %v4589 = vmax.f32 %v3477, 0.0
      %v4590 = vmax.f32 %v3482, 0.0
      %v4591 = vmax.f32 %v3487, 0.0
      %v4592 = vmax.f32 %v3492, 0.0
      %v4593 = vmax.f32 %v3497, 0.0
      %v4594 = vmax.f32 %v3502, 0.0
      %v4595 = vmax.f32 %v3507, 0.0
      %v4596 = vmax.f32 %v3512, 0.0
      %v4597 = vmax.f32 %v3517, 0.0
      %v4598 = vmax.f32 %v3522, 0.0
      %v4599 = vmax.f32 %v3527, 0.0
      %v4600 = vmax.f32 %v3532, 0.0
      %v4601 = vmax.f32 %v3537, 0.0
      %v4602 = vmax.f32 %v3542, 0.0
      %v4603 = vmax.f32 %v3547, 0.0
      %v4604 = vmax.f32 %v3552, 0.0
      %v4605 = vmax.f32 %v3557, 0.0
      %v4606 = vmax.f32 %v3562, 0.0
      %v4607 = vmax.f32 %v3567, 0.0
      %v4608 = vmax.f32 %v3572, 0.0
      %v4609 = vmax.f32 %v3577, 0.0
      %v4610 = vmax.f32 %v3582, 0.0
      %v4611 = vmax.f32 %v3587, 0.0
      %v4612 = vmax.f32 %v3592, 0.0
      %v4613 = vmax.f32 %v3597, 0.0
      %v4614 = vmax.f32 %v3602, 0.0
      %v4615 = vmax.f32 %v3607, 0.0
      %v4616 = vmax.f32 %v3612, 0.0
      %v4617 = vmax.f32 %v3617, 0.0
      %v4618 = vmax.f32 %v3622, 0.0
      %v4619 = vmax.f32 %v3627, 0.0
      %v4620 = vmax.f32 %v3632, 0.0
      %v4621 = vmax.f32 %v3637, 0.0
      %v4622 = vmax.f32 %v3642, 0.0
      %v4623 = vmax.f32 %v3647, 0.0
      %v4624 = vmax.f32 %v3652, 0.0
      %v4625 = vmax.f32 %v3657, 0.0
      %v4626 = vmax.f32 %v3662, 0.0
      %v4627 = vmax.f32 %v3667, 0.0
      %v4628 = vmax.f32 %v3672, 0.0
      %v4629 = vmax.f32 %v3677, 0.0
      %v4630 = vmax.f32 %v3682, 0.0
      %v4631 = vmax.f32 %v3687, 0.0
      %v4632 = vmax.f32 %v3692, 0.0
      %v4633 = vmax.f32 %v3697, 0.0
      %v4634 = vmax.f32 %v3702, 0.0
      %v4635 = vmax.f32 %v3707, 0.0
      %v4636 = vmax.f32 %v3712, 0.0
      %v4637 = vmax.f32 %v3717, 0.0
      %v4638 = vmax.f32 %v3722, 0.0
      %v4639 = vmax.f32 %v3727, 0.0
      %v4640 = vmax.f32 %v3732, 0.0
      %v4641 = vmax.f32 %v3737, 0.0
      %v4642 = vmax.f32 %v3742, 0.0
      %v4643 = vmax.f32 %v3747, 0.0
      %v4644 = vmax.f32 %v3752, 0.0
      %v4645 = vmax.f32 %v3757, 0.0
      %v4646 = vmax.f32 %v3762, 0.0
      %v4647 = vmax.f32 %v3767, 0.0
      %v4648 = vmax.f32 %v3772, 0.0
      %v4649 = vmax.f32 %v3777, 0.0
      %v4650 = vmax.f32 %v3782, 0.0
      %v4651 = vmax.f32 %v3787, 0.0
      %v4652 = vmax.f32 %v3792, 0.0
      %v4653 = vmax.f32 %v3797, 0.0
      %v4654 = vmax.f32 %v3802, 0.0
      %v4655 = vmax.f32 %v3807, 0.0
      %v4656 = vmax.f32 %v3812, 0.0
      %v4657 = vmax.f32 %v3817, 0.0
      %v4658 = vmax.f32 %v3822, 0.0
      %v4659 = vmax.f32 %v3827, 0.0
      %v4660 = vmax.f32 %v3832, 0.0
      %v4661 = vmax.f32 %v3837, 0.0
      %v4662 = vmax.f32 %v3842, 0.0
      %v4663 = vmax.f32 %v3847, 0.0
      %v4664 = vmax.f32 %v3852, 0.0
      %v4665 = vmax.f32 %v3857, 0.0
      %v4666 = vmax.f32 %v3862, 0.0
      %v4667 = vmax.f32 %v3867, 0.0
      %v4668 = vmax.f32 %v3872, 0.0
      %v4669 = vmax.f32 %v3877, 0.0
      %v4670 = vmax.f32 %v3882, 0.0
      %v4671 = vmax.f32 %v3887, 0.0
      %v4672 = vmax.f32 %v3892, 0.0
      %v4673 = vmax.f32 %v3897, 0.0
      %v4674 = vmax.f32 %v3902, 0.0
      %v4675 = vmax.f32 %v3907, 0.0
      %v4676 = vmax.f32 %v3912, 0.0
      %v4677 = vmax.f32 %v3917, 0.0
      %v4678 = vmax.f32 %v3922, 0.0
      %v4679 = vmax.f32 %v3927, 0.0
      %v4680 = vmax.f32 %v3932, 0.0
      %v4681 = vmax.f32 %v3937, 0.0
      %v4682 = vmax.f32 %v3942, 0.0
      %v4683 = vmax.f32 %v3947, 0.0
      %v4684 = vmax.f32 %v3952, 0.0
      %v4685 = vmax.f32 %v3957, 0.0
      %v4686 = vmax.f32 %v3962, 0.0
      %v4687 = vmax.f32 %v3967, 0.0
      %v4688 = vmax.f32 %v3972, 0.0
      %v4689 = vmax.f32 %v3977, 0.0
      %v4690 = vmax.f32 %v3982, 0.0
      %v4691 = vmax.f32 %v3987, 0.0
      %v4692 = vmax.f32 %v3992, 0.0
      %v4693 = vmax.f32 %v3997, 0.0
      %v4694 = vmax.f32 %v4002, 0.0
      %v4695 = vmax.f32 %v4007, 0.0
      %v4696 = vmax.f32 %v4012, 0.0
      %v4697 = vmax.f32 %v4017, 0.0
      %v4698 = vmax.f32 %v4022, 0.0
      %v4699 = vmax.f32 %v4027, 0.0
      %v4700 = vmax.f32 %v4032, 0.0
      %v4701 = vmax.f32 %v4037, 0.0
      %v4702 = vmax.f32 %v4042, 0.0
      %v4703 = vmax.f32 %v4047, 0.0
      %v4704 = vmax.f32 %v4052, 0.0
      %v4705 = vmax.f32 %v4057, 0.0
      %v4706 = vmax.f32 %v4062, 0.0
      %v4707 = vmax.f32 %v4067, 0.0
      %v4708 = vmax.f32 %v4072, 0.0
      %v4709 = vmax.f32 %v4077, 0.0
      %v4710 = vmax.f32 %v4082, 0.0
      %v4711 = vmax.f32 %v4087, 0.0
      %v4712 = vmax.f32 %v4092, 0.0
      %v4713 = vmax.f32 %v4097, 0.0
      %v4714 = vmax.f32 %v4102, 0.0
      %v4715 = vmax.f32 %v4107, 0.0
      %v4716 = vmax.f32 %v4112, 0.0
      %v4717 = vmax.f32 %v4117, 0.0
      %v4718 = vmax.f32 %v4122, 0.0
      %v4719 = vmax.f32 %v4127, 0.0
      %v4720 = vmax.f32 %v4132, 0.0
      %v4721 = vmax.f32 %v4137, 0.0
      %v4722 = vmax.f32 %v4142, 0.0
      %v4723 = vmax.f32 %v4147, 0.0
      %v4724 = vmax.f32 %v4152, 0.0
      %v4725 = vmax.f32 %v4157, 0.0
      %v4726 = vmax.f32 %v4162, 0.0
      %v4727 = vmax.f32 %v4167, 0.0
      %v4728 = vmax.f32 %v4172, 0.0
      %v4729 = vmax.f32 %v4177, 0.0
      %v4730 = vmax.f32 %v4182, 0.0
      %v4731 = vmax.f32 %v4187, 0.0
      %v4732 = vmax.f32 %v4192, 0.0
      %v4733 = vmax.f32 %v4197, 0.0
      %v4734 = vmax.f32 %v4202, 0.0
      %v4735 = vmax.f32 %v4207, 0.0
      %v4736 = vmax.f32 %v4212, 0.0
      %v4737 = vmax.f32 %v4217, 0.0
      %v4738 = vmax.f32 %v4222, 0.0
      %v4739 = vmax.f32 %v4227, 0.0
      %v4740 = vmax.f32 %v4232, 0.0
      %v4741 = vmax.f32 %v4237, 0.0
      %v4742 = vmax.f32 %v4242, 0.0
      %v4743 = vmax.f32 %v4247, 0.0
      %v4744 = vmax.f32 %v4252, 0.0
      %v4745 = vmax.f32 %v4257, 0.0
      %v4746 = vmax.f32 %v4262, 0.0
      %v4747 = vmax.f32 %v4267, 0.0
      %v4748 = vmax.f32 %v4272, 0.0
      %v4749 = vmax.f32 %v4277, 0.0
      %v4750 = vmax.f32 %v4282, 0.0
      %v4751 = vmax.f32 %v4287, 0.0
      %v4752 = vmax.f32 %v4292, 0.0
      %v4753 = vmax.f32 %v4297, 0.0
      %v4754 = vmax.f32 %v4302, 0.0
      %vm4755 = vcmask 261120
      %4756 = vst.msk [vmem:[%s172] sm:$0xff] %vm4755, %v4305
      %4757 = vst.msk [vmem:[%s172 + $0x8] sm:$0xff] %vm4755, %v4306
      %4758 = vst.msk [vmem:[%s172 + $0x10] sm:$0xff] %vm4755, %v4307
      %4759 = vst.msk [vmem:[%s172 + $0x18] sm:$0xff] %vm4755, %v4308
      %4760 = vst.msk [vmem:[%s172 + $0x20] sm:$0xff] %vm4755, %v4309
      %4761 = vst.msk [vmem:[%s172 + $0x28] sm:$0xff] %vm4755, %v4310
      %4762 = vst.msk [vmem:[%s172 + $0x30] sm:$0xff] %vm4755, %v4311
      %4763 = vst.msk [vmem:[%s172 + $0x38] sm:$0xff] %vm4755, %v4312
      %4764 = vst.msk [vmem:[%s172 + $0x40] sm:$0xff] %vm4755, %v4313
      %4765 = vst.msk [vmem:[%s172 + $0x48] sm:$0xff] %vm4755, %v4314
      %4766 = vst.msk [vmem:[%s172 + $0x50] sm:$0xff] %vm4755, %v4315
      %4767 = vst.msk [vmem:[%s172 + $0x58] sm:$0xff] %vm4755, %v4316
      %4768 = vst.msk [vmem:[%s172 + $0x60] sm:$0xff] %vm4755, %v4317
      %4769 = vst.msk [vmem:[%s172 + $0x68] sm:$0xff] %vm4755, %v4318
      %4770 = vst.msk [vmem:[%s172 + $0x70] sm:$0xff] %vm4755, %v4319
      %4771 = vst.msk [vmem:[%s172 + $0x78] sm:$0xff] %vm4755, %v4320
      %4772 = vst.msk [vmem:[%s172 + $0x80] sm:$0xff] %vm4755, %v4321
      %4773 = vst.msk [vmem:[%s172 + $0x88] sm:$0xff] %vm4755, %v4322
      %4774 = vst.msk [vmem:[%s172 + $0x90] sm:$0xff] %vm4755, %v4323
      %4775 = vst.msk [vmem:[%s172 + $0x98] sm:$0xff] %vm4755, %v4324
      %4776 = vst.msk [vmem:[%s172 + $0xa0] sm:$0xff] %vm4755, %v4325
      %4777 = vst.msk [vmem:[%s172 + $0xa8] sm:$0xff] %vm4755, %v4326
      %4778 = vst.msk [vmem:[%s172 + $0xb0] sm:$0xff] %vm4755, %v4327
      %4779 = vst.msk [vmem:[%s172 + $0xb8] sm:$0xff] %vm4755, %v4328
      %4780 = vst.msk [vmem:[%s172 + $0xc0] sm:$0xff] %vm4755, %v4329
      %4781 = vst.msk [vmem:[%s172 + $0xc8] sm:$0xff] %vm4755, %v4330
      %4782 = vst.msk [vmem:[%s172 + $0xd0] sm:$0xff] %vm4755, %v4331
      %4783 = vst.msk [vmem:[%s172 + $0xd8] sm:$0xff] %vm4755, %v4332
      %4784 = vst.msk [vmem:[%s172 + $0xe0] sm:$0xff] %vm4755, %v4333
      %4785 = vst.msk [vmem:[%s172 + $0xe8] sm:$0xff] %vm4755, %v4334
      %4786 = vst.msk [vmem:[%s172 + $0xf0] sm:$0xff] %vm4755, %v4335
      %4787 = vst.msk [vmem:[%s172 + $0xf8] sm:$0xff] %vm4755, %v4336
      %4788 = vst.msk [vmem:[%s172 + $0x100] sm:$0xff] %vm4755, %v4337
      %4789 = vst.msk [vmem:[%s172 + $0x108] sm:$0xff] %vm4755, %v4338
      %4790 = vst.msk [vmem:[%s172 + $0x110] sm:$0xff] %vm4755, %v4339
      %4791 = vst.msk [vmem:[%s172 + $0x118] sm:$0xff] %vm4755, %v4340
      %4792 = vst.msk [vmem:[%s172 + $0x120] sm:$0xff] %vm4755, %v4341
      %4793 = vst.msk [vmem:[%s172 + $0x128] sm:$0xff] %vm4755, %v4342
      %4794 = vst.msk [vmem:[%s172 + $0x130] sm:$0xff] %vm4755, %v4343
      %4795 = vst.msk [vmem:[%s172 + $0x138] sm:$0xff] %vm4755, %v4344
      %4796 = vst.msk [vmem:[%s172 + $0x140] sm:$0xff] %vm4755, %v4345
      %4797 = vst.msk [vmem:[%s172 + $0x148] sm:$0xff] %vm4755, %v4346
      %4798 = vst.msk [vmem:[%s172 + $0x150] sm:$0xff] %vm4755, %v4347
      %4799 = vst.msk [vmem:[%s172 + $0x158] sm:$0xff] %vm4755, %v4348
      %4800 = vst.msk [vmem:[%s172 + $0x160] sm:$0xff] %vm4755, %v4349
      %4801 = vst.msk [vmem:[%s172 + $0x168] sm:$0xff] %vm4755, %v4350
      %4802 = vst.msk [vmem:[%s172 + $0x170] sm:$0xff] %vm4755, %v4351
      %4803 = vst.msk [vmem:[%s172 + $0x178] sm:$0xff] %vm4755, %v4352
      %4804 = vst.msk [vmem:[%s172 + $0x180] sm:$0xff] %vm4755, %v4353
      %4805 = vst.msk [vmem:[%s172 + $0x188] sm:$0xff] %vm4755, %v4354
      %4806 = vst.msk [vmem:[%s172 + $0x190] sm:$0xff] %vm4755, %v4355
      %4807 = vst.msk [vmem:[%s172 + $0x198] sm:$0xff] %vm4755, %v4356
      %4808 = vst.msk [vmem:[%s172 + $0x1a0] sm:$0xff] %vm4755, %v4357
      %4809 = vst.msk [vmem:[%s172 + $0x1a8] sm:$0xff] %vm4755, %v4358
      %4810 = vst.msk [vmem:[%s172 + $0x1b0] sm:$0xff] %vm4755, %v4359
      %4811 = vst.msk [vmem:[%s172 + $0x1b8] sm:$0xff] %vm4755, %v4360
      %4812 = vst.msk [vmem:[%s172 + $0x1c0] sm:$0xff] %vm4755, %v4361
      %4813 = vst.msk [vmem:[%s172 + $0x1c8] sm:$0xff] %vm4755, %v4362
      %4814 = vst.msk [vmem:[%s172 + $0x1d0] sm:$0xff] %vm4755, %v4363
      %4815 = vst.msk [vmem:[%s172 + $0x1d8] sm:$0xff] %vm4755, %v4364
      %4816 = vst.msk [vmem:[%s172 + $0x1e0] sm:$0xff] %vm4755, %v4365
      %4817 = vst.msk [vmem:[%s172 + $0x1e8] sm:$0xff] %vm4755, %v4366
      %4818 = vst.msk [vmem:[%s172 + $0x1f0] sm:$0xff] %vm4755, %v4367
      %4819 = vst.msk [vmem:[%s172 + $0x1f8] sm:$0xff] %vm4755, %v4368
      %4820 = vst.msk [vmem:[%s172 + $0x200] sm:$0xff] %vm4755, %v4369
      %4821 = vst.msk [vmem:[%s172 + $0x208] sm:$0xff] %vm4755, %v4370
      %4822 = vst.msk [vmem:[%s172 + $0x210] sm:$0xff] %vm4755, %v4371
      %4823 = vst.msk [vmem:[%s172 + $0x218] sm:$0xff] %vm4755, %v4372
      %4824 = vst.msk [vmem:[%s172 + $0x220] sm:$0xff] %vm4755, %v4373
      %4825 = vst.msk [vmem:[%s172 + $0x228] sm:$0xff] %vm4755, %v4374
      %4826 = vst.msk [vmem:[%s172 + $0x230] sm:$0xff] %vm4755, %v4375
      %4827 = vst.msk [vmem:[%s172 + $0x238] sm:$0xff] %vm4755, %v4376
      %4828 = vst.msk [vmem:[%s172 + $0x240] sm:$0xff] %vm4755, %v4377
      %4829 = vst.msk [vmem:[%s172 + $0x248] sm:$0xff] %vm4755, %v4378
      %4830 = vst.msk [vmem:[%s172 + $0x250] sm:$0xff] %vm4755, %v4379
      %4831 = vst.msk [vmem:[%s172 + $0x258] sm:$0xff] %vm4755, %v4380
      %4832 = vst.msk [vmem:[%s172 + $0x260] sm:$0xff] %vm4755, %v4381
      %4833 = vst.msk [vmem:[%s172 + $0x268] sm:$0xff] %vm4755, %v4382
      %4834 = vst.msk [vmem:[%s172 + $0x270] sm:$0xff] %vm4755, %v4383
      %4835 = vst.msk [vmem:[%s172 + $0x278] sm:$0xff] %vm4755, %v4384
      %4836 = vst.msk [vmem:[%s172 + $0x280] sm:$0xff] %vm4755, %v4385
      %4837 = vst.msk [vmem:[%s172 + $0x288] sm:$0xff] %vm4755, %v4386
      %4838 = vst.msk [vmem:[%s172 + $0x290] sm:$0xff] %vm4755, %v4387
      %4839 = vst.msk [vmem:[%s172 + $0x298] sm:$0xff] %vm4755, %v4388
      %4840 = vst.msk [vmem:[%s172 + $0x2a0] sm:$0xff] %vm4755, %v4389
      %4841 = vst.msk [vmem:[%s172 + $0x2a8] sm:$0xff] %vm4755, %v4390
      %4842 = vst.msk [vmem:[%s172 + $0x2b0] sm:$0xff] %vm4755, %v4391
      %4843 = vst.msk [vmem:[%s172 + $0x2b8] sm:$0xff] %vm4755, %v4392
      %4844 = vst.msk [vmem:[%s172 + $0x2c0] sm:$0xff] %vm4755, %v4393
      %4845 = vst.msk [vmem:[%s172 + $0x2c8] sm:$0xff] %vm4755, %v4394
      %4846 = vst.msk [vmem:[%s172 + $0x2d0] sm:$0xff] %vm4755, %v4395
      %4847 = vst.msk [vmem:[%s172 + $0x2d8] sm:$0xff] %vm4755, %v4396
      %4848 = vst.msk [vmem:[%s172 + $0x2e0] sm:$0xff] %vm4755, %v4397
      %4849 = vst.msk [vmem:[%s172 + $0x2e8] sm:$0xff] %vm4755, %v4398
      %4850 = vst.msk [vmem:[%s172 + $0x2f0] sm:$0xff] %vm4755, %v4399
      %4851 = vst.msk [vmem:[%s172 + $0x2f8] sm:$0xff] %vm4755, %v4400
      %4852 = vst.msk [vmem:[%s172 + $0x300] sm:$0xff] %vm4755, %v4401
      %4853 = vst.msk [vmem:[%s172 + $0x308] sm:$0xff] %vm4755, %v4402
      %4854 = vst.msk [vmem:[%s172 + $0x310] sm:$0xff] %vm4755, %v4403
      %4855 = vst.msk [vmem:[%s172 + $0x318] sm:$0xff] %vm4755, %v4404
      %4856 = vst.msk [vmem:[%s172 + $0x320] sm:$0xff] %vm4755, %v4405
      %4857 = vst.msk [vmem:[%s172 + $0x328] sm:$0xff] %vm4755, %v4406
      %4858 = vst.msk [vmem:[%s172 + $0x330] sm:$0xff] %vm4755, %v4407
      %4859 = vst.msk [vmem:[%s172 + $0x338] sm:$0xff] %vm4755, %v4408
      %4860 = vst.msk [vmem:[%s172 + $0x340] sm:$0xff] %vm4755, %v4409
      %4861 = vst.msk [vmem:[%s172 + $0x348] sm:$0xff] %vm4755, %v4410
      %4862 = vst.msk [vmem:[%s172 + $0x350] sm:$0xff] %vm4755, %v4411
      %4863 = vst.msk [vmem:[%s172 + $0x358] sm:$0xff] %vm4755, %v4412
      %4864 = vst.msk [vmem:[%s172 + $0x360] sm:$0xff] %vm4755, %v4413
      %4865 = vst.msk [vmem:[%s172 + $0x368] sm:$0xff] %vm4755, %v4414
      %4866 = vst.msk [vmem:[%s172 + $0x370] sm:$0xff] %vm4755, %v4415
      %4867 = vst.msk [vmem:[%s172 + $0x378] sm:$0xff] %vm4755, %v4416
      %4868 = vst.msk [vmem:[%s172 + $0x380] sm:$0xff] %vm4755, %v4417
      %4869 = vst.msk [vmem:[%s172 + $0x388] sm:$0xff] %vm4755, %v4418
      %4870 = vst.msk [vmem:[%s172 + $0x390] sm:$0xff] %vm4755, %v4419
      %4871 = vst.msk [vmem:[%s172 + $0x398] sm:$0xff] %vm4755, %v4420
      %4872 = vst.msk [vmem:[%s172 + $0x3a0] sm:$0xff] %vm4755, %v4421
      %4873 = vst.msk [vmem:[%s172 + $0x3a8] sm:$0xff] %vm4755, %v4422
      %4874 = vst.msk [vmem:[%s172 + $0x3b0] sm:$0xff] %vm4755, %v4423
      %4875 = vst.msk [vmem:[%s172 + $0x3b8] sm:$0xff] %vm4755, %v4424
      %4876 = vst.msk [vmem:[%s172 + $0x3c0] sm:$0xff] %vm4755, %v4425
      %4877 = vst.msk [vmem:[%s172 + $0x3c8] sm:$0xff] %vm4755, %v4426
      %4878 = vst.msk [vmem:[%s172 + $0x3d0] sm:$0xff] %vm4755, %v4427
      %4879 = vst.msk [vmem:[%s172 + $0x3d8] sm:$0xff] %vm4755, %v4428
      %4880 = vst.msk [vmem:[%s172 + $0x3e0] sm:$0xff] %vm4755, %v4429
      %4881 = vst.msk [vmem:[%s172 + $0x3e8] sm:$0xff] %vm4755, %v4430
      %4882 = vst.msk [vmem:[%s172 + $0x3f0] sm:$0xff] %vm4755, %v4431
      %4883 = vst.msk [vmem:[%s172 + $0x3f8] sm:$0xff] %vm4755, %v4432
      %4884 = vst.msk [vmem:[%s172 + $0x400] sm:$0xff] %vm4755, %v4433
      %4885 = vst.msk [vmem:[%s172 + $0x408] sm:$0xff] %vm4755, %v4434
      %4886 = vst.msk [vmem:[%s172 + $0x410] sm:$0xff] %vm4755, %v4435
      %4887 = vst.msk [vmem:[%s172 + $0x418] sm:$0xff] %vm4755, %v4436
      %4888 = vst.msk [vmem:[%s172 + $0x420] sm:$0xff] %vm4755, %v4437
      %4889 = vst.msk [vmem:[%s172 + $0x428] sm:$0xff] %vm4755, %v4438
      %4890 = vst.msk [vmem:[%s172 + $0x430] sm:$0xff] %vm4755, %v4439
      %4891 = vst.msk [vmem:[%s172 + $0x438] sm:$0xff] %vm4755, %v4440
      %4892 = vst.msk [vmem:[%s172 + $0x440] sm:$0xff] %vm4755, %v4441
      %4893 = vst.msk [vmem:[%s172 + $0x448] sm:$0xff] %vm4755, %v4442
      %4894 = vst.msk [vmem:[%s172 + $0x450] sm:$0xff] %vm4755, %v4443
      %4895 = vst.msk [vmem:[%s172 + $0x458] sm:$0xff] %vm4755, %v4444
      %4896 = vst.msk [vmem:[%s172 + $0x460] sm:$0xff] %vm4755, %v4445
      %4897 = vst.msk [vmem:[%s172 + $0x468] sm:$0xff] %vm4755, %v4446
      %4898 = vst.msk [vmem:[%s172 + $0x470] sm:$0xff] %vm4755, %v4447
      %4899 = vst.msk [vmem:[%s172 + $0x478] sm:$0xff] %vm4755, %v4448
      %4900 = vst.msk [vmem:[%s172 + $0x480] sm:$0xff] %vm4755, %v4449
      %4901 = vst.msk [vmem:[%s172 + $0x488] sm:$0xff] %vm4755, %v4450
      %4902 = vst.msk [vmem:[%s172 + $0x490] sm:$0xff] %vm4755, %v4451
      %4903 = vst.msk [vmem:[%s172 + $0x498] sm:$0xff] %vm4755, %v4452
      %4904 = vst.msk [vmem:[%s172 + $0x4a0] sm:$0xff] %vm4755, %v4453
      %4905 = vst.msk [vmem:[%s172 + $0x4a8] sm:$0xff] %vm4755, %v4454
      %4906 = vst.msk [vmem:[%s172 + $0x4b0] sm:$0xff] %vm4755, %v4455
      %4907 = vst.msk [vmem:[%s172 + $0x4b8] sm:$0xff] %vm4755, %v4456
      %4908 = vst.msk [vmem:[%s172 + $0x4c0] sm:$0xff] %vm4755, %v4457
      %4909 = vst.msk [vmem:[%s172 + $0x4c8] sm:$0xff] %vm4755, %v4458
      %4910 = vst.msk [vmem:[%s172 + $0x4d0] sm:$0xff] %vm4755, %v4459
      %4911 = vst.msk [vmem:[%s172 + $0x4d8] sm:$0xff] %vm4755, %v4460
      %4912 = vst.msk [vmem:[%s172 + $0x4e0] sm:$0xff] %vm4755, %v4461
      %4913 = vst.msk [vmem:[%s172 + $0x4e8] sm:$0xff] %vm4755, %v4462
      %4914 = vst.msk [vmem:[%s172 + $0x4f0] sm:$0xff] %vm4755, %v4463
      %4915 = vst.msk [vmem:[%s172 + $0x4f8] sm:$0xff] %vm4755, %v4464
      %4916 = vst.msk [vmem:[%s172 + $0x500] sm:$0xff] %vm4755, %v4465
      %4917 = vst.msk [vmem:[%s172 + $0x508] sm:$0xff] %vm4755, %v4466
      %4918 = vst.msk [vmem:[%s172 + $0x510] sm:$0xff] %vm4755, %v4467
      %4919 = vst.msk [vmem:[%s172 + $0x518] sm:$0xff] %vm4755, %v4468
      %4920 = vst.msk [vmem:[%s172 + $0x520] sm:$0xff] %vm4755, %v4469
      %4921 = vst.msk [vmem:[%s172 + $0x528] sm:$0xff] %vm4755, %v4470
      %4922 = vst.msk [vmem:[%s172 + $0x530] sm:$0xff] %vm4755, %v4471
      %4923 = vst.msk [vmem:[%s172 + $0x538] sm:$0xff] %vm4755, %v4472
      %4924 = vst.msk [vmem:[%s172 + $0x540] sm:$0xff] %vm4755, %v4473
      %4925 = vst.msk [vmem:[%s172 + $0x548] sm:$0xff] %vm4755, %v4474
      %4926 = vst.msk [vmem:[%s172 + $0x550] sm:$0xff] %vm4755, %v4475
      %4927 = vst.msk [vmem:[%s172 + $0x558] sm:$0xff] %vm4755, %v4476
      %4928 = vst.msk [vmem:[%s172 + $0x560] sm:$0xff] %vm4755, %v4477
      %4929 = vst.msk [vmem:[%s172 + $0x568] sm:$0xff] %vm4755, %v4478
      %4930 = vst.msk [vmem:[%s172 + $0x570] sm:$0xff] %vm4755, %v4479
      %4931 = vst.msk [vmem:[%s172 + $0x578] sm:$0xff] %vm4755, %v4480
      %4932 = vst.msk [vmem:[%s172 + $0x580] sm:$0xff] %vm4755, %v4481
      %4933 = vst.msk [vmem:[%s172 + $0x588] sm:$0xff] %vm4755, %v4482
      %4934 = vst.msk [vmem:[%s172 + $0x590] sm:$0xff] %vm4755, %v4483
      %4935 = vst.msk [vmem:[%s172 + $0x598] sm:$0xff] %vm4755, %v4484
      %4936 = vst.msk [vmem:[%s172 + $0x5a0] sm:$0xff] %vm4755, %v4485
      %4937 = vst.msk [vmem:[%s172 + $0x5a8] sm:$0xff] %vm4755, %v4486
      %4938 = vst.msk [vmem:[%s172 + $0x5b0] sm:$0xff] %vm4755, %v4487
      %4939 = vst.msk [vmem:[%s172 + $0x5b8] sm:$0xff] %vm4755, %v4488
      %4940 = vst.msk [vmem:[%s172 + $0x5c0] sm:$0xff] %vm4755, %v4489
      %4941 = vst.msk [vmem:[%s172 + $0x5c8] sm:$0xff] %vm4755, %v4490
      %4942 = vst.msk [vmem:[%s172 + $0x5d0] sm:$0xff] %vm4755, %v4491
      %4943 = vst.msk [vmem:[%s172 + $0x5d8] sm:$0xff] %vm4755, %v4492
      %4944 = vst.msk [vmem:[%s172 + $0x5e0] sm:$0xff] %vm4755, %v4493
      %4945 = vst.msk [vmem:[%s172 + $0x5e8] sm:$0xff] %vm4755, %v4494
      %4946 = vst.msk [vmem:[%s172 + $0x5f0] sm:$0xff] %vm4755, %v4495
      %4947 = vst.msk [vmem:[%s172 + $0x5f8] sm:$0xff] %vm4755, %v4496
      %4948 = vst.msk [vmem:[%s172 + $0x600] sm:$0xff] %vm4755, %v4497
      %4949 = vst.msk [vmem:[%s172 + $0x608] sm:$0xff] %vm4755, %v4498
      %4950 = vst.msk [vmem:[%s172 + $0x610] sm:$0xff] %vm4755, %v4499
      %4951 = vst.msk [vmem:[%s172 + $0x618] sm:$0xff] %vm4755, %v4500
      %4952 = vst.msk [vmem:[%s172 + $0x620] sm:$0xff] %vm4755, %v4501
      %4953 = vst.msk [vmem:[%s172 + $0x628] sm:$0xff] %vm4755, %v4502
      %4954 = vst.msk [vmem:[%s172 + $0x630] sm:$0xff] %vm4755, %v4503
      %4955 = vst.msk [vmem:[%s172 + $0x638] sm:$0xff] %vm4755, %v4504
      %4956 = vst.msk [vmem:[%s172 + $0x640] sm:$0xff] %vm4755, %v4505
      %4957 = vst.msk [vmem:[%s172 + $0x648] sm:$0xff] %vm4755, %v4506
      %4958 = vst.msk [vmem:[%s172 + $0x650] sm:$0xff] %vm4755, %v4507
      %4959 = vst.msk [vmem:[%s172 + $0x658] sm:$0xff] %vm4755, %v4508
      %4960 = vst.msk [vmem:[%s172 + $0x660] sm:$0xff] %vm4755, %v4509
      %4961 = vst.msk [vmem:[%s172 + $0x668] sm:$0xff] %vm4755, %v4510
      %4962 = vst.msk [vmem:[%s172 + $0x670] sm:$0xff] %vm4755, %v4511
      %4963 = vst.msk [vmem:[%s172 + $0x678] sm:$0xff] %vm4755, %v4512
      %4964 = vst.msk [vmem:[%s172 + $0x680] sm:$0xff] %vm4755, %v4513
      %4965 = vst.msk [vmem:[%s172 + $0x688] sm:$0xff] %vm4755, %v4514
      %4966 = vst.msk [vmem:[%s172 + $0x690] sm:$0xff] %vm4755, %v4515
      %4967 = vst.msk [vmem:[%s172 + $0x698] sm:$0xff] %vm4755, %v4516
      %4968 = vst.msk [vmem:[%s172 + $0x6a0] sm:$0xff] %vm4755, %v4517
      %4969 = vst.msk [vmem:[%s172 + $0x6a8] sm:$0xff] %vm4755, %v4518
      %4970 = vst.msk [vmem:[%s172 + $0x6b0] sm:$0xff] %vm4755, %v4519
      %4971 = vst.msk [vmem:[%s172 + $0x6b8] sm:$0xff] %vm4755, %v4520
      %4972 = vst.msk [vmem:[%s172 + $0x6c0] sm:$0xff] %vm4755, %v4521
      %4973 = vst.msk [vmem:[%s172 + $0x6c8] sm:$0xff] %vm4755, %v4522
      %4974 = vst.msk [vmem:[%s172 + $0x6d0] sm:$0xff] %vm4755, %v4523
      %4975 = vst.msk [vmem:[%s172 + $0x6d8] sm:$0xff] %vm4755, %v4524
      %4976 = vst.msk [vmem:[%s172 + $0x6e0] sm:$0xff] %vm4755, %v4525
      %4977 = vst.msk [vmem:[%s172 + $0x6e8] sm:$0xff] %vm4755, %v4526
      %4978 = vst.msk [vmem:[%s172 + $0x6f0] sm:$0xff] %vm4755, %v4527
      %4979 = vst.msk [vmem:[%s172 + $0x6f8] sm:$0xff] %vm4755, %v4528
      %4980 = vst.msk [vmem:[%s172 + $0x700] sm:$0xff] %vm4755, %v4529
      %4981 = vst.msk [vmem:[%s172 + $0x708] sm:$0xff] %vm4755, %v4530
      %4982 = vst.msk [vmem:[%s172 + $0x710] sm:$0xff] %vm4755, %v4531
      %4983 = vst.msk [vmem:[%s172 + $0x718] sm:$0xff] %vm4755, %v4532
      %4984 = vst.msk [vmem:[%s172 + $0x720] sm:$0xff] %vm4755, %v4533
      %4985 = vst.msk [vmem:[%s172 + $0x728] sm:$0xff] %vm4755, %v4534
      %4986 = vst.msk [vmem:[%s172 + $0x730] sm:$0xff] %vm4755, %v4535
      %4987 = vst.msk [vmem:[%s172 + $0x738] sm:$0xff] %vm4755, %v4536
      %4988 = vst.msk [vmem:[%s172 + $0x740] sm:$0xff] %vm4755, %v4537
      %4989 = vst.msk [vmem:[%s172 + $0x748] sm:$0xff] %vm4755, %v4538
      %4990 = vst.msk [vmem:[%s172 + $0x750] sm:$0xff] %vm4755, %v4539
      %4991 = vst.msk [vmem:[%s172 + $0x758] sm:$0xff] %vm4755, %v4540
      %4992 = vst.msk [vmem:[%s172 + $0x760] sm:$0xff] %vm4755, %v4541
      %4993 = vst.msk [vmem:[%s172 + $0x768] sm:$0xff] %vm4755, %v4542
      %4994 = vst.msk [vmem:[%s172 + $0x770] sm:$0xff] %vm4755, %v4543
      %4995 = vst.msk [vmem:[%s172 + $0x778] sm:$0xff] %vm4755, %v4544
      %4996 = vst.msk [vmem:[%s172 + $0x780] sm:$0xff] %vm4755, %v4545
      %4997 = vst.msk [vmem:[%s172 + $0x788] sm:$0xff] %vm4755, %v4546
      %4998 = vst.msk [vmem:[%s172 + $0x790] sm:$0xff] %vm4755, %v4547
      %4999 = vst.msk [vmem:[%s172 + $0x798] sm:$0xff] %vm4755, %v4548
      %5000 = vst.msk [vmem:[%s172 + $0x7a0] sm:$0xff] %vm4755, %v4549
      %5001 = vst.msk [vmem:[%s172 + $0x7a8] sm:$0xff] %vm4755, %v4550
      %5002 = vst.msk [vmem:[%s172 + $0x7b0] sm:$0xff] %vm4755, %v4551
      %5003 = vst.msk [vmem:[%s172 + $0x7b8] sm:$0xff] %vm4755, %v4552
      %5004 = vst.msk [vmem:[%s172 + $0x7c0] sm:$0xff] %vm4755, %v4553
      %5005 = vst.msk [vmem:[%s172 + $0x7c8] sm:$0xff] %vm4755, %v4554
      %5006 = vst.msk [vmem:[%s172 + $0x7d0] sm:$0xff] %vm4755, %v4555
      %5007 = vst.msk [vmem:[%s172 + $0x7d8] sm:$0xff] %vm4755, %v4556
      %5008 = vst.msk [vmem:[%s172 + $0x7e0] sm:$0xff] %vm4755, %v4557
      %5009 = vst.msk [vmem:[%s172 + $0x7e8] sm:$0xff] %vm4755, %v4558
      %5010 = vst.msk [vmem:[%s172 + $0x7f0] sm:$0xff] %vm4755, %v4559
      %5011 = vst.msk [vmem:[%s172 + $0x7f8] sm:$0xff] %vm4755, %v4560
      %5012 = vst.msk [vmem:[%s172 + $0x800] sm:$0xff] %vm4755, %v4561
      %5013 = vst.msk [vmem:[%s172 + $0x808] sm:$0xff] %vm4755, %v4562
      %5014 = vst.msk [vmem:[%s172 + $0x810] sm:$0xff] %vm4755, %v4563
      %5015 = vst.msk [vmem:[%s172 + $0x818] sm:$0xff] %vm4755, %v4564
      %5016 = vst.msk [vmem:[%s172 + $0x820] sm:$0xff] %vm4755, %v4565
      %5017 = vst.msk [vmem:[%s172 + $0x828] sm:$0xff] %vm4755, %v4566
      %5018 = vst.msk [vmem:[%s172 + $0x830] sm:$0xff] %vm4755, %v4567
      %5019 = vst.msk [vmem:[%s172 + $0x838] sm:$0xff] %vm4755, %v4568
      %5020 = vst.msk [vmem:[%s172 + $0x840] sm:$0xff] %vm4755, %v4569
      %5021 = vst.msk [vmem:[%s172 + $0x848] sm:$0xff] %vm4755, %v4570
      %5022 = vst.msk [vmem:[%s172 + $0x850] sm:$0xff] %vm4755, %v4571
      %5023 = vst.msk [vmem:[%s172 + $0x858] sm:$0xff] %vm4755, %v4572
      %5024 = vst.msk [vmem:[%s172 + $0x860] sm:$0xff] %vm4755, %v4573
      %5025 = vst.msk [vmem:[%s172 + $0x868] sm:$0xff] %vm4755, %v4574
      %5026 = vst.msk [vmem:[%s172 + $0x870] sm:$0xff] %vm4755, %v4575
      %5027 = vst.msk [vmem:[%s172 + $0x878] sm:$0xff] %vm4755, %v4576
      %5028 = vst.msk [vmem:[%s172 + $0x880] sm:$0xff] %vm4755, %v4577
      %5029 = vst.msk [vmem:[%s172 + $0x888] sm:$0xff] %vm4755, %v4578
      %5030 = vst.msk [vmem:[%s172 + $0x890] sm:$0xff] %vm4755, %v4579
      %5031 = vst.msk [vmem:[%s172 + $0x898] sm:$0xff] %vm4755, %v4580
      %5032 = vst.msk [vmem:[%s172 + $0x8a0] sm:$0xff] %vm4755, %v4581
      %5033 = vst.msk [vmem:[%s172 + $0x8a8] sm:$0xff] %vm4755, %v4582
      %5034 = vst.msk [vmem:[%s172 + $0x8b0] sm:$0xff] %vm4755, %v4583
      %5035 = vst.msk [vmem:[%s172 + $0x8b8] sm:$0xff] %vm4755, %v4584
      %5036 = vst.msk [vmem:[%s172 + $0x8c0] sm:$0xff] %vm4755, %v4585
      %5037 = vst.msk [vmem:[%s172 + $0x8c8] sm:$0xff] %vm4755, %v4586
      %5038 = vst.msk [vmem:[%s172 + $0x8d0] sm:$0xff] %vm4755, %v4587
      %5039 = vst.msk [vmem:[%s172 + $0x8d8] sm:$0xff] %vm4755, %v4588
      %5040 = vst.msk [vmem:[%s172 + $0x8e0] sm:$0xff] %vm4755, %v4589
      %5041 = vst.msk [vmem:[%s172 + $0x8e8] sm:$0xff] %vm4755, %v4590
      %5042 = vst.msk [vmem:[%s172 + $0x8f0] sm:$0xff] %vm4755, %v4591
      %5043 = vst.msk [vmem:[%s172 + $0x8f8] sm:$0xff] %vm4755, %v4592
      %5044 = vst.msk [vmem:[%s172 + $0x900] sm:$0xff] %vm4755, %v4593
      %5045 = vst.msk [vmem:[%s172 + $0x908] sm:$0xff] %vm4755, %v4594
      %5046 = vst.msk [vmem:[%s172 + $0x910] sm:$0xff] %vm4755, %v4595
      %5047 = vst.msk [vmem:[%s172 + $0x918] sm:$0xff] %vm4755, %v4596
      %5048 = vst.msk [vmem:[%s172 + $0x920] sm:$0xff] %vm4755, %v4597
      %5049 = vst.msk [vmem:[%s172 + $0x928] sm:$0xff] %vm4755, %v4598
      %5050 = vst.msk [vmem:[%s172 + $0x930] sm:$0xff] %vm4755, %v4599
      %5051 = vst.msk [vmem:[%s172 + $0x938] sm:$0xff] %vm4755, %v4600
      %5052 = vst.msk [vmem:[%s172 + $0x940] sm:$0xff] %vm4755, %v4601
      %5053 = vst.msk [vmem:[%s172 + $0x948] sm:$0xff] %vm4755, %v4602
      %5054 = vst.msk [vmem:[%s172 + $0x950] sm:$0xff] %vm4755, %v4603
      %5055 = vst.msk [vmem:[%s172 + $0x958] sm:$0xff] %vm4755, %v4604
      %5056 = vst.msk [vmem:[%s172 + $0x960] sm:$0xff] %vm4755, %v4605
      %5057 = vst.msk [vmem:[%s172 + $0x968] sm:$0xff] %vm4755, %v4606
      %5058 = vst.msk [vmem:[%s172 + $0x970] sm:$0xff] %vm4755, %v4607
      %5059 = vst.msk [vmem:[%s172 + $0x978] sm:$0xff] %vm4755, %v4608
      %5060 = vst.msk [vmem:[%s172 + $0x980] sm:$0xff] %vm4755, %v4609
      %5061 = vst.msk [vmem:[%s172 + $0x988] sm:$0xff] %vm4755, %v4610
      %5062 = vst.msk [vmem:[%s172 + $0x990] sm:$0xff] %vm4755, %v4611
      %5063 = vst.msk [vmem:[%s172 + $0x998] sm:$0xff] %vm4755, %v4612
      %5064 = vst.msk [vmem:[%s172 + $0x9a0] sm:$0xff] %vm4755, %v4613
      %5065 = vst.msk [vmem:[%s172 + $0x9a8] sm:$0xff] %vm4755, %v4614
      %5066 = vst.msk [vmem:[%s172 + $0x9b0] sm:$0xff] %vm4755, %v4615
      %5067 = vst.msk [vmem:[%s172 + $0x9b8] sm:$0xff] %vm4755, %v4616
      %5068 = vst.msk [vmem:[%s172 + $0x9c0] sm:$0xff] %vm4755, %v4617
      %5069 = vst.msk [vmem:[%s172 + $0x9c8] sm:$0xff] %vm4755, %v4618
      %5070 = vst.msk [vmem:[%s172 + $0x9d0] sm:$0xff] %vm4755, %v4619
      %5071 = vst.msk [vmem:[%s172 + $0x9d8] sm:$0xff] %vm4755, %v4620
      %5072 = vst.msk [vmem:[%s172 + $0x9e0] sm:$0xff] %vm4755, %v4621
      %5073 = vst.msk [vmem:[%s172 + $0x9e8] sm:$0xff] %vm4755, %v4622
      %5074 = vst.msk [vmem:[%s172 + $0x9f0] sm:$0xff] %vm4755, %v4623
      %5075 = vst.msk [vmem:[%s172 + $0x9f8] sm:$0xff] %vm4755, %v4624
      %5076 = vst.msk [vmem:[%s172 + $0xa00] sm:$0xff] %vm4755, %v4625
      %5077 = vst.msk [vmem:[%s172 + $0xa08] sm:$0xff] %vm4755, %v4626
      %5078 = vst.msk [vmem:[%s172 + $0xa10] sm:$0xff] %vm4755, %v4627
      %5079 = vst.msk [vmem:[%s172 + $0xa18] sm:$0xff] %vm4755, %v4628
      %5080 = vst.msk [vmem:[%s172 + $0xa20] sm:$0xff] %vm4755, %v4629
      %5081 = vst.msk [vmem:[%s172 + $0xa28] sm:$0xff] %vm4755, %v4630
      %5082 = vst.msk [vmem:[%s172 + $0xa30] sm:$0xff] %vm4755, %v4631
      %5083 = vst.msk [vmem:[%s172 + $0xa38] sm:$0xff] %vm4755, %v4632
      %5084 = vst.msk [vmem:[%s172 + $0xa40] sm:$0xff] %vm4755, %v4633
      %5085 = vst.msk [vmem:[%s172 + $0xa48] sm:$0xff] %vm4755, %v4634
      %5086 = vst.msk [vmem:[%s172 + $0xa50] sm:$0xff] %vm4755, %v4635
      %5087 = vst.msk [vmem:[%s172 + $0xa58] sm:$0xff] %vm4755, %v4636
      %5088 = vst.msk [vmem:[%s172 + $0xa60] sm:$0xff] %vm4755, %v4637
      %5089 = vst.msk [vmem:[%s172 + $0xa68] sm:$0xff] %vm4755, %v4638
      %5090 = vst.msk [vmem:[%s172 + $0xa70] sm:$0xff] %vm4755, %v4639
      %5091 = vst.msk [vmem:[%s172 + $0xa78] sm:$0xff] %vm4755, %v4640
      %5092 = vst.msk [vmem:[%s172 + $0xa80] sm:$0xff] %vm4755, %v4641
      %5093 = vst.msk [vmem:[%s172 + $0xa88] sm:$0xff] %vm4755, %v4642
      %5094 = vst.msk [vmem:[%s172 + $0xa90] sm:$0xff] %vm4755, %v4643
      %5095 = vst.msk [vmem:[%s172 + $0xa98] sm:$0xff] %vm4755, %v4644
      %5096 = vst.msk [vmem:[%s172 + $0xaa0] sm:$0xff] %vm4755, %v4645
      %5097 = vst.msk [vmem:[%s172 + $0xaa8] sm:$0xff] %vm4755, %v4646
      %5098 = vst.msk [vmem:[%s172 + $0xab0] sm:$0xff] %vm4755, %v4647
      %5099 = vst.msk [vmem:[%s172 + $0xab8] sm:$0xff] %vm4755, %v4648
      %5100 = vst.msk [vmem:[%s172 + $0xac0] sm:$0xff] %vm4755, %v4649
      %5101 = vst.msk [vmem:[%s172 + $0xac8] sm:$0xff] %vm4755, %v4650
      %5102 = vst.msk [vmem:[%s172 + $0xad0] sm:$0xff] %vm4755, %v4651
      %5103 = vst.msk [vmem:[%s172 + $0xad8] sm:$0xff] %vm4755, %v4652
      %5104 = vst.msk [vmem:[%s172 + $0xae0] sm:$0xff] %vm4755, %v4653
      %5105 = vst.msk [vmem:[%s172 + $0xae8] sm:$0xff] %vm4755, %v4654
      %5106 = vst.msk [vmem:[%s172 + $0xaf0] sm:$0xff] %vm4755, %v4655
      %5107 = vst.msk [vmem:[%s172 + $0xaf8] sm:$0xff] %vm4755, %v4656
      %5108 = vst.msk [vmem:[%s172 + $0xb00] sm:$0xff] %vm4755, %v4657
      %5109 = vst.msk [vmem:[%s172 + $0xb08] sm:$0xff] %vm4755, %v4658
      %5110 = vst.msk [vmem:[%s172 + $0xb10] sm:$0xff] %vm4755, %v4659
      %5111 = vst.msk [vmem:[%s172 + $0xb18] sm:$0xff] %vm4755, %v4660
      %5112 = vst.msk [vmem:[%s172 + $0xb20] sm:$0xff] %vm4755, %v4661
      %5113 = vst.msk [vmem:[%s172 + $0xb28] sm:$0xff] %vm4755, %v4662
      %5114 = vst.msk [vmem:[%s172 + $0xb30] sm:$0xff] %vm4755, %v4663
      %5115 = vst.msk [vmem:[%s172 + $0xb38] sm:$0xff] %vm4755, %v4664
      %5116 = vst.msk [vmem:[%s172 + $0xb40] sm:$0xff] %vm4755, %v4665
      %5117 = vst.msk [vmem:[%s172 + $0xb48] sm:$0xff] %vm4755, %v4666
      %5118 = vst.msk [vmem:[%s172 + $0xb50] sm:$0xff] %vm4755, %v4667
      %5119 = vst.msk [vmem:[%s172 + $0xb58] sm:$0xff] %vm4755, %v4668
      %5120 = vst.msk [vmem:[%s172 + $0xb60] sm:$0xff] %vm4755, %v4669
      %5121 = vst.msk [vmem:[%s172 + $0xb68] sm:$0xff] %vm4755, %v4670
      %5122 = vst.msk [vmem:[%s172 + $0xb70] sm:$0xff] %vm4755, %v4671
      %5123 = vst.msk [vmem:[%s172 + $0xb78] sm:$0xff] %vm4755, %v4672
      %5124 = vst.msk [vmem:[%s172 + $0xb80] sm:$0xff] %vm4755, %v4673
      %5125 = vst.msk [vmem:[%s172 + $0xb88] sm:$0xff] %vm4755, %v4674
      %5126 = vst.msk [vmem:[%s172 + $0xb90] sm:$0xff] %vm4755, %v4675
      %5127 = vst.msk [vmem:[%s172 + $0xb98] sm:$0xff] %vm4755, %v4676
      %5128 = vst.msk [vmem:[%s172 + $0xba0] sm:$0xff] %vm4755, %v4677
      %5129 = vst.msk [vmem:[%s172 + $0xba8] sm:$0xff] %vm4755, %v4678
      %5130 = vst.msk [vmem:[%s172 + $0xbb0] sm:$0xff] %vm4755, %v4679
      %5131 = vst.msk [vmem:[%s172 + $0xbb8] sm:$0xff] %vm4755, %v4680
      %5132 = vst.msk [vmem:[%s172 + $0xbc0] sm:$0xff] %vm4755, %v4681
      %5133 = vst.msk [vmem:[%s172 + $0xbc8] sm:$0xff] %vm4755, %v4682
      %5134 = vst.msk [vmem:[%s172 + $0xbd0] sm:$0xff] %vm4755, %v4683
      %5135 = vst.msk [vmem:[%s172 + $0xbd8] sm:$0xff] %vm4755, %v4684
      %5136 = vst.msk [vmem:[%s172 + $0xbe0] sm:$0xff] %vm4755, %v4685
      %5137 = vst.msk [vmem:[%s172 + $0xbe8] sm:$0xff] %vm4755, %v4686
      %5138 = vst.msk [vmem:[%s172 + $0xbf0] sm:$0xff] %vm4755, %v4687
      %5139 = vst.msk [vmem:[%s172 + $0xbf8] sm:$0xff] %vm4755, %v4688
      %5140 = vst.msk [vmem:[%s172 + $0xc00] sm:$0xff] %vm4755, %v4689
      %5141 = vst.msk [vmem:[%s172 + $0xc08] sm:$0xff] %vm4755, %v4690
      %5142 = vst.msk [vmem:[%s172 + $0xc10] sm:$0xff] %vm4755, %v4691
      %5143 = vst.msk [vmem:[%s172 + $0xc18] sm:$0xff] %vm4755, %v4692
      %5144 = vst.msk [vmem:[%s172 + $0xc20] sm:$0xff] %vm4755, %v4693
      %5145 = vst.msk [vmem:[%s172 + $0xc28] sm:$0xff] %vm4755, %v4694
      %5146 = vst.msk [vmem:[%s172 + $0xc30] sm:$0xff] %vm4755, %v4695
      %5147 = vst.msk [vmem:[%s172 + $0xc38] sm:$0xff] %vm4755, %v4696
      %5148 = vst.msk [vmem:[%s172 + $0xc40] sm:$0xff] %vm4755, %v4697
      %5149 = vst.msk [vmem:[%s172 + $0xc48] sm:$0xff] %vm4755, %v4698
      %5150 = vst.msk [vmem:[%s172 + $0xc50] sm:$0xff] %vm4755, %v4699
      %5151 = vst.msk [vmem:[%s172 + $0xc58] sm:$0xff] %vm4755, %v4700
      %5152 = vst.msk [vmem:[%s172 + $0xc60] sm:$0xff] %vm4755, %v4701
      %5153 = vst.msk [vmem:[%s172 + $0xc68] sm:$0xff] %vm4755, %v4702
      %5154 = vst.msk [vmem:[%s172 + $0xc70] sm:$0xff] %vm4755, %v4703
      %5155 = vst.msk [vmem:[%s172 + $0xc78] sm:$0xff] %vm4755, %v4704
      %5156 = vst.msk [vmem:[%s172 + $0xc80] sm:$0xff] %vm4755, %v4705
      %5157 = vst.msk [vmem:[%s172 + $0xc88] sm:$0xff] %vm4755, %v4706
      %5158 = vst.msk [vmem:[%s172 + $0xc90] sm:$0xff] %vm4755, %v4707
      %5159 = vst.msk [vmem:[%s172 + $0xc98] sm:$0xff] %vm4755, %v4708
      %5160 = vst.msk [vmem:[%s172 + $0xca0] sm:$0xff] %vm4755, %v4709
      %5161 = vst.msk [vmem:[%s172 + $0xca8] sm:$0xff] %vm4755, %v4710
      %5162 = vst.msk [vmem:[%s172 + $0xcb0] sm:$0xff] %vm4755, %v4711
      %5163 = vst.msk [vmem:[%s172 + $0xcb8] sm:$0xff] %vm4755, %v4712
      %5164 = vst.msk [vmem:[%s172 + $0xcc0] sm:$0xff] %vm4755, %v4713
      %5165 = vst.msk [vmem:[%s172 + $0xcc8] sm:$0xff] %vm4755, %v4714
      %5166 = vst.msk [vmem:[%s172 + $0xcd0] sm:$0xff] %vm4755, %v4715
      %5167 = vst.msk [vmem:[%s172 + $0xcd8] sm:$0xff] %vm4755, %v4716
      %5168 = vst.msk [vmem:[%s172 + $0xce0] sm:$0xff] %vm4755, %v4717
      %5169 = vst.msk [vmem:[%s172 + $0xce8] sm:$0xff] %vm4755, %v4718
      %5170 = vst.msk [vmem:[%s172 + $0xcf0] sm:$0xff] %vm4755, %v4719
      %5171 = vst.msk [vmem:[%s172 + $0xcf8] sm:$0xff] %vm4755, %v4720
      %5172 = vst.msk [vmem:[%s172 + $0xd00] sm:$0xff] %vm4755, %v4721
      %5173 = vst.msk [vmem:[%s172 + $0xd08] sm:$0xff] %vm4755, %v4722
      %5174 = vst.msk [vmem:[%s172 + $0xd10] sm:$0xff] %vm4755, %v4723
      %5175 = vst.msk [vmem:[%s172 + $0xd18] sm:$0xff] %vm4755, %v4724
      %5176 = vst.msk [vmem:[%s172 + $0xd20] sm:$0xff] %vm4755, %v4725
      %5177 = vst.msk [vmem:[%s172 + $0xd28] sm:$0xff] %vm4755, %v4726
      %5178 = vst.msk [vmem:[%s172 + $0xd30] sm:$0xff] %vm4755, %v4727
      %5179 = vst.msk [vmem:[%s172 + $0xd38] sm:$0xff] %vm4755, %v4728
      %5180 = vst.msk [vmem:[%s172 + $0xd40] sm:$0xff] %vm4755, %v4729
      %5181 = vst.msk [vmem:[%s172 + $0xd48] sm:$0xff] %vm4755, %v4730
      %5182 = vst.msk [vmem:[%s172 + $0xd50] sm:$0xff] %vm4755, %v4731
      %5183 = vst.msk [vmem:[%s172 + $0xd58] sm:$0xff] %vm4755, %v4732
      %5184 = vst.msk [vmem:[%s172 + $0xd60] sm:$0xff] %vm4755, %v4733
      %5185 = vst.msk [vmem:[%s172 + $0xd68] sm:$0xff] %vm4755, %v4734
      %5186 = vst.msk [vmem:[%s172 + $0xd70] sm:$0xff] %vm4755, %v4735
      %5187 = vst.msk [vmem:[%s172 + $0xd78] sm:$0xff] %vm4755, %v4736
      %5188 = vst.msk [vmem:[%s172 + $0xd80] sm:$0xff] %vm4755, %v4737
      %5189 = vst.msk [vmem:[%s172 + $0xd88] sm:$0xff] %vm4755, %v4738
      %5190 = vst.msk [vmem:[%s172 + $0xd90] sm:$0xff] %vm4755, %v4739
      %5191 = vst.msk [vmem:[%s172 + $0xd98] sm:$0xff] %vm4755, %v4740
      %5192 = vst.msk [vmem:[%s172 + $0xda0] sm:$0xff] %vm4755, %v4741
      %5193 = vst.msk [vmem:[%s172 + $0xda8] sm:$0xff] %vm4755, %v4742
      %5194 = vst.msk [vmem:[%s172 + $0xdb0] sm:$0xff] %vm4755, %v4743
      %5195 = vst.msk [vmem:[%s172 + $0xdb8] sm:$0xff] %vm4755, %v4744
      %5196 = vst.msk [vmem:[%s172 + $0xdc0] sm:$0xff] %vm4755, %v4745
      %5197 = vst.msk [vmem:[%s172 + $0xdc8] sm:$0xff] %vm4755, %v4746
      %5198 = vst.msk [vmem:[%s172 + $0xdd0] sm:$0xff] %vm4755, %v4747
      %5199 = vst.msk [vmem:[%s172 + $0xdd8] sm:$0xff] %vm4755, %v4748
      %5200 = vst.msk [vmem:[%s172 + $0xde0] sm:$0xff] %vm4755, %v4749
      %5201 = vst.msk [vmem:[%s172 + $0xde8] sm:$0xff] %vm4755, %v4750
      %5202 = vst.msk [vmem:[%s172 + $0xdf0] sm:$0xff] %vm4755, %v4751
      %5203 = vst.msk [vmem:[%s172 + $0xdf8] sm:$0xff] %vm4755, %v4752
      %5204 = vst.msk [vmem:[%s172 + $0xe00] sm:$0xff] %vm4755, %v4753
      %5205 = vst.msk [vmem:[%s172 + $0xe08] sm:$0xff] %vm4755, %v4754
      %s5206 = smul.u32 450, %s14
      %p5207 = scmp.lt.s32.totalorder %s5206, 899
      %s5208 = scalar_select %p5207, %s5206, 899
      %s5209 = smul.addr %s5208, 8
      %s5210 = scalar_lea.vmem %s3, %s5209
      // Predicated region
      $region33: #{simple_binary_cnn_forward.5} parent=31 // pred_check
        %p5211 = pneg %p100
      $region34: #{simple_binary_cnn_forward.5} parent=31 // pred_check_branch
        %5213 = sbr.rel (%p5211) target = $region36
      $region35: #{simple_binary_cnn_forward.5} parent=31 // pred_region
        %s5214 = smul.u32 450, %s14
      $region36: #{simple_binary_cnn_forward.5} parent=31 // pred_fallthru
        _
    $region32: #{simple_binary_cnn_forward.5} parent=5 // pred_fallthru
      _
    %p5215 = scmp.le.s32.totalorder 2, %s9
    // Predicated region
    $region37: #{simple_binary_cnn_forward.5} parent=5 // pred_check
      %p5216 = pneg %p5215
    $region38: #{simple_binary_cnn_forward.5} parent=5 // pred_check_branch
      %5218 = sbr.rel (%p5216) target = $region40
    $region39: #{simple_binary_cnn_forward.5} parent=5 // pred_region
      %s5219 = ssub.s32 %s9, 2
      // Predicated region
      $region41: #{simple_binary_cnn_forward.5} parent=39 // pred_check
        %p5220 = pneg %p106
      $region42: #{simple_binary_cnn_forward.5} parent=39 // pred_check_branch
        %5222 = sbr.rel (%p5220) target = $region44
      $region43: #{simple_binary_cnn_forward.5} parent=39 // pred_region
        %s5223 = smul.u32 450, %s15
        %p5224 = scmp.lt.s32.totalorder %s5223, 899
        %s5225 = scalar_select %p5224, %s5223, 899
        %s5226 = smul.addr %s5225, 8
        %s5227 = scalar_lea.vmem %s3, %s5226
      $region44: #{simple_binary_cnn_forward.5} parent=39 // pred_fallthru
        _
    $region40: #{simple_binary_cnn_forward.5} parent=5 // pred_fallthru
      _
  $region6: #{simple_binary_cnn_forward.5} parent=0 // loop_footer
    %s13 = sadd.s32 1, %s9
  $region7: #{simple_binary_cnn_forward.5} parent=0 // loop_footer_branch
    %8 = sbr.rel target = $region3
  $region8: #{simple_binary_cnn_forward.5} parent=0 // loop_exit
    _

// kernel: simple_binary_cnn_forward.8
$region0: #{simple_binary_cnn_forward.8}
  #allocation0 [shape = 'u32[]', space=smem, size = 0x4, offset = 0x4, fixed_abs, tag = 'smem constant byte address 0x4 - core index']
  #allocation1 [shape = 'u32[144,128]{1,0:T(1,128)}', space=vmem, size = 0x12000, scoped, tag = 'internal scratch']
  %s0 = inlined_call_operand.vmem [shape: f32[28,2,14,128], index: 0, kind: input, shape index: {}]
  %s1 = inlined_call_operand.vmem [shape: f32[28,14,64], index: 1, kind: output, shape index: {}]
  %s2 = sld [smem:[#allocation0]]
  $region37: #{simple_binary_cnn_forward.8} parent=0
    _
  %s4 = ssub.s32 1, %s2
  %s5 = scalar_select 0, %s4, %s2
  loop: start=0, step=1, limit=4
  $region2: #{simple_binary_cnn_forward.8} parent=0 // loop_pre_header
    _
  $region3: #{simple_binary_cnn_forward.8} parent=0 // loop_header
    %s7 = sphi 0, %s11
    %p8 = scmp.ge.s32.totalorder %s7, 4
    %s17 = sphi 0, %s19
    %s20 = sphi 0, %s17
    %s21 = sphi 0, %s20
    %s37 = sphi 0, %s21
    %s43 = sphi 0, %s45
    %s46 = sphi 0, %s43
    %s47 = sphi 0, %s46
    %s63 = sphi 0, %s47
  $region4: #{simple_binary_cnn_forward.8} parent=0 // loop_header_branch
    %10 = sbr.rel (%p8) target = $region8
  $region5: #{simple_binary_cnn_forward.8} parent=0 // loop_body
    %s12 = ssub.s32 %s7, 1
    %s13 = ssub.s32 %s7, 2
    %s14 = sadd.s32 %s7, 1
    %s15 = ssub.s32 %s7, %s14
    %p16 = scmp.eq.s32.totalorder %s15, 0
    %s18 = sadd.s32 %s17, 1
    %s19 = scalar_select %p16, %s17, %s18
    %p22 = pneg %p16
    %p23 = scmp.eq.s32.totalorder %s7, 1
    %p24 = por %p22, %p23
    %p25 = scmp.ne.s32.totalorder %s17, %s20
    %p26 = scmp.eq.s32.totalorder %s7, 0
    %p27 = por %p25, %p26
    %p28 = scmp.ne.s32.totalorder %s17, %s20
    %p29 = scmp.eq.s32.totalorder %s12, 1
    %p30 = por %p28, %p29
    %p31 = scmp.ne.s32.totalorder %s20, %s21
    %p32 = scmp.eq.s32.totalorder %s12, 0
    %p33 = por %p31, %p32
    %p34 = scmp.ne.s32.totalorder %s20, %s21
    %p35 = scmp.eq.s32.totalorder %s13, 1
    %p36 = por %p34, %p35
    %p38 = scmp.ne.s32.totalorder %s21, %s37
    %p39 = scmp.eq.s32.totalorder %s13, 0
    %p40 = por %p38, %p39
    %s41 = ssub.s32 %s7, %s14
    %p42 = scmp.eq.s32.totalorder %s41, 0
    %s44 = sadd.s32 %s43, 1
    %s45 = scalar_select %p42, %s43, %s44
    %p48 = pneg %p42
    %p49 = scmp.eq.s32.totalorder %s7, 1
    %p50 = por %p48, %p49
    %p51 = scmp.ne.s32.totalorder %s43, %s46
    %p52 = scmp.eq.s32.totalorder %s7, 0
    %p53 = por %p51, %p52
    %p54 = scmp.ne.s32.totalorder %s43, %s46
    %p55 = scmp.eq.s32.totalorder %s12, 1
    %p56 = por %p54, %p55
    %p57 = scmp.ne.s32.totalorder %s46, %s47
    %p58 = scmp.eq.s32.totalorder %s12, 0
    %p59 = por %p57, %p58
    %p60 = scmp.ne.s32.totalorder %s46, %s47
    %p61 = scmp.eq.s32.totalorder %s13, 1
    %p62 = por %p60, %p61
    %p64 = scmp.ne.s32.totalorder %s47, %s63
    %p65 = scmp.eq.s32.totalorder %s13, 0
    %p66 = por %p64, %p65
    %p67 = scmp.le.s32.totalorder 1, %s7
    %p68 = scmp.lt.s32.totalorder %s7, 3
    %p69 = pnand %p67, %p68
    %p70 = pneg %p69
    // Predicated region
    $region9: #{simple_binary_cnn_forward.8} parent=5 // pred_check
      _
    $region10: #{simple_binary_cnn_forward.8} parent=5 // pred_check_branch
      %72 = sbr.rel (%p69) target = $region12
    $region11: #{simple_binary_cnn_forward.8} parent=5 // pred_region
      %s73 = ssub.s32 %s7, 1
    $region12: #{simple_binary_cnn_forward.8} parent=5 // pred_fallthru
      _
    %p74 = scmp.lt.s32.totalorder %s7, 2
    // Predicated region
    $region13: #{simple_binary_cnn_forward.8} parent=5 // pred_check
      %p75 = pneg %p74
    $region14: #{simple_binary_cnn_forward.8} parent=5 // pred_check_branch
      %77 = sbr.rel (%p75) target = $region16
    $region15: #{simple_binary_cnn_forward.8} parent=5 // pred_region
      // Predicated region
      $region17: #{simple_binary_cnn_forward.8} parent=15 // pred_check
        %p78 = pneg %p27
      $region18: #{simple_binary_cnn_forward.8} parent=15 // pred_check_branch
        %80 = sbr.rel (%p78) target = $region20
      $region19: #{simple_binary_cnn_forward.8} parent=15 // pred_region
        %s81 = smul.u32 14, %s7
        %p82 = scmp.lt.s32.totalorder %s81, 27
        %s83 = scalar_select %p82, %s81, 27
        %s84 = smul.addr %s83, 4
        %s85 = smul.addr %s84, 8
        %s86 = scalar_lea.vmem %s0, %s85
        %s87 = smul.u32 14, %s7
      $region20: #{simple_binary_cnn_forward.8} parent=15 // pred_fallthru
        _
    $region16: #{simple_binary_cnn_forward.8} parent=5 // pred_fallthru
      _
    %p88 = scmp.le.s32.totalorder 1, %s7
    %p89 = scmp.lt.s32.totalorder %s7, 3
    %p90 = pnand %p88, %p89
    %p91 = pneg %p90
    // Predicated region
    $region21: #{simple_binary_cnn_forward.8} parent=5 // pred_check
      _
    $region22: #{simple_binary_cnn_forward.8} parent=5 // pred_check_branch
      %93 = sbr.rel (%p90) target = $region24
    $region23: #{simple_binary_cnn_forward.8} parent=5 // pred_region
      %s94 = ssub.s32 %s7, 1
      %s95 = smul.u32 14, %s12
      %p96 = scmp.lt.s32.totalorder %s95, 27
      %s97 = scalar_select %p96, %s95, 27
      %s98 = smul.addr %s97, 4
      %s99 = smul.addr %s98, 8
      %s100 = scalar_lea.vmem %s0, %s99
      %p101 = pneg %p33
      %p102 = pneg %p30
      %p103 = pneg %p59
      %p104 = pneg %p56
      %s105 = smul.u32 14, %s12
      %p106 = scmp.lt.s32.totalorder %s105, 27
      %s107 = scalar_select %p106, %s105, 27
      %s108 = smul.addr %s107, 2
      %s109 = smul.addr %s108, 8
      %s110 = scalar_lea.vmem %s1, %s109
      %s111 = smul.u32 14, %s12
      %p112 = scmp.lt.s32.totalorder %s111, 27
      %s113 = scalar_select %p112, %s111, 27
      %s114 = smul.addr %s113, 4
      %s115 = smul.addr %s114, 8
      %s116 = scalar_lea.vmem %s0, %s115
      %s117 = smul.u32 14, %s12
      %s118 = smul.u32 14, %s12
      %p119 = scmp.lt.s32.totalorder %s118, 27
      %s120 = scalar_select %p119, %s118, 27
      %s121 = smul.addr %s120, 2
      %s122 = smul.addr %s121, 8
      %s123 = scalar_lea.vmem %s1, %s122
      %s124 = smul.u32 14, %s12
      %v125 = vld [vmem:[%s116] sm:$0xff]
      %v126 = vld [vmem:[%s116 + $0x8] sm:$0x3f]
      %v127 = vld [vmem:[%s116 + $0x20] sm:$0xff]
      %v128 = vld [vmem:[%s116 + $0x28] sm:$0x3f]
      %v129 = vld [vmem:[%s116 + $0x40] sm:$0xff]
      %v130 = vld [vmem:[%s116 + $0x48] sm:$0x3f]
      %v131 = vld [vmem:[%s116 + $0x60] sm:$0xff]
      %v132 = vld [vmem:[%s116 + $0x68] sm:$0x3f]
      %v133 = vld [vmem:[%s116 + $0x80] sm:$0xff]
      %v134 = vld [vmem:[%s116 + $0x88] sm:$0x3f]
      %v135 = vld [vmem:[%s116 + $0xa0] sm:$0xff]
      %v136 = vld [vmem:[%s116 + $0xa8] sm:$0x3f]
      %v137 = vld [vmem:[%s116 + $0xc0] sm:$0xff]
      %v138 = vld [vmem:[%s116 + $0xc8] sm:$0x3f]
      %v139 = vld [vmem:[%s116 + $0xe0] sm:$0xff]
      %v140 = vld [vmem:[%s116 + $0xe8] sm:$0x3f]
      %v141 = vld [vmem:[%s116 + $0x100] sm:$0xff]
      %v142 = vld [vmem:[%s116 + $0x108] sm:$0x3f]
      %v143 = vld [vmem:[%s116 + $0x120] sm:$0xff]
      %v144 = vld [vmem:[%s116 + $0x128] sm:$0x3f]
      %v145 = vld [vmem:[%s116 + $0x140] sm:$0xff]
      %v146 = vld [vmem:[%s116 + $0x148] sm:$0x3f]
      %v147 = vld [vmem:[%s116 + $0x160] sm:$0xff]
      %v148 = vld [vmem:[%s116 + $0x168] sm:$0x3f]
      %v149 = vld [vmem:[%s116 + $0x180] sm:$0xff]
      %v150 = vld [vmem:[%s116 + $0x188] sm:$0x3f]
      %v151 = vld [vmem:[%s116 + $0x1a0] sm:$0xff]
      %v152 = vld [vmem:[%s116 + $0x1a8] sm:$0x3f]
      %s153 = scalar_lea.vmem %s116, 16
      %v154 = vld [vmem:[%s153] sm:$0xff]
      %v155 = vld [vmem:[%s153 + $0x8] sm:$0x3f]
      %v156 = vld [vmem:[%s153 + $0x20] sm:$0xff]
      %v157 = vld [vmem:[%s153 + $0x28] sm:$0x3f]
      %v158 = vld [vmem:[%s153 + $0x40] sm:$0xff]
      %v159 = vld [vmem:[%s153 + $0x48] sm:$0x3f]
      %v160 = vld [vmem:[%s153 + $0x60] sm:$0xff]
      %v161 = vld [vmem:[%s153 + $0x68] sm:$0x3f]
      %v162 = vld [vmem:[%s153 + $0x80] sm:$0xff]
      %v163 = vld [vmem:[%s153 + $0x88] sm:$0x3f]
      %v164 = vld [vmem:[%s153 + $0xa0] sm:$0xff]
      %v165 = vld [vmem:[%s153 + $0xa8] sm:$0x3f]
      %v166 = vld [vmem:[%s153 + $0xc0] sm:$0xff]
      %v167 = vld [vmem:[%s153 + $0xc8] sm:$0x3f]
      %v168 = vld [vmem:[%s153 + $0xe0] sm:$0xff]
      %v169 = vld [vmem:[%s153 + $0xe8] sm:$0x3f]
      %v170 = vld [vmem:[%s153 + $0x100] sm:$0xff]
      %v171 = vld [vmem:[%s153 + $0x108] sm:$0x3f]
      %v172 = vld [vmem:[%s153 + $0x120] sm:$0xff]
      %v173 = vld [vmem:[%s153 + $0x128] sm:$0x3f]
      %v174 = vld [vmem:[%s153 + $0x140] sm:$0xff]
      %v175 = vld [vmem:[%s153 + $0x148] sm:$0x3f]
      %v176 = vld [vmem:[%s153 + $0x160] sm:$0xff]
      %v177 = vld [vmem:[%s153 + $0x168] sm:$0x3f]
      %v178 = vld [vmem:[%s153 + $0x180] sm:$0xff]
      %v179 = vld [vmem:[%s153 + $0x188] sm:$0x3f]
      %v180 = vld [vmem:[%s153 + $0x1a0] sm:$0xff]
      %v181 = vld [vmem:[%s153 + $0x1a8] sm:$0x3f]
      %v182 = vmax.f32 %v125, %v154
      %v183 = vmax.f32 %v126, %v155
      %v184 = vmax.f32 %v127, %v156
      %v185 = vmax.f32 %v128, %v157
      %v186 = vmax.f32 %v129, %v158
      %v187 = vmax.f32 %v130, %v159
      %v188 = vmax.f32 %v131, %v160
      %v189 = vmax.f32 %v132, %v161
      %v190 = vmax.f32 %v133, %v162
      %v191 = vmax.f32 %v134, %v163
      %v192 = vmax.f32 %v135, %v164
      %v193 = vmax.f32 %v136, %v165
      %v194 = vmax.f32 %v137, %v166
      %v195 = vmax.f32 %v138, %v167
      %v196 = vmax.f32 %v139, %v168
      %v197 = vmax.f32 %v140, %v169
      %v198 = vmax.f32 %v141, %v170
      %v199 = vmax.f32 %v142, %v171
      %v200 = vmax.f32 %v143, %v172
      %v201 = vmax.f32 %v144, %v173
      %v202 = vmax.f32 %v145, %v174
      %v203 = vmax.f32 %v146, %v175
      %v204 = vmax.f32 %v147, %v176
      %v205 = vmax.f32 %v148, %v177
      %v206 = vmax.f32 %v149, %v178
      %v207 = vmax.f32 %v150, %v179
      %v208 = vmax.f32 %v151, %v180
      %v209 = vmax.f32 %v152, %v181
      %238 = vrot.lane.b32.xlu0 %v182, 64
      %v239 = vpop.permute.xlu0 %238
      %240 = vrot.lane.b32.xlu0 %v183, 64
      %v241 = vpop.permute.xlu0 %240
      %242 = vrot.lane.b32.xlu0 %v184, 64
      %v243 = vpop.permute.xlu0 %242
      %244 = vrot.lane.b32.xlu0 %v185, 64
      %v245 = vpop.permute.xlu0 %244
      %246 = vrot.lane.b32.xlu0 %v186, 64
      %v247 = vpop.permute.xlu0 %246
      %248 = vrot.lane.b32.xlu0 %v187, 64
      %v249 = vpop.permute.xlu0 %248
      %250 = vrot.lane.b32.xlu0 %v188, 64
      %v251 = vpop.permute.xlu0 %250
      %252 = vrot.lane.b32.xlu0 %v189, 64
      %v253 = vpop.permute.xlu0 %252
      %254 = vrot.lane.b32.xlu0 %v190, 64
      %v255 = vpop.permute.xlu0 %254
      %256 = vrot.lane.b32.xlu0 %v191, 64
      %v257 = vpop.permute.xlu0 %256
      %258 = vrot.lane.b32.xlu0 %v192, 64
      %v259 = vpop.permute.xlu0 %258
      %260 = vrot.lane.b32.xlu0 %v193, 64
      %v261 = vpop.permute.xlu0 %260
      %262 = vrot.lane.b32.xlu0 %v194, 64
      %v263 = vpop.permute.xlu0 %262
      %264 = vrot.lane.b32.xlu0 %v195, 64
      %v265 = vpop.permute.xlu0 %264
      %266 = vrot.lane.b32.xlu0 %v196, 64
      %v267 = vpop.permute.xlu0 %266
      %268 = vrot.lane.b32.xlu0 %v197, 64
      %v269 = vpop.permute.xlu0 %268
      %270 = vrot.lane.b32.xlu0 %v198, 64
      %v271 = vpop.permute.xlu0 %270
      %272 = vrot.lane.b32.xlu0 %v199, 64
      %v273 = vpop.permute.xlu0 %272
      %274 = vrot.lane.b32.xlu0 %v200, 64
      %v275 = vpop.permute.xlu0 %274
      %276 = vrot.lane.b32.xlu0 %v201, 64
      %v277 = vpop.permute.xlu0 %276
      %278 = vrot.lane.b32.xlu0 %v202, 64
      %v279 = vpop.permute.xlu0 %278
      %280 = vrot.lane.b32.xlu0 %v203, 64
      %v281 = vpop.permute.xlu0 %280
      %282 = vrot.lane.b32.xlu0 %v204, 64
      %v283 = vpop.permute.xlu0 %282
      %284 = vrot.lane.b32.xlu0 %v205, 64
      %v285 = vpop.permute.xlu0 %284
      %286 = vrot.lane.b32.xlu0 %v206, 64
      %v287 = vpop.permute.xlu0 %286
      %288 = vrot.lane.b32.xlu0 %v207, 64
      %v289 = vpop.permute.xlu0 %288
      %290 = vrot.lane.b32.xlu0 %v208, 64
      %v291 = vpop.permute.xlu0 %290
      %292 = vrot.lane.b32.xlu0 %v209, 64
      %v293 = vpop.permute.xlu0 %292
      %v322 = vmax.f32 %v182, %v239
      %v323 = vmax.f32 %v183, %v241
      %v324 = vmax.f32 %v184, %v243
      %v325 = vmax.f32 %v185, %v245
      %v326 = vmax.f32 %v186, %v247
      %v327 = vmax.f32 %v187, %v249
      %v328 = vmax.f32 %v188, %v251
      %v329 = vmax.f32 %v189, %v253
      %v330 = vmax.f32 %v190, %v255
      %v331 = vmax.f32 %v191, %v257
      %v332 = vmax.f32 %v192, %v259
      %v333 = vmax.f32 %v193, %v261
      %v334 = vmax.f32 %v194, %v263
      %v335 = vmax.f32 %v195, %v265
      %v336 = vmax.f32 %v196, %v267
      %v337 = vmax.f32 %v197, %v269
      %v338 = vmax.f32 %v198, %v271
      %v339 = vmax.f32 %v199, %v273
      %v340 = vmax.f32 %v200, %v275
      %v341 = vmax.f32 %v201, %v277
      %v342 = vmax.f32 %v202, %v279
      %v343 = vmax.f32 %v203, %v281
      %v344 = vmax.f32 %v204, %v283
      %v345 = vmax.f32 %v205, %v285
      %v346 = vmax.f32 %v206, %v287
      %v347 = vmax.f32 %v207, %v289
      %v348 = vmax.f32 %v208, %v291
      %v349 = vmax.f32 %v209, %v293
      %vm350 = vcmask 523264
      %351 = vst.msk [vmem:[%s123] sm:$0xff] %vm350, %v322
      %vm352 = vcmask 521216
      %353 = vst.msk [vmem:[%s123 + $0x8] sm:$0x3f] %vm352, %v323
      %354 = vst.msk [vmem:[%s123 + $0x10] sm:$0xff] %vm350, %v324
      %355 = vst.msk [vmem:[%s123 + $0x18] sm:$0x3f] %vm352, %v325
      %356 = vst.msk [vmem:[%s123 + $0x20] sm:$0xff] %vm350, %v326
      %357 = vst.msk [vmem:[%s123 + $0x28] sm:$0x3f] %vm352, %v327
      %358 = vst.msk [vmem:[%s123 + $0x30] sm:$0xff] %vm350, %v328
      %359 = vst.msk [vmem:[%s123 + $0x38] sm:$0x3f] %vm352, %v329
      %360 = vst.msk [vmem:[%s123 + $0x40] sm:$0xff] %vm350, %v330
      %361 = vst.msk [vmem:[%s123 + $0x48] sm:$0x3f] %vm352, %v331
      %362 = vst.msk [vmem:[%s123 + $0x50] sm:$0xff] %vm350, %v332
      %363 = vst.msk [vmem:[%s123 + $0x58] sm:$0x3f] %vm352, %v333
      %364 = vst.msk [vmem:[%s123 + $0x60] sm:$0xff] %vm350, %v334
      %365 = vst.msk [vmem:[%s123 + $0x68] sm:$0x3f] %vm352, %v335
      %366 = vst.msk [vmem:[%s123 + $0x70] sm:$0xff] %vm350, %v336
      %367 = vst.msk [vmem:[%s123 + $0x78] sm:$0x3f] %vm352, %v337
      %368 = vst.msk [vmem:[%s123 + $0x80] sm:$0xff] %vm350, %v338
      %369 = vst.msk [vmem:[%s123 + $0x88] sm:$0x3f] %vm352, %v339
      %370 = vst.msk [vmem:[%s123 + $0x90] sm:$0xff] %vm350, %v340
      %371 = vst.msk [vmem:[%s123 + $0x98] sm:$0x3f] %vm352, %v341
      %372 = vst.msk [vmem:[%s123 + $0xa0] sm:$0xff] %vm350, %v342
      %373 = vst.msk [vmem:[%s123 + $0xa8] sm:$0x3f] %vm352, %v343
      %374 = vst.msk [vmem:[%s123 + $0xb0] sm:$0xff] %vm350, %v344
      %375 = vst.msk [vmem:[%s123 + $0xb8] sm:$0x3f] %vm352, %v345
      %376 = vst.msk [vmem:[%s123 + $0xc0] sm:$0xff] %vm350, %v346
      %377 = vst.msk [vmem:[%s123 + $0xc8] sm:$0x3f] %vm352, %v347
      %378 = vst.msk [vmem:[%s123 + $0xd0] sm:$0xff] %vm350, %v348
      %379 = vst.msk [vmem:[%s123 + $0xd8] sm:$0x3f] %vm352, %v349
      %s380 = smul.u32 14, %s12
      %p381 = scmp.lt.s32.totalorder %s380, 27
      %s382 = scalar_select %p381, %s380, 27
      %s383 = smul.addr %s382, 2
      %s384 = smul.addr %s383, 8
      %s385 = scalar_lea.vmem %s1, %s384
      // Predicated region
      $region25: #{simple_binary_cnn_forward.8} parent=23 // pred_check
        %p386 = pneg %p56
      $region26: #{simple_binary_cnn_forward.8} parent=23 // pred_check_branch
        %388 = sbr.rel (%p386) target = $region28
      $region27: #{simple_binary_cnn_forward.8} parent=23 // pred_region
        %s389 = smul.u32 14, %s12
      $region28: #{simple_binary_cnn_forward.8} parent=23 // pred_fallthru
        _
    $region24: #{simple_binary_cnn_forward.8} parent=5 // pred_fallthru
      _
    %p390 = scmp.le.s32.totalorder 2, %s7
    // Predicated region
    $region29: #{simple_binary_cnn_forward.8} parent=5 // pred_check
      %p391 = pneg %p390
    $region30: #{simple_binary_cnn_forward.8} parent=5 // pred_check_branch
      %393 = sbr.rel (%p391) target = $region32
    $region31: #{simple_binary_cnn_forward.8} parent=5 // pred_region
      %s394 = ssub.s32 %s7, 2
      // Predicated region
      $region33: #{simple_binary_cnn_forward.8} parent=31 // pred_check
        %p395 = pneg %p62
      $region34: #{simple_binary_cnn_forward.8} parent=31 // pred_check_branch
        %397 = sbr.rel (%p395) target = $region36
      $region35: #{simple_binary_cnn_forward.8} parent=31 // pred_region
        %s398 = smul.u32 14, %s13
        %p399 = scmp.lt.s32.totalorder %s398, 27
        %s400 = scalar_select %p399, %s398, 27
        %s401 = smul.addr %s400, 2
        %s402 = smul.addr %s401, 8
        %s403 = scalar_lea.vmem %s1, %s402
      $region36: #{simple_binary_cnn_forward.8} parent=31 // pred_fallthru
        _
    $region32: #{simple_binary_cnn_forward.8} parent=5 // pred_fallthru
      _
  $region6: #{simple_binary_cnn_forward.8} parent=0 // loop_footer
    %s11 = sadd.s32 1, %s7
  $region7: #{simple_binary_cnn_forward.8} parent=0 // loop_footer_branch
    %6 = sbr.rel target = $region3
  $region8: #{simple_binary_cnn_forward.8} parent=0 // loop_exit
    _

// kernel: simple_binary_cnn_forward.7
$region0: #{simple_binary_cnn_forward.7}
  #allocation0 [shape = 'u32[]', space=smem, size = 0x4, offset = 0x4, fixed_abs, tag = 'smem constant byte address 0x4 - core index']
  #allocation1 [shape = 'u32[144,128]{1,0:T(1,128)}', space=vmem, size = 0x12000, scoped, tag = 'internal scratch']
  %s0 = inlined_call_operand.vmem [shape: f32[1568,288], index: 0, kind: input, shape index: {}]
  %s1 = inlined_call_operand.vmem [shape: f32[288,64], index: 1, kind: input, shape index: {}]
  %s2 = inlined_call_operand.vmem [shape: f32[1,64], index: 2, kind: input, shape index: {}]
  %s3 = inlined_call_operand.vmem [shape: f32[1568,64], index: 3, kind: output, shape index: {}]
  %s4 = sld [smem:[#allocation0]]
  $region45: #{simple_binary_cnn_forward.7} parent=0
    _
  %s6 = ssub.s32 1, %s4
  %s7 = scalar_select 0, %s6, %s4
  loop: start=0, step=1, limit=4
  $region2: #{simple_binary_cnn_forward.7} parent=0 // loop_pre_header
    _
  $region3: #{simple_binary_cnn_forward.7} parent=0 // loop_header
    %s9 = sphi 0, %s13
    %p10 = scmp.ge.s32.totalorder %s9, 4
    %s19 = sphi 0, %s21
    %s22 = sphi 0, %s19
    %s23 = sphi 0, %s22
    %s39 = sphi 0, %s23
    %s43 = sphi 0, %s43
    %s45 = sphi 0, %s43
    %s46 = sphi 0, %s45
    %s60 = sphi 0, %s46
    %s64 = sphi 0, %s64
    %s66 = sphi 0, %s64
    %s67 = sphi 0, %s66
    %s81 = sphi 0, %s67
    %s87 = sphi 0, %s89
    %s90 = sphi 0, %s87
    %s91 = sphi 0, %s90
    %s107 = sphi 0, %s91
  $region4: #{simple_binary_cnn_forward.7} parent=0 // loop_header_branch
    %12 = sbr.rel (%p10) target = $region8
  $region5: #{simple_binary_cnn_forward.7} parent=0 // loop_body
    %s14 = ssub.s32 %s9, 1
    %s15 = ssub.s32 %s9, 2
    %s16 = sadd.s32 %s9, 1
    %s17 = ssub.s32 %s9, %s16
    %p18 = scmp.eq.s32.totalorder %s17, 0
    %s20 = sadd.s32 %s19, 1
    %s21 = scalar_select %p18, %s19, %s20
    %p24 = pneg %p18
    %p25 = scmp.eq.s32.totalorder %s9, 1
    %p26 = por %p24, %p25
    %p27 = scmp.ne.s32.totalorder %s19, %s22
    %p28 = scmp.eq.s32.totalorder %s9, 0
    %p29 = por %p27, %p28
    %p30 = scmp.ne.s32.totalorder %s19, %s22
    %p31 = scmp.eq.s32.totalorder %s14, 1
    %p32 = por %p30, %p31
    %p33 = scmp.ne.s32.totalorder %s22, %s23
    %p34 = scmp.eq.s32.totalorder %s14, 0
    %p35 = por %p33, %p34
    %p36 = scmp.ne.s32.totalorder %s22, %s23
    %p37 = scmp.eq.s32.totalorder %s15, 1
    %p38 = por %p36, %p37
    %p40 = scmp.ne.s32.totalorder %s23, %s39
    %p41 = scmp.eq.s32.totalorder %s15, 0
    %p42 = por %p40, %p41
    %s44 = sadd.s32 %s43, 1
    %p47 = scmp.eq.s32.totalorder %s9, 1
    %p48 = scmp.ne.s32.totalorder %s43, %s45
    %p49 = scmp.eq.s32.totalorder %s9, 0
    %p50 = por %p48, %p49
    %p51 = scmp.ne.s32.totalorder %s43, %s45
    %p52 = scmp.eq.s32.totalorder %s14, 1
    %p53 = por %p51, %p52
    %p54 = scmp.ne.s32.totalorder %s45, %s46
    %p55 = scmp.eq.s32.totalorder %s14, 0
    %p56 = por %p54, %p55
    %p57 = scmp.ne.s32.totalorder %s45, %s46
    %p58 = scmp.eq.s32.totalorder %s15, 1
    %p59 = por %p57, %p58
    %p61 = scmp.ne.s32.totalorder %s46, %s60
    %p62 = scmp.eq.s32.totalorder %s15, 0
    %p63 = por %p61, %p62
    %s65 = sadd.s32 %s64, 1
    %p68 = scmp.eq.s32.totalorder %s9, 1
    %p69 = scmp.ne.s32.totalorder %s64, %s66
    %p70 = scmp.eq.s32.totalorder %s9, 0
    %p71 = por %p69, %p70
    %p72 = scmp.ne.s32.totalorder %s64, %s66
    %p73 = scmp.eq.s32.totalorder %s14, 1
    %p74 = por %p72, %p73
    %p75 = scmp.ne.s32.totalorder %s66, %s67
    %p76 = scmp.eq.s32.totalorder %s14, 0
    %p77 = por %p75, %p76
    %p78 = scmp.ne.s32.totalorder %s66, %s67
    %p79 = scmp.eq.s32.totalorder %s15, 1
    %p80 = por %p78, %p79
    %p82 = scmp.ne.s32.totalorder %s67, %s81
    %p83 = scmp.eq.s32.totalorder %s15, 0
    %p84 = por %p82, %p83
    %s85 = ssub.s32 %s9, %s16
    %p86 = scmp.eq.s32.totalorder %s85, 0
    %s88 = sadd.s32 %s87, 1
    %s89 = scalar_select %p86, %s87, %s88
    %p92 = pneg %p86
    %p93 = scmp.eq.s32.totalorder %s9, 1
    %p94 = por %p92, %p93
    %p95 = scmp.ne.s32.totalorder %s87, %s90
    %p96 = scmp.eq.s32.totalorder %s9, 0
    %p97 = por %p95, %p96
    %p98 = scmp.ne.s32.totalorder %s87, %s90
    %p99 = scmp.eq.s32.totalorder %s14, 1
    %p100 = por %p98, %p99
    %p101 = scmp.ne.s32.totalorder %s90, %s91
    %p102 = scmp.eq.s32.totalorder %s14, 0
    %p103 = por %p101, %p102
    %p104 = scmp.ne.s32.totalorder %s90, %s91
    %p105 = scmp.eq.s32.totalorder %s15, 1
    %p106 = por %p104, %p105
    %p108 = scmp.ne.s32.totalorder %s91, %s107
    %p109 = scmp.eq.s32.totalorder %s15, 0
    %p110 = por %p108, %p109
    %p111 = scmp.le.s32.totalorder 1, %s9
    %p112 = scmp.lt.s32.totalorder %s9, 3
    %p113 = pnand %p111, %p112
    %p114 = pneg %p113
    // Predicated region
    $region9: #{simple_binary_cnn_forward.7} parent=5 // pred_check
      _
    $region10: #{simple_binary_cnn_forward.7} parent=5 // pred_check_branch
      %116 = sbr.rel (%p113) target = $region12
    $region11: #{simple_binary_cnn_forward.7} parent=5 // pred_region
      %s117 = ssub.s32 %s9, 1
      // Predicated region
      $region13: #{simple_binary_cnn_forward.7} parent=11 // pred_check
        %p118 = pneg %p56
      $region14: #{simple_binary_cnn_forward.7} parent=11 // pred_check_branch
        %120 = sbr.rel (%p118) target = $region16
      $region15: #{simple_binary_cnn_forward.7} parent=11 // pred_region
        _
      $region16: #{simple_binary_cnn_forward.7} parent=11 // pred_fallthru
        _
      // Predicated region
      $region17: #{simple_binary_cnn_forward.7} parent=11 // pred_check
        %p121 = pneg %p77
      $region18: #{simple_binary_cnn_forward.7} parent=11 // pred_check_branch
        %123 = sbr.rel (%p121) target = $region20
      $region19: #{simple_binary_cnn_forward.7} parent=11 // pred_region
        _
      $region20: #{simple_binary_cnn_forward.7} parent=11 // pred_fallthru
        _
    $region12: #{simple_binary_cnn_forward.7} parent=5 // pred_fallthru
      _
    %p124 = scmp.lt.s32.totalorder %s9, 2
    // Predicated region
    $region21: #{simple_binary_cnn_forward.7} parent=5 // pred_check
      %p125 = pneg %p124
    $region22: #{simple_binary_cnn_forward.7} parent=5 // pred_check_branch
      %127 = sbr.rel (%p125) target = $region24
    $region23: #{simple_binary_cnn_forward.7} parent=5 // pred_region
      // Predicated region
      $region25: #{simple_binary_cnn_forward.7} parent=23 // pred_check
        %p128 = pneg %p29
      $region26: #{simple_binary_cnn_forward.7} parent=23 // pred_check_branch
        %130 = sbr.rel (%p128) target = $region28
      $region27: #{simple_binary_cnn_forward.7} parent=23 // pred_region
        %s131 = smul.u32 98, %s9
        %p132 = scmp.lt.s32.totalorder %s131, 195
        %s133 = scalar_select %p132, %s131, 195
        %s134 = smul.addr %s133, 3
        %s135 = smul.addr %s134, 8
        %s136 = scalar_lea.vmem %s0, %s135
        %s137 = smul.u32 98, %s9
      $region28: #{simple_binary_cnn_forward.7} parent=23 // pred_fallthru
        _
    $region24: #{simple_binary_cnn_forward.7} parent=5 // pred_fallthru
      _
    %p138 = scmp.le.s32.totalorder 1, %s9
    %p139 = scmp.lt.s32.totalorder %s9, 3
    %p140 = pnand %p138, %p139
    %p141 = pneg %p140
    // Predicated region
    $region29: #{simple_binary_cnn_forward.7} parent=5 // pred_check
      _
    $region30: #{simple_binary_cnn_forward.7} parent=5 // pred_check_branch
      %143 = sbr.rel (%p140) target = $region32
    $region31: #{simple_binary_cnn_forward.7} parent=5 // pred_region
      %s144 = ssub.s32 %s9, 1
      %s145 = smul.u32 98, %s14
      %p146 = scmp.lt.s32.totalorder %s145, 195
      %s147 = scalar_select %p146, %s145, 195
      %s148 = smul.addr %s147, 3
      %s149 = smul.addr %s148, 8
      %s150 = scalar_lea.vmem %s0, %s149
      %p151 = pneg %p35
      %p152 = pneg %p32
      %p153 = pneg %p56
      %p154 = pneg %p53
      %p155 = pneg %p77
      %p156 = pneg %p74
      %p157 = pneg %p103
      %p158 = pneg %p100
      %s159 = smul.u32 98, %s14
      %p160 = scmp.lt.s32.totalorder %s159, 195
      %s161 = scalar_select %p160, %s159, 195
      %s162 = smul.addr %s161, 8
      %s163 = scalar_lea.vmem %s3, %s162
      %s164 = smul.u32 98, %s14
      %p165 = scmp.lt.s32.totalorder %s164, 195
      %s166 = scalar_select %p165, %s164, 195
      %s167 = smul.addr %s166, 3
      %s168 = smul.addr %s167, 8
      %s169 = scalar_lea.vmem %s0, %s168
      %s170 = smul.u32 98, %s14
      %s171 = smul.u32 98, %s14
      %p172 = scmp.lt.s32.totalorder %s171, 195
      %s173 = scalar_select %p172, %s171, 195
      %s174 = smul.addr %s173, 8
      %s175 = scalar_lea.vmem %s3, %s174
      %s176 = smul.u32 98, %s14
      %v177 = vld [vmem:[%s169] sm:$0xff]
      %v178 = vld [vmem:[%s169 + $0x8] sm:$0xff]
      %v179 = vld [vmem:[%s169 + $0x10] sm:$0xff]
      %v180 = vld [vmem:[%s169 + $0x18] sm:$0xff]
      %v181 = vld [vmem:[%s169 + $0x20] sm:$0xff]
      %v182 = vld [vmem:[%s169 + $0x28] sm:$0xff]
      %v183 = vld [vmem:[%s169 + $0x30] sm:$0xff]
      %v184 = vld [vmem:[%s169 + $0x38] sm:$0xff]
      %v185 = vld [vmem:[%s169 + $0x40] sm:$0xff]
      %v186 = vld [vmem:[%s169 + $0x48] sm:$0xff]
      %v187 = vld [vmem:[%s169 + $0x50] sm:$0xff]
      %v188 = vld [vmem:[%s169 + $0x58] sm:$0xff]
      %v189 = vld [vmem:[%s169 + $0x60] sm:$0xff]
      %v190 = vld [vmem:[%s169 + $0x68] sm:$0xff]
      %v191 = vld [vmem:[%s169 + $0x70] sm:$0xff]
      %v192 = vld [vmem:[%s169 + $0x78] sm:$0xff]
      %v193 = vld [vmem:[%s169 + $0x80] sm:$0xff]
      %v194 = vld [vmem:[%s169 + $0x88] sm:$0xff]
      %v195 = vld [vmem:[%s169 + $0x90] sm:$0xff]
      %v196 = vld [vmem:[%s169 + $0x98] sm:$0xff]
      %v197 = vld [vmem:[%s169 + $0xa0] sm:$0xff]
      %v198 = vld [vmem:[%s169 + $0xa8] sm:$0xff]
      %v199 = vld [vmem:[%s169 + $0xb0] sm:$0xff]
      %v200 = vld [vmem:[%s169 + $0xb8] sm:$0xff]
      %v201 = vld [vmem:[%s169 + $0xc0] sm:$0xff]
      %v202 = vld [vmem:[%s169 + $0xc8] sm:$0xff]
      %v203 = vld [vmem:[%s169 + $0xd0] sm:$0xff]
      %v204 = vld [vmem:[%s169 + $0xd8] sm:$0xff]
      %v205 = vld [vmem:[%s169 + $0xe0] sm:$0xff]
      %v206 = vld [vmem:[%s169 + $0xe8] sm:$0xff]
      %v207 = vld [vmem:[%s169 + $0xf0] sm:$0xff]
      %v208 = vld [vmem:[%s169 + $0xf8] sm:$0xff]
      %v209 = vld [vmem:[%s169 + $0x100] sm:$0xff]
      %v210 = vld [vmem:[%s169 + $0x108] sm:$0xff]
      %v211 = vld [vmem:[%s169 + $0x110] sm:$0xff]
      %v212 = vld [vmem:[%s169 + $0x118] sm:$0xff]
      %v213 = vld [vmem:[%s169 + $0x120] sm:$0xff]
      %v214 = vld [vmem:[%s169 + $0x128] sm:$0xff]
      %v215 = vld [vmem:[%s169 + $0x130] sm:$0xff]
      %v216 = vld [vmem:[%s169 + $0x138] sm:$0xff]
      %v217 = vld [vmem:[%s169 + $0x140] sm:$0xff]
      %v218 = vld [vmem:[%s169 + $0x148] sm:$0xff]
      %v219 = vld [vmem:[%s169 + $0x150] sm:$0xff]
      %v220 = vld [vmem:[%s169 + $0x158] sm:$0xff]
      %v221 = vld [vmem:[%s169 + $0x160] sm:$0xff]
      %v222 = vld [vmem:[%s169 + $0x168] sm:$0xff]
      %v223 = vld [vmem:[%s169 + $0x170] sm:$0xff]
      %v224 = vld [vmem:[%s169 + $0x178] sm:$0xff]
      %v225 = vld [vmem:[%s169 + $0x180] sm:$0xff]
      %v226 = vld [vmem:[%s169 + $0x188] sm:$0xff]
      %v227 = vld [vmem:[%s169 + $0x190] sm:$0xff]
      %v228 = vld [vmem:[%s169 + $0x198] sm:$0xff]
      %v229 = vld [vmem:[%s169 + $0x1a0] sm:$0xff]
      %v230 = vld [vmem:[%s169 + $0x1a8] sm:$0xff]
      %v231 = vld [vmem:[%s169 + $0x1b0] sm:$0xff]
      %v232 = vld [vmem:[%s169 + $0x1b8] sm:$0xff]
      %v233 = vld [vmem:[%s169 + $0x1c0] sm:$0xff]
      %v234 = vld [vmem:[%s169 + $0x1c8] sm:$0xff]
      %v235 = vld [vmem:[%s169 + $0x1d0] sm:$0xff]
      %v236 = vld [vmem:[%s169 + $0x1d8] sm:$0xff]
      %v237 = vld [vmem:[%s169 + $0x1e0] sm:$0xff]
      %v238 = vld [vmem:[%s169 + $0x1e8] sm:$0xff]
      %v239 = vld [vmem:[%s169 + $0x1f0] sm:$0xff]
      %v240 = vld [vmem:[%s169 + $0x1f8] sm:$0xff]
      %v241 = vld [vmem:[%s169 + $0x200] sm:$0xff]
      %v242 = vld [vmem:[%s169 + $0x208] sm:$0xff]
      %v243 = vld [vmem:[%s169 + $0x210] sm:$0xff]
      %v244 = vld [vmem:[%s169 + $0x218] sm:$0xff]
      %v245 = vld [vmem:[%s169 + $0x220] sm:$0xff]
      %v246 = vld [vmem:[%s169 + $0x228] sm:$0xff]
      %v247 = vld [vmem:[%s169 + $0x230] sm:$0xff]
      %v248 = vld [vmem:[%s169 + $0x238] sm:$0xff]
      %v249 = vld [vmem:[%s169 + $0x240] sm:$0xff]
      %v250 = vld [vmem:[%s169 + $0x248] sm:$0xff]
      %v251 = vld [vmem:[%s169 + $0x250] sm:$0xff]
      %v252 = vld [vmem:[%s169 + $0x258] sm:$0xff]
      %v253 = vld [vmem:[%s169 + $0x260] sm:$0xff]
      %v254 = vld [vmem:[%s169 + $0x268] sm:$0xff]
      %v255 = vld [vmem:[%s169 + $0x270] sm:$0xff]
      %v256 = vld [vmem:[%s169 + $0x278] sm:$0xff]
      %v257 = vld [vmem:[%s169 + $0x280] sm:$0xff]
      %v258 = vld [vmem:[%s169 + $0x288] sm:$0xff]
      %v259 = vld [vmem:[%s169 + $0x290] sm:$0xff]
      %v260 = vld [vmem:[%s169 + $0x298] sm:$0xff]
      %v261 = vld [vmem:[%s169 + $0x2a0] sm:$0xff]
      %v262 = vld [vmem:[%s169 + $0x2a8] sm:$0xff]
      %v263 = vld [vmem:[%s169 + $0x2b0] sm:$0xff]
      %v264 = vld [vmem:[%s169 + $0x2b8] sm:$0xff]
      %v265 = vld [vmem:[%s169 + $0x2c0] sm:$0xff]
      %v266 = vld [vmem:[%s169 + $0x2c8] sm:$0xff]
      %v267 = vld [vmem:[%s169 + $0x2d0] sm:$0xff]
      %v268 = vld [vmem:[%s169 + $0x2d8] sm:$0xff]
      %v269 = vld [vmem:[%s169 + $0x2e0] sm:$0xff]
      %v270 = vld [vmem:[%s169 + $0x2e8] sm:$0xff]
      %v271 = vld [vmem:[%s169 + $0x2f0] sm:$0xff]
      %v272 = vld [vmem:[%s169 + $0x2f8] sm:$0xff]
      %v273 = vld [vmem:[%s169 + $0x300] sm:$0xff]
      %v274 = vld [vmem:[%s169 + $0x308] sm:$0xff]
      %v275 = vld [vmem:[%s169 + $0x310] sm:$0xff]
      %v276 = vld [vmem:[%s169 + $0x318] sm:$0xff]
      %v277 = vld [vmem:[%s169 + $0x320] sm:$0xff]
      %v278 = vld [vmem:[%s169 + $0x328] sm:$0xff]
      %v279 = vld [vmem:[%s169 + $0x330] sm:$0xff]
      %v280 = vld [vmem:[%s169 + $0x338] sm:$0xff]
      %v281 = vld [vmem:[%s169 + $0x340] sm:$0xff]
      %v282 = vld [vmem:[%s169 + $0x348] sm:$0xff]
      %v283 = vld [vmem:[%s169 + $0x350] sm:$0xff]
      %v284 = vld [vmem:[%s169 + $0x358] sm:$0xff]
      %v285 = vld [vmem:[%s169 + $0x360] sm:$0xff]
      %v286 = vld [vmem:[%s169 + $0x368] sm:$0xff]
      %v287 = vld [vmem:[%s169 + $0x370] sm:$0xff]
      %v288 = vld [vmem:[%s169 + $0x378] sm:$0xff]
      %v289 = vld [vmem:[%s169 + $0x380] sm:$0xff]
      %v290 = vld [vmem:[%s169 + $0x388] sm:$0xff]
      %v291 = vld [vmem:[%s169 + $0x390] sm:$0xff]
      %v292 = vld [vmem:[%s169 + $0x398] sm:$0xff]
      %v293 = vld [vmem:[%s169 + $0x3a0] sm:$0xff]
      %v294 = vld [vmem:[%s169 + $0x3a8] sm:$0xff]
      %v295 = vld [vmem:[%s169 + $0x3b0] sm:$0xff]
      %v296 = vld [vmem:[%s169 + $0x3b8] sm:$0xff]
      %v297 = vld [vmem:[%s169 + $0x3c0] sm:$0xff]
      %v298 = vld [vmem:[%s169 + $0x3c8] sm:$0xff]
      %v299 = vld [vmem:[%s169 + $0x3d0] sm:$0xff]
      %v300 = vld [vmem:[%s169 + $0x3d8] sm:$0xff]
      %v301 = vld [vmem:[%s169 + $0x3e0] sm:$0xff]
      %v302 = vld [vmem:[%s169 + $0x3e8] sm:$0xff]
      %v303 = vld [vmem:[%s169 + $0x3f0] sm:$0xff]
      %v304 = vld [vmem:[%s169 + $0x3f8] sm:$0xff]
      %v305 = vld [vmem:[%s169 + $0x400] sm:$0xff]
      %v306 = vld [vmem:[%s169 + $0x408] sm:$0xff]
      %v307 = vld [vmem:[%s169 + $0x410] sm:$0xff]
      %v308 = vld [vmem:[%s169 + $0x418] sm:$0xff]
      %v309 = vld [vmem:[%s169 + $0x420] sm:$0xff]
      %v310 = vld [vmem:[%s169 + $0x428] sm:$0xff]
      %v311 = vld [vmem:[%s169 + $0x430] sm:$0xff]
      %v312 = vld [vmem:[%s169 + $0x438] sm:$0xff]
      %v313 = vld [vmem:[%s169 + $0x440] sm:$0xff]
      %v314 = vld [vmem:[%s169 + $0x448] sm:$0xff]
      %v315 = vld [vmem:[%s169 + $0x450] sm:$0xff]
      %v316 = vld [vmem:[%s169 + $0x458] sm:$0xff]
      %v317 = vld [vmem:[%s169 + $0x460] sm:$0xff]
      %v318 = vld [vmem:[%s169 + $0x468] sm:$0xff]
      %v319 = vld [vmem:[%s169 + $0x470] sm:$0xff]
      %v320 = vld [vmem:[%s169 + $0x478] sm:$0xff]
      %v321 = vld [vmem:[%s169 + $0x480] sm:$0xff]
      %v322 = vld [vmem:[%s169 + $0x488] sm:$0xff]
      %v323 = vld [vmem:[%s169 + $0x490] sm:$0xff]
      %v324 = vld [vmem:[%s169 + $0x498] sm:$0xff]
      %v325 = vld [vmem:[%s169 + $0x4a0] sm:$0xff]
      %v326 = vld [vmem:[%s169 + $0x4a8] sm:$0xff]
      %v327 = vld [vmem:[%s169 + $0x4b0] sm:$0xff]
      %v328 = vld [vmem:[%s169 + $0x4b8] sm:$0xff]
      %v329 = vld [vmem:[%s169 + $0x4c0] sm:$0xff]
      %v330 = vld [vmem:[%s169 + $0x4c8] sm:$0xff]
      %v331 = vld [vmem:[%s169 + $0x4d0] sm:$0xff]
      %v332 = vld [vmem:[%s169 + $0x4d8] sm:$0xff]
      %v333 = vld [vmem:[%s169 + $0x4e0] sm:$0xff]
      %v334 = vld [vmem:[%s169 + $0x4e8] sm:$0xff]
      %v335 = vld [vmem:[%s169 + $0x4f0] sm:$0xff]
      %v336 = vld [vmem:[%s169 + $0x4f8] sm:$0xff]
      %v337 = vld [vmem:[%s169 + $0x500] sm:$0xff]
      %v338 = vld [vmem:[%s169 + $0x508] sm:$0xff]
      %v339 = vld [vmem:[%s169 + $0x510] sm:$0xff]
      %v340 = vld [vmem:[%s169 + $0x518] sm:$0xff]
      %v341 = vld [vmem:[%s169 + $0x520] sm:$0xff]
      %v342 = vld [vmem:[%s169 + $0x528] sm:$0xff]
      %v343 = vld [vmem:[%s169 + $0x530] sm:$0xff]
      %v344 = vld [vmem:[%s169 + $0x538] sm:$0xff]
      %v345 = vld [vmem:[%s169 + $0x540] sm:$0xff]
      %v346 = vld [vmem:[%s169 + $0x548] sm:$0xff]
      %v347 = vld [vmem:[%s169 + $0x550] sm:$0xff]
      %v348 = vld [vmem:[%s169 + $0x558] sm:$0xff]
      %v349 = vld [vmem:[%s169 + $0x560] sm:$0xff]
      %v350 = vld [vmem:[%s169 + $0x568] sm:$0xff]
      %v351 = vld [vmem:[%s169 + $0x570] sm:$0xff]
      %v352 = vld [vmem:[%s169 + $0x578] sm:$0xff]
      %v353 = vld [vmem:[%s169 + $0x580] sm:$0xff]
      %v354 = vld [vmem:[%s169 + $0x588] sm:$0xff]
      %v355 = vld [vmem:[%s169 + $0x590] sm:$0xff]
      %v356 = vld [vmem:[%s169 + $0x598] sm:$0xff]
      %v357 = vld [vmem:[%s169 + $0x5a0] sm:$0xff]
      %v358 = vld [vmem:[%s169 + $0x5a8] sm:$0xff]
      %v359 = vld [vmem:[%s169 + $0x5b0] sm:$0xff]
      %v360 = vld [vmem:[%s169 + $0x5b8] sm:$0xff]
      %v361 = vld [vmem:[%s169 + $0x5c0] sm:$0xff]
      %v362 = vld [vmem:[%s169 + $0x5c8] sm:$0xff]
      %v363 = vld [vmem:[%s169 + $0x5d0] sm:$0xff]
      %v364 = vld [vmem:[%s169 + $0x5d8] sm:$0xff]
      %v365 = vld [vmem:[%s169 + $0x5e0] sm:$0xff]
      %v366 = vld [vmem:[%s169 + $0x5e8] sm:$0xff]
      %v367 = vld [vmem:[%s169 + $0x5f0] sm:$0xff]
      %v368 = vld [vmem:[%s169 + $0x5f8] sm:$0xff]
      %v369 = vld [vmem:[%s169 + $0x600] sm:$0xff]
      %v370 = vld [vmem:[%s169 + $0x608] sm:$0xff]
      %v371 = vld [vmem:[%s169 + $0x610] sm:$0xff]
      %v372 = vld [vmem:[%s169 + $0x618] sm:$0xff]
      %v373 = vld [vmem:[%s169 + $0x620] sm:$0xff]
      %v374 = vld [vmem:[%s169 + $0x628] sm:$0xff]
      %v375 = vld [vmem:[%s169 + $0x630] sm:$0xff]
      %v376 = vld [vmem:[%s169 + $0x638] sm:$0xff]
      %v377 = vld [vmem:[%s169 + $0x640] sm:$0xff]
      %v378 = vld [vmem:[%s169 + $0x648] sm:$0xff]
      %v379 = vld [vmem:[%s169 + $0x650] sm:$0xff]
      %v380 = vld [vmem:[%s169 + $0x658] sm:$0xff]
      %v381 = vld [vmem:[%s169 + $0x660] sm:$0xff]
      %v382 = vld [vmem:[%s169 + $0x668] sm:$0xff]
      %v383 = vld [vmem:[%s169 + $0x670] sm:$0xff]
      %v384 = vld [vmem:[%s169 + $0x678] sm:$0xff]
      %v385 = vld [vmem:[%s169 + $0x680] sm:$0xff]
      %v386 = vld [vmem:[%s169 + $0x688] sm:$0xff]
      %v387 = vld [vmem:[%s169 + $0x690] sm:$0xff]
      %v388 = vld [vmem:[%s169 + $0x698] sm:$0xff]
      %v389 = vld [vmem:[%s169 + $0x6a0] sm:$0xff]
      %v390 = vld [vmem:[%s169 + $0x6a8] sm:$0xff]
      %v391 = vld [vmem:[%s169 + $0x6b0] sm:$0xff]
      %v392 = vld [vmem:[%s169 + $0x6b8] sm:$0xff]
      %v393 = vld [vmem:[%s169 + $0x6c0] sm:$0xff]
      %v394 = vld [vmem:[%s169 + $0x6c8] sm:$0xff]
      %v395 = vld [vmem:[%s169 + $0x6d0] sm:$0xff]
      %v396 = vld [vmem:[%s169 + $0x6d8] sm:$0xff]
      %v397 = vld [vmem:[%s169 + $0x6e0] sm:$0xff]
      %v398 = vld [vmem:[%s169 + $0x6e8] sm:$0xff]
      %v399 = vld [vmem:[%s169 + $0x6f0] sm:$0xff]
      %v400 = vld [vmem:[%s169 + $0x6f8] sm:$0xff]
      %v401 = vld [vmem:[%s169 + $0x700] sm:$0xff]
      %v402 = vld [vmem:[%s169 + $0x708] sm:$0xff]
      %v403 = vld [vmem:[%s169 + $0x710] sm:$0xff]
      %v404 = vld [vmem:[%s169 + $0x718] sm:$0xff]
      %v405 = vld [vmem:[%s169 + $0x720] sm:$0xff]
      %v406 = vld [vmem:[%s169 + $0x728] sm:$0xff]
      %v407 = vld [vmem:[%s169 + $0x730] sm:$0xff]
      %v408 = vld [vmem:[%s169 + $0x738] sm:$0xff]
      %v409 = vld [vmem:[%s169 + $0x740] sm:$0xff]
      %v410 = vld [vmem:[%s169 + $0x748] sm:$0xff]
      %v411 = vld [vmem:[%s169 + $0x750] sm:$0xff]
      %v412 = vld [vmem:[%s169 + $0x758] sm:$0xff]
      %v413 = vld [vmem:[%s169 + $0x760] sm:$0xff]
      %v414 = vld [vmem:[%s169 + $0x768] sm:$0xff]
      %v415 = vld [vmem:[%s169 + $0x770] sm:$0xff]
      %v416 = vld [vmem:[%s169 + $0x778] sm:$0xff]
      %v417 = vld [vmem:[%s169 + $0x780] sm:$0xff]
      %v418 = vld [vmem:[%s169 + $0x788] sm:$0xff]
      %v419 = vld [vmem:[%s169 + $0x790] sm:$0xff]
      %v420 = vld [vmem:[%s169 + $0x798] sm:$0xff]
      %v421 = vld [vmem:[%s169 + $0x7a0] sm:$0xff]
      %v422 = vld [vmem:[%s169 + $0x7a8] sm:$0xff]
      %v423 = vld [vmem:[%s169 + $0x7b0] sm:$0xff]
      %v424 = vld [vmem:[%s169 + $0x7b8] sm:$0xff]
      %v425 = vld [vmem:[%s169 + $0x7c0] sm:$0xff]
      %v426 = vld [vmem:[%s169 + $0x7c8] sm:$0xff]
      %v427 = vld [vmem:[%s169 + $0x7d0] sm:$0xff]
      %v428 = vld [vmem:[%s169 + $0x7d8] sm:$0xff]
      %v429 = vld [vmem:[%s169 + $0x7e0] sm:$0xff]
      %v430 = vld [vmem:[%s169 + $0x7e8] sm:$0xff]
      %v431 = vld [vmem:[%s169 + $0x7f0] sm:$0xff]
      %v432 = vld [vmem:[%s169 + $0x7f8] sm:$0xff]
      %v433 = vld [vmem:[%s169 + $0x800] sm:$0xff]
      %v434 = vld [vmem:[%s169 + $0x808] sm:$0xff]
      %v435 = vld [vmem:[%s169 + $0x810] sm:$0xff]
      %v436 = vld [vmem:[%s169 + $0x818] sm:$0xff]
      %v437 = vld [vmem:[%s169 + $0x820] sm:$0xff]
      %v438 = vld [vmem:[%s169 + $0x828] sm:$0xff]
      %v439 = vld [vmem:[%s169 + $0x830] sm:$0xff]
      %v440 = vld [vmem:[%s169 + $0x838] sm:$0xff]
      %v441 = vld [vmem:[%s169 + $0x840] sm:$0xff]
      %v442 = vld [vmem:[%s169 + $0x848] sm:$0xff]
      %v443 = vld [vmem:[%s169 + $0x850] sm:$0xff]
      %v444 = vld [vmem:[%s169 + $0x858] sm:$0xff]
      %v445 = vld [vmem:[%s169 + $0x860] sm:$0xff]
      %v446 = vld [vmem:[%s169 + $0x868] sm:$0xff]
      %v447 = vld [vmem:[%s169 + $0x870] sm:$0xff]
      %v448 = vld [vmem:[%s169 + $0x878] sm:$0xff]
      %v449 = vld [vmem:[%s169 + $0x880] sm:$0xff]
      %v450 = vld [vmem:[%s169 + $0x888] sm:$0xff]
      %v451 = vld [vmem:[%s169 + $0x890] sm:$0xff]
      %v452 = vld [vmem:[%s169 + $0x898] sm:$0xff]
      %v453 = vld [vmem:[%s169 + $0x8a0] sm:$0xff]
      %v454 = vld [vmem:[%s169 + $0x8a8] sm:$0xff]
      %v455 = vld [vmem:[%s169 + $0x8b0] sm:$0xff]
      %v456 = vld [vmem:[%s169 + $0x8b8] sm:$0xff]
      %v457 = vld [vmem:[%s169 + $0x8c0] sm:$0xff]
      %v458 = vld [vmem:[%s169 + $0x8c8] sm:$0xff]
      %v459 = vld [vmem:[%s169 + $0x8d0] sm:$0xff]
      %v460 = vld [vmem:[%s169 + $0x8d8] sm:$0xff]
      %v461 = vld [vmem:[%s169 + $0x8e0] sm:$0xff]
      %v462 = vld [vmem:[%s169 + $0x8e8] sm:$0xff]
      %v463 = vld [vmem:[%s169 + $0x8f0] sm:$0xff]
      %v464 = vld [vmem:[%s169 + $0x8f8] sm:$0xff]
      %v465 = vld [vmem:[%s169 + $0x900] sm:$0xff]
      %v466 = vld [vmem:[%s169 + $0x908] sm:$0xff]
      %v467 = vld [vmem:[%s169 + $0x910] sm:$0xff]
      %v468 = vld [vmem:[%s169 + $0x918] sm:$0xff]
      %v469 = vld [vmem:[%s169 + $0x920] sm:$0xff]
      %v470 = vld [vmem:[%s169 + $0x928] sm:$0xff]
      %v471 = vld [vmem:[%s1] sm:$0xff]
      %v472 = vld [vmem:[%s1 + $0x8] sm:$0xff]
      %v473 = vld [vmem:[%s1 + $0x10] sm:$0xff]
      %v474 = vld [vmem:[%s1 + $0x18] sm:$0xff]
      %v475 = vld [vmem:[%s1 + $0x20] sm:$0xff]
      %v476 = vld [vmem:[%s1 + $0x28] sm:$0xff]
      %v477 = vld [vmem:[%s1 + $0x30] sm:$0xff]
      %v478 = vld [vmem:[%s1 + $0x38] sm:$0xff]
      %v479 = vld [vmem:[%s1 + $0x40] sm:$0xff]
      %v480 = vld [vmem:[%s1 + $0x48] sm:$0xff]
      %v481 = vld [vmem:[%s1 + $0x50] sm:$0xff]
      %v482 = vld [vmem:[%s1 + $0x58] sm:$0xff]
      %v483 = vld [vmem:[%s1 + $0x60] sm:$0xff]
      %v484 = vld [vmem:[%s1 + $0x68] sm:$0xff]
      %v485 = vld [vmem:[%s1 + $0x70] sm:$0xff]
      %v486 = vld [vmem:[%s1 + $0x78] sm:$0xff]
      %v487 = vld [vmem:[%s1 + $0x80] sm:$0xff]
      %v488 = vld [vmem:[%s1 + $0x88] sm:$0xff]
      %v489 = vld [vmem:[%s1 + $0x90] sm:$0xff]
      %v490 = vld [vmem:[%s1 + $0x98] sm:$0xff]
      %v491 = vld [vmem:[%s1 + $0xa0] sm:$0xff]
      %v492 = vld [vmem:[%s1 + $0xa8] sm:$0xff]
      %v493 = vld [vmem:[%s1 + $0xb0] sm:$0xff]
      %v494 = vld [vmem:[%s1 + $0xb8] sm:$0xff]
      %v495 = vld [vmem:[%s1 + $0xc0] sm:$0xff]
      %v496 = vld [vmem:[%s1 + $0xc8] sm:$0xff]
      %v497 = vld [vmem:[%s1 + $0xd0] sm:$0xff]
      %v498 = vld [vmem:[%s1 + $0xd8] sm:$0xff]
      %v499 = vld [vmem:[%s1 + $0xe0] sm:$0xff]
      %v500 = vld [vmem:[%s1 + $0xe8] sm:$0xff]
      %v501 = vld [vmem:[%s1 + $0xf0] sm:$0xff]
      %v502 = vld [vmem:[%s1 + $0xf8] sm:$0xff]
      %v503 = vld [vmem:[%s1 + $0x100] sm:$0xff]
      %v504 = vld [vmem:[%s1 + $0x108] sm:$0xff]
      %v505 = vld [vmem:[%s1 + $0x110] sm:$0xff]
      %v506 = vld [vmem:[%s1 + $0x118] sm:$0xff]
      %v507 = vld [vmem:[%s2] sm:$0x1]
      %v509 = vlaneseq
      %v510 = vshrl.u32 %v509, 7
      %v511 = vsub.s32 0, %v510
      %v512 = vrot.slane %v507, %v511
      %vm514 = vcmask 261120
      %v516 = vsel %vm514, %v179, 0
      %v519 = vsel %vm514, %v182, 0
      %v522 = vsel %vm514, %v185, 0
      %v525 = vsel %vm514, %v188, 0
      %v528 = vsel %vm514, %v191, 0
      %v531 = vsel %vm514, %v194, 0
      %v534 = vsel %vm514, %v197, 0
      %v537 = vsel %vm514, %v200, 0
      %v540 = vsel %vm514, %v203, 0
      %v543 = vsel %vm514, %v206, 0
      %v546 = vsel %vm514, %v209, 0
      %v549 = vsel %vm514, %v212, 0
      %v552 = vsel %vm514, %v215, 0
      %v555 = vsel %vm514, %v218, 0
      %v558 = vsel %vm514, %v221, 0
      %v561 = vsel %vm514, %v224, 0
      %v564 = vsel %vm514, %v227, 0
      %v567 = vsel %vm514, %v230, 0
      %v570 = vsel %vm514, %v233, 0
      %v573 = vsel %vm514, %v236, 0
      %v576 = vsel %vm514, %v239, 0
      %v579 = vsel %vm514, %v242, 0
      %v582 = vsel %vm514, %v245, 0
      %v585 = vsel %vm514, %v248, 0
      %v588 = vsel %vm514, %v251, 0
      %v591 = vsel %vm514, %v254, 0
      %v594 = vsel %vm514, %v257, 0
      %v597 = vsel %vm514, %v260, 0
      %v600 = vsel %vm514, %v263, 0
      %v603 = vsel %vm514, %v266, 0
      %v606 = vsel %vm514, %v269, 0
      %v609 = vsel %vm514, %v272, 0
      %v612 = vsel %vm514, %v275, 0
      %v615 = vsel %vm514, %v278, 0
      %v618 = vsel %vm514, %v281, 0
      %v621 = vsel %vm514, %v284, 0
      %v624 = vsel %vm514, %v287, 0
      %v627 = vsel %vm514, %v290, 0
      %v630 = vsel %vm514, %v293, 0
      %v633 = vsel %vm514, %v296, 0
      %v636 = vsel %vm514, %v299, 0
      %v639 = vsel %vm514, %v302, 0
      %v642 = vsel %vm514, %v305, 0
      %v645 = vsel %vm514, %v308, 0
      %v648 = vsel %vm514, %v311, 0
      %v651 = vsel %vm514, %v314, 0
      %v654 = vsel %vm514, %v317, 0
      %v657 = vsel %vm514, %v320, 0
      %v660 = vsel %vm514, %v323, 0
      %v663 = vsel %vm514, %v326, 0
      %v666 = vsel %vm514, %v329, 0
      %v669 = vsel %vm514, %v332, 0
      %v672 = vsel %vm514, %v335, 0
      %v675 = vsel %vm514, %v338, 0
      %v678 = vsel %vm514, %v341, 0
      %v681 = vsel %vm514, %v344, 0
      %v684 = vsel %vm514, %v347, 0
      %v687 = vsel %vm514, %v350, 0
      %v690 = vsel %vm514, %v353, 0
      %v693 = vsel %vm514, %v356, 0
      %v696 = vsel %vm514, %v359, 0
      %v699 = vsel %vm514, %v362, 0
      %v702 = vsel %vm514, %v365, 0
      %v705 = vsel %vm514, %v368, 0
      %v708 = vsel %vm514, %v371, 0
      %v711 = vsel %vm514, %v374, 0
      %v714 = vsel %vm514, %v377, 0
      %v717 = vsel %vm514, %v380, 0
      %v720 = vsel %vm514, %v383, 0
      %v723 = vsel %vm514, %v386, 0
      %v726 = vsel %vm514, %v389, 0
      %v729 = vsel %vm514, %v392, 0
      %v732 = vsel %vm514, %v395, 0
      %v735 = vsel %vm514, %v398, 0
      %v738 = vsel %vm514, %v401, 0
      %v741 = vsel %vm514, %v404, 0
      %v744 = vsel %vm514, %v407, 0
      %v747 = vsel %vm514, %v410, 0
      %v750 = vsel %vm514, %v413, 0
      %v753 = vsel %vm514, %v416, 0
      %v756 = vsel %vm514, %v419, 0
      %v759 = vsel %vm514, %v422, 0
      %v762 = vsel %vm514, %v425, 0
      %v765 = vsel %vm514, %v428, 0
      %v768 = vsel %vm514, %v431, 0
      %v771 = vsel %vm514, %v434, 0
      %v774 = vsel %vm514, %v437, 0
      %v777 = vsel %vm514, %v440, 0
      %v780 = vsel %vm514, %v443, 0
      %v783 = vsel %vm514, %v446, 0
      %v786 = vsel %vm514, %v449, 0
      %v789 = vsel %vm514, %v452, 0
      %v792 = vsel %vm514, %v455, 0
      %v795 = vsel %vm514, %v458, 0
      %v798 = vsel %vm514, %v461, 0
      %v801 = vsel %vm514, %v464, 0
      %v804 = vsel %vm514, %v467, 0
      %v807 = vsel %vm514, %v470, 0
      %809 = vmatprep.subr.mxu0 0.0
      %810 = vmatpush1.msra.mxu0 %v471
      %811 = vmatprep.subr.mxu0 0.0
      %812 = vmatpush1.msra.mxu0 %v472
      %813 = vmatprep.subr.mxu0 0.0
      %814 = vmatpush1.msra.mxu0 %v473
      %815 = vmatprep.subr.mxu0 0.0
      %816 = vmatpush1.msra.mxu0 %v474
      %817 = vmatprep.subr.mxu0 0.0
      %818 = vmatpush1.msra.mxu0 %v475
      %819 = vmatprep.subr.mxu0 0.0
      %820 = vmatpush1.msra.mxu0 %v476
      %821 = vmatprep.subr.mxu0 0.0
      %822 = vmatpush1.msra.mxu0 %v477
      %823 = vmatprep.subr.mxu0 0.0
      %824 = vmatpush1.msra.mxu0 %v478
      %825 = vmatprep.subr.mxu0 0.0
      %826 = vmatpush1.msra.mxu0 %v479
      %827 = vmatprep.subr.mxu0 0.0
      %828 = vmatpush1.msra.mxu0 %v480
      %829 = vmatprep.subr.mxu0 0.0
      %830 = vmatpush1.msra.mxu0 %v481
      %831 = vmatprep.subr.mxu0 0.0
      %832 = vmatpush1.msra.mxu0 %v482
      %833 = vmatprep.subr.mxu0 0.0
      %834 = vmatpush1.msra.mxu0 %v483
      %835 = vmatprep.subr.mxu0 0.0
      %836 = vmatpush1.msra.mxu0 %v484
      %837 = vmatprep.subr.mxu0 0.0
      %838 = vmatpush1.msra.mxu0 %v485
      %839 = vmatprep.subr.mxu0 0.0
      %840 = vmatpush1.msra.mxu0 %v486
      %841 = vmatprep.subr.mxu0 0.0
      %842 = vmatpush1.msra.mxu0 %v487
      %843 = vmatprep.subr.mxu0 0.0
      %844 = vmatpush1.msra.mxu0 %v488
      %845 = vmatprep.subr.mxu0 0.0
      %846 = vmatpush1.msra.mxu0 %v489
      %847 = vmatprep.subr.mxu0 0.0
      %848 = vmatpush1.msra.mxu0 %v490
      %849 = vmatprep.subr.mxu0 0.0
      %850 = vmatpush1.msra.mxu0 %v491
      %851 = vmatprep.subr.mxu0 0.0
      %852 = vmatpush1.msra.mxu0 %v492
      %853 = vmatprep.subr.mxu0 0.0
      %854 = vmatpush1.msra.mxu0 %v493
      %855 = vmatprep.subr.mxu0 0.0
      %856 = vmatpush1.msra.mxu0 %v494
      %857 = vmatprep.subr.mxu0 0.0
      %858 = vmatpush1.msra.mxu0 %v495
      %859 = vmatprep.subr.mxu0 0.0
      %860 = vmatpush1.msra.mxu0 %v496
      %861 = vmatprep.subr.mxu0 0.0
      %862 = vmatpush1.msra.mxu0 %v497
      %863 = vmatprep.subr.mxu0 0.0
      %864 = vmatpush1.msra.mxu0 %v498
      %865 = vmatprep.subr.mxu0 0.0
      %866 = vmatpush1.msra.mxu0 %v499
      %867 = vmatprep.subr.mxu0 0.0
      %868 = vmatpush1.msra.mxu0 %v500
      %869 = vmatprep.subr.mxu0 0.0
      %870 = vmatpush1.msra.mxu0 %v501
      %871 = vmatprep.subr.mxu0 0.0
      %872 = vmatpush1.msra.mxu0 %v502
      %873 = vmatprep.mubr.f32.mxu0 %v178
      %874 = vmatmul.mubr.f32.gmra.mrb[0].mxu0 %v177
      %v875 = vpop.f32.mrb[0].mxu0
      %v876 = vadd.f32 %v512, %v875
      %v877 = vpop.f32.mrb[0].mxu0
      %878 = vmatprep.mubr.f32.mxu0 %v181
      %879 = vmatmul.mubr.f32.gmra.mrb[0].mxu0 %v180
      %v880 = vpop.f32.mrb[0].mxu0
      %v881 = vadd.f32 %v512, %v880
      %v882 = vpop.f32.mrb[0].mxu0
      %883 = vmatprep.mubr.f32.mxu0 %v184
      %884 = vmatmul.mubr.f32.gmra.mrb[0].mxu0 %v183
      %v885 = vpop.f32.mrb[0].mxu0
      %v886 = vadd.f32 %v512, %v885
      %v887 = vpop.f32.mrb[0].mxu0
      %888 = vmatprep.mubr.f32.mxu0 %v187
      %889 = vmatmul.mubr.f32.gmra.mrb[0].mxu0 %v186
      %v890 = vpop.f32.mrb[0].mxu0
      %v891 = vadd.f32 %v512, %v890
      %v892 = vpop.f32.mrb[0].mxu0
      %893 = vmatprep.mubr.f32.mxu0 %v190
      %894 = vmatmul.mubr.f32.gmra.mrb[0].mxu0 %v189
      %v895 = vpop.f32.mrb[0].mxu0
      %v896 = vadd.f32 %v512, %v895
      %v897 = vpop.f32.mrb[0].mxu0
      %898 = vmatprep.mubr.f32.mxu0 %v193
      %899 = vmatmul.mubr.f32.gmra.mrb[0].mxu0 %v192
      %v900 = vpop.f32.mrb[0].mxu0
      %v901 = vadd.f32 %v512, %v900
      %v902 = vpop.f32.mrb[0].mxu0
      %903 = vmatprep.mubr.f32.mxu0 %v196
      %904 = vmatmul.mubr.f32.gmra.mrb[0].mxu0 %v195
      %v905 = vpop.f32.mrb[0].mxu0
      %v906 = vadd.f32 %v512, %v905
      %v907 = vpop.f32.mrb[0].mxu0
      %908 = vmatprep.mubr.f32.mxu0 %v199
      %909 = vmatmul.mubr.f32.gmra.mrb[0].mxu0 %v198
      %v910 = vpop.f32.mrb[0].mxu0
      %v911 = vadd.f32 %v512, %v910
      %v912 = vpop.f32.mrb[0].mxu0
      %913 = vmatprep.mubr.f32.mxu0 %v202
      %914 = vmatmul.mubr.f32.gmra.mrb[0].mxu0 %v201
      %v915 = vpop.f32.mrb[0].mxu0
      %v916 = vadd.f32 %v512, %v915
      %v917 = vpop.f32.mrb[0].mxu0
      %918 = vmatprep.mubr.f32.mxu0 %v205
      %919 = vmatmul.mubr.f32.gmra.mrb[0].mxu0 %v204
      %v920 = vpop.f32.mrb[0].mxu0
      %v921 = vadd.f32 %v512, %v920
      %v922 = vpop.f32.mrb[0].mxu0
      %923 = vmatprep.mubr.f32.mxu0 %v208
      %924 = vmatmul.mubr.f32.gmra.mrb[0].mxu0 %v207
      %v925 = vpop.f32.mrb[0].mxu0
      %v926 = vadd.f32 %v512, %v925
      %v927 = vpop.f32.mrb[0].mxu0
      %928 = vmatprep.mubr.f32.mxu0 %v211
      %929 = vmatmul.mubr.f32.gmra.mrb[0].mxu0 %v210
      %v930 = vpop.f32.mrb[0].mxu0
      %v931 = vadd.f32 %v512, %v930
      %v932 = vpop.f32.mrb[0].mxu0
      %933 = vmatprep.mubr.f32.mxu0 %v214
      %934 = vmatmul.mubr.f32.gmra.mrb[0].mxu0 %v213
      %v935 = vpop.f32.mrb[0].mxu0
      %v936 = vadd.f32 %v512, %v935
      %v937 = vpop.f32.mrb[0].mxu0
      %938 = vmatprep.mubr.f32.mxu0 %v217
      %939 = vmatmul.mubr.f32.gmra.mrb[0].mxu0 %v216
      %v940 = vpop.f32.mrb[0].mxu0
      %v941 = vadd.f32 %v512, %v940
      %v942 = vpop.f32.mrb[0].mxu0
      %943 = vmatprep.mubr.f32.mxu0 %v220
      %944 = vmatmul.mubr.f32.gmra.mrb[0].mxu0 %v219
      %v945 = vpop.f32.mrb[0].mxu0
      %v946 = vadd.f32 %v512, %v945
      %v947 = vpop.f32.mrb[0].mxu0
      %948 = vmatprep.mubr.f32.mxu0 %v223
      %949 = vmatmul.mubr.f32.gmra.mrb[0].mxu0 %v222
      %v950 = vpop.f32.mrb[0].mxu0
      %v951 = vadd.f32 %v512, %v950
      %v952 = vpop.f32.mrb[0].mxu0
      %953 = vmatprep.mubr.f32.mxu0 %v226
      %954 = vmatmul.mubr.f32.gmra.mrb[0].mxu0 %v225
      %v955 = vpop.f32.mrb[0].mxu0
      %v956 = vadd.f32 %v512, %v955
      %v957 = vpop.f32.mrb[0].mxu0
      %958 = vmatprep.mubr.f32.mxu0 %v229
      %959 = vmatmul.mubr.f32.gmra.mrb[0].mxu0 %v228
      %v960 = vpop.f32.mrb[0].mxu0
      %v961 = vadd.f32 %v512, %v960
      %v962 = vpop.f32.mrb[0].mxu0
      %963 = vmatprep.mubr.f32.mxu0 %v232
      %964 = vmatmul.mubr.f32.gmra.mrb[0].mxu0 %v231
      %v965 = vpop.f32.mrb[0].mxu0
      %v966 = vadd.f32 %v512, %v965
      %v967 = vpop.f32.mrb[0].mxu0
      %968 = vmatprep.mubr.f32.mxu0 %v235
      %969 = vmatmul.mubr.f32.gmra.mrb[0].mxu0 %v234
      %v970 = vpop.f32.mrb[0].mxu0
      %v971 = vadd.f32 %v512, %v970
      %v972 = vpop.f32.mrb[0].mxu0
      %973 = vmatprep.mubr.f32.mxu0 %v238
      %974 = vmatmul.mubr.f32.gmra.mrb[0].mxu0 %v237
      %v975 = vpop.f32.mrb[0].mxu0
      %v976 = vadd.f32 %v512, %v975
      %v977 = vpop.f32.mrb[0].mxu0
      %978 = vmatprep.mubr.f32.mxu0 %v241
      %979 = vmatmul.mubr.f32.gmra.mrb[0].mxu0 %v240
      %v980 = vpop.f32.mrb[0].mxu0
      %v981 = vadd.f32 %v512, %v980
      %v982 = vpop.f32.mrb[0].mxu0
      %983 = vmatprep.mubr.f32.mxu0 %v244
      %984 = vmatmul.mubr.f32.gmra.mrb[0].mxu0 %v243
      %v985 = vpop.f32.mrb[0].mxu0
      %v986 = vadd.f32 %v512, %v985
      %v987 = vpop.f32.mrb[0].mxu0
      %988 = vmatprep.mubr.f32.mxu0 %v247
      %989 = vmatmul.mubr.f32.gmra.mrb[0].mxu0 %v246
      %v990 = vpop.f32.mrb[0].mxu0
      %v991 = vadd.f32 %v512, %v990
      %v992 = vpop.f32.mrb[0].mxu0
      %993 = vmatprep.mubr.f32.mxu0 %v250
      %994 = vmatmul.mubr.f32.gmra.mrb[0].mxu0 %v249
      %v995 = vpop.f32.mrb[0].mxu0
      %v996 = vadd.f32 %v512, %v995
      %v997 = vpop.f32.mrb[0].mxu0
      %998 = vmatprep.mubr.f32.mxu0 %v253
      %999 = vmatmul.mubr.f32.gmra.mrb[0].mxu0 %v252
      %v1000 = vpop.f32.mrb[0].mxu0
      %v1001 = vadd.f32 %v512, %v1000
      %v1002 = vpop.f32.mrb[0].mxu0
      %1003 = vmatprep.mubr.f32.mxu0 %v256
      %1004 = vmatmul.mubr.f32.gmra.mrb[0].mxu0 %v255
      %v1005 = vpop.f32.mrb[0].mxu0
      %v1006 = vadd.f32 %v512, %v1005
      %v1007 = vpop.f32.mrb[0].mxu0
      %1008 = vmatprep.mubr.f32.mxu0 %v259
      %1009 = vmatmul.mubr.f32.gmra.mrb[0].mxu0 %v258
      %v1010 = vpop.f32.mrb[0].mxu0
      %v1011 = vadd.f32 %v512, %v1010
      %v1012 = vpop.f32.mrb[0].mxu0
      %1013 = vmatprep.mubr.f32.mxu0 %v262
      %1014 = vmatmul.mubr.f32.gmra.mrb[0].mxu0 %v261
      %v1015 = vpop.f32.mrb[0].mxu0
      %v1016 = vadd.f32 %v512, %v1015
      %v1017 = vpop.f32.mrb[0].mxu0
      %1018 = vmatprep.mubr.f32.mxu0 %v265
      %1019 = vmatmul.mubr.f32.gmra.mrb[0].mxu0 %v264
      %v1020 = vpop.f32.mrb[0].mxu0
      %v1021 = vadd.f32 %v512, %v1020
      %v1022 = vpop.f32.mrb[0].mxu0
      %1023 = vmatprep.mubr.f32.mxu0 %v268
      %1024 = vmatmul.mubr.f32.gmra.mrb[0].mxu0 %v267
      %v1025 = vpop.f32.mrb[0].mxu0
      %v1026 = vadd.f32 %v512, %v1025
      %v1027 = vpop.f32.mrb[0].mxu0
      %1028 = vmatprep.mubr.f32.mxu0 %v271
      %1029 = vmatmul.mubr.f32.gmra.mrb[0].mxu0 %v270
      %v1030 = vpop.f32.mrb[0].mxu0
      %v1031 = vadd.f32 %v512, %v1030
      %v1032 = vpop.f32.mrb[0].mxu0
      %1033 = vmatprep.mubr.f32.mxu0 %v274
      %1034 = vmatmul.mubr.f32.gmra.mrb[0].mxu0 %v273
      %v1035 = vpop.f32.mrb[0].mxu0
      %v1036 = vadd.f32 %v512, %v1035
      %v1037 = vpop.f32.mrb[0].mxu0
      %1038 = vmatprep.mubr.f32.mxu0 %v277
      %1039 = vmatmul.mubr.f32.gmra.mrb[0].mxu0 %v276
      %v1040 = vpop.f32.mrb[0].mxu0
      %v1041 = vadd.f32 %v512, %v1040
      %v1042 = vpop.f32.mrb[0].mxu0
      %1043 = vmatprep.mubr.f32.mxu0 %v280
      %1044 = vmatmul.mubr.f32.gmra.mrb[0].mxu0 %v279
      %v1045 = vpop.f32.mrb[0].mxu0
      %v1046 = vadd.f32 %v512, %v1045
      %v1047 = vpop.f32.mrb[0].mxu0
      %1048 = vmatprep.mubr.f32.mxu0 %v283
      %1049 = vmatmul.mubr.f32.gmra.mrb[0].mxu0 %v282
      %v1050 = vpop.f32.mrb[0].mxu0
      %v1051 = vadd.f32 %v512, %v1050
      %v1052 = vpop.f32.mrb[0].mxu0
      %1053 = vmatprep.mubr.f32.mxu0 %v286
      %1054 = vmatmul.mubr.f32.gmra.mrb[0].mxu0 %v285
      %v1055 = vpop.f32.mrb[0].mxu0
      %v1056 = vadd.f32 %v512, %v1055
      %v1057 = vpop.f32.mrb[0].mxu0
      %1058 = vmatprep.mubr.f32.mxu0 %v289
      %1059 = vmatmul.mubr.f32.gmra.mrb[0].mxu0 %v288
      %v1060 = vpop.f32.mrb[0].mxu0
      %v1061 = vadd.f32 %v512, %v1060
      %v1062 = vpop.f32.mrb[0].mxu0
      %1063 = vmatprep.mubr.f32.mxu0 %v292
      %1064 = vmatmul.mubr.f32.gmra.mrb[0].mxu0 %v291
      %v1065 = vpop.f32.mrb[0].mxu0
      %v1066 = vadd.f32 %v512, %v1065
      %v1067 = vpop.f32.mrb[0].mxu0
      %1068 = vmatprep.mubr.f32.mxu0 %v295
      %1069 = vmatmul.mubr.f32.gmra.mrb[0].mxu0 %v294
      %v1070 = vpop.f32.mrb[0].mxu0
      %v1071 = vadd.f32 %v512, %v1070
      %v1072 = vpop.f32.mrb[0].mxu0
      %1073 = vmatprep.mubr.f32.mxu0 %v298
      %1074 = vmatmul.mubr.f32.gmra.mrb[0].mxu0 %v297
      %v1075 = vpop.f32.mrb[0].mxu0
      %v1076 = vadd.f32 %v512, %v1075
      %v1077 = vpop.f32.mrb[0].mxu0
      %1078 = vmatprep.mubr.f32.mxu0 %v301
      %1079 = vmatmul.mubr.f32.gmra.mrb[0].mxu0 %v300
      %v1080 = vpop.f32.mrb[0].mxu0
      %v1081 = vadd.f32 %v512, %v1080
      %v1082 = vpop.f32.mrb[0].mxu0
      %1083 = vmatprep.mubr.f32.mxu0 %v304
      %1084 = vmatmul.mubr.f32.gmra.mrb[0].mxu0 %v303
      %v1085 = vpop.f32.mrb[0].mxu0
      %v1086 = vadd.f32 %v512, %v1085
      %v1087 = vpop.f32.mrb[0].mxu0
      %1088 = vmatprep.mubr.f32.mxu0 %v307
      %1089 = vmatmul.mubr.f32.gmra.mrb[0].mxu0 %v306
      %v1090 = vpop.f32.mrb[0].mxu0
      %v1091 = vadd.f32 %v512, %v1090
      %v1092 = vpop.f32.mrb[0].mxu0
      %1093 = vmatprep.mubr.f32.mxu0 %v310
      %1094 = vmatmul.mubr.f32.gmra.mrb[0].mxu0 %v309
      %v1095 = vpop.f32.mrb[0].mxu0
      %v1096 = vadd.f32 %v512, %v1095
      %v1097 = vpop.f32.mrb[0].mxu0
      %1098 = vmatprep.mubr.f32.mxu0 %v313
      %1099 = vmatmul.mubr.f32.gmra.mrb[0].mxu0 %v312
      %v1100 = vpop.f32.mrb[0].mxu0
      %v1101 = vadd.f32 %v512, %v1100
      %v1102 = vpop.f32.mrb[0].mxu0
      %1103 = vmatprep.mubr.f32.mxu0 %v316
      %1104 = vmatmul.mubr.f32.gmra.mrb[0].mxu0 %v315
      %v1105 = vpop.f32.mrb[0].mxu0
      %v1106 = vadd.f32 %v512, %v1105
      %v1107 = vpop.f32.mrb[0].mxu0
      %1108 = vmatprep.mubr.f32.mxu0 %v319
      %1109 = vmatmul.mubr.f32.gmra.mrb[0].mxu0 %v318
      %v1110 = vpop.f32.mrb[0].mxu0
      %v1111 = vadd.f32 %v512, %v1110
      %v1112 = vpop.f32.mrb[0].mxu0
      %1113 = vmatprep.mubr.f32.mxu0 %v322
      %1114 = vmatmul.mubr.f32.gmra.mrb[0].mxu0 %v321
      %v1115 = vpop.f32.mrb[0].mxu0
      %v1116 = vadd.f32 %v512, %v1115
      %v1117 = vpop.f32.mrb[0].mxu0
      %1118 = vmatprep.mubr.f32.mxu0 %v325
      %1119 = vmatmul.mubr.f32.gmra.mrb[0].mxu0 %v324
      %v1120 = vpop.f32.mrb[0].mxu0
      %v1121 = vadd.f32 %v512, %v1120
      %v1122 = vpop.f32.mrb[0].mxu0
      %1123 = vmatprep.mubr.f32.mxu0 %v328
      %1124 = vmatmul.mubr.f32.gmra.mrb[0].mxu0 %v327
      %v1125 = vpop.f32.mrb[0].mxu0
      %v1126 = vadd.f32 %v512, %v1125
      %v1127 = vpop.f32.mrb[0].mxu0
      %1128 = vmatprep.mubr.f32.mxu0 %v331
      %1129 = vmatmul.mubr.f32.gmra.mrb[0].mxu0 %v330
      %v1130 = vpop.f32.mrb[0].mxu0
      %v1131 = vadd.f32 %v512, %v1130
      %v1132 = vpop.f32.mrb[0].mxu0
      %1133 = vmatprep.mubr.f32.mxu0 %v334
      %1134 = vmatmul.mubr.f32.gmra.mrb[0].mxu0 %v333
      %v1135 = vpop.f32.mrb[0].mxu0
      %v1136 = vadd.f32 %v512, %v1135
      %v1137 = vpop.f32.mrb[0].mxu0
      %1138 = vmatprep.mubr.f32.mxu0 %v337
      %1139 = vmatmul.mubr.f32.gmra.mrb[0].mxu0 %v336
      %v1140 = vpop.f32.mrb[0].mxu0
      %v1141 = vadd.f32 %v512, %v1140
      %v1142 = vpop.f32.mrb[0].mxu0
      %1143 = vmatprep.mubr.f32.mxu0 %v340
      %1144 = vmatmul.mubr.f32.gmra.mrb[0].mxu0 %v339
      %v1145 = vpop.f32.mrb[0].mxu0
      %v1146 = vadd.f32 %v512, %v1145
      %v1147 = vpop.f32.mrb[0].mxu0
      %1148 = vmatprep.mubr.f32.mxu0 %v343
      %1149 = vmatmul.mubr.f32.gmra.mrb[0].mxu0 %v342
      %v1150 = vpop.f32.mrb[0].mxu0
      %v1151 = vadd.f32 %v512, %v1150
      %v1152 = vpop.f32.mrb[0].mxu0
      %1153 = vmatprep.mubr.f32.mxu0 %v346
      %1154 = vmatmul.mubr.f32.gmra.mrb[0].mxu0 %v345
      %v1155 = vpop.f32.mrb[0].mxu0
      %v1156 = vadd.f32 %v512, %v1155
      %v1157 = vpop.f32.mrb[0].mxu0
      %1158 = vmatprep.mubr.f32.mxu0 %v349
      %1159 = vmatmul.mubr.f32.gmra.mrb[0].mxu0 %v348
      %v1160 = vpop.f32.mrb[0].mxu0
      %v1161 = vadd.f32 %v512, %v1160
      %v1162 = vpop.f32.mrb[0].mxu0
      %1163 = vmatprep.mubr.f32.mxu0 %v352
      %1164 = vmatmul.mubr.f32.gmra.mrb[0].mxu0 %v351
      %v1165 = vpop.f32.mrb[0].mxu0
      %v1166 = vadd.f32 %v512, %v1165
      %v1167 = vpop.f32.mrb[0].mxu0
      %1168 = vmatprep.mubr.f32.mxu0 %v355
      %1169 = vmatmul.mubr.f32.gmra.mrb[0].mxu0 %v354
      %v1170 = vpop.f32.mrb[0].mxu0
      %v1171 = vadd.f32 %v512, %v1170
      %v1172 = vpop.f32.mrb[0].mxu0
      %1173 = vmatprep.mubr.f32.mxu0 %v358
      %1174 = vmatmul.mubr.f32.gmra.mrb[0].mxu0 %v357
      %v1175 = vpop.f32.mrb[0].mxu0
      %v1176 = vadd.f32 %v512, %v1175
      %v1177 = vpop.f32.mrb[0].mxu0
      %1178 = vmatprep.mubr.f32.mxu0 %v361
      %1179 = vmatmul.mubr.f32.gmra.mrb[0].mxu0 %v360
      %v1180 = vpop.f32.mrb[0].mxu0
      %v1181 = vadd.f32 %v512, %v1180
      %v1182 = vpop.f32.mrb[0].mxu0
      %1183 = vmatprep.mubr.f32.mxu0 %v364
      %1184 = vmatmul.mubr.f32.gmra.mrb[0].mxu0 %v363
      %v1185 = vpop.f32.mrb[0].mxu0
      %v1186 = vadd.f32 %v512, %v1185
      %v1187 = vpop.f32.mrb[0].mxu0
      %1188 = vmatprep.mubr.f32.mxu0 %v367
      %1189 = vmatmul.mubr.f32.gmra.mrb[0].mxu0 %v366
      %v1190 = vpop.f32.mrb[0].mxu0
      %v1191 = vadd.f32 %v512, %v1190
      %v1192 = vpop.f32.mrb[0].mxu0
      %1193 = vmatprep.mubr.f32.mxu0 %v370
      %1194 = vmatmul.mubr.f32.gmra.mrb[0].mxu0 %v369
      %v1195 = vpop.f32.mrb[0].mxu0
      %v1196 = vadd.f32 %v512, %v1195
      %v1197 = vpop.f32.mrb[0].mxu0
      %1198 = vmatprep.mubr.f32.mxu0 %v373
      %1199 = vmatmul.mubr.f32.gmra.mrb[0].mxu0 %v372
      %v1200 = vpop.f32.mrb[0].mxu0
      %v1201 = vadd.f32 %v512, %v1200
      %v1202 = vpop.f32.mrb[0].mxu0
      %1203 = vmatprep.mubr.f32.mxu0 %v376
      %1204 = vmatmul.mubr.f32.gmra.mrb[0].mxu0 %v375
      %v1205 = vpop.f32.mrb[0].mxu0
      %v1206 = vadd.f32 %v512, %v1205
      %v1207 = vpop.f32.mrb[0].mxu0
      %1208 = vmatprep.mubr.f32.mxu0 %v379
      %1209 = vmatmul.mubr.f32.gmra.mrb[0].mxu0 %v378
      %v1210 = vpop.f32.mrb[0].mxu0
      %v1211 = vadd.f32 %v512, %v1210
      %v1212 = vpop.f32.mrb[0].mxu0
      %1213 = vmatprep.mubr.f32.mxu0 %v382
      %1214 = vmatmul.mubr.f32.gmra.mrb[0].mxu0 %v381
      %v1215 = vpop.f32.mrb[0].mxu0
      %v1216 = vadd.f32 %v512, %v1215
      %v1217 = vpop.f32.mrb[0].mxu0
      %1218 = vmatprep.mubr.f32.mxu0 %v385
      %1219 = vmatmul.mubr.f32.gmra.mrb[0].mxu0 %v384
      %v1220 = vpop.f32.mrb[0].mxu0
      %v1221 = vadd.f32 %v512, %v1220
      %v1222 = vpop.f32.mrb[0].mxu0
      %1223 = vmatprep.mubr.f32.mxu0 %v388
      %1224 = vmatmul.mubr.f32.gmra.mrb[0].mxu0 %v387
      %v1225 = vpop.f32.mrb[0].mxu0
      %v1226 = vadd.f32 %v512, %v1225
      %v1227 = vpop.f32.mrb[0].mxu0
      %1228 = vmatprep.mubr.f32.mxu0 %v391
      %1229 = vmatmul.mubr.f32.gmra.mrb[0].mxu0 %v390
      %v1230 = vpop.f32.mrb[0].mxu0
      %v1231 = vadd.f32 %v512, %v1230
      %v1232 = vpop.f32.mrb[0].mxu0
      %1233 = vmatprep.mubr.f32.mxu0 %v394
      %1234 = vmatmul.mubr.f32.gmra.mrb[0].mxu0 %v393
      %v1235 = vpop.f32.mrb[0].mxu0
      %v1236 = vadd.f32 %v512, %v1235
      %v1237 = vpop.f32.mrb[0].mxu0
      %1238 = vmatprep.mubr.f32.mxu0 %v397
      %1239 = vmatmul.mubr.f32.gmra.mrb[0].mxu0 %v396
      %v1240 = vpop.f32.mrb[0].mxu0
      %v1241 = vadd.f32 %v512, %v1240
      %v1242 = vpop.f32.mrb[0].mxu0
      %1243 = vmatprep.mubr.f32.mxu0 %v400
      %1244 = vmatmul.mubr.f32.gmra.mrb[0].mxu0 %v399
      %v1245 = vpop.f32.mrb[0].mxu0
      %v1246 = vadd.f32 %v512, %v1245
      %v1247 = vpop.f32.mrb[0].mxu0
      %1248 = vmatprep.mubr.f32.mxu0 %v403
      %1249 = vmatmul.mubr.f32.gmra.mrb[0].mxu0 %v402
      %v1250 = vpop.f32.mrb[0].mxu0
      %v1251 = vadd.f32 %v512, %v1250
      %v1252 = vpop.f32.mrb[0].mxu0
      %1253 = vmatprep.mubr.f32.mxu0 %v406
      %1254 = vmatmul.mubr.f32.gmra.mrb[0].mxu0 %v405
      %v1255 = vpop.f32.mrb[0].mxu0
      %v1256 = vadd.f32 %v512, %v1255
      %v1257 = vpop.f32.mrb[0].mxu0
      %1258 = vmatprep.mubr.f32.mxu0 %v409
      %1259 = vmatmul.mubr.f32.gmra.mrb[0].mxu0 %v408
      %v1260 = vpop.f32.mrb[0].mxu0
      %v1261 = vadd.f32 %v512, %v1260
      %v1262 = vpop.f32.mrb[0].mxu0
      %1263 = vmatprep.mubr.f32.mxu0 %v412
      %1264 = vmatmul.mubr.f32.gmra.mrb[0].mxu0 %v411
      %v1265 = vpop.f32.mrb[0].mxu0
      %v1266 = vadd.f32 %v512, %v1265
      %v1267 = vpop.f32.mrb[0].mxu0
      %1268 = vmatprep.mubr.f32.mxu0 %v415
      %1269 = vmatmul.mubr.f32.gmra.mrb[0].mxu0 %v414
      %v1270 = vpop.f32.mrb[0].mxu0
      %v1271 = vadd.f32 %v512, %v1270
      %v1272 = vpop.f32.mrb[0].mxu0
      %1273 = vmatprep.mubr.f32.mxu0 %v418
      %1274 = vmatmul.mubr.f32.gmra.mrb[0].mxu0 %v417
      %v1275 = vpop.f32.mrb[0].mxu0
      %v1276 = vadd.f32 %v512, %v1275
      %v1277 = vpop.f32.mrb[0].mxu0
      %1278 = vmatprep.mubr.f32.mxu0 %v421
      %1279 = vmatmul.mubr.f32.gmra.mrb[0].mxu0 %v420
      %v1280 = vpop.f32.mrb[0].mxu0
      %v1281 = vadd.f32 %v512, %v1280
      %v1282 = vpop.f32.mrb[0].mxu0
      %1283 = vmatprep.mubr.f32.mxu0 %v424
      %1284 = vmatmul.mubr.f32.gmra.mrb[0].mxu0 %v423
      %v1285 = vpop.f32.mrb[0].mxu0
      %v1286 = vadd.f32 %v512, %v1285
      %v1287 = vpop.f32.mrb[0].mxu0
      %1288 = vmatprep.mubr.f32.mxu0 %v427
      %1289 = vmatmul.mubr.f32.gmra.mrb[0].mxu0 %v426
      %v1290 = vpop.f32.mrb[0].mxu0
      %v1291 = vadd.f32 %v512, %v1290
      %v1292 = vpop.f32.mrb[0].mxu0
      %1293 = vmatprep.mubr.f32.mxu0 %v430
      %1294 = vmatmul.mubr.f32.gmra.mrb[0].mxu0 %v429
      %v1295 = vpop.f32.mrb[0].mxu0
      %v1296 = vadd.f32 %v512, %v1295
      %v1297 = vpop.f32.mrb[0].mxu0
      %1298 = vmatprep.mubr.f32.mxu0 %v433
      %1299 = vmatmul.mubr.f32.gmra.mrb[0].mxu0 %v432
      %v1300 = vpop.f32.mrb[0].mxu0
      %v1301 = vadd.f32 %v512, %v1300
      %v1302 = vpop.f32.mrb[0].mxu0
      %1303 = vmatprep.mubr.f32.mxu0 %v436
      %1304 = vmatmul.mubr.f32.gmra.mrb[0].mxu0 %v435
      %v1305 = vpop.f32.mrb[0].mxu0
      %v1306 = vadd.f32 %v512, %v1305
      %v1307 = vpop.f32.mrb[0].mxu0
      %1308 = vmatprep.mubr.f32.mxu0 %v439
      %1309 = vmatmul.mubr.f32.gmra.mrb[0].mxu0 %v438
      %v1310 = vpop.f32.mrb[0].mxu0
      %v1311 = vadd.f32 %v512, %v1310
      %v1312 = vpop.f32.mrb[0].mxu0
      %1313 = vmatprep.mubr.f32.mxu0 %v442
      %1314 = vmatmul.mubr.f32.gmra.mrb[0].mxu0 %v441
      %v1315 = vpop.f32.mrb[0].mxu0
      %v1316 = vadd.f32 %v512, %v1315
      %v1317 = vpop.f32.mrb[0].mxu0
      %1318 = vmatprep.mubr.f32.mxu0 %v445
      %1319 = vmatmul.mubr.f32.gmra.mrb[0].mxu0 %v444
      %v1320 = vpop.f32.mrb[0].mxu0
      %v1321 = vadd.f32 %v512, %v1320
      %v1322 = vpop.f32.mrb[0].mxu0
      %1323 = vmatprep.mubr.f32.mxu0 %v448
      %1324 = vmatmul.mubr.f32.gmra.mrb[0].mxu0 %v447
      %v1325 = vpop.f32.mrb[0].mxu0
      %v1326 = vadd.f32 %v512, %v1325
      %v1327 = vpop.f32.mrb[0].mxu0
      %1328 = vmatprep.mubr.f32.mxu0 %v451
      %1329 = vmatmul.mubr.f32.gmra.mrb[0].mxu0 %v450
      %v1330 = vpop.f32.mrb[0].mxu0
      %v1331 = vadd.f32 %v512, %v1330
      %v1332 = vpop.f32.mrb[0].mxu0
      %1333 = vmatprep.mubr.f32.mxu0 %v454
      %1334 = vmatmul.mubr.f32.gmra.mrb[0].mxu0 %v453
      %v1335 = vpop.f32.mrb[0].mxu0
      %v1336 = vadd.f32 %v512, %v1335
      %v1337 = vpop.f32.mrb[0].mxu0
      %1338 = vmatprep.mubr.f32.mxu0 %v457
      %1339 = vmatmul.mubr.f32.gmra.mrb[0].mxu0 %v456
      %v1340 = vpop.f32.mrb[0].mxu0
      %v1341 = vadd.f32 %v512, %v1340
      %v1342 = vpop.f32.mrb[0].mxu0
      %1343 = vmatprep.mubr.f32.mxu0 %v460
      %1344 = vmatmul.mubr.f32.gmra.mrb[0].mxu0 %v459
      %v1345 = vpop.f32.mrb[0].mxu0
      %v1346 = vadd.f32 %v512, %v1345
      %v1347 = vpop.f32.mrb[0].mxu0
      %1348 = vmatprep.mubr.f32.mxu0 %v463
      %1349 = vmatmul.mubr.f32.gmra.mrb[0].mxu0 %v462
      %v1350 = vpop.f32.mrb[0].mxu0
      %v1351 = vadd.f32 %v512, %v1350
      %v1352 = vpop.f32.mrb[0].mxu0
      %1353 = vmatprep.mubr.f32.mxu0 %v466
      %1354 = vmatmul.mubr.f32.gmra.mrb[0].mxu0 %v465
      %v1355 = vpop.f32.mrb[0].mxu0
      %v1356 = vadd.f32 %v512, %v1355
      %v1357 = vpop.f32.mrb[0].mxu0
      %1358 = vmatprep.mubr.f32.mxu0 %v469
      %1359 = vmatmul.mubr.f32.gmra.mrb[0].mxu0 %v468
      %v1360 = vpop.f32.mrb[0].mxu0
      %v1361 = vadd.f32 %v512, %v1360
      %v1362 = vpop.f32.mrb[0].mxu0
      %1363 = vdwg.mxu0
      %1364 = vmatprep.subr.mxu0 0.0
      %1365 = vmatpush1.msra.mxu0 %v503
      %1366 = vmatprep.subr.mxu0 0.0
      %1367 = vmatpush1.msra.mxu0 %v504
      %1368 = vmatprep.subr.mxu0 0.0
      %1369 = vmatpush1.msra.mxu0 %v505
      %1370 = vmatprep.subr.mxu0 0.0
      %1371 = vmatpush1.msra.mxu0 %v506
      %1372 = vmatprep.subr.mxu0 0.0
      %1373 = vmatpush1.msra.mxu0 0.0
      %1374 = vmatprep.subr.mxu0 0.0
      %1375 = vmatpush1.msra.mxu0 0.0
      %1376 = vmatprep.subr.mxu0 0.0
      %1377 = vmatpush1.msra.mxu0 0.0
      %1378 = vmatprep.subr.mxu0 0.0
      %1379 = vmatpush1.msra.mxu0 0.0
      %1380 = vmatprep.subr.mxu0 0.0
      %1381 = vmatpush1.msra.mxu0 0.0
      %1382 = vmatprep.subr.mxu0 0.0
      %1383 = vmatpush1.msra.mxu0 0.0
      %1384 = vmatprep.subr.mxu0 0.0
      %1385 = vmatpush1.msra.mxu0 0.0
      %1386 = vmatprep.subr.mxu0 0.0
      %1387 = vmatpush1.msra.mxu0 0.0
      %1388 = vmatprep.subr.mxu0 0.0
      %1389 = vmatpush1.msra.mxu0 0.0
      %1390 = vmatprep.subr.mxu0 0.0
      %1391 = vmatpush1.msra.mxu0 0.0
      %1392 = vmatprep.subr.mxu0 0.0
      %1393 = vmatpush1.msra.mxu0 0.0
      %1394 = vmatprep.subr.mxu0 0.0
      %1395 = vmatpush1.msra.mxu0 0.0
      %1396 = vmatprep.subr.mxu0 0.0
      %1397 = vmatpush1.msra.mxu0 0.0
      %1398 = vmatprep.subr.mxu0 0.0
      %1399 = vmatpush1.msra.mxu0 0.0
      %1400 = vmatprep.subr.mxu0 0.0
      %1401 = vmatpush1.msra.mxu0 0.0
      %1402 = vmatprep.subr.mxu0 0.0
      %1403 = vmatpush1.msra.mxu0 0.0
      %1404 = vmatprep.subr.mxu0 0.0
      %1405 = vmatpush1.msra.mxu0 0.0
      %1406 = vmatprep.subr.mxu0 0.0
      %1407 = vmatpush1.msra.mxu0 0.0
      %1408 = vmatprep.subr.mxu0 0.0
      %1409 = vmatpush1.msra.mxu0 0.0
      %1410 = vmatprep.subr.mxu0 0.0
      %1411 = vmatpush1.msra.mxu0 0.0
      %1412 = vmatprep.subr.mxu0 0.0
      %1413 = vmatpush1.msra.mxu0 0.0
      %1414 = vmatprep.subr.mxu0 0.0
      %1415 = vmatpush1.msra.mxu0 0.0
      %1416 = vmatprep.subr.mxu0 0.0
      %1417 = vmatpush1.msra.mxu0 0.0
      %1418 = vmatprep.subr.mxu0 0.0
      %1419 = vmatpush1.msra.mxu0 0.0
      %1420 = vmatprep.subr.mxu0 0.0
      %1421 = vmatpush1.msra.mxu0 0.0
      %1422 = vmatprep.subr.mxu0 0.0
      %1423 = vmatpush1.msra.mxu0 0.0
      %1424 = vmatprep.subr.mxu0 0.0
      %1425 = vmatpush1.msra.mxu0 0.0
      %1426 = vmatprep.subr.mxu0 0.0
      %1427 = vmatpush1.msra.mxu0 0.0
      %1428 = vmatprep.mubr.f32.mxu0 0.0
      %1429 = vmatmul.mubr.f32.gmra.mrb[0].mxu0 %v516
      %v1430 = vpop.f32.mrb[0].mxu0
      %v1431 = vadd.f32 %v876, %v1430
      %v1432 = vpop.f32.mrb[0].mxu0
      %1433 = vmatprep.mubr.f32.mxu0 0.0
      %1434 = vmatmul.mubr.f32.gmra.mrb[0].mxu0 %v519
      %v1435 = vpop.f32.mrb[0].mxu0
      %v1436 = vadd.f32 %v881, %v1435
      %v1437 = vpop.f32.mrb[0].mxu0
      %1438 = vmatprep.mubr.f32.mxu0 0.0
      %1439 = vmatmul.mubr.f32.gmra.mrb[0].mxu0 %v522
      %v1440 = vpop.f32.mrb[0].mxu0
      %v1441 = vadd.f32 %v886, %v1440
      %v1442 = vpop.f32.mrb[0].mxu0
      %1443 = vmatprep.mubr.f32.mxu0 0.0
      %1444 = vmatmul.mubr.f32.gmra.mrb[0].mxu0 %v525
      %v1445 = vpop.f32.mrb[0].mxu0
      %v1446 = vadd.f32 %v891, %v1445
      %v1447 = vpop.f32.mrb[0].mxu0
      %1448 = vmatprep.mubr.f32.mxu0 0.0
      %1449 = vmatmul.mubr.f32.gmra.mrb[0].mxu0 %v528
      %v1450 = vpop.f32.mrb[0].mxu0
      %v1451 = vadd.f32 %v896, %v1450
      %v1452 = vpop.f32.mrb[0].mxu0
      %1453 = vmatprep.mubr.f32.mxu0 0.0
      %1454 = vmatmul.mubr.f32.gmra.mrb[0].mxu0 %v531
      %v1455 = vpop.f32.mrb[0].mxu0
      %v1456 = vadd.f32 %v901, %v1455
      %v1457 = vpop.f32.mrb[0].mxu0
      %1458 = vmatprep.mubr.f32.mxu0 0.0
      %1459 = vmatmul.mubr.f32.gmra.mrb[0].mxu0 %v534
      %v1460 = vpop.f32.mrb[0].mxu0
      %v1461 = vadd.f32 %v906, %v1460
      %v1462 = vpop.f32.mrb[0].mxu0
      %1463 = vmatprep.mubr.f32.mxu0 0.0
      %1464 = vmatmul.mubr.f32.gmra.mrb[0].mxu0 %v537
      %v1465 = vpop.f32.mrb[0].mxu0
      %v1466 = vadd.f32 %v911, %v1465
      %v1467 = vpop.f32.mrb[0].mxu0
      %1468 = vmatprep.mubr.f32.mxu0 0.0
      %1469 = vmatmul.mubr.f32.gmra.mrb[0].mxu0 %v540
      %v1470 = vpop.f32.mrb[0].mxu0
      %v1471 = vadd.f32 %v916, %v1470
      %v1472 = vpop.f32.mrb[0].mxu0
      %1473 = vmatprep.mubr.f32.mxu0 0.0
      %1474 = vmatmul.mubr.f32.gmra.mrb[0].mxu0 %v543
      %v1475 = vpop.f32.mrb[0].mxu0
      %v1476 = vadd.f32 %v921, %v1475
      %v1477 = vpop.f32.mrb[0].mxu0
      %1478 = vmatprep.mubr.f32.mxu0 0.0
      %1479 = vmatmul.mubr.f32.gmra.mrb[0].mxu0 %v546
      %v1480 = vpop.f32.mrb[0].mxu0
      %v1481 = vadd.f32 %v926, %v1480
      %v1482 = vpop.f32.mrb[0].mxu0
      %1483 = vmatprep.mubr.f32.mxu0 0.0
      %1484 = vmatmul.mubr.f32.gmra.mrb[0].mxu0 %v549
      %v1485 = vpop.f32.mrb[0].mxu0
      %v1486 = vadd.f32 %v931, %v1485
      %v1487 = vpop.f32.mrb[0].mxu0
      %1488 = vmatprep.mubr.f32.mxu0 0.0
      %1489 = vmatmul.mubr.f32.gmra.mrb[0].mxu0 %v552
      %v1490 = vpop.f32.mrb[0].mxu0
      %v1491 = vadd.f32 %v936, %v1490
      %v1492 = vpop.f32.mrb[0].mxu0
      %1493 = vmatprep.mubr.f32.mxu0 0.0
      %1494 = vmatmul.mubr.f32.gmra.mrb[0].mxu0 %v555
      %v1495 = vpop.f32.mrb[0].mxu0
      %v1496 = vadd.f32 %v941, %v1495
      %v1497 = vpop.f32.mrb[0].mxu0
      %1498 = vmatprep.mubr.f32.mxu0 0.0
      %1499 = vmatmul.mubr.f32.gmra.mrb[0].mxu0 %v558
      %v1500 = vpop.f32.mrb[0].mxu0
      %v1501 = vadd.f32 %v946, %v1500
      %v1502 = vpop.f32.mrb[0].mxu0
      %1503 = vmatprep.mubr.f32.mxu0 0.0
      %1504 = vmatmul.mubr.f32.gmra.mrb[0].mxu0 %v561
      %v1505 = vpop.f32.mrb[0].mxu0
      %v1506 = vadd.f32 %v951, %v1505
      %v1507 = vpop.f32.mrb[0].mxu0
      %1508 = vmatprep.mubr.f32.mxu0 0.0
      %1509 = vmatmul.mubr.f32.gmra.mrb[0].mxu0 %v564
      %v1510 = vpop.f32.mrb[0].mxu0
      %v1511 = vadd.f32 %v956, %v1510
      %v1512 = vpop.f32.mrb[0].mxu0
      %1513 = vmatprep.mubr.f32.mxu0 0.0
      %1514 = vmatmul.mubr.f32.gmra.mrb[0].mxu0 %v567
      %v1515 = vpop.f32.mrb[0].mxu0
      %v1516 = vadd.f32 %v961, %v1515
      %v1517 = vpop.f32.mrb[0].mxu0
      %1518 = vmatprep.mubr.f32.mxu0 0.0
      %1519 = vmatmul.mubr.f32.gmra.mrb[0].mxu0 %v570
      %v1520 = vpop.f32.mrb[0].mxu0
      %v1521 = vadd.f32 %v966, %v1520
      %v1522 = vpop.f32.mrb[0].mxu0
      %1523 = vmatprep.mubr.f32.mxu0 0.0
      %1524 = vmatmul.mubr.f32.gmra.mrb[0].mxu0 %v573
      %v1525 = vpop.f32.mrb[0].mxu0
      %v1526 = vadd.f32 %v971, %v1525
      %v1527 = vpop.f32.mrb[0].mxu0
      %1528 = vmatprep.mubr.f32.mxu0 0.0
      %1529 = vmatmul.mubr.f32.gmra.mrb[0].mxu0 %v576
      %v1530 = vpop.f32.mrb[0].mxu0
      %v1531 = vadd.f32 %v976, %v1530
      %v1532 = vpop.f32.mrb[0].mxu0
      %1533 = vmatprep.mubr.f32.mxu0 0.0
      %1534 = vmatmul.mubr.f32.gmra.mrb[0].mxu0 %v579
      %v1535 = vpop.f32.mrb[0].mxu0
      %v1536 = vadd.f32 %v981, %v1535
      %v1537 = vpop.f32.mrb[0].mxu0
      %1538 = vmatprep.mubr.f32.mxu0 0.0
      %1539 = vmatmul.mubr.f32.gmra.mrb[0].mxu0 %v582
      %v1540 = vpop.f32.mrb[0].mxu0
      %v1541 = vadd.f32 %v986, %v1540
      %v1542 = vpop.f32.mrb[0].mxu0
      %1543 = vmatprep.mubr.f32.mxu0 0.0
      %1544 = vmatmul.mubr.f32.gmra.mrb[0].mxu0 %v585
      %v1545 = vpop.f32.mrb[0].mxu0
      %v1546 = vadd.f32 %v991, %v1545
      %v1547 = vpop.f32.mrb[0].mxu0
      %1548 = vmatprep.mubr.f32.mxu0 0.0
      %1549 = vmatmul.mubr.f32.gmra.mrb[0].mxu0 %v588
      %v1550 = vpop.f32.mrb[0].mxu0
      %v1551 = vadd.f32 %v996, %v1550
      %v1552 = vpop.f32.mrb[0].mxu0
      %1553 = vmatprep.mubr.f32.mxu0 0.0
      %1554 = vmatmul.mubr.f32.gmra.mrb[0].mxu0 %v591
      %v1555 = vpop.f32.mrb[0].mxu0
      %v1556 = vadd.f32 %v1001, %v1555
      %v1557 = vpop.f32.mrb[0].mxu0
      %1558 = vmatprep.mubr.f32.mxu0 0.0
      %1559 = vmatmul.mubr.f32.gmra.mrb[0].mxu0 %v594
      %v1560 = vpop.f32.mrb[0].mxu0
      %v1561 = vadd.f32 %v1006, %v1560
      %v1562 = vpop.f32.mrb[0].mxu0
      %1563 = vmatprep.mubr.f32.mxu0 0.0
      %1564 = vmatmul.mubr.f32.gmra.mrb[0].mxu0 %v597
      %v1565 = vpop.f32.mrb[0].mxu0
      %v1566 = vadd.f32 %v1011, %v1565
      %v1567 = vpop.f32.mrb[0].mxu0
      %1568 = vmatprep.mubr.f32.mxu0 0.0
      %1569 = vmatmul.mubr.f32.gmra.mrb[0].mxu0 %v600
      %v1570 = vpop.f32.mrb[0].mxu0
      %v1571 = vadd.f32 %v1016, %v1570
      %v1572 = vpop.f32.mrb[0].mxu0
      %1573 = vmatprep.mubr.f32.mxu0 0.0
      %1574 = vmatmul.mubr.f32.gmra.mrb[0].mxu0 %v603
      %v1575 = vpop.f32.mrb[0].mxu0
      %v1576 = vadd.f32 %v1021, %v1575
      %v1577 = vpop.f32.mrb[0].mxu0
      %1578 = vmatprep.mubr.f32.mxu0 0.0
      %1579 = vmatmul.mubr.f32.gmra.mrb[0].mxu0 %v606
      %v1580 = vpop.f32.mrb[0].mxu0
      %v1581 = vadd.f32 %v1026, %v1580
      %v1582 = vpop.f32.mrb[0].mxu0
      %1583 = vmatprep.mubr.f32.mxu0 0.0
      %1584 = vmatmul.mubr.f32.gmra.mrb[0].mxu0 %v609
      %v1585 = vpop.f32.mrb[0].mxu0
      %v1586 = vadd.f32 %v1031, %v1585
      %v1587 = vpop.f32.mrb[0].mxu0
      %1588 = vmatprep.mubr.f32.mxu0 0.0
      %1589 = vmatmul.mubr.f32.gmra.mrb[0].mxu0 %v612
      %v1590 = vpop.f32.mrb[0].mxu0
      %v1591 = vadd.f32 %v1036, %v1590
      %v1592 = vpop.f32.mrb[0].mxu0
      %1593 = vmatprep.mubr.f32.mxu0 0.0
      %1594 = vmatmul.mubr.f32.gmra.mrb[0].mxu0 %v615
      %v1595 = vpop.f32.mrb[0].mxu0
      %v1596 = vadd.f32 %v1041, %v1595
      %v1597 = vpop.f32.mrb[0].mxu0
      %1598 = vmatprep.mubr.f32.mxu0 0.0
      %1599 = vmatmul.mubr.f32.gmra.mrb[0].mxu0 %v618
      %v1600 = vpop.f32.mrb[0].mxu0
      %v1601 = vadd.f32 %v1046, %v1600
      %v1602 = vpop.f32.mrb[0].mxu0
      %1603 = vmatprep.mubr.f32.mxu0 0.0
      %1604 = vmatmul.mubr.f32.gmra.mrb[0].mxu0 %v621
      %v1605 = vpop.f32.mrb[0].mxu0
      %v1606 = vadd.f32 %v1051, %v1605
      %v1607 = vpop.f32.mrb[0].mxu0
      %1608 = vmatprep.mubr.f32.mxu0 0.0
      %1609 = vmatmul.mubr.f32.gmra.mrb[0].mxu0 %v624
      %v1610 = vpop.f32.mrb[0].mxu0
      %v1611 = vadd.f32 %v1056, %v1610
      %v1612 = vpop.f32.mrb[0].mxu0
      %1613 = vmatprep.mubr.f32.mxu0 0.0
      %1614 = vmatmul.mubr.f32.gmra.mrb[0].mxu0 %v627
      %v1615 = vpop.f32.mrb[0].mxu0
      %v1616 = vadd.f32 %v1061, %v1615
      %v1617 = vpop.f32.mrb[0].mxu0
      %1618 = vmatprep.mubr.f32.mxu0 0.0
      %1619 = vmatmul.mubr.f32.gmra.mrb[0].mxu0 %v630
      %v1620 = vpop.f32.mrb[0].mxu0
      %v1621 = vadd.f32 %v1066, %v1620
      %v1622 = vpop.f32.mrb[0].mxu0
      %1623 = vmatprep.mubr.f32.mxu0 0.0
      %1624 = vmatmul.mubr.f32.gmra.mrb[0].mxu0 %v633
      %v1625 = vpop.f32.mrb[0].mxu0
      %v1626 = vadd.f32 %v1071, %v1625
      %v1627 = vpop.f32.mrb[0].mxu0
      %1628 = vmatprep.mubr.f32.mxu0 0.0
      %1629 = vmatmul.mubr.f32.gmra.mrb[0].mxu0 %v636
      %v1630 = vpop.f32.mrb[0].mxu0
      %v1631 = vadd.f32 %v1076, %v1630
      %v1632 = vpop.f32.mrb[0].mxu0
      %1633 = vmatprep.mubr.f32.mxu0 0.0
      %1634 = vmatmul.mubr.f32.gmra.mrb[0].mxu0 %v639
      %v1635 = vpop.f32.mrb[0].mxu0
      %v1636 = vadd.f32 %v1081, %v1635
      %v1637 = vpop.f32.mrb[0].mxu0
      %1638 = vmatprep.mubr.f32.mxu0 0.0
      %1639 = vmatmul.mubr.f32.gmra.mrb[0].mxu0 %v642
      %v1640 = vpop.f32.mrb[0].mxu0
      %v1641 = vadd.f32 %v1086, %v1640
      %v1642 = vpop.f32.mrb[0].mxu0
      %1643 = vmatprep.mubr.f32.mxu0 0.0
      %1644 = vmatmul.mubr.f32.gmra.mrb[0].mxu0 %v645
      %v1645 = vpop.f32.mrb[0].mxu0
      %v1646 = vadd.f32 %v1091, %v1645
      %v1647 = vpop.f32.mrb[0].mxu0
      %1648 = vmatprep.mubr.f32.mxu0 0.0
      %1649 = vmatmul.mubr.f32.gmra.mrb[0].mxu0 %v648
      %v1650 = vpop.f32.mrb[0].mxu0
      %v1651 = vadd.f32 %v1096, %v1650
      %v1652 = vpop.f32.mrb[0].mxu0
      %1653 = vmatprep.mubr.f32.mxu0 0.0
      %1654 = vmatmul.mubr.f32.gmra.mrb[0].mxu0 %v651
      %v1655 = vpop.f32.mrb[0].mxu0
      %v1656 = vadd.f32 %v1101, %v1655
      %v1657 = vpop.f32.mrb[0].mxu0
      %1658 = vmatprep.mubr.f32.mxu0 0.0
      %1659 = vmatmul.mubr.f32.gmra.mrb[0].mxu0 %v654
      %v1660 = vpop.f32.mrb[0].mxu0
      %v1661 = vadd.f32 %v1106, %v1660
      %v1662 = vpop.f32.mrb[0].mxu0
      %1663 = vmatprep.mubr.f32.mxu0 0.0
      %1664 = vmatmul.mubr.f32.gmra.mrb[0].mxu0 %v657
      %v1665 = vpop.f32.mrb[0].mxu0
      %v1666 = vadd.f32 %v1111, %v1665
      %v1667 = vpop.f32.mrb[0].mxu0
      %1668 = vmatprep.mubr.f32.mxu0 0.0
      %1669 = vmatmul.mubr.f32.gmra.mrb[0].mxu0 %v660
      %v1670 = vpop.f32.mrb[0].mxu0
      %v1671 = vadd.f32 %v1116, %v1670
      %v1672 = vpop.f32.mrb[0].mxu0
      %1673 = vmatprep.mubr.f32.mxu0 0.0
      %1674 = vmatmul.mubr.f32.gmra.mrb[0].mxu0 %v663
      %v1675 = vpop.f32.mrb[0].mxu0
      %v1676 = vadd.f32 %v1121, %v1675
      %v1677 = vpop.f32.mrb[0].mxu0
      %1678 = vmatprep.mubr.f32.mxu0 0.0
      %1679 = vmatmul.mubr.f32.gmra.mrb[0].mxu0 %v666
      %v1680 = vpop.f32.mrb[0].mxu0
      %v1681 = vadd.f32 %v1126, %v1680
      %v1682 = vpop.f32.mrb[0].mxu0
      %1683 = vmatprep.mubr.f32.mxu0 0.0
      %1684 = vmatmul.mubr.f32.gmra.mrb[0].mxu0 %v669
      %v1685 = vpop.f32.mrb[0].mxu0
      %v1686 = vadd.f32 %v1131, %v1685
      %v1687 = vpop.f32.mrb[0].mxu0
      %1688 = vmatprep.mubr.f32.mxu0 0.0
      %1689 = vmatmul.mubr.f32.gmra.mrb[0].mxu0 %v672
      %v1690 = vpop.f32.mrb[0].mxu0
      %v1691 = vadd.f32 %v1136, %v1690
      %v1692 = vpop.f32.mrb[0].mxu0
      %1693 = vmatprep.mubr.f32.mxu0 0.0
      %1694 = vmatmul.mubr.f32.gmra.mrb[0].mxu0 %v675
      %v1695 = vpop.f32.mrb[0].mxu0
      %v1696 = vadd.f32 %v1141, %v1695
      %v1697 = vpop.f32.mrb[0].mxu0
      %1698 = vmatprep.mubr.f32.mxu0 0.0
      %1699 = vmatmul.mubr.f32.gmra.mrb[0].mxu0 %v678
      %v1700 = vpop.f32.mrb[0].mxu0
      %v1701 = vadd.f32 %v1146, %v1700
      %v1702 = vpop.f32.mrb[0].mxu0
      %1703 = vmatprep.mubr.f32.mxu0 0.0
      %1704 = vmatmul.mubr.f32.gmra.mrb[0].mxu0 %v681
      %v1705 = vpop.f32.mrb[0].mxu0
      %v1706 = vadd.f32 %v1151, %v1705
      %v1707 = vpop.f32.mrb[0].mxu0
      %1708 = vmatprep.mubr.f32.mxu0 0.0
      %1709 = vmatmul.mubr.f32.gmra.mrb[0].mxu0 %v684
      %v1710 = vpop.f32.mrb[0].mxu0
      %v1711 = vadd.f32 %v1156, %v1710
      %v1712 = vpop.f32.mrb[0].mxu0
      %1713 = vmatprep.mubr.f32.mxu0 0.0
      %1714 = vmatmul.mubr.f32.gmra.mrb[0].mxu0 %v687
      %v1715 = vpop.f32.mrb[0].mxu0
      %v1716 = vadd.f32 %v1161, %v1715
      %v1717 = vpop.f32.mrb[0].mxu0
      %1718 = vmatprep.mubr.f32.mxu0 0.0
      %1719 = vmatmul.mubr.f32.gmra.mrb[0].mxu0 %v690
      %v1720 = vpop.f32.mrb[0].mxu0
      %v1721 = vadd.f32 %v1166, %v1720
      %v1722 = vpop.f32.mrb[0].mxu0
      %1723 = vmatprep.mubr.f32.mxu0 0.0
      %1724 = vmatmul.mubr.f32.gmra.mrb[0].mxu0 %v693
      %v1725 = vpop.f32.mrb[0].mxu0
      %v1726 = vadd.f32 %v1171, %v1725
      %v1727 = vpop.f32.mrb[0].mxu0
      %1728 = vmatprep.mubr.f32.mxu0 0.0
      %1729 = vmatmul.mubr.f32.gmra.mrb[0].mxu0 %v696
      %v1730 = vpop.f32.mrb[0].mxu0
      %v1731 = vadd.f32 %v1176, %v1730
      %v1732 = vpop.f32.mrb[0].mxu0
      %1733 = vmatprep.mubr.f32.mxu0 0.0
      %1734 = vmatmul.mubr.f32.gmra.mrb[0].mxu0 %v699
      %v1735 = vpop.f32.mrb[0].mxu0
      %v1736 = vadd.f32 %v1181, %v1735
      %v1737 = vpop.f32.mrb[0].mxu0
      %1738 = vmatprep.mubr.f32.mxu0 0.0
      %1739 = vmatmul.mubr.f32.gmra.mrb[0].mxu0 %v702
      %v1740 = vpop.f32.mrb[0].mxu0
      %v1741 = vadd.f32 %v1186, %v1740
      %v1742 = vpop.f32.mrb[0].mxu0
      %1743 = vmatprep.mubr.f32.mxu0 0.0
      %1744 = vmatmul.mubr.f32.gmra.mrb[0].mxu0 %v705
      %v1745 = vpop.f32.mrb[0].mxu0
      %v1746 = vadd.f32 %v1191, %v1745
      %v1747 = vpop.f32.mrb[0].mxu0
      %1748 = vmatprep.mubr.f32.mxu0 0.0
      %1749 = vmatmul.mubr.f32.gmra.mrb[0].mxu0 %v708
      %v1750 = vpop.f32.mrb[0].mxu0
      %v1751 = vadd.f32 %v1196, %v1750
      %v1752 = vpop.f32.mrb[0].mxu0
      %1753 = vmatprep.mubr.f32.mxu0 0.0
      %1754 = vmatmul.mubr.f32.gmra.mrb[0].mxu0 %v711
      %v1755 = vpop.f32.mrb[0].mxu0
      %v1756 = vadd.f32 %v1201, %v1755
      %v1757 = vpop.f32.mrb[0].mxu0
      %1758 = vmatprep.mubr.f32.mxu0 0.0
      %1759 = vmatmul.mubr.f32.gmra.mrb[0].mxu0 %v714
      %v1760 = vpop.f32.mrb[0].mxu0
      %v1761 = vadd.f32 %v1206, %v1760
      %v1762 = vpop.f32.mrb[0].mxu0
      %1763 = vmatprep.mubr.f32.mxu0 0.0
      %1764 = vmatmul.mubr.f32.gmra.mrb[0].mxu0 %v717
      %v1765 = vpop.f32.mrb[0].mxu0
      %v1766 = vadd.f32 %v1211, %v1765
      %v1767 = vpop.f32.mrb[0].mxu0
      %1768 = vmatprep.mubr.f32.mxu0 0.0
      %1769 = vmatmul.mubr.f32.gmra.mrb[0].mxu0 %v720
      %v1770 = vpop.f32.mrb[0].mxu0
      %v1771 = vadd.f32 %v1216, %v1770
      %v1772 = vpop.f32.mrb[0].mxu0
      %1773 = vmatprep.mubr.f32.mxu0 0.0
      %1774 = vmatmul.mubr.f32.gmra.mrb[0].mxu0 %v723
      %v1775 = vpop.f32.mrb[0].mxu0
      %v1776 = vadd.f32 %v1221, %v1775
      %v1777 = vpop.f32.mrb[0].mxu0
      %1778 = vmatprep.mubr.f32.mxu0 0.0
      %1779 = vmatmul.mubr.f32.gmra.mrb[0].mxu0 %v726
      %v1780 = vpop.f32.mrb[0].mxu0
      %v1781 = vadd.f32 %v1226, %v1780
      %v1782 = vpop.f32.mrb[0].mxu0
      %1783 = vmatprep.mubr.f32.mxu0 0.0
      %1784 = vmatmul.mubr.f32.gmra.mrb[0].mxu0 %v729
      %v1785 = vpop.f32.mrb[0].mxu0
      %v1786 = vadd.f32 %v1231, %v1785
      %v1787 = vpop.f32.mrb[0].mxu0
      %1788 = vmatprep.mubr.f32.mxu0 0.0
      %1789 = vmatmul.mubr.f32.gmra.mrb[0].mxu0 %v732
      %v1790 = vpop.f32.mrb[0].mxu0
      %v1791 = vadd.f32 %v1236, %v1790
      %v1792 = vpop.f32.mrb[0].mxu0
      %1793 = vmatprep.mubr.f32.mxu0 0.0
      %1794 = vmatmul.mubr.f32.gmra.mrb[0].mxu0 %v735
      %v1795 = vpop.f32.mrb[0].mxu0
      %v1796 = vadd.f32 %v1241, %v1795
      %v1797 = vpop.f32.mrb[0].mxu0
      %1798 = vmatprep.mubr.f32.mxu0 0.0
      %1799 = vmatmul.mubr.f32.gmra.mrb[0].mxu0 %v738
      %v1800 = vpop.f32.mrb[0].mxu0
      %v1801 = vadd.f32 %v1246, %v1800
      %v1802 = vpop.f32.mrb[0].mxu0
      %1803 = vmatprep.mubr.f32.mxu0 0.0
      %1804 = vmatmul.mubr.f32.gmra.mrb[0].mxu0 %v741
      %v1805 = vpop.f32.mrb[0].mxu0
      %v1806 = vadd.f32 %v1251, %v1805
      %v1807 = vpop.f32.mrb[0].mxu0
      %1808 = vmatprep.mubr.f32.mxu0 0.0
      %1809 = vmatmul.mubr.f32.gmra.mrb[0].mxu0 %v744
      %v1810 = vpop.f32.mrb[0].mxu0
      %v1811 = vadd.f32 %v1256, %v1810
      %v1812 = vpop.f32.mrb[0].mxu0
      %1813 = vmatprep.mubr.f32.mxu0 0.0
      %1814 = vmatmul.mubr.f32.gmra.mrb[0].mxu0 %v747
      %v1815 = vpop.f32.mrb[0].mxu0
      %v1816 = vadd.f32 %v1261, %v1815
      %v1817 = vpop.f32.mrb[0].mxu0
      %1818 = vmatprep.mubr.f32.mxu0 0.0
      %1819 = vmatmul.mubr.f32.gmra.mrb[0].mxu0 %v750
      %v1820 = vpop.f32.mrb[0].mxu0
      %v1821 = vadd.f32 %v1266, %v1820
      %v1822 = vpop.f32.mrb[0].mxu0
      %1823 = vmatprep.mubr.f32.mxu0 0.0
      %1824 = vmatmul.mubr.f32.gmra.mrb[0].mxu0 %v753
      %v1825 = vpop.f32.mrb[0].mxu0
      %v1826 = vadd.f32 %v1271, %v1825
      %v1827 = vpop.f32.mrb[0].mxu0
      %1828 = vmatprep.mubr.f32.mxu0 0.0
      %1829 = vmatmul.mubr.f32.gmra.mrb[0].mxu0 %v756
      %v1830 = vpop.f32.mrb[0].mxu0
      %v1831 = vadd.f32 %v1276, %v1830
      %v1832 = vpop.f32.mrb[0].mxu0
      %1833 = vmatprep.mubr.f32.mxu0 0.0
      %1834 = vmatmul.mubr.f32.gmra.mrb[0].mxu0 %v759
      %v1835 = vpop.f32.mrb[0].mxu0
      %v1836 = vadd.f32 %v1281, %v1835
      %v1837 = vpop.f32.mrb[0].mxu0
      %1838 = vmatprep.mubr.f32.mxu0 0.0
      %1839 = vmatmul.mubr.f32.gmra.mrb[0].mxu0 %v762
      %v1840 = vpop.f32.mrb[0].mxu0
      %v1841 = vadd.f32 %v1286, %v1840
      %v1842 = vpop.f32.mrb[0].mxu0
      %1843 = vmatprep.mubr.f32.mxu0 0.0
      %1844 = vmatmul.mubr.f32.gmra.mrb[0].mxu0 %v765
      %v1845 = vpop.f32.mrb[0].mxu0
      %v1846 = vadd.f32 %v1291, %v1845
      %v1847 = vpop.f32.mrb[0].mxu0
      %1848 = vmatprep.mubr.f32.mxu0 0.0
      %1849 = vmatmul.mubr.f32.gmra.mrb[0].mxu0 %v768
      %v1850 = vpop.f32.mrb[0].mxu0
      %v1851 = vadd.f32 %v1296, %v1850
      %v1852 = vpop.f32.mrb[0].mxu0
      %1853 = vmatprep.mubr.f32.mxu0 0.0
      %1854 = vmatmul.mubr.f32.gmra.mrb[0].mxu0 %v771
      %v1855 = vpop.f32.mrb[0].mxu0
      %v1856 = vadd.f32 %v1301, %v1855
      %v1857 = vpop.f32.mrb[0].mxu0
      %1858 = vmatprep.mubr.f32.mxu0 0.0
      %1859 = vmatmul.mubr.f32.gmra.mrb[0].mxu0 %v774
      %v1860 = vpop.f32.mrb[0].mxu0
      %v1861 = vadd.f32 %v1306, %v1860
      %v1862 = vpop.f32.mrb[0].mxu0
      %1863 = vmatprep.mubr.f32.mxu0 0.0
      %1864 = vmatmul.mubr.f32.gmra.mrb[0].mxu0 %v777
      %v1865 = vpop.f32.mrb[0].mxu0
      %v1866 = vadd.f32 %v1311, %v1865
      %v1867 = vpop.f32.mrb[0].mxu0
      %1868 = vmatprep.mubr.f32.mxu0 0.0
      %1869 = vmatmul.mubr.f32.gmra.mrb[0].mxu0 %v780
      %v1870 = vpop.f32.mrb[0].mxu0
      %v1871 = vadd.f32 %v1316, %v1870
      %v1872 = vpop.f32.mrb[0].mxu0
      %1873 = vmatprep.mubr.f32.mxu0 0.0
      %1874 = vmatmul.mubr.f32.gmra.mrb[0].mxu0 %v783
      %v1875 = vpop.f32.mrb[0].mxu0
      %v1876 = vadd.f32 %v1321, %v1875
      %v1877 = vpop.f32.mrb[0].mxu0
      %1878 = vmatprep.mubr.f32.mxu0 0.0
      %1879 = vmatmul.mubr.f32.gmra.mrb[0].mxu0 %v786
      %v1880 = vpop.f32.mrb[0].mxu0
      %v1881 = vadd.f32 %v1326, %v1880
      %v1882 = vpop.f32.mrb[0].mxu0
      %1883 = vmatprep.mubr.f32.mxu0 0.0
      %1884 = vmatmul.mubr.f32.gmra.mrb[0].mxu0 %v789
      %v1885 = vpop.f32.mrb[0].mxu0
      %v1886 = vadd.f32 %v1331, %v1885
      %v1887 = vpop.f32.mrb[0].mxu0
      %1888 = vmatprep.mubr.f32.mxu0 0.0
      %1889 = vmatmul.mubr.f32.gmra.mrb[0].mxu0 %v792
      %v1890 = vpop.f32.mrb[0].mxu0
      %v1891 = vadd.f32 %v1336, %v1890
      %v1892 = vpop.f32.mrb[0].mxu0
      %1893 = vmatprep.mubr.f32.mxu0 0.0
      %1894 = vmatmul.mubr.f32.gmra.mrb[0].mxu0 %v795
      %v1895 = vpop.f32.mrb[0].mxu0
      %v1896 = vadd.f32 %v1341, %v1895
      %v1897 = vpop.f32.mrb[0].mxu0
      %1898 = vmatprep.mubr.f32.mxu0 0.0
      %1899 = vmatmul.mubr.f32.gmra.mrb[0].mxu0 %v798
      %v1900 = vpop.f32.mrb[0].mxu0
      %v1901 = vadd.f32 %v1346, %v1900
      %v1902 = vpop.f32.mrb[0].mxu0
      %1903 = vmatprep.mubr.f32.mxu0 0.0
      %1904 = vmatmul.mubr.f32.gmra.mrb[0].mxu0 %v801
      %v1905 = vpop.f32.mrb[0].mxu0
      %v1906 = vadd.f32 %v1351, %v1905
      %v1907 = vpop.f32.mrb[0].mxu0
      %1908 = vmatprep.mubr.f32.mxu0 0.0
      %1909 = vmatmul.mubr.f32.gmra.mrb[0].mxu0 %v804
      %v1910 = vpop.f32.mrb[0].mxu0
      %v1911 = vadd.f32 %v1356, %v1910
      %v1912 = vpop.f32.mrb[0].mxu0
      %1913 = vmatprep.mubr.f32.mxu0 0.0
      %1914 = vmatmul.mubr.f32.gmra.mrb[0].mxu0 %v807
      %v1915 = vpop.f32.mrb[0].mxu0
      %v1916 = vadd.f32 %v1361, %v1915
      %v1917 = vpop.f32.mrb[0].mxu0
      %1918 = vdwg.mxu0
      %v1919 = vmax.f32 %v1431, 0.0
      %v1920 = vmax.f32 %v1436, 0.0
      %v1921 = vmax.f32 %v1441, 0.0
      %v1922 = vmax.f32 %v1446, 0.0
      %v1923 = vmax.f32 %v1451, 0.0
      %v1924 = vmax.f32 %v1456, 0.0
      %v1925 = vmax.f32 %v1461, 0.0
      %v1926 = vmax.f32 %v1466, 0.0
      %v1927 = vmax.f32 %v1471, 0.0
      %v1928 = vmax.f32 %v1476, 0.0
      %v1929 = vmax.f32 %v1481, 0.0
      %v1930 = vmax.f32 %v1486, 0.0
      %v1931 = vmax.f32 %v1491, 0.0
      %v1932 = vmax.f32 %v1496, 0.0
      %v1933 = vmax.f32 %v1501, 0.0
      %v1934 = vmax.f32 %v1506, 0.0
      %v1935 = vmax.f32 %v1511, 0.0
      %v1936 = vmax.f32 %v1516, 0.0
      %v1937 = vmax.f32 %v1521, 0.0
      %v1938 = vmax.f32 %v1526, 0.0
      %v1939 = vmax.f32 %v1531, 0.0
      %v1940 = vmax.f32 %v1536, 0.0
      %v1941 = vmax.f32 %v1541, 0.0
      %v1942 = vmax.f32 %v1546, 0.0
      %v1943 = vmax.f32 %v1551, 0.0
      %v1944 = vmax.f32 %v1556, 0.0
      %v1945 = vmax.f32 %v1561, 0.0
      %v1946 = vmax.f32 %v1566, 0.0
      %v1947 = vmax.f32 %v1571, 0.0
      %v1948 = vmax.f32 %v1576, 0.0
      %v1949 = vmax.f32 %v1581, 0.0
      %v1950 = vmax.f32 %v1586, 0.0
      %v1951 = vmax.f32 %v1591, 0.0
      %v1952 = vmax.f32 %v1596, 0.0
      %v1953 = vmax.f32 %v1601, 0.0
      %v1954 = vmax.f32 %v1606, 0.0
      %v1955 = vmax.f32 %v1611, 0.0
      %v1956 = vmax.f32 %v1616, 0.0
      %v1957 = vmax.f32 %v1621, 0.0
      %v1958 = vmax.f32 %v1626, 0.0
      %v1959 = vmax.f32 %v1631, 0.0
      %v1960 = vmax.f32 %v1636, 0.0
      %v1961 = vmax.f32 %v1641, 0.0
      %v1962 = vmax.f32 %v1646, 0.0
      %v1963 = vmax.f32 %v1651, 0.0
      %v1964 = vmax.f32 %v1656, 0.0
      %v1965 = vmax.f32 %v1661, 0.0
      %v1966 = vmax.f32 %v1666, 0.0
      %v1967 = vmax.f32 %v1671, 0.0
      %v1968 = vmax.f32 %v1676, 0.0
      %v1969 = vmax.f32 %v1681, 0.0
      %v1970 = vmax.f32 %v1686, 0.0
      %v1971 = vmax.f32 %v1691, 0.0
      %v1972 = vmax.f32 %v1696, 0.0
      %v1973 = vmax.f32 %v1701, 0.0
      %v1974 = vmax.f32 %v1706, 0.0
      %v1975 = vmax.f32 %v1711, 0.0
      %v1976 = vmax.f32 %v1716, 0.0
      %v1977 = vmax.f32 %v1721, 0.0
      %v1978 = vmax.f32 %v1726, 0.0
      %v1979 = vmax.f32 %v1731, 0.0
      %v1980 = vmax.f32 %v1736, 0.0
      %v1981 = vmax.f32 %v1741, 0.0
      %v1982 = vmax.f32 %v1746, 0.0
      %v1983 = vmax.f32 %v1751, 0.0
      %v1984 = vmax.f32 %v1756, 0.0
      %v1985 = vmax.f32 %v1761, 0.0
      %v1986 = vmax.f32 %v1766, 0.0
      %v1987 = vmax.f32 %v1771, 0.0
      %v1988 = vmax.f32 %v1776, 0.0
      %v1989 = vmax.f32 %v1781, 0.0
      %v1990 = vmax.f32 %v1786, 0.0
      %v1991 = vmax.f32 %v1791, 0.0
      %v1992 = vmax.f32 %v1796, 0.0
      %v1993 = vmax.f32 %v1801, 0.0
      %v1994 = vmax.f32 %v1806, 0.0
      %v1995 = vmax.f32 %v1811, 0.0
      %v1996 = vmax.f32 %v1816, 0.0
      %v1997 = vmax.f32 %v1821, 0.0
      %v1998 = vmax.f32 %v1826, 0.0
      %v1999 = vmax.f32 %v1831, 0.0
      %v2000 = vmax.f32 %v1836, 0.0
      %v2001 = vmax.f32 %v1841, 0.0
      %v2002 = vmax.f32 %v1846, 0.0
      %v2003 = vmax.f32 %v1851, 0.0
      %v2004 = vmax.f32 %v1856, 0.0
      %v2005 = vmax.f32 %v1861, 0.0
      %v2006 = vmax.f32 %v1866, 0.0
      %v2007 = vmax.f32 %v1871, 0.0
      %v2008 = vmax.f32 %v1876, 0.0
      %v2009 = vmax.f32 %v1881, 0.0
      %v2010 = vmax.f32 %v1886, 0.0
      %v2011 = vmax.f32 %v1891, 0.0
      %v2012 = vmax.f32 %v1896, 0.0
      %v2013 = vmax.f32 %v1901, 0.0
      %v2014 = vmax.f32 %v1906, 0.0
      %v2015 = vmax.f32 %v1911, 0.0
      %v2016 = vmax.f32 %v1916, 0.0
      %vm2017 = vcmask 523264
      %2018 = vst.msk [vmem:[%s175] sm:$0xff] %vm2017, %v1919
      %2019 = vst.msk [vmem:[%s175 + $0x8] sm:$0xff] %vm2017, %v1920
      %2020 = vst.msk [vmem:[%s175 + $0x10] sm:$0xff] %vm2017, %v1921
      %2021 = vst.msk [vmem:[%s175 + $0x18] sm:$0xff] %vm2017, %v1922
      %2022 = vst.msk [vmem:[%s175 + $0x20] sm:$0xff] %vm2017, %v1923
      %2023 = vst.msk [vmem:[%s175 + $0x28] sm:$0xff] %vm2017, %v1924
      %2024 = vst.msk [vmem:[%s175 + $0x30] sm:$0xff] %vm2017, %v1925
      %2025 = vst.msk [vmem:[%s175 + $0x38] sm:$0xff] %vm2017, %v1926
      %2026 = vst.msk [vmem:[%s175 + $0x40] sm:$0xff] %vm2017, %v1927
      %2027 = vst.msk [vmem:[%s175 + $0x48] sm:$0xff] %vm2017, %v1928
      %2028 = vst.msk [vmem:[%s175 + $0x50] sm:$0xff] %vm2017, %v1929
      %2029 = vst.msk [vmem:[%s175 + $0x58] sm:$0xff] %vm2017, %v1930
      %2030 = vst.msk [vmem:[%s175 + $0x60] sm:$0xff] %vm2017, %v1931
      %2031 = vst.msk [vmem:[%s175 + $0x68] sm:$0xff] %vm2017, %v1932
      %2032 = vst.msk [vmem:[%s175 + $0x70] sm:$0xff] %vm2017, %v1933
      %2033 = vst.msk [vmem:[%s175 + $0x78] sm:$0xff] %vm2017, %v1934
      %2034 = vst.msk [vmem:[%s175 + $0x80] sm:$0xff] %vm2017, %v1935
      %2035 = vst.msk [vmem:[%s175 + $0x88] sm:$0xff] %vm2017, %v1936
      %2036 = vst.msk [vmem:[%s175 + $0x90] sm:$0xff] %vm2017, %v1937
      %2037 = vst.msk [vmem:[%s175 + $0x98] sm:$0xff] %vm2017, %v1938
      %2038 = vst.msk [vmem:[%s175 + $0xa0] sm:$0xff] %vm2017, %v1939
      %2039 = vst.msk [vmem:[%s175 + $0xa8] sm:$0xff] %vm2017, %v1940
      %2040 = vst.msk [vmem:[%s175 + $0xb0] sm:$0xff] %vm2017, %v1941
      %2041 = vst.msk [vmem:[%s175 + $0xb8] sm:$0xff] %vm2017, %v1942
      %2042 = vst.msk [vmem:[%s175 + $0xc0] sm:$0xff] %vm2017, %v1943
      %2043 = vst.msk [vmem:[%s175 + $0xc8] sm:$0xff] %vm2017, %v1944
      %2044 = vst.msk [vmem:[%s175 + $0xd0] sm:$0xff] %vm2017, %v1945
      %2045 = vst.msk [vmem:[%s175 + $0xd8] sm:$0xff] %vm2017, %v1946
      %2046 = vst.msk [vmem:[%s175 + $0xe0] sm:$0xff] %vm2017, %v1947
      %2047 = vst.msk [vmem:[%s175 + $0xe8] sm:$0xff] %vm2017, %v1948
      %2048 = vst.msk [vmem:[%s175 + $0xf0] sm:$0xff] %vm2017, %v1949
      %2049 = vst.msk [vmem:[%s175 + $0xf8] sm:$0xff] %vm2017, %v1950
      %2050 = vst.msk [vmem:[%s175 + $0x100] sm:$0xff] %vm2017, %v1951
      %2051 = vst.msk [vmem:[%s175 + $0x108] sm:$0xff] %vm2017, %v1952
      %2052 = vst.msk [vmem:[%s175 + $0x110] sm:$0xff] %vm2017, %v1953
      %2053 = vst.msk [vmem:[%s175 + $0x118] sm:$0xff] %vm2017, %v1954
      %2054 = vst.msk [vmem:[%s175 + $0x120] sm:$0xff] %vm2017, %v1955
      %2055 = vst.msk [vmem:[%s175 + $0x128] sm:$0xff] %vm2017, %v1956
      %2056 = vst.msk [vmem:[%s175 + $0x130] sm:$0xff] %vm2017, %v1957
      %2057 = vst.msk [vmem:[%s175 + $0x138] sm:$0xff] %vm2017, %v1958
      %2058 = vst.msk [vmem:[%s175 + $0x140] sm:$0xff] %vm2017, %v1959
      %2059 = vst.msk [vmem:[%s175 + $0x148] sm:$0xff] %vm2017, %v1960
      %2060 = vst.msk [vmem:[%s175 + $0x150] sm:$0xff] %vm2017, %v1961
      %2061 = vst.msk [vmem:[%s175 + $0x158] sm:$0xff] %vm2017, %v1962
      %2062 = vst.msk [vmem:[%s175 + $0x160] sm:$0xff] %vm2017, %v1963
      %2063 = vst.msk [vmem:[%s175 + $0x168] sm:$0xff] %vm2017, %v1964
      %2064 = vst.msk [vmem:[%s175 + $0x170] sm:$0xff] %vm2017, %v1965
      %2065 = vst.msk [vmem:[%s175 + $0x178] sm:$0xff] %vm2017, %v1966
      %2066 = vst.msk [vmem:[%s175 + $0x180] sm:$0xff] %vm2017, %v1967
      %2067 = vst.msk [vmem:[%s175 + $0x188] sm:$0xff] %vm2017, %v1968
      %2068 = vst.msk [vmem:[%s175 + $0x190] sm:$0xff] %vm2017, %v1969
      %2069 = vst.msk [vmem:[%s175 + $0x198] sm:$0xff] %vm2017, %v1970
      %2070 = vst.msk [vmem:[%s175 + $0x1a0] sm:$0xff] %vm2017, %v1971
      %2071 = vst.msk [vmem:[%s175 + $0x1a8] sm:$0xff] %vm2017, %v1972
      %2072 = vst.msk [vmem:[%s175 + $0x1b0] sm:$0xff] %vm2017, %v1973
      %2073 = vst.msk [vmem:[%s175 + $0x1b8] sm:$0xff] %vm2017, %v1974
      %2074 = vst.msk [vmem:[%s175 + $0x1c0] sm:$0xff] %vm2017, %v1975
      %2075 = vst.msk [vmem:[%s175 + $0x1c8] sm:$0xff] %vm2017, %v1976
      %2076 = vst.msk [vmem:[%s175 + $0x1d0] sm:$0xff] %vm2017, %v1977
      %2077 = vst.msk [vmem:[%s175 + $0x1d8] sm:$0xff] %vm2017, %v1978
      %2078 = vst.msk [vmem:[%s175 + $0x1e0] sm:$0xff] %vm2017, %v1979
      %2079 = vst.msk [vmem:[%s175 + $0x1e8] sm:$0xff] %vm2017, %v1980
      %2080 = vst.msk [vmem:[%s175 + $0x1f0] sm:$0xff] %vm2017, %v1981
      %2081 = vst.msk [vmem:[%s175 + $0x1f8] sm:$0xff] %vm2017, %v1982
      %2082 = vst.msk [vmem:[%s175 + $0x200] sm:$0xff] %vm2017, %v1983
      %2083 = vst.msk [vmem:[%s175 + $0x208] sm:$0xff] %vm2017, %v1984
      %2084 = vst.msk [vmem:[%s175 + $0x210] sm:$0xff] %vm2017, %v1985
      %2085 = vst.msk [vmem:[%s175 + $0x218] sm:$0xff] %vm2017, %v1986
      %2086 = vst.msk [vmem:[%s175 + $0x220] sm:$0xff] %vm2017, %v1987
      %2087 = vst.msk [vmem:[%s175 + $0x228] sm:$0xff] %vm2017, %v1988
      %2088 = vst.msk [vmem:[%s175 + $0x230] sm:$0xff] %vm2017, %v1989
      %2089 = vst.msk [vmem:[%s175 + $0x238] sm:$0xff] %vm2017, %v1990
      %2090 = vst.msk [vmem:[%s175 + $0x240] sm:$0xff] %vm2017, %v1991
      %2091 = vst.msk [vmem:[%s175 + $0x248] sm:$0xff] %vm2017, %v1992
      %2092 = vst.msk [vmem:[%s175 + $0x250] sm:$0xff] %vm2017, %v1993
      %2093 = vst.msk [vmem:[%s175 + $0x258] sm:$0xff] %vm2017, %v1994
      %2094 = vst.msk [vmem:[%s175 + $0x260] sm:$0xff] %vm2017, %v1995
      %2095 = vst.msk [vmem:[%s175 + $0x268] sm:$0xff] %vm2017, %v1996
      %2096 = vst.msk [vmem:[%s175 + $0x270] sm:$0xff] %vm2017, %v1997
      %2097 = vst.msk [vmem:[%s175 + $0x278] sm:$0xff] %vm2017, %v1998
      %2098 = vst.msk [vmem:[%s175 + $0x280] sm:$0xff] %vm2017, %v1999
      %2099 = vst.msk [vmem:[%s175 + $0x288] sm:$0xff] %vm2017, %v2000
      %2100 = vst.msk [vmem:[%s175 + $0x290] sm:$0xff] %vm2017, %v2001
      %2101 = vst.msk [vmem:[%s175 + $0x298] sm:$0xff] %vm2017, %v2002
      %2102 = vst.msk [vmem:[%s175 + $0x2a0] sm:$0xff] %vm2017, %v2003
      %2103 = vst.msk [vmem:[%s175 + $0x2a8] sm:$0xff] %vm2017, %v2004
      %2104 = vst.msk [vmem:[%s175 + $0x2b0] sm:$0xff] %vm2017, %v2005
      %2105 = vst.msk [vmem:[%s175 + $0x2b8] sm:$0xff] %vm2017, %v2006
      %2106 = vst.msk [vmem:[%s175 + $0x2c0] sm:$0xff] %vm2017, %v2007
      %2107 = vst.msk [vmem:[%s175 + $0x2c8] sm:$0xff] %vm2017, %v2008
      %2108 = vst.msk [vmem:[%s175 + $0x2d0] sm:$0xff] %vm2017, %v2009
      %2109 = vst.msk [vmem:[%s175 + $0x2d8] sm:$0xff] %vm2017, %v2010
      %2110 = vst.msk [vmem:[%s175 + $0x2e0] sm:$0xff] %vm2017, %v2011
      %2111 = vst.msk [vmem:[%s175 + $0x2e8] sm:$0xff] %vm2017, %v2012
      %2112 = vst.msk [vmem:[%s175 + $0x2f0] sm:$0xff] %vm2017, %v2013
      %2113 = vst.msk [vmem:[%s175 + $0x2f8] sm:$0xff] %vm2017, %v2014
      %2114 = vst.msk [vmem:[%s175 + $0x300] sm:$0xff] %vm2017, %v2015
      %2115 = vst.msk [vmem:[%s175 + $0x308] sm:$0xff] %vm2017, %v2016
      %s2116 = smul.u32 98, %s14
      %p2117 = scmp.lt.s32.totalorder %s2116, 195
      %s2118 = scalar_select %p2117, %s2116, 195
      %s2119 = smul.addr %s2118, 8
      %s2120 = scalar_lea.vmem %s3, %s2119
      // Predicated region
      $region33: #{simple_binary_cnn_forward.7} parent=31 // pred_check
        %p2121 = pneg %p100
      $region34: #{simple_binary_cnn_forward.7} parent=31 // pred_check_branch
        %2123 = sbr.rel (%p2121) target = $region36
      $region35: #{simple_binary_cnn_forward.7} parent=31 // pred_region
        %s2124 = smul.u32 98, %s14
      $region36: #{simple_binary_cnn_forward.7} parent=31 // pred_fallthru
        _
    $region32: #{simple_binary_cnn_forward.7} parent=5 // pred_fallthru
      _
    %p2125 = scmp.le.s32.totalorder 2, %s9
    // Predicated region
    $region37: #{simple_binary_cnn_forward.7} parent=5 // pred_check
      %p2126 = pneg %p2125
    $region38: #{simple_binary_cnn_forward.7} parent=5 // pred_check_branch
      %2128 = sbr.rel (%p2126) target = $region40
    $region39: #{simple_binary_cnn_forward.7} parent=5 // pred_region
      %s2129 = ssub.s32 %s9, 2
      // Predicated region
      $region41: #{simple_binary_cnn_forward.7} parent=39 // pred_check
        %p2130 = pneg %p106
      $region42: #{simple_binary_cnn_forward.7} parent=39 // pred_check_branch
        %2132 = sbr.rel (%p2130) target = $region44
      $region43: #{simple_binary_cnn_forward.7} parent=39 // pred_region
        %s2133 = smul.u32 98, %s15
        %p2134 = scmp.lt.s32.totalorder %s2133, 195
        %s2135 = scalar_select %p2134, %s2133, 195
        %s2136 = smul.addr %s2135, 8
        %s2137 = scalar_lea.vmem %s3, %s2136
      $region44: #{simple_binary_cnn_forward.7} parent=39 // pred_fallthru
        _
    $region40: #{simple_binary_cnn_forward.7} parent=5 // pred_fallthru
      _
  $region6: #{simple_binary_cnn_forward.7} parent=0 // loop_footer
    %s13 = sadd.s32 1, %s9
  $region7: #{simple_binary_cnn_forward.7} parent=0 // loop_footer_branch
    %8 = sbr.rel target = $region3
  $region8: #{simple_binary_cnn_forward.7} parent=0 // loop_exit
    _

// kernel: simple_binary_cnn_forward.9
$region0: #{simple_binary_cnn_forward.9}
  #allocation0 [shape = 'u32[]', space=smem, size = 0x4, offset = 0x4, fixed_abs, tag = 'smem constant byte address 0x4 - core index']
  #allocation1 [shape = 'u32[144,128]{1,0:T(1,128)}', space=vmem, size = 0x12000, scoped, tag = 'internal scratch']
  #allocation2 [shape = 'f32[2,128]{1,0:T(2,128)}', space=vmem, size = 0x400, scoped, tag = 'scratch operand']
  #allocation3 [shape = 'f32[1,1]{1,0:T(1,128)S(1)}', space=vmem, size = 0x200, scoped, tag = 'scoped memory for simple_binary_cnn_forward.9']
  %s0 = inlined_call_operand.vmem [shape: f32[2,12544], index: 0, kind: input, shape index: {}]
  %s1 = inlined_call_operand.vmem [shape: f32[12544,128], index: 1, kind: input, shape index: {}]
  %s2 = inlined_call_operand.vmem [shape: f32[1,128], index: 2, kind: input, shape index: {}]
  %s3 = inlined_call_operand.vmem [shape: f32[1,128], index: 3, kind: input, shape index: {}]
  %s4 = inlined_call_operand.<no memory space> [shape: f32[1,1], index: 4, kind: input, shape index: {}]
  %s5 = inlined_call_operand.vmem [shape: f32[2,1], index: 5, kind: output, shape index: {}]
  %s6 = sld [smem:[#allocation0]]
  $region61: #{simple_binary_cnn_forward.9} parent=0
    _
  %s8 = ssub.s32 1, %s6
  %s9 = scalar_select 0, %s8, %s6
  %v10 = vstv %s4
  %11 = vst [vmem:[#allocation3] sm:$0x1] %v10
  loop: start=0, step=1, limit=9
  $region2: #{simple_binary_cnn_forward.9} parent=0 // loop_pre_header
    _
  $region3: #{simple_binary_cnn_forward.9} parent=0 // loop_header
    %s13 = sphi 0, %s17
    %p14 = scmp.ge.s32.totalorder %s13, 9
    %s23 = sphi 0, %s25
    %s26 = sphi 0, %s23
    %s27 = sphi 0, %s26
    %s43 = sphi 0, %s27
    %s49 = sphi 0, %s51
    %s52 = sphi 0, %s49
    %s53 = sphi 0, %s52
    %s69 = sphi 0, %s53
    %s73 = sphi 0, %s73
    %s75 = sphi 0, %s73
    %s76 = sphi 0, %s75
    %s90 = sphi 0, %s76
    %s94 = sphi 0, %s94
    %s96 = sphi 0, %s94
    %s97 = sphi 0, %s96
    %s111 = sphi 0, %s97
    %s115 = sphi 0, %s115
    %s117 = sphi 0, %s115
    %s118 = sphi 0, %s117
    %s132 = sphi 0, %s118
    %s136 = sphi 0, %s136
    %s138 = sphi 0, %s136
    %s139 = sphi 0, %s138
    %s153 = sphi 0, %s139
  $region4: #{simple_binary_cnn_forward.9} parent=0 // loop_header_branch
    %16 = sbr.rel (%p14) target = $region8
  $region5: #{simple_binary_cnn_forward.9} parent=0 // loop_body
    %s18 = ssub.s32 %s13, 1
    %s19 = ssub.s32 %s13, 2
    %s20 = sadd.s32 %s13, 1
    %s21 = ssub.s32 %s13, %s20
    %p22 = scmp.eq.s32.totalorder %s21, 0
    %s24 = sadd.s32 %s23, 1
    %s25 = scalar_select %p22, %s23, %s24
    %p28 = pneg %p22
    %p29 = scmp.eq.s32.totalorder %s13, 6
    %p30 = por %p28, %p29
    %p31 = scmp.ne.s32.totalorder %s23, %s26
    %p32 = scmp.eq.s32.totalorder %s13, 0
    %p33 = por %p31, %p32
    %p34 = scmp.ne.s32.totalorder %s23, %s26
    %p35 = scmp.eq.s32.totalorder %s18, 6
    %p36 = por %p34, %p35
    %p37 = scmp.ne.s32.totalorder %s26, %s27
    %p38 = scmp.eq.s32.totalorder %s18, 0
    %p39 = por %p37, %p38
    %p40 = scmp.ne.s32.totalorder %s26, %s27
    %p41 = scmp.eq.s32.totalorder %s19, 6
    %p42 = por %p40, %p41
    %p44 = scmp.ne.s32.totalorder %s27, %s43
    %p45 = scmp.eq.s32.totalorder %s19, 0
    %p46 = por %p44, %p45
    %s47 = ssub.s32 %s13, %s20
    %p48 = scmp.eq.s32.totalorder %s47, 0
    %s50 = sadd.s32 %s49, 1
    %s51 = scalar_select %p48, %s49, %s50
    %p54 = pneg %p48
    %p55 = scmp.eq.s32.totalorder %s13, 6
    %p56 = por %p54, %p55
    %p57 = scmp.ne.s32.totalorder %s49, %s52
    %p58 = scmp.eq.s32.totalorder %s13, 0
    %p59 = por %p57, %p58
    %p60 = scmp.ne.s32.totalorder %s49, %s52
    %p61 = scmp.eq.s32.totalorder %s18, 6
    %p62 = por %p60, %p61
    %p63 = scmp.ne.s32.totalorder %s52, %s53
    %p64 = scmp.eq.s32.totalorder %s18, 0
    %p65 = por %p63, %p64
    %p66 = scmp.ne.s32.totalorder %s52, %s53
    %p67 = scmp.eq.s32.totalorder %s19, 6
    %p68 = por %p66, %p67
    %p70 = scmp.ne.s32.totalorder %s53, %s69
    %p71 = scmp.eq.s32.totalorder %s19, 0
    %p72 = por %p70, %p71
    %s74 = sadd.s32 %s73, 1
    %p77 = scmp.eq.s32.totalorder %s13, 6
    %p78 = scmp.ne.s32.totalorder %s73, %s75
    %p79 = scmp.eq.s32.totalorder %s13, 0
    %p80 = por %p78, %p79
    %p81 = scmp.ne.s32.totalorder %s73, %s75
    %p82 = scmp.eq.s32.totalorder %s18, 6
    %p83 = por %p81, %p82
    %p84 = scmp.ne.s32.totalorder %s75, %s76
    %p85 = scmp.eq.s32.totalorder %s18, 0
    %p86 = por %p84, %p85
    %p87 = scmp.ne.s32.totalorder %s75, %s76
    %p88 = scmp.eq.s32.totalorder %s19, 6
    %p89 = por %p87, %p88
    %p91 = scmp.ne.s32.totalorder %s76, %s90
    %p92 = scmp.eq.s32.totalorder %s19, 0
    %p93 = por %p91, %p92
    %s95 = sadd.s32 %s94, 1
    %p98 = scmp.eq.s32.totalorder %s13, 6
    %p99 = scmp.ne.s32.totalorder %s94, %s96
    %p100 = scmp.eq.s32.totalorder %s13, 0
    %p101 = por %p99, %p100
    %p102 = scmp.ne.s32.totalorder %s94, %s96
    %p103 = scmp.eq.s32.totalorder %s18, 6
    %p104 = por %p102, %p103
    %p105 = scmp.ne.s32.totalorder %s96, %s97
    %p106 = scmp.eq.s32.totalorder %s18, 0
    %p107 = por %p105, %p106
    %p108 = scmp.ne.s32.totalorder %s96, %s97
    %p109 = scmp.eq.s32.totalorder %s19, 6
    %p110 = por %p108, %p109
    %p112 = scmp.ne.s32.totalorder %s97, %s111
    %p113 = scmp.eq.s32.totalorder %s19, 0
    %p114 = por %p112, %p113
    %s116 = sadd.s32 %s115, 1
    %p119 = scmp.eq.s32.totalorder %s13, 6
    %p120 = scmp.ne.s32.totalorder %s115, %s117
    %p121 = scmp.eq.s32.totalorder %s13, 0
    %p122 = por %p120, %p121
    %p123 = scmp.ne.s32.totalorder %s115, %s117
    %p124 = scmp.eq.s32.totalorder %s18, 6
    %p125 = por %p123, %p124
    %p126 = scmp.ne.s32.totalorder %s117, %s118
    %p127 = scmp.eq.s32.totalorder %s18, 0
    %p128 = por %p126, %p127
    %p129 = scmp.ne.s32.totalorder %s117, %s118
    %p130 = scmp.eq.s32.totalorder %s19, 6
    %p131 = por %p129, %p130
    %p133 = scmp.ne.s32.totalorder %s118, %s132
    %p134 = scmp.eq.s32.totalorder %s19, 0
    %p135 = por %p133, %p134
    %s137 = sadd.s32 %s136, 1
    %p140 = scmp.eq.s32.totalorder %s13, 6
    %p141 = scmp.ne.s32.totalorder %s136, %s138
    %p142 = scmp.eq.s32.totalorder %s13, 0
    %p143 = por %p141, %p142
    %p144 = scmp.ne.s32.totalorder %s136, %s138
    %p145 = scmp.eq.s32.totalorder %s18, 6
    %p146 = por %p144, %p145
    %p147 = scmp.ne.s32.totalorder %s138, %s139
    %p148 = scmp.eq.s32.totalorder %s18, 0
    %p149 = por %p147, %p148
    %p150 = scmp.ne.s32.totalorder %s138, %s139
    %p151 = scmp.eq.s32.totalorder %s19, 6
    %p152 = por %p150, %p151
    %p154 = scmp.ne.s32.totalorder %s139, %s153
    %p155 = scmp.eq.s32.totalorder %s19, 0
    %p156 = por %p154, %p155
    %p157 = scmp.le.s32.totalorder 1, %s13
    %p158 = scmp.lt.s32.totalorder %s13, 8
    %p159 = pnand %p157, %p158
    %p160 = pneg %p159
    // Predicated region
    $region9: #{simple_binary_cnn_forward.9} parent=5 // pred_check
      _
    $region10: #{simple_binary_cnn_forward.9} parent=5 // pred_check_branch
      %162 = sbr.rel (%p159) target = $region12
    $region11: #{simple_binary_cnn_forward.9} parent=5 // pred_region
      %s163 = ssub.s32 %s13, 1
      // Predicated region
      $region13: #{simple_binary_cnn_forward.9} parent=11 // pred_check
        %p164 = pneg %p86
      $region14: #{simple_binary_cnn_forward.9} parent=11 // pred_check_branch
        %166 = sbr.rel (%p164) target = $region16
      $region15: #{simple_binary_cnn_forward.9} parent=11 // pred_region
        _
      $region16: #{simple_binary_cnn_forward.9} parent=11 // pred_fallthru
        _
      // Predicated region
      $region17: #{simple_binary_cnn_forward.9} parent=11 // pred_check
        %p167 = pneg %p107
      $region18: #{simple_binary_cnn_forward.9} parent=11 // pred_check_branch
        %169 = sbr.rel (%p167) target = $region20
      $region19: #{simple_binary_cnn_forward.9} parent=11 // pred_region
        _
      $region20: #{simple_binary_cnn_forward.9} parent=11 // pred_fallthru
        _
      // Predicated region
      $region21: #{simple_binary_cnn_forward.9} parent=11 // pred_check
        %p170 = pneg %p128
      $region22: #{simple_binary_cnn_forward.9} parent=11 // pred_check_branch
        %172 = sbr.rel (%p170) target = $region24
      $region23: #{simple_binary_cnn_forward.9} parent=11 // pred_region
        _
      $region24: #{simple_binary_cnn_forward.9} parent=11 // pred_fallthru
        _
    $region12: #{simple_binary_cnn_forward.9} parent=5 // pred_fallthru
      _
    %p173 = scmp.lt.s32.totalorder %s13, 7
    // Predicated region
    $region25: #{simple_binary_cnn_forward.9} parent=5 // pred_check
      %p174 = pneg %p173
    $region26: #{simple_binary_cnn_forward.9} parent=5 // pred_check_branch
      %176 = sbr.rel (%p174) target = $region28
    $region27: #{simple_binary_cnn_forward.9} parent=5 // pred_region
      // Predicated region
      $region29: #{simple_binary_cnn_forward.9} parent=27 // pred_check
        %p177 = pneg %p33
      $region30: #{simple_binary_cnn_forward.9} parent=27 // pred_check_branch
        %179 = sbr.rel (%p177) target = $region32
      $region31: #{simple_binary_cnn_forward.9} parent=27 // pred_region
        %s180 = smul.u32 14, %s13
        %p181 = scmp.lt.s32.totalorder %s180, 97
        %s182 = scalar_select %p181, %s180, 97
        %s183 = smul.addr %s182, 2
        %s184 = scalar_lea.vmem %s0, %s183
        %s185 = smul.u32 14, %s13
      $region32: #{simple_binary_cnn_forward.9} parent=27 // pred_fallthru
        _
      // Predicated region
      $region33: #{simple_binary_cnn_forward.9} parent=27 // pred_check
        %p186 = pneg %p59
      $region34: #{simple_binary_cnn_forward.9} parent=27 // pred_check_branch
        %188 = sbr.rel (%p186) target = $region36
      $region35: #{simple_binary_cnn_forward.9} parent=27 // pred_region
        %s189 = smul.u32 224, %s13
        %p190 = scmp.lt.s32.totalorder %s189, 1567
        %s191 = scalar_select %p190, %s189, 1567
        %s192 = smul.addr %s191, 8
        %s193 = scalar_lea.vmem %s1, %s192
        %s194 = smul.u32 224, %s13
      $region36: #{simple_binary_cnn_forward.9} parent=27 // pred_fallthru
        _
    $region28: #{simple_binary_cnn_forward.9} parent=5 // pred_fallthru
      _
    %p195 = scmp.le.s32.totalorder 1, %s13
    %p196 = scmp.lt.s32.totalorder %s13, 8
    %p197 = pnand %p195, %p196
    %p198 = pneg %p197
    // Predicated region
    $region37: #{simple_binary_cnn_forward.9} parent=5 // pred_check
      _
    $region38: #{simple_binary_cnn_forward.9} parent=5 // pred_check_branch
      %200 = sbr.rel (%p197) target = $region40
    $region39: #{simple_binary_cnn_forward.9} parent=5 // pred_region
      %s201 = ssub.s32 %s13, 1
      %s202 = smul.u32 14, %s18
      %p203 = scmp.lt.s32.totalorder %s202, 97
      %s204 = scalar_select %p203, %s202, 97
      %s205 = smul.addr %s204, 2
      %s206 = scalar_lea.vmem %s0, %s205
      %p207 = pneg %p39
      %p208 = pneg %p36
      %s209 = smul.u32 224, %s18
      %p210 = scmp.lt.s32.totalorder %s209, 1567
      %s211 = scalar_select %p210, %s209, 1567
      %s212 = smul.addr %s211, 8
      %s213 = scalar_lea.vmem %s1, %s212
      %p214 = pneg %p65
      %p215 = pneg %p62
      %p216 = pneg %p86
      %p217 = pneg %p83
      %p218 = pneg %p107
      %p219 = pneg %p104
      %p220 = pneg %p128
      %p221 = pneg %p125
      %p222 = pneg %p149
      %p223 = pneg %p146
      %s224 = smul.u32 14, %s18
      %p225 = scmp.lt.s32.totalorder %s224, 97
      %s226 = scalar_select %p225, %s224, 97
      %s227 = smul.addr %s226, 2
      %s228 = scalar_lea.vmem %s0, %s227
      %s229 = smul.u32 14, %s18
      %s230 = smul.u32 224, %s18
      %p231 = scmp.lt.s32.totalorder %s230, 1567
      %s232 = scalar_select %p231, %s230, 1567
      %s233 = smul.addr %s232, 8
      %s234 = scalar_lea.vmem %s1, %s233
      %s235 = smul.u32 224, %s18
      %p236 = scmp.eq.s32.totalorder %s18, 0
      // Predicated region
      $region41: #{simple_binary_cnn_forward.9} parent=39 // pred_check
        %p237 = pneg %p236
      $region42: #{simple_binary_cnn_forward.9} parent=39 // pred_check_branch
        %239 = sbr.rel (%p237) target = $region44
      $region43: #{simple_binary_cnn_forward.9} parent=39 // pred_region
        %240 = vst [vmem:[#allocation2] sm:$0x3] 0.0
      $region44: #{simple_binary_cnn_forward.9} parent=39 // pred_fallthru
        _
      %v241 = vld [vmem:[#allocation2] sm:$0x3]
      %v242 = vld [vmem:[%s228] sm:$0xff]
      %v243 = vld [vmem:[%s228 + $0x8] sm:$0xff]
      %v244 = vld [vmem:[%s228 + $0x10] sm:$0xff]
      %v245 = vld [vmem:[%s228 + $0x18] sm:$0xf]
      %v246 = vld [vmem:[%s234] sm:$0xff]
      %v247 = vld [vmem:[%s234 + $0x8] sm:$0xff]
      %v248 = vld [vmem:[%s234 + $0x10] sm:$0xff]
      %v249 = vld [vmem:[%s234 + $0x18] sm:$0xff]
      %v250 = vld [vmem:[%s234 + $0x20] sm:$0xff]
      %v251 = vld [vmem:[%s234 + $0x28] sm:$0xff]
      %v252 = vld [vmem:[%s234 + $0x30] sm:$0xff]
      %v253 = vld [vmem:[%s234 + $0x38] sm:$0xff]
      %v254 = vld [vmem:[%s234 + $0x40] sm:$0xff]
      %v255 = vld [vmem:[%s234 + $0x48] sm:$0xff]
      %v256 = vld [vmem:[%s234 + $0x50] sm:$0xff]
      %v257 = vld [vmem:[%s234 + $0x58] sm:$0xff]
      %v258 = vld [vmem:[%s234 + $0x60] sm:$0xff]
      %v259 = vld [vmem:[%s234 + $0x68] sm:$0xff]
      %v260 = vld [vmem:[%s234 + $0x70] sm:$0xff]
      %v261 = vld [vmem:[%s234 + $0x78] sm:$0xff]
      %v262 = vld [vmem:[%s234 + $0x80] sm:$0xff]
      %v263 = vld [vmem:[%s234 + $0x88] sm:$0xff]
      %v264 = vld [vmem:[%s234 + $0x90] sm:$0xff]
      %v265 = vld [vmem:[%s234 + $0x98] sm:$0xff]
      %v266 = vld [vmem:[%s234 + $0xa0] sm:$0xff]
      %v267 = vld [vmem:[%s234 + $0xa8] sm:$0xff]
      %v268 = vld [vmem:[%s234 + $0xb0] sm:$0xff]
      %v269 = vld [vmem:[%s234 + $0xb8] sm:$0xff]
      %v270 = vld [vmem:[%s234 + $0xc0] sm:$0xff]
      %v271 = vld [vmem:[%s234 + $0xc8] sm:$0xff]
      %v272 = vld [vmem:[%s234 + $0xd0] sm:$0xff]
      %v273 = vld [vmem:[%s234 + $0xd8] sm:$0xff]
      %v274 = vld [vmem:[%s234 + $0xe0] sm:$0xff]
      %v275 = vld [vmem:[%s234 + $0xe8] sm:$0xff]
      %v276 = vld [vmem:[%s234 + $0xf0] sm:$0xff]
      %v277 = vld [vmem:[%s234 + $0xf8] sm:$0xff]
      %v278 = vld [vmem:[%s234 + $0x100] sm:$0xff]
      %v279 = vld [vmem:[%s234 + $0x108] sm:$0xff]
      %v280 = vld [vmem:[%s234 + $0x110] sm:$0xff]
      %v281 = vld [vmem:[%s234 + $0x118] sm:$0xff]
      %v282 = vld [vmem:[%s234 + $0x120] sm:$0xff]
      %v283 = vld [vmem:[%s234 + $0x128] sm:$0xff]
      %v284 = vld [vmem:[%s234 + $0x130] sm:$0xff]
      %v285 = vld [vmem:[%s234 + $0x138] sm:$0xff]
      %v286 = vld [vmem:[%s234 + $0x140] sm:$0xff]
      %v287 = vld [vmem:[%s234 + $0x148] sm:$0xff]
      %v288 = vld [vmem:[%s234 + $0x150] sm:$0xff]
      %v289 = vld [vmem:[%s234 + $0x158] sm:$0xff]
      %v290 = vld [vmem:[%s234 + $0x160] sm:$0xff]
      %v291 = vld [vmem:[%s234 + $0x168] sm:$0xff]
      %v292 = vld [vmem:[%s234 + $0x170] sm:$0xff]
      %v293 = vld [vmem:[%s234 + $0x178] sm:$0xff]
      %v294 = vld [vmem:[%s234 + $0x180] sm:$0xff]
      %v295 = vld [vmem:[%s234 + $0x188] sm:$0xff]
      %v296 = vld [vmem:[%s234 + $0x190] sm:$0xff]
      %v297 = vld [vmem:[%s234 + $0x198] sm:$0xff]
      %v298 = vld [vmem:[%s234 + $0x1a0] sm:$0xff]
      %v299 = vld [vmem:[%s234 + $0x1a8] sm:$0xff]
      %v300 = vld [vmem:[%s234 + $0x1b0] sm:$0xff]
      %v301 = vld [vmem:[%s234 + $0x1b8] sm:$0xff]
      %v302 = vld [vmem:[%s234 + $0x1c0] sm:$0xff]
      %v303 = vld [vmem:[%s234 + $0x1c8] sm:$0xff]
      %v304 = vld [vmem:[%s234 + $0x1d0] sm:$0xff]
      %v305 = vld [vmem:[%s234 + $0x1d8] sm:$0xff]
      %v306 = vld [vmem:[%s234 + $0x1e0] sm:$0xff]
      %v307 = vld [vmem:[%s234 + $0x1e8] sm:$0xff]
      %v308 = vld [vmem:[%s234 + $0x1f0] sm:$0xff]
      %v309 = vld [vmem:[%s234 + $0x1f8] sm:$0xff]
      %v310 = vld [vmem:[%s234 + $0x200] sm:$0xff]
      %v311 = vld [vmem:[%s234 + $0x208] sm:$0xff]
      %v312 = vld [vmem:[%s234 + $0x210] sm:$0xff]
      %v313 = vld [vmem:[%s234 + $0x218] sm:$0xff]
      %v314 = vld [vmem:[%s234 + $0x220] sm:$0xff]
      %v315 = vld [vmem:[%s234 + $0x228] sm:$0xff]
      %v316 = vld [vmem:[%s234 + $0x230] sm:$0xff]
      %v317 = vld [vmem:[%s234 + $0x238] sm:$0xff]
      %v318 = vld [vmem:[%s234 + $0x240] sm:$0xff]
      %v319 = vld [vmem:[%s234 + $0x248] sm:$0xff]
      %v320 = vld [vmem:[%s234 + $0x250] sm:$0xff]
      %v321 = vld [vmem:[%s234 + $0x258] sm:$0xff]
      %v322 = vld [vmem:[%s234 + $0x260] sm:$0xff]
      %v323 = vld [vmem:[%s234 + $0x268] sm:$0xff]
      %v324 = vld [vmem:[%s234 + $0x270] sm:$0xff]
      %v325 = vld [vmem:[%s234 + $0x278] sm:$0xff]
      %v326 = vld [vmem:[%s234 + $0x280] sm:$0xff]
      %v327 = vld [vmem:[%s234 + $0x288] sm:$0xff]
      %v328 = vld [vmem:[%s234 + $0x290] sm:$0xff]
      %v329 = vld [vmem:[%s234 + $0x298] sm:$0xff]
      %v330 = vld [vmem:[%s234 + $0x2a0] sm:$0xff]
      %v331 = vld [vmem:[%s234 + $0x2a8] sm:$0xff]
      %v332 = vld [vmem:[%s234 + $0x2b0] sm:$0xff]
      %v333 = vld [vmem:[%s234 + $0x2b8] sm:$0xff]
      %v334 = vld [vmem:[%s234 + $0x2c0] sm:$0xff]
      %v335 = vld [vmem:[%s234 + $0x2c8] sm:$0xff]
      %v336 = vld [vmem:[%s234 + $0x2d0] sm:$0xff]
      %v337 = vld [vmem:[%s234 + $0x2d8] sm:$0xff]
      %v338 = vld [vmem:[%s234 + $0x2e0] sm:$0xff]
      %v339 = vld [vmem:[%s234 + $0x2e8] sm:$0xff]
      %v340 = vld [vmem:[%s234 + $0x2f0] sm:$0xff]
      %v341 = vld [vmem:[%s234 + $0x2f8] sm:$0xff]
      %v342 = vld [vmem:[%s234 + $0x300] sm:$0xff]
      %v343 = vld [vmem:[%s234 + $0x308] sm:$0xff]
      %v344 = vld [vmem:[%s234 + $0x310] sm:$0xff]
      %v345 = vld [vmem:[%s234 + $0x318] sm:$0xff]
      %v346 = vld [vmem:[%s234 + $0x320] sm:$0xff]
      %v347 = vld [vmem:[%s234 + $0x328] sm:$0xff]
      %v348 = vld [vmem:[%s234 + $0x330] sm:$0xff]
      %v349 = vld [vmem:[%s234 + $0x338] sm:$0xff]
      %v350 = vld [vmem:[%s234 + $0x340] sm:$0xff]
      %v351 = vld [vmem:[%s234 + $0x348] sm:$0xff]
      %v352 = vld [vmem:[%s234 + $0x350] sm:$0xff]
      %v353 = vld [vmem:[%s234 + $0x358] sm:$0xff]
      %v354 = vld [vmem:[%s234 + $0x360] sm:$0xff]
      %v355 = vld [vmem:[%s234 + $0x368] sm:$0xff]
      %v356 = vld [vmem:[%s234 + $0x370] sm:$0xff]
      %v357 = vld [vmem:[%s234 + $0x378] sm:$0xff]
      %v358 = vld [vmem:[%s234 + $0x380] sm:$0xff]
      %v359 = vld [vmem:[%s234 + $0x388] sm:$0xff]
      %v360 = vld [vmem:[%s234 + $0x390] sm:$0xff]
      %v361 = vld [vmem:[%s234 + $0x398] sm:$0xff]
      %v362 = vld [vmem:[%s234 + $0x3a0] sm:$0xff]
      %v363 = vld [vmem:[%s234 + $0x3a8] sm:$0xff]
      %v364 = vld [vmem:[%s234 + $0x3b0] sm:$0xff]
      %v365 = vld [vmem:[%s234 + $0x3b8] sm:$0xff]
      %v366 = vld [vmem:[%s234 + $0x3c0] sm:$0xff]
      %v367 = vld [vmem:[%s234 + $0x3c8] sm:$0xff]
      %v368 = vld [vmem:[%s234 + $0x3d0] sm:$0xff]
      %v369 = vld [vmem:[%s234 + $0x3d8] sm:$0xff]
      %v370 = vld [vmem:[%s234 + $0x3e0] sm:$0xff]
      %v371 = vld [vmem:[%s234 + $0x3e8] sm:$0xff]
      %v372 = vld [vmem:[%s234 + $0x3f0] sm:$0xff]
      %v373 = vld [vmem:[%s234 + $0x3f8] sm:$0xff]
      %v374 = vld [vmem:[%s234 + $0x400] sm:$0xff]
      %v375 = vld [vmem:[%s234 + $0x408] sm:$0xff]
      %v376 = vld [vmem:[%s234 + $0x410] sm:$0xff]
      %v377 = vld [vmem:[%s234 + $0x418] sm:$0xff]
      %v378 = vld [vmem:[%s234 + $0x420] sm:$0xff]
      %v379 = vld [vmem:[%s234 + $0x428] sm:$0xff]
      %v380 = vld [vmem:[%s234 + $0x430] sm:$0xff]
      %v381 = vld [vmem:[%s234 + $0x438] sm:$0xff]
      %v382 = vld [vmem:[%s234 + $0x440] sm:$0xff]
      %v383 = vld [vmem:[%s234 + $0x448] sm:$0xff]
      %v384 = vld [vmem:[%s234 + $0x450] sm:$0xff]
      %v385 = vld [vmem:[%s234 + $0x458] sm:$0xff]
      %v386 = vld [vmem:[%s234 + $0x460] sm:$0xff]
      %v387 = vld [vmem:[%s234 + $0x468] sm:$0xff]
      %v388 = vld [vmem:[%s234 + $0x470] sm:$0xff]
      %v389 = vld [vmem:[%s234 + $0x478] sm:$0xff]
      %v390 = vld [vmem:[%s234 + $0x480] sm:$0xff]
      %v391 = vld [vmem:[%s234 + $0x488] sm:$0xff]
      %v392 = vld [vmem:[%s234 + $0x490] sm:$0xff]
      %v393 = vld [vmem:[%s234 + $0x498] sm:$0xff]
      %v394 = vld [vmem:[%s234 + $0x4a0] sm:$0xff]
      %v395 = vld [vmem:[%s234 + $0x4a8] sm:$0xff]
      %v396 = vld [vmem:[%s234 + $0x4b0] sm:$0xff]
      %v397 = vld [vmem:[%s234 + $0x4b8] sm:$0xff]
      %v398 = vld [vmem:[%s234 + $0x4c0] sm:$0xff]
      %v399 = vld [vmem:[%s234 + $0x4c8] sm:$0xff]
      %v400 = vld [vmem:[%s234 + $0x4d0] sm:$0xff]
      %v401 = vld [vmem:[%s234 + $0x4d8] sm:$0xff]
      %v402 = vld [vmem:[%s234 + $0x4e0] sm:$0xff]
      %v403 = vld [vmem:[%s234 + $0x4e8] sm:$0xff]
      %v404 = vld [vmem:[%s234 + $0x4f0] sm:$0xff]
      %v405 = vld [vmem:[%s234 + $0x4f8] sm:$0xff]
      %v406 = vld [vmem:[%s234 + $0x500] sm:$0xff]
      %v407 = vld [vmem:[%s234 + $0x508] sm:$0xff]
      %v408 = vld [vmem:[%s234 + $0x510] sm:$0xff]
      %v409 = vld [vmem:[%s234 + $0x518] sm:$0xff]
      %v410 = vld [vmem:[%s234 + $0x520] sm:$0xff]
      %v411 = vld [vmem:[%s234 + $0x528] sm:$0xff]
      %v412 = vld [vmem:[%s234 + $0x530] sm:$0xff]
      %v413 = vld [vmem:[%s234 + $0x538] sm:$0xff]
      %v414 = vld [vmem:[%s234 + $0x540] sm:$0xff]
      %v415 = vld [vmem:[%s234 + $0x548] sm:$0xff]
      %v416 = vld [vmem:[%s234 + $0x550] sm:$0xff]
      %v417 = vld [vmem:[%s234 + $0x558] sm:$0xff]
      %v418 = vld [vmem:[%s234 + $0x560] sm:$0xff]
      %v419 = vld [vmem:[%s234 + $0x568] sm:$0xff]
      %v420 = vld [vmem:[%s234 + $0x570] sm:$0xff]
      %v421 = vld [vmem:[%s234 + $0x578] sm:$0xff]
      %v422 = vld [vmem:[%s234 + $0x580] sm:$0xff]
      %v423 = vld [vmem:[%s234 + $0x588] sm:$0xff]
      %v424 = vld [vmem:[%s234 + $0x590] sm:$0xff]
      %v425 = vld [vmem:[%s234 + $0x598] sm:$0xff]
      %v426 = vld [vmem:[%s234 + $0x5a0] sm:$0xff]
      %v427 = vld [vmem:[%s234 + $0x5a8] sm:$0xff]
      %v428 = vld [vmem:[%s234 + $0x5b0] sm:$0xff]
      %v429 = vld [vmem:[%s234 + $0x5b8] sm:$0xff]
      %v430 = vld [vmem:[%s234 + $0x5c0] sm:$0xff]
      %v431 = vld [vmem:[%s234 + $0x5c8] sm:$0xff]
      %v432 = vld [vmem:[%s234 + $0x5d0] sm:$0xff]
      %v433 = vld [vmem:[%s234 + $0x5d8] sm:$0xff]
      %v434 = vld [vmem:[%s234 + $0x5e0] sm:$0xff]
      %v435 = vld [vmem:[%s234 + $0x5e8] sm:$0xff]
      %v436 = vld [vmem:[%s234 + $0x5f0] sm:$0xff]
      %v437 = vld [vmem:[%s234 + $0x5f8] sm:$0xff]
      %v438 = vld [vmem:[%s234 + $0x600] sm:$0xff]
      %v439 = vld [vmem:[%s234 + $0x608] sm:$0xff]
      %v440 = vld [vmem:[%s234 + $0x610] sm:$0xff]
      %v441 = vld [vmem:[%s234 + $0x618] sm:$0xff]
      %v442 = vld [vmem:[%s234 + $0x620] sm:$0xff]
      %v443 = vld [vmem:[%s234 + $0x628] sm:$0xff]
      %v444 = vld [vmem:[%s234 + $0x630] sm:$0xff]
      %v445 = vld [vmem:[%s234 + $0x638] sm:$0xff]
      %v446 = vld [vmem:[%s234 + $0x640] sm:$0xff]
      %v447 = vld [vmem:[%s234 + $0x648] sm:$0xff]
      %v448 = vld [vmem:[%s234 + $0x650] sm:$0xff]
      %v449 = vld [vmem:[%s234 + $0x658] sm:$0xff]
      %v450 = vld [vmem:[%s234 + $0x660] sm:$0xff]
      %v451 = vld [vmem:[%s234 + $0x668] sm:$0xff]
      %v452 = vld [vmem:[%s234 + $0x670] sm:$0xff]
      %v453 = vld [vmem:[%s234 + $0x678] sm:$0xff]
      %v454 = vld [vmem:[%s234 + $0x680] sm:$0xff]
      %v455 = vld [vmem:[%s234 + $0x688] sm:$0xff]
      %v456 = vld [vmem:[%s234 + $0x690] sm:$0xff]
      %v457 = vld [vmem:[%s234 + $0x698] sm:$0xff]
      %v458 = vld [vmem:[%s234 + $0x6a0] sm:$0xff]
      %v459 = vld [vmem:[%s234 + $0x6a8] sm:$0xff]
      %v460 = vld [vmem:[%s234 + $0x6b0] sm:$0xff]
      %v461 = vld [vmem:[%s234 + $0x6b8] sm:$0xff]
      %v462 = vld [vmem:[%s234 + $0x6c0] sm:$0xff]
      %v463 = vld [vmem:[%s234 + $0x6c8] sm:$0xff]
      %v464 = vld [vmem:[%s234 + $0x6d0] sm:$0xff]
      %v465 = vld [vmem:[%s234 + $0x6d8] sm:$0xff]
      %v466 = vld [vmem:[%s234 + $0x6e0] sm:$0xff]
      %v467 = vld [vmem:[%s234 + $0x6e8] sm:$0xff]
      %v468 = vld [vmem:[%s234 + $0x6f0] sm:$0xff]
      %v469 = vld [vmem:[%s234 + $0x6f8] sm:$0xff]
      %v474 = vcombine.high %v242, %v242
      %v476 = vunpack.c.l.s4 1983009808
      %v477 = vunpack.c.0.s8 %v476
      %v478 = vlaneseq
      %v479 = vshrl.u32 %v478, 7
      %v480 = vsub.s32 %v477, %v479
      %v481 = vrot.slane %v242, %v480
      %v483 = vunpack.c.l.s4 1983009808
      %v484 = vunpack.c.0.s8 %v483
      %v485 = vlaneseq
      %v486 = vshrl.u32 %v485, 7
      %v487 = vsub.s32 %v484, %v486
      %v488 = vrot.slane %v474, %v487
      %v489 = vcombine.high %v481, %v481
      %v490 = vcombine.high %v488, %v488
      %v491 = vcombine.high %v243, %v243
      %v493 = vunpack.c.l.s4 1983009808
      %v494 = vunpack.c.0.s8 %v493
      %v495 = vlaneseq
      %v496 = vshrl.u32 %v495, 7
      %v497 = vsub.s32 %v494, %v496
      %v498 = vrot.slane %v243, %v497
      %v500 = vunpack.c.l.s4 1983009808
      %v501 = vunpack.c.0.s8 %v500
      %v502 = vlaneseq
      %v503 = vshrl.u32 %v502, 7
      %v504 = vsub.s32 %v501, %v503
      %v505 = vrot.slane %v491, %v504
      %v506 = vcombine.high %v498, %v498
      %v507 = vcombine.high %v505, %v505
      %v508 = vcombine.high %v244, %v244
      %v510 = vunpack.c.l.s4 1983009808
      %v511 = vunpack.c.0.s8 %v510
      %v512 = vlaneseq
      %v513 = vshrl.u32 %v512, 7
      %v514 = vsub.s32 %v511, %v513
      %v515 = vrot.slane %v244, %v514
      %v517 = vunpack.c.l.s4 1983009808
      %v518 = vunpack.c.0.s8 %v517
      %v519 = vlaneseq
      %v520 = vshrl.u32 %v519, 7
      %v521 = vsub.s32 %v518, %v520
      %v522 = vrot.slane %v508, %v521
      %v523 = vcombine.high %v515, %v515
      %v524 = vcombine.high %v522, %v522
      %v526 = vunpack.c.l.s4 1983009808
      %v527 = vunpack.c.0.s8 %v526
      %v528 = vlaneseq
      %v529 = vshrl.u32 %v528, 7
      %v530 = vsub.s32 %v527, %v529
      %v531 = vrot.slane %v245, %v530
      %v532 = vcombine.high %v531, %v531
      %547 = vmatprep.subr.mxu0 0.0
      %548 = vmatpush1.msra.mxu0 %v246
      %549 = vmatprep.subr.mxu0 0.0
      %550 = vmatpush1.msra.mxu0 %v247
      %551 = vmatprep.subr.mxu0 0.0
      %552 = vmatpush1.msra.mxu0 %v248
      %553 = vmatprep.subr.mxu0 0.0
      %554 = vmatpush1.msra.mxu0 %v249
      %555 = vmatprep.subr.mxu0 0.0
      %556 = vmatpush1.msra.mxu0 %v250
      %557 = vmatprep.subr.mxu0 0.0
      %558 = vmatpush1.msra.mxu0 %v251
      %559 = vmatprep.subr.mxu0 0.0
      %560 = vmatpush1.msra.mxu0 %v252
      %561 = vmatprep.subr.mxu0 0.0
      %562 = vmatpush1.msra.mxu0 %v253
      %563 = vmatprep.subr.mxu0 0.0
      %564 = vmatpush1.msra.mxu0 %v254
      %565 = vmatprep.subr.mxu0 0.0
      %566 = vmatpush1.msra.mxu0 %v255
      %567 = vmatprep.subr.mxu0 0.0
      %568 = vmatpush1.msra.mxu0 %v256
      %569 = vmatprep.subr.mxu0 0.0
      %570 = vmatpush1.msra.mxu0 %v257
      %571 = vmatprep.subr.mxu0 0.0
      %572 = vmatpush1.msra.mxu0 %v258
      %573 = vmatprep.subr.mxu0 0.0
      %574 = vmatpush1.msra.mxu0 %v259
      %575 = vmatprep.subr.mxu0 0.0
      %576 = vmatpush1.msra.mxu0 %v260
      %577 = vmatprep.subr.mxu0 0.0
      %578 = vmatpush1.msra.mxu0 %v261
      %579 = vmatprep.subr.mxu0 0.0
      %580 = vmatpush1.msra.mxu0 %v262
      %581 = vmatprep.subr.mxu0 0.0
      %582 = vmatpush1.msra.mxu0 %v263
      %583 = vmatprep.subr.mxu0 0.0
      %584 = vmatpush1.msra.mxu0 %v264
      %585 = vmatprep.subr.mxu0 0.0
      %586 = vmatpush1.msra.mxu0 %v265
      %587 = vmatprep.subr.mxu0 0.0
      %588 = vmatpush1.msra.mxu0 %v266
      %589 = vmatprep.subr.mxu0 0.0
      %590 = vmatpush1.msra.mxu0 %v267
      %591 = vmatprep.subr.mxu0 0.0
      %592 = vmatpush1.msra.mxu0 %v268
      %593 = vmatprep.subr.mxu0 0.0
      %594 = vmatpush1.msra.mxu0 %v269
      %595 = vmatprep.subr.mxu0 0.0
      %596 = vmatpush1.msra.mxu0 %v270
      %597 = vmatprep.subr.mxu0 0.0
      %598 = vmatpush1.msra.mxu0 %v271
      %599 = vmatprep.subr.mxu0 0.0
      %600 = vmatpush1.msra.mxu0 %v272
      %601 = vmatprep.subr.mxu0 0.0
      %602 = vmatpush1.msra.mxu0 %v273
      %603 = vmatprep.subr.mxu0 0.0
      %604 = vmatpush1.msra.mxu0 %v274
      %605 = vmatprep.subr.mxu0 0.0
      %606 = vmatpush1.msra.mxu0 %v275
      %607 = vmatprep.subr.mxu0 0.0
      %608 = vmatpush1.msra.mxu0 %v276
      %609 = vmatprep.subr.mxu0 0.0
      %610 = vmatpush1.msra.mxu0 %v277
      %611 = vmatprep.mubr.f32.mxu0 %v489
      %612 = vmatmul.mubr.f32.gmra.mrb[0].mxu0 %v481
      %v613 = vpop.f32.mrb[0].mxu0
      %v614 = vadd.f32 0.0, %v613
      %v615 = vpop.f32.mrb[0].mxu0
      %616 = vdwg.mxu0
      %617 = vmatprep.subr.mxu0 0.0
      %618 = vmatpush1.msra.mxu0 %v278
      %619 = vmatprep.subr.mxu0 0.0
      %620 = vmatpush1.msra.mxu0 %v279
      %621 = vmatprep.subr.mxu0 0.0
      %622 = vmatpush1.msra.mxu0 %v280
      %623 = vmatprep.subr.mxu0 0.0
      %624 = vmatpush1.msra.mxu0 %v281
      %625 = vmatprep.subr.mxu0 0.0
      %626 = vmatpush1.msra.mxu0 %v282
      %627 = vmatprep.subr.mxu0 0.0
      %628 = vmatpush1.msra.mxu0 %v283
      %629 = vmatprep.subr.mxu0 0.0
      %630 = vmatpush1.msra.mxu0 %v284
      %631 = vmatprep.subr.mxu0 0.0
      %632 = vmatpush1.msra.mxu0 %v285
      %633 = vmatprep.subr.mxu0 0.0
      %634 = vmatpush1.msra.mxu0 %v286
      %635 = vmatprep.subr.mxu0 0.0
      %636 = vmatpush1.msra.mxu0 %v287
      %637 = vmatprep.subr.mxu0 0.0
      %638 = vmatpush1.msra.mxu0 %v288
      %639 = vmatprep.subr.mxu0 0.0
      %640 = vmatpush1.msra.mxu0 %v289
      %641 = vmatprep.subr.mxu0 0.0
      %642 = vmatpush1.msra.mxu0 %v290
      %643 = vmatprep.subr.mxu0 0.0
      %644 = vmatpush1.msra.mxu0 %v291
      %645 = vmatprep.subr.mxu0 0.0
      %646 = vmatpush1.msra.mxu0 %v292
      %647 = vmatprep.subr.mxu0 0.0
      %648 = vmatpush1.msra.mxu0 %v293
      %649 = vmatprep.subr.mxu0 0.0
      %650 = vmatpush1.msra.mxu0 %v294
      %651 = vmatprep.subr.mxu0 0.0
      %652 = vmatpush1.msra.mxu0 %v295
      %653 = vmatprep.subr.mxu0 0.0
      %654 = vmatpush1.msra.mxu0 %v296
      %655 = vmatprep.subr.mxu0 0.0
      %656 = vmatpush1.msra.mxu0 %v297
      %657 = vmatprep.subr.mxu0 0.0
      %658 = vmatpush1.msra.mxu0 %v298
      %659 = vmatprep.subr.mxu0 0.0
      %660 = vmatpush1.msra.mxu0 %v299
      %661 = vmatprep.subr.mxu0 0.0
      %662 = vmatpush1.msra.mxu0 %v300
      %663 = vmatprep.subr.mxu0 0.0
      %664 = vmatpush1.msra.mxu0 %v301
      %665 = vmatprep.subr.mxu0 0.0
      %666 = vmatpush1.msra.mxu0 %v302
      %667 = vmatprep.subr.mxu0 0.0
      %668 = vmatpush1.msra.mxu0 %v303
      %669 = vmatprep.subr.mxu0 0.0
      %670 = vmatpush1.msra.mxu0 %v304
      %671 = vmatprep.subr.mxu0 0.0
      %672 = vmatpush1.msra.mxu0 %v305
      %673 = vmatprep.subr.mxu0 0.0
      %674 = vmatpush1.msra.mxu0 %v306
      %675 = vmatprep.subr.mxu0 0.0
      %676 = vmatpush1.msra.mxu0 %v307
      %677 = vmatprep.subr.mxu0 0.0
      %678 = vmatpush1.msra.mxu0 %v308
      %679 = vmatprep.subr.mxu0 0.0
      %680 = vmatpush1.msra.mxu0 %v309
      %681 = vmatprep.mubr.f32.mxu0 %v490
      %682 = vmatmul.mubr.f32.gmra.mrb[0].mxu0 %v488
      %v683 = vpop.f32.mrb[0].mxu0
      %v684 = vadd.f32 %v614, %v683
      %v685 = vpop.f32.mrb[0].mxu0
      %686 = vdwg.mxu0
      %687 = vmatprep.subr.mxu0 0.0
      %688 = vmatpush1.msra.mxu0 %v310
      %689 = vmatprep.subr.mxu0 0.0
      %690 = vmatpush1.msra.mxu0 %v311
      %691 = vmatprep.subr.mxu0 0.0
      %692 = vmatpush1.msra.mxu0 %v312
      %693 = vmatprep.subr.mxu0 0.0
      %694 = vmatpush1.msra.mxu0 %v313
      %695 = vmatprep.subr.mxu0 0.0
      %696 = vmatpush1.msra.mxu0 %v314
      %697 = vmatprep.subr.mxu0 0.0
      %698 = vmatpush1.msra.mxu0 %v315
      %699 = vmatprep.subr.mxu0 0.0
      %700 = vmatpush1.msra.mxu0 %v316
      %701 = vmatprep.subr.mxu0 0.0
      %702 = vmatpush1.msra.mxu0 %v317
      %703 = vmatprep.subr.mxu0 0.0
      %704 = vmatpush1.msra.mxu0 %v318
      %705 = vmatprep.subr.mxu0 0.0
      %706 = vmatpush1.msra.mxu0 %v319
      %707 = vmatprep.subr.mxu0 0.0
      %708 = vmatpush1.msra.mxu0 %v320
      %709 = vmatprep.subr.mxu0 0.0
      %710 = vmatpush1.msra.mxu0 %v321
      %711 = vmatprep.subr.mxu0 0.0
      %712 = vmatpush1.msra.mxu0 %v322
      %713 = vmatprep.subr.mxu0 0.0
      %714 = vmatpush1.msra.mxu0 %v323
      %715 = vmatprep.subr.mxu0 0.0
      %716 = vmatpush1.msra.mxu0 %v324
      %717 = vmatprep.subr.mxu0 0.0
      %718 = vmatpush1.msra.mxu0 %v325
      %719 = vmatprep.subr.mxu0 0.0
      %720 = vmatpush1.msra.mxu0 %v326
      %721 = vmatprep.subr.mxu0 0.0
      %722 = vmatpush1.msra.mxu0 %v327
      %723 = vmatprep.subr.mxu0 0.0
      %724 = vmatpush1.msra.mxu0 %v328
      %725 = vmatprep.subr.mxu0 0.0
      %726 = vmatpush1.msra.mxu0 %v329
      %727 = vmatprep.subr.mxu0 0.0
      %728 = vmatpush1.msra.mxu0 %v330
      %729 = vmatprep.subr.mxu0 0.0
      %730 = vmatpush1.msra.mxu0 %v331
      %731 = vmatprep.subr.mxu0 0.0
      %732 = vmatpush1.msra.mxu0 %v332
      %733 = vmatprep.subr.mxu0 0.0
      %734 = vmatpush1.msra.mxu0 %v333
      %735 = vmatprep.subr.mxu0 0.0
      %736 = vmatpush1.msra.mxu0 %v334
      %737 = vmatprep.subr.mxu0 0.0
      %738 = vmatpush1.msra.mxu0 %v335
      %739 = vmatprep.subr.mxu0 0.0
      %740 = vmatpush1.msra.mxu0 %v336
      %741 = vmatprep.subr.mxu0 0.0
      %742 = vmatpush1.msra.mxu0 %v337
      %743 = vmatprep.subr.mxu0 0.0
      %744 = vmatpush1.msra.mxu0 %v338
      %745 = vmatprep.subr.mxu0 0.0
      %746 = vmatpush1.msra.mxu0 %v339
      %747 = vmatprep.subr.mxu0 0.0
      %748 = vmatpush1.msra.mxu0 %v340
      %749 = vmatprep.subr.mxu0 0.0
      %750 = vmatpush1.msra.mxu0 %v341
      %751 = vmatprep.mubr.f32.mxu0 %v506
      %752 = vmatmul.mubr.f32.gmra.mrb[0].mxu0 %v498
      %v753 = vpop.f32.mrb[0].mxu0
      %v754 = vadd.f32 %v684, %v753
      %v755 = vpop.f32.mrb[0].mxu0
      %756 = vdwg.mxu0
      %757 = vmatprep.subr.mxu0 0.0
      %758 = vmatpush1.msra.mxu0 %v342
      %759 = vmatprep.subr.mxu0 0.0
      %760 = vmatpush1.msra.mxu0 %v343
      %761 = vmatprep.subr.mxu0 0.0
      %762 = vmatpush1.msra.mxu0 %v344
      %763 = vmatprep.subr.mxu0 0.0
      %764 = vmatpush1.msra.mxu0 %v345
      %765 = vmatprep.subr.mxu0 0.0
      %766 = vmatpush1.msra.mxu0 %v346
      %767 = vmatprep.subr.mxu0 0.0
      %768 = vmatpush1.msra.mxu0 %v347
      %769 = vmatprep.subr.mxu0 0.0
      %770 = vmatpush1.msra.mxu0 %v348
      %771 = vmatprep.subr.mxu0 0.0
      %772 = vmatpush1.msra.mxu0 %v349
      %773 = vmatprep.subr.mxu0 0.0
      %774 = vmatpush1.msra.mxu0 %v350
      %775 = vmatprep.subr.mxu0 0.0
      %776 = vmatpush1.msra.mxu0 %v351
      %777 = vmatprep.subr.mxu0 0.0
      %778 = vmatpush1.msra.mxu0 %v352
      %779 = vmatprep.subr.mxu0 0.0
      %780 = vmatpush1.msra.mxu0 %v353
      %781 = vmatprep.subr.mxu0 0.0
      %782 = vmatpush1.msra.mxu0 %v354
      %783 = vmatprep.subr.mxu0 0.0
      %784 = vmatpush1.msra.mxu0 %v355
      %785 = vmatprep.subr.mxu0 0.0
      %786 = vmatpush1.msra.mxu0 %v356
      %787 = vmatprep.subr.mxu0 0.0
      %788 = vmatpush1.msra.mxu0 %v357
      %789 = vmatprep.subr.mxu0 0.0
      %790 = vmatpush1.msra.mxu0 %v358
      %791 = vmatprep.subr.mxu0 0.0
      %792 = vmatpush1.msra.mxu0 %v359
      %793 = vmatprep.subr.mxu0 0.0
      %794 = vmatpush1.msra.mxu0 %v360
      %795 = vmatprep.subr.mxu0 0.0
      %796 = vmatpush1.msra.mxu0 %v361
      %797 = vmatprep.subr.mxu0 0.0
      %798 = vmatpush1.msra.mxu0 %v362
      %799 = vmatprep.subr.mxu0 0.0
      %800 = vmatpush1.msra.mxu0 %v363
      %801 = vmatprep.subr.mxu0 0.0
      %802 = vmatpush1.msra.mxu0 %v364
      %803 = vmatprep.subr.mxu0 0.0
      %804 = vmatpush1.msra.mxu0 %v365
      %805 = vmatprep.subr.mxu0 0.0
      %806 = vmatpush1.msra.mxu0 %v366
      %807 = vmatprep.subr.mxu0 0.0
      %808 = vmatpush1.msra.mxu0 %v367
      %809 = vmatprep.subr.mxu0 0.0
      %810 = vmatpush1.msra.mxu0 %v368
      %811 = vmatprep.subr.mxu0 0.0
      %812 = vmatpush1.msra.mxu0 %v369
      %813 = vmatprep.subr.mxu0 0.0
      %814 = vmatpush1.msra.mxu0 %v370
      %815 = vmatprep.subr.mxu0 0.0
      %816 = vmatpush1.msra.mxu0 %v371
      %817 = vmatprep.subr.mxu0 0.0
      %818 = vmatpush1.msra.mxu0 %v372
      %819 = vmatprep.subr.mxu0 0.0
      %820 = vmatpush1.msra.mxu0 %v373
      %821 = vmatprep.mubr.f32.mxu0 %v507
      %822 = vmatmul.mubr.f32.gmra.mrb[0].mxu0 %v505
      %v823 = vpop.f32.mrb[0].mxu0
      %v824 = vadd.f32 %v754, %v823
      %v825 = vpop.f32.mrb[0].mxu0
      %826 = vdwg.mxu0
      %827 = vmatprep.subr.mxu0 0.0
      %828 = vmatpush1.msra.mxu0 %v374
      %829 = vmatprep.subr.mxu0 0.0
      %830 = vmatpush1.msra.mxu0 %v375
      %831 = vmatprep.subr.mxu0 0.0
      %832 = vmatpush1.msra.mxu0 %v376
      %833 = vmatprep.subr.mxu0 0.0
      %834 = vmatpush1.msra.mxu0 %v377
      %835 = vmatprep.subr.mxu0 0.0
      %836 = vmatpush1.msra.mxu0 %v378
      %837 = vmatprep.subr.mxu0 0.0
      %838 = vmatpush1.msra.mxu0 %v379
      %839 = vmatprep.subr.mxu0 0.0
      %840 = vmatpush1.msra.mxu0 %v380
      %841 = vmatprep.subr.mxu0 0.0
      %842 = vmatpush1.msra.mxu0 %v381
      %843 = vmatprep.subr.mxu0 0.0
      %844 = vmatpush1.msra.mxu0 %v382
      %845 = vmatprep.subr.mxu0 0.0
      %846 = vmatpush1.msra.mxu0 %v383
      %847 = vmatprep.subr.mxu0 0.0
      %848 = vmatpush1.msra.mxu0 %v384
      %849 = vmatprep.subr.mxu0 0.0
      %850 = vmatpush1.msra.mxu0 %v385
      %851 = vmatprep.subr.mxu0 0.0
      %852 = vmatpush1.msra.mxu0 %v386
      %853 = vmatprep.subr.mxu0 0.0
      %854 = vmatpush1.msra.mxu0 %v387
      %855 = vmatprep.subr.mxu0 0.0
      %856 = vmatpush1.msra.mxu0 %v388
      %857 = vmatprep.subr.mxu0 0.0
      %858 = vmatpush1.msra.mxu0 %v389
      %859 = vmatprep.subr.mxu0 0.0
      %860 = vmatpush1.msra.mxu0 %v390
      %861 = vmatprep.subr.mxu0 0.0
      %862 = vmatpush1.msra.mxu0 %v391
      %863 = vmatprep.subr.mxu0 0.0
      %864 = vmatpush1.msra.mxu0 %v392
      %865 = vmatprep.subr.mxu0 0.0
      %866 = vmatpush1.msra.mxu0 %v393
      %867 = vmatprep.subr.mxu0 0.0
      %868 = vmatpush1.msra.mxu0 %v394
      %869 = vmatprep.subr.mxu0 0.0
      %870 = vmatpush1.msra.mxu0 %v395
      %871 = vmatprep.subr.mxu0 0.0
      %872 = vmatpush1.msra.mxu0 %v396
      %873 = vmatprep.subr.mxu0 0.0
      %874 = vmatpush1.msra.mxu0 %v397
      %875 = vmatprep.subr.mxu0 0.0
      %876 = vmatpush1.msra.mxu0 %v398
      %877 = vmatprep.subr.mxu0 0.0
      %878 = vmatpush1.msra.mxu0 %v399
      %879 = vmatprep.subr.mxu0 0.0
      %880 = vmatpush1.msra.mxu0 %v400
      %881 = vmatprep.subr.mxu0 0.0
      %882 = vmatpush1.msra.mxu0 %v401
      %883 = vmatprep.subr.mxu0 0.0
      %884 = vmatpush1.msra.mxu0 %v402
      %885 = vmatprep.subr.mxu0 0.0
      %886 = vmatpush1.msra.mxu0 %v403
      %887 = vmatprep.subr.mxu0 0.0
      %888 = vmatpush1.msra.mxu0 %v404
      %889 = vmatprep.subr.mxu0 0.0
      %890 = vmatpush1.msra.mxu0 %v405
      %891 = vmatprep.mubr.f32.mxu0 %v523
      %892 = vmatmul.mubr.f32.gmra.mrb[0].mxu0 %v515
      %v893 = vpop.f32.mrb[0].mxu0
      %v894 = vadd.f32 %v824, %v893
      %v895 = vpop.f32.mrb[0].mxu0
      %896 = vdwg.mxu0
      %897 = vmatprep.subr.mxu0 0.0
      %898 = vmatpush1.msra.mxu0 %v406
      %899 = vmatprep.subr.mxu0 0.0
      %900 = vmatpush1.msra.mxu0 %v407
      %901 = vmatprep.subr.mxu0 0.0
      %902 = vmatpush1.msra.mxu0 %v408
      %903 = vmatprep.subr.mxu0 0.0
      %904 = vmatpush1.msra.mxu0 %v409
      %905 = vmatprep.subr.mxu0 0.0
      %906 = vmatpush1.msra.mxu0 %v410
      %907 = vmatprep.subr.mxu0 0.0
      %908 = vmatpush1.msra.mxu0 %v411
      %909 = vmatprep.subr.mxu0 0.0
      %910 = vmatpush1.msra.mxu0 %v412
      %911 = vmatprep.subr.mxu0 0.0
      %912 = vmatpush1.msra.mxu0 %v413
      %913 = vmatprep.subr.mxu0 0.0
      %914 = vmatpush1.msra.mxu0 %v414
      %915 = vmatprep.subr.mxu0 0.0
      %916 = vmatpush1.msra.mxu0 %v415
      %917 = vmatprep.subr.mxu0 0.0
      %918 = vmatpush1.msra.mxu0 %v416
      %919 = vmatprep.subr.mxu0 0.0
      %920 = vmatpush1.msra.mxu0 %v417
      %921 = vmatprep.subr.mxu0 0.0
      %922 = vmatpush1.msra.mxu0 %v418
      %923 = vmatprep.subr.mxu0 0.0
      %924 = vmatpush1.msra.mxu0 %v419
      %925 = vmatprep.subr.mxu0 0.0
      %926 = vmatpush1.msra.mxu0 %v420
      %927 = vmatprep.subr.mxu0 0.0
      %928 = vmatpush1.msra.mxu0 %v421
      %929 = vmatprep.subr.mxu0 0.0
      %930 = vmatpush1.msra.mxu0 %v422
      %931 = vmatprep.subr.mxu0 0.0
      %932 = vmatpush1.msra.mxu0 %v423
      %933 = vmatprep.subr.mxu0 0.0
      %934 = vmatpush1.msra.mxu0 %v424
      %935 = vmatprep.subr.mxu0 0.0
      %936 = vmatpush1.msra.mxu0 %v425
      %937 = vmatprep.subr.mxu0 0.0
      %938 = vmatpush1.msra.mxu0 %v426
      %939 = vmatprep.subr.mxu0 0.0
      %940 = vmatpush1.msra.mxu0 %v427
      %941 = vmatprep.subr.mxu0 0.0
      %942 = vmatpush1.msra.mxu0 %v428
      %943 = vmatprep.subr.mxu0 0.0
      %944 = vmatpush1.msra.mxu0 %v429
      %945 = vmatprep.subr.mxu0 0.0
      %946 = vmatpush1.msra.mxu0 %v430
      %947 = vmatprep.subr.mxu0 0.0
      %948 = vmatpush1.msra.mxu0 %v431
      %949 = vmatprep.subr.mxu0 0.0
      %950 = vmatpush1.msra.mxu0 %v432
      %951 = vmatprep.subr.mxu0 0.0
      %952 = vmatpush1.msra.mxu0 %v433
      %953 = vmatprep.subr.mxu0 0.0
      %954 = vmatpush1.msra.mxu0 %v434
      %955 = vmatprep.subr.mxu0 0.0
      %956 = vmatpush1.msra.mxu0 %v435
      %957 = vmatprep.subr.mxu0 0.0
      %958 = vmatpush1.msra.mxu0 %v436
      %959 = vmatprep.subr.mxu0 0.0
      %960 = vmatpush1.msra.mxu0 %v437
      %961 = vmatprep.mubr.f32.mxu0 %v524
      %962 = vmatmul.mubr.f32.gmra.mrb[0].mxu0 %v522
      %v963 = vpop.f32.mrb[0].mxu0
      %v964 = vadd.f32 %v894, %v963
      %v965 = vpop.f32.mrb[0].mxu0
      %966 = vdwg.mxu0
      %967 = vmatprep.subr.mxu0 0.0
      %968 = vmatpush1.msra.mxu0 %v438
      %969 = vmatprep.subr.mxu0 0.0
      %970 = vmatpush1.msra.mxu0 %v439
      %971 = vmatprep.subr.mxu0 0.0
      %972 = vmatpush1.msra.mxu0 %v440
      %973 = vmatprep.subr.mxu0 0.0
      %974 = vmatpush1.msra.mxu0 %v441
      %975 = vmatprep.subr.mxu0 0.0
      %976 = vmatpush1.msra.mxu0 %v442
      %977 = vmatprep.subr.mxu0 0.0
      %978 = vmatpush1.msra.mxu0 %v443
      %979 = vmatprep.subr.mxu0 0.0
      %980 = vmatpush1.msra.mxu0 %v444
      %981 = vmatprep.subr.mxu0 0.0
      %982 = vmatpush1.msra.mxu0 %v445
      %983 = vmatprep.subr.mxu0 0.0
      %984 = vmatpush1.msra.mxu0 %v446
      %985 = vmatprep.subr.mxu0 0.0
      %986 = vmatpush1.msra.mxu0 %v447
      %987 = vmatprep.subr.mxu0 0.0
      %988 = vmatpush1.msra.mxu0 %v448
      %989 = vmatprep.subr.mxu0 0.0
      %990 = vmatpush1.msra.mxu0 %v449
      %991 = vmatprep.subr.mxu0 0.0
      %992 = vmatpush1.msra.mxu0 %v450
      %993 = vmatprep.subr.mxu0 0.0
      %994 = vmatpush1.msra.mxu0 %v451
      %995 = vmatprep.subr.mxu0 0.0
      %996 = vmatpush1.msra.mxu0 %v452
      %997 = vmatprep.subr.mxu0 0.0
      %998 = vmatpush1.msra.mxu0 %v453
      %999 = vmatprep.subr.mxu0 0.0
      %1000 = vmatpush1.msra.mxu0 %v454
      %1001 = vmatprep.subr.mxu0 0.0
      %1002 = vmatpush1.msra.mxu0 %v455
      %1003 = vmatprep.subr.mxu0 0.0
      %1004 = vmatpush1.msra.mxu0 %v456
      %1005 = vmatprep.subr.mxu0 0.0
      %1006 = vmatpush1.msra.mxu0 %v457
      %1007 = vmatprep.subr.mxu0 0.0
      %1008 = vmatpush1.msra.mxu0 %v458
      %1009 = vmatprep.subr.mxu0 0.0
      %1010 = vmatpush1.msra.mxu0 %v459
      %1011 = vmatprep.subr.mxu0 0.0
      %1012 = vmatpush1.msra.mxu0 %v460
      %1013 = vmatprep.subr.mxu0 0.0
      %1014 = vmatpush1.msra.mxu0 %v461
      %1015 = vmatprep.subr.mxu0 0.0
      %1016 = vmatpush1.msra.mxu0 %v462
      %1017 = vmatprep.subr.mxu0 0.0
      %1018 = vmatpush1.msra.mxu0 %v463
      %1019 = vmatprep.subr.mxu0 0.0
      %1020 = vmatpush1.msra.mxu0 %v464
      %1021 = vmatprep.subr.mxu0 0.0
      %1022 = vmatpush1.msra.mxu0 %v465
      %1023 = vmatprep.subr.mxu0 0.0
      %1024 = vmatpush1.msra.mxu0 %v466
      %1025 = vmatprep.subr.mxu0 0.0
      %1026 = vmatpush1.msra.mxu0 %v467
      %1027 = vmatprep.subr.mxu0 0.0
      %1028 = vmatpush1.msra.mxu0 %v468
      %1029 = vmatprep.subr.mxu0 0.0
      %1030 = vmatpush1.msra.mxu0 %v469
      %1031 = vmatprep.mubr.f32.mxu0 %v532
      %1032 = vmatmul.mubr.f32.gmra.mrb[0].mxu0 %v531
      %v1033 = vpop.f32.mrb[0].mxu0
      %v1034 = vadd.f32 %v964, %v1033
      %v1035 = vpop.f32.mrb[0].mxu0
      %1036 = vdwg.mxu0
      %v1037 = vadd.f32 %v241, %v1034
      %1038 = vst [vmem:[#allocation2] sm:$0x3] %v1037
      %p1039 = scmp.eq.s32.totalorder %s18, 6
      // Predicated region
      $region45: #{simple_binary_cnn_forward.9} parent=39 // pred_check
        %p1040 = pneg %p1039
      $region46: #{simple_binary_cnn_forward.9} parent=39 // pred_check_branch
        %1042 = sbr.rel (%p1040) target = $region48
      $region47: #{simple_binary_cnn_forward.9} parent=39 // pred_region
        %v1043 = vld [vmem:[#allocation2] sm:$0x3]
        %v1044 = vld [vmem:[%s2] sm:$0x1]
        %v1046 = vlaneseq
        %v1047 = vshrl.u32 %v1046, 7
        %v1048 = vsub.s32 0, %v1047
        %v1049 = vrot.slane %v1044, %v1048
        %v1051 = vadd.f32 %v1043, %v1049
        %v1052 = vmax.f32 %v1051, 0.0
        %v1053 = vld [vmem:[%s3] sm:$0x1]
        %v1055 = vlaneseq
        %v1056 = vshrl.u32 %v1055, 7
        %v1057 = vsub.s32 0, %v1056
        %v1058 = vrot.slane %v1053, %v1057
        %v1060 = vmul.f32 %v1052, %v1058
        %vm1061 = vcmask 1041408
        %v1062 = vsel %vm1061, %v1060, 0.0
        %1063 = vadd.xlane.f32.xlu0 %v1062
        %v1064 = vpop.xlane.xlu0 %1063
        %v1065 = vld [vmem:[#allocation3] sm:$0x1]
        %v1067 = vlaneseq
        %v1068 = vshrl.u32 %v1067, 7
        %v1069 = vsub.s32 0, %v1068
        %v1070 = vrot.slane %v1065, %v1069
        %v1072 = vadd.f32 %v1064, %v1070
        %v1073 = vsub.f32 0.0, %v1072
        %v1074 = vmul.f32 %v1073, 1.442695
        %v1075 = vpow.pop %v1074
        %v1076 = vadd.f32 %v1075, 1.0
        %v1077 = vrcp.pop %v1076
        %v1078 = vmul.f32 1.0, %v1077
        %vm1079 = vcmask 1024
        %1080 = vst.msk [vmem:[%s5] sm:$0x3] %vm1079, %v1078
      $region48: #{simple_binary_cnn_forward.9} parent=39 // pred_fallthru
        _
      // Predicated region
      $region49: #{simple_binary_cnn_forward.9} parent=39 // pred_check
        %p1081 = pneg %p146
      $region50: #{simple_binary_cnn_forward.9} parent=39 // pred_check_branch
        %1083 = sbr.rel (%p1081) target = $region52
      $region51: #{simple_binary_cnn_forward.9} parent=39 // pred_region
        _
      $region52: #{simple_binary_cnn_forward.9} parent=39 // pred_fallthru
        _
      // Predicated region
      $region53: #{simple_binary_cnn_forward.9} parent=39 // pred_check
        %p1084 = pneg %p146
      $region54: #{simple_binary_cnn_forward.9} parent=39 // pred_check_branch
        %1086 = sbr.rel (%p1084) target = $region56
      $region55: #{simple_binary_cnn_forward.9} parent=39 // pred_region
        _
      $region56: #{simple_binary_cnn_forward.9} parent=39 // pred_fallthru
        _
    $region40: #{simple_binary_cnn_forward.9} parent=5 // pred_fallthru
      _
    %p1087 = scmp.le.s32.totalorder 2, %s13
    // Predicated region
    $region57: #{simple_binary_cnn_forward.9} parent=5 // pred_check
      %p1088 = pneg %p1087
    $region58: #{simple_binary_cnn_forward.9} parent=5 // pred_check_branch
      %1090 = sbr.rel (%p1088) target = $region60
    $region59: #{simple_binary_cnn_forward.9} parent=5 // pred_region
      %s1091 = ssub.s32 %s13, 2
    $region60: #{simple_binary_cnn_forward.9} parent=5 // pred_fallthru
      _
  $region6: #{simple_binary_cnn_forward.9} parent=0 // loop_footer
    %s17 = sadd.s32 1, %s13
  $region7: #{simple_binary_cnn_forward.9} parent=0 // loop_footer_branch
    %12 = sbr.rel target = $region3
  $region8: #{simple_binary_cnn_forward.9} parent=0 // loop_exit
    _

</llo_original>
